<compile_context>
chip_gen: v7x
topology: tpu7x:2x2x1
jax: 0.10.0
libtpu: 0.0.40
codegen_flags: <defaults>
</compile_context>

<pallas_src>
import functools

import jax
import jax.numpy as jnp
from jax.experimental import pallas as pl
from jax.experimental.pallas import tpu as pltpu


HIDDEN = 32
LATENT = 4
SCALING_FACTOR = 0.18215

# Conservative per-call VMEM budget: v7x has 64 MiB/TC physical (32 MiB default
# scoped limit); v5e/v6e have 128 MiB.  Re-derived for the smallest target.
_VMEM_BUDGET = 32 * 1024 * 1024


# ---------------------------------------------------------------------------
# Pallas kernels
# ---------------------------------------------------------------------------
def _conv_taps_kernel(x_ref, w_ref, b_ref, o_ref, *, k, stride, ho, wo, act):
    """One batch element of a KxK conv; taps accumulated in-kernel (no im2col).

    x_ref : (1, s*s*Hq, Wq, Cin)  bf16 phase-packed padded input (VMEM resident)
    w_ref : (k, k, Cin, Cout)     bf16
    b_ref : (1, Cout)             f32
    o_ref : (1, Ho*Wo, Cout)
    """
    cin = x_ref.shape[-1]
    cout = o_ref.shape[-1]
    hq = x_ref.shape[1] // (stride * stride)
    m = ho * wo

    acc = jnp.zeros((m, cout), jnp.float32)
    for di in range(k):                      # static unroll: at most 9 taps
        for dj in range(k):
            ri, qi = di % stride, di // stride
            rj, qj = dj % stride, dj // stride
            p = ri * stride + rj
            patch = x_ref[0, p * hq + qi:p * hq + qi + ho, qj:qj + wo, :]
            acc = acc + jnp.dot(patch.reshape(m, cin), w_ref[di, dj],
                                preferred_element_type=jnp.float32)
    acc = acc + b_ref[...]
    if act == "silu":
        # exp -> EUP, approx reciprocal -> EUP: SiLU is near-free filler.
        acc = acc * pl.reciprocal(1.0 + jnp.exp(-acc), approx=True)
    o_ref[0] = acc.astype(o_ref.dtype)


def _conv_moments_sample_kernel(x_ref, w_ref, b_ref, eps_ref, o_ref, *,
                                k, stride, ho, wo):
    """Fused conv_out (+folded quant_conv) -> DiagonalGaussian.sample * scale."""
    cin = x_ref.shape[-1]
    hq = x_ref.shape[1] // (stride * stride)
    m = ho * wo

    acc = jnp.zeros((m, 2 * LATENT), jnp.float32)
    for di in range(k):
        for dj in range(k):
            ri, qi = di % stride, di // stride
            rj, qj = dj % stride, dj // stride
            p = ri * stride + rj
            patch = x_ref[0, p * hq + qi:p * hq + qi + ho, qj:qj + wo, :]
            acc = acc + jnp.dot(patch.reshape(m, cin), w_ref[di, dj],
                                preferred_element_type=jnp.float32)
    moments = acc + b_ref[...]
    mean = moments[:, :LATENT]
    logvar = jnp.clip(moments[:, LATENT:], -30.0, 20.0)
    std = jnp.exp(0.5 * logvar)
    o_ref[0] = ((mean + std * eps_ref[0]) * SCALING_FACTOR).astype(o_ref.dtype)


# ---------------------------------------------------------------------------
# Wrapper glue (plain JAX): pad + phase-pack so the kernel only needs dense
# unit-stride static slices (total bytes ~= padded input, NOT k*k im2col blowup)
# ---------------------------------------------------------------------------
def _phase_pack(x_nhwc, k, stride, pad):
    n, h, w, c = x_nhwc.shape
    ho = (h + 2 * pad - k) // stride + 1
    wo = (w + 2 * pad - k) // stride + 1
    q = (k - 1) // stride
    hq, wq = ho + q, wo + q
    xp = jnp.pad(x_nhwc, ((0, 0), (pad, pad), (pad, pad), (0, 0)))
    phases = []
    for ri in range(stride):
        for rj in range(stride):
            ph = xp[:, ri::stride, rj::stride, :]
            assert ph.shape[1] >= hq and ph.shape[2] >= wq, (
                "spatial dims must be even for stride-2 downsampling")
            phases.append(ph[:, :hq, :wq, :])
    xph = phases[0] if len(phases) == 1 else jnp.concatenate(phases, axis=1)
    return xph, (ho, wo, hq, wq)


def _vmem_check(*byte_counts):
    total = 2 * sum(byte_counts)          # double-buffered pipeline upper bound
    assert total < _VMEM_BUDGET, f"tile does not fit VMEM budget: {total} bytes"


def conv2d_pallas(x_nhwc, w_g, b, *, stride, pad, act=None,
                  out_dtype=jnp.bfloat16):
    """KxK conv on NHWC input.  w_g is GEMM layout (kH, kW, Cin, Cout) bf16."""
    k, _, cin, cout = w_g.shape
    xph, (ho, wo, hq, wq) = _phase_pack(x_nhwc.astype(jnp.bfloat16), k, stride, pad)
    n = xph.shape[0]
    m = ho * wo
    s2 = stride * stride

    _vmem_check(s2 * hq * wq * cin * 2, k * k * cin * cout * 2,
                m * cout * jnp.dtype(out_dtype).itemsize, m * cout * 4)

    kern = functools.partial(_conv_taps_kernel, k=k, stride=stride,
                             ho=ho, wo=wo, act=act)
    out = pl.pallas_call(
        kern,
        out_shape=jax.ShapeDtypeStruct((n, m, cout), out_dtype),
        grid=(n,),
        in_specs=[
            pl.BlockSpec((1, s2 * hq, wq, cin), lambda i: (i, 0, 0, 0)),
            pl.BlockSpec((k, k, cin, cout), lambda i: (0, 0, 0, 0)),
            pl.BlockSpec((1, cout), lambda i: (0, 0)),
        ],
        out_specs=pl.BlockSpec((1, m, cout), lambda i: (i, 0, 0)),
        compiler_params=pltpu.CompilerParams(
            dimension_semantics=("parallel",),
            vmem_limit_bytes=_VMEM_BUDGET,
        ),
    )(xph, w_g, b)
    return out.reshape(n, ho, wo, cout)


def conv_moments_sample_pallas(x_nhwc, w_g, b, eps, *, stride, pad):
    """Final conv (quant_conv folded in) fused with sample() * scaling_factor."""
    k, _, cin, _ = w_g.shape
    xph, (ho, wo, hq, wq) = _phase_pack(x_nhwc.astype(jnp.bfloat16), k, stride, pad)
    n = xph.shape[0]
    m = ho * wo
    s2 = stride * stride

    _vmem_check(s2 * hq * wq * cin * 2, k * k * cin * 2 * LATENT * 2,
                m * LATENT * 4, m * LATENT * 4, m * 2 * LATENT * 4)

    kern = functools.partial(_conv_moments_sample_kernel, k=k, stride=stride,
                             ho=ho, wo=wo)
    out = pl.pallas_call(
        kern,
        out_shape=jax.ShapeDtypeStruct((n, m, LATENT), jnp.float32),
        grid=(n,),
        in_specs=[
            pl.BlockSpec((1, s2 * hq, wq, cin), lambda i: (i, 0, 0, 0)),
            pl.BlockSpec((k, k, cin, 2 * LATENT), lambda i: (0, 0, 0, 0)),
            pl.BlockSpec((1, 2 * LATENT), lambda i: (0, 0)),
            pl.BlockSpec((1, m, LATENT), lambda i: (i, 0, 0)),
        ],
        out_specs=pl.BlockSpec((1, m, LATENT), lambda i: (i, 0, 0)),
        compiler_params=pltpu.CompilerParams(
            dimension_semantics=("parallel",),
            vmem_limit_bytes=_VMEM_BUDGET,
        ),
    )(xph, w_g, b, eps)
    return out.reshape(n, ho, wo, LATENT)


# ---------------------------------------------------------------------------
# Synthetic VAE parameters + one-time GEMM-layout preparation
# ---------------------------------------------------------------------------
def make_vae_params(key, in_ch=3):
    """Deterministic synthetic params in PyTorch conv layout (Cout,Cin,kH,kW)."""
    def conv_init(kk, cout, cin, ksize):
        kw_, kb_ = jax.random.split(kk)
        fan_in = cin * ksize * ksize
        w = jax.random.normal(kw_, (cout, cin, ksize, ksize), jnp.float32) / jnp.sqrt(fan_in)
        bb = 0.01 * jax.random.normal(kb_, (cout,), jnp.float32)
        return w, bb

    ks = jax.random.split(key, 5)
    return {
        "conv_in": conv_init(ks[0], HIDDEN, in_ch, 3),
        "down1": conv_init(ks[1], HIDDEN, HIDDEN, 3),
        "down2": conv_init(ks[2], HIDDEN, HIDDEN, 3),
        "conv_out": conv_init(ks[3], 2 * LATENT, HIDDEN, 3),
        "quant_conv": conv_init(ks[4], 2 * LATENT, 2 * LATENT, 1),
    }


def prepare_vae_params(p):
    """Hoisted, one-time relayout: (Cout,Cin,kH,kW) -> (kH,kW,Cin,Cout) bf16,
    bias -> (1,Cout) f32; quant_conv (1x1, no intermediate nonlinearity) is
    folded exactly into conv_out."""
    def prep(w, bb):
        wg = jnp.transpose(w, (2, 3, 1, 0)).astype(jnp.bfloat16)
        return wg, bb.reshape(1, -1).astype(jnp.float32)

    out = {name: prep(*p[name]) for name in ("conv_in", "down1", "down2")}

    w_out, b_out = p["conv_out"]
    w_q, b_q = p["quant_conv"]
    wq_mat = w_q[:, :, 0, 0].T                               # (C_mid, C_out)
    wg_out = jnp.transpose(w_out, (2, 3, 1, 0))              # (3,3,HIDDEN,2*LATENT)
    w_fold = jnp.einsum("ijab,bc->ijac", wg_out, wq_mat)     # exact fold
    b_fold = b_out @ wq_mat + b_q
    out["moments"] = (w_fold.astype(jnp.bfloat16),
                      b_fold.reshape(1, -1).astype(jnp.float32))
    return out


# ---------------------------------------------------------------------------
# VAE_encode forward
# ---------------------------------------------------------------------------
def vae_encode_forward(x_nchw, direction, prep_a2b, prep_b2a, noise_key):
    assert direction in ("a2b", "b2a")
    p = prep_a2b if direction == "a2b" else prep_b2a

    # NCHW -> NHWC
    x = jnp.transpose(x_nchw, (0, 2, 3, 1)).astype(jnp.float32)

    # encoder (conv stack, SiLU, two /2 downsamples); bf16 activations
    h = conv2d_pallas(x, *p["conv_in"], stride=1, pad=1, act="silu")
    h = conv2d_pallas(h, *p["down1"], stride=2, pad=1, act="silu")
    h = conv2d_pallas(h, *p["down2"], stride=2, pad=1, act="silu")

    # fused conv_out(+quant_conv) -> moments -> sample -> *scaling_factor
    n, hh, wh, _ = h.shape                    # final conv is 3x3 / stride 1 / pad 1
    eps = jax.random.normal(noise_key, (n, hh * wh, LATENT), jnp.float32)
    lat = conv_moments_sample_pallas(h, *p["moments"], eps, stride=1, pad=1)

    # NHWC -> NCHW (matches PyTorch output layout)
    return jnp.transpose(lat, (0, 3, 1, 2))


# ---------------------------------------------------------------------------
if __name__ == "__main__":
    key = jax.random.PRNGKey(0)
    k_x, k_a, k_b, k_noise = jax.random.split(key, 4)

    # small, PyTorch-consistent input: batch=2, RGB 16x16, NCHW
    x = jax.random.normal(k_x, (2, 3, 16, 16), jnp.float32)

    params_a2b = prepare_vae_params(make_vae_params(k_a))    # self.vae
    params_b2a = prepare_vae_params(make_vae_params(k_b))    # self.vae_b2a

    fwd = jax.jit(vae_encode_forward, static_argnames=("direction",))

    out = jax.block_until_ready(fwd(x, "a2b", params_a2b, params_b2a, k_noise))
    assert out.shape == (2, LATENT, 4, 4), out.shape
    assert bool(jnp.all(jnp.isfinite(out)))

    out_b = jax.block_until_ready(fwd(x, "b2a", params_a2b, params_b2a, k_noise))
    assert out_b.shape == (2, LATENT, 4, 4), out_b.shape

    print("KERNEL_OK")
</pallas_src>

<mosaic_0001>
module attributes {stable_mosaic.version = 11 : i64} {
  func.func @_conv_taps_kernel(%arg0: i32, %arg1: memref<1x18x18x3xbf16, #tpu.memory_space<vmem>>, %arg2: memref<3x3x3x32xbf16, #tpu.memory_space<vmem>>, %arg3: memref<1x32xf32, #tpu.memory_space<vmem>>, %arg4: memref<1x256x32xbf16, #tpu.memory_space<vmem>>) attributes {dimension_semantics = [#tpu.dimension_semantics<parallel>], iteration_bounds = array<i64: 2>, scalar_prefetch = 0 : i64, scratch_operands = 0 : i64, tpu.core_type = #tpu.core_type<tc>, window_params = [{transform_indices = @transform_0, window_bounds = array<i64: 1, 18, 18, 3>}, {pipeline_mode = #tpu.pipeline_mode<synchronous>, transform_indices = @transform_1, window_bounds = array<i64: 3, 3, 3, 32>}, {pipeline_mode = #tpu.pipeline_mode<synchronous>, transform_indices = @transform_2, window_bounds = array<i64: 1, 32>}, {transform_indices = @transform_3, window_bounds = array<i64: 1, 256, 32>}]} {
    %cst = arith.constant 0.000000e+00 : f32
    %0 = vector.broadcast %cst : f32 to vector<256x32xf32>
    %c0 = arith.constant 0 : index
    %c0_0 = arith.constant 0 : index
    %c0_1 = arith.constant 0 : index
    %c0_2 = arith.constant 0 : index
    %1 = vector.load %arg1[%c0, %c0_0, %c0_1, %c0_2] : memref<1x18x18x3xbf16, #tpu.memory_space<vmem>>, vector<1x16x16x3xbf16>
    %2 = vector.shape_cast %1 : vector<1x16x16x3xbf16> to vector<16x16x3xbf16>
    %3 = vector.shape_cast %2 : vector<16x16x3xbf16> to vector<256x3xbf16>
    %c0_3 = arith.constant 0 : index
    %c0_4 = arith.constant 0 : index
    %c0_5 = arith.constant 0 : index
    %c0_6 = arith.constant 0 : index
    %4 = vector.load %arg2[%c0_3, %c0_4, %c0_5, %c0_6] : memref<3x3x3x32xbf16, #tpu.memory_space<vmem>>, vector<1x1x3x32xbf16>
    %5 = vector.shape_cast %4 : vector<1x1x3x32xbf16> to vector<3x32xbf16>
    %cst_7 = arith.constant dense<0.000000e+00> : vector<256x32xf32>
    %6 = tpu.matmul %3, %5, %cst_7 {dimension_numbers = #tpu.dot_dimension_numbers<[1], [0], [0], [1], [0, 0, 1, 1], [], []>} : vector<256x3xbf16>, vector<3x32xbf16>, vector<256x32xf32> -> vector<256x32xf32>
    %7 = arith.addf %0, %6 : vector<256x32xf32>
    %c0_8 = arith.constant 0 : index
    %c0_9 = arith.constant 0 : index
    %c1 = arith.constant 1 : index
    %c0_10 = arith.constant 0 : index
    %8 = vector.load %arg1[%c0_8, %c0_9, %c1, %c0_10] : memref<1x18x18x3xbf16, #tpu.memory_space<vmem>>, vector<1x16x16x3xbf16>
    %9 = vector.shape_cast %8 : vector<1x16x16x3xbf16> to vector<16x16x3xbf16>
    %10 = vector.shape_cast %9 : vector<16x16x3xbf16> to vector<256x3xbf16>
    %c0_11 = arith.constant 0 : index
    %c1_12 = arith.constant 1 : index
    %c0_13 = arith.constant 0 : index
    %c0_14 = arith.constant 0 : index
    %11 = vector.load %arg2[%c0_11, %c1_12, %c0_13, %c0_14] : memref<3x3x3x32xbf16, #tpu.memory_space<vmem>>, vector<1x1x3x32xbf16>
    %12 = vector.shape_cast %11 : vector<1x1x3x32xbf16> to vector<3x32xbf16>
    %cst_15 = arith.constant dense<0.000000e+00> : vector<256x32xf32>
    %13 = tpu.matmul %10, %12, %cst_15 {dimension_numbers = #tpu.dot_dimension_numbers<[1], [0], [0], [1], [0, 0, 1, 1], [], []>} : vector<256x3xbf16>, vector<3x32xbf16>, vector<256x32xf32> -> vector<256x32xf32>
    %14 = arith.addf %7, %13 : vector<256x32xf32>
    %c0_16 = arith.constant 0 : index
    %c0_17 = arith.constant 0 : index
    %c2 = arith.constant 2 : index
    %c0_18 = arith.constant 0 : index
    %15 = vector.load %arg1[%c0_16, %c0_17, %c2, %c0_18] : memref<1x18x18x3xbf16, #tpu.memory_space<vmem>>, vector<1x16x16x3xbf16>
    %16 = vector.shape_cast %15 : vector<1x16x16x3xbf16> to vector<16x16x3xbf16>
    %17 = vector.shape_cast %16 : vector<16x16x3xbf16> to vector<256x3xbf16>
    %c0_19 = arith.constant 0 : index
    %c2_20 = arith.constant 2 : index
    %c0_21 = arith.constant 0 : index
    %c0_22 = arith.constant 0 : index
    %18 = vector.load %arg2[%c0_19, %c2_20, %c0_21, %c0_22] : memref<3x3x3x32xbf16, #tpu.memory_space<vmem>>, vector<1x1x3x32xbf16>
    %19 = vector.shape_cast %18 : vector<1x1x3x32xbf16> to vector<3x32xbf16>
    %cst_23 = arith.constant dense<0.000000e+00> : vector<256x32xf32>
    %20 = tpu.matmul %17, %19, %cst_23 {dimension_numbers = #tpu.dot_dimension_numbers<[1], [0], [0], [1], [0, 0, 1, 1], [], []>} : vector<256x3xbf16>, vector<3x32xbf16>, vector<256x32xf32> -> vector<256x32xf32>
    %21 = arith.addf %14, %20 : vector<256x32xf32>
    %c0_24 = arith.constant 0 : index
    %c1_25 = arith.constant 1 : index
    %c0_26 = arith.constant 0 : index
    %c0_27 = arith.constant 0 : index
    %22 = vector.load %arg1[%c0_24, %c1_25, %c0_26, %c0_27] : memref<1x18x18x3xbf16, #tpu.memory_space<vmem>>, vector<1x16x16x3xbf16>
    %23 = vector.shape_cast %22 : vector<1x16x16x3xbf16> to vector<16x16x3xbf16>
    %24 = vector.shape_cast %23 : vector<16x16x3xbf16> to vector<256x3xbf16>
    %c1_28 = arith.constant 1 : index
    %c0_29 = arith.constant 0 : index
    %c0_30 = arith.constant 0 : index
    %c0_31 = arith.constant 0 : index
    %25 = vector.load %arg2[%c1_28, %c0_29, %c0_30, %c0_31] : memref<3x3x3x32xbf16, #tpu.memory_space<vmem>>, vector<1x1x3x32xbf16>
    %26 = vector.shape_cast %25 : vector<1x1x3x32xbf16> to vector<3x32xbf16>
    %cst_32 = arith.constant dense<0.000000e+00> : vector<256x32xf32>
    %27 = tpu.matmul %24, %26, %cst_32 {dimension_numbers = #tpu.dot_dimension_numbers<[1], [0], [0], [1], [0, 0, 1, 1], [], []>} : vector<256x3xbf16>, vector<3x32xbf16>, vector<256x32xf32> -> vector<256x32xf32>
    %28 = arith.addf %21, %27 : vector<256x32xf32>
    %c0_33 = arith.constant 0 : index
    %c1_34 = arith.constant 1 : index
    %c1_35 = arith.constant 1 : index
    %c0_36 = arith.constant 0 : index
    %29 = vector.load %arg1[%c0_33, %c1_34, %c1_35, %c0_36] : memref<1x18x18x3xbf16, #tpu.memory_space<vmem>>, vector<1x16x16x3xbf16>
    %30 = vector.shape_cast %29 : vector<1x16x16x3xbf16> to vector<16x16x3xbf16>
    %31 = vector.shape_cast %30 : vector<16x16x3xbf16> to vector<256x3xbf16>
    %c1_37 = arith.constant 1 : index
    %c1_38 = arith.constant 1 : index
    %c0_39 = arith.constant 0 : index
    %c0_40 = arith.constant 0 : index
    %32 = vector.load %arg2[%c1_37, %c1_38, %c0_39, %c0_40] : memref<3x3x3x32xbf16, #tpu.memory_space<vmem>>, vector<1x1x3x32xbf16>
    %33 = vector.shape_cast %32 : vector<1x1x3x32xbf16> to vector<3x32xbf16>
    %cst_41 = arith.constant dense<0.000000e+00> : vector<256x32xf32>
    %34 = tpu.matmul %31, %33, %cst_41 {dimension_numbers = #tpu.dot_dimension_numbers<[1], [0], [0], [1], [0, 0, 1, 1], [], []>} : vector<256x3xbf16>, vector<3x32xbf16>, vector<256x32xf32> -> vector<256x32xf32>
    %35 = arith.addf %28, %34 : vector<256x32xf32>
    %c0_42 = arith.constant 0 : index
    %c1_43 = arith.constant 1 : index
    %c2_44 = arith.constant 2 : index
    %c0_45 = arith.constant 0 : index
    %36 = vector.load %arg1[%c0_42, %c1_43, %c2_44, %c0_45] : memref<1x18x18x3xbf16, #tpu.memory_space<vmem>>, vector<1x16x16x3xbf16>
    %37 = vector.shape_cast %36 : vector<1x16x16x3xbf16> to vector<16x16x3xbf16>
    %38 = vector.shape_cast %37 : vector<16x16x3xbf16> to vector<256x3xbf16>
    %c1_46 = arith.constant 1 : index
    %c2_47 = arith.constant 2 : index
    %c0_48 = arith.constant 0 : index
    %c0_49 = arith.constant 0 : index
    %39 = vector.load %arg2[%c1_46, %c2_47, %c0_48, %c0_49] : memref<3x3x3x32xbf16, #tpu.memory_space<vmem>>, vector<1x1x3x32xbf16>
    %40 = vector.shape_cast %39 : vector<1x1x3x32xbf16> to vector<3x32xbf16>
    %cst_50 = arith.constant dense<0.000000e+00> : vector<256x32xf32>
    %41 = tpu.matmul %38, %40, %cst_50 {dimension_numbers = #tpu.dot_dimension_numbers<[1], [0], [0], [1], [0, 0, 1, 1], [], []>} : vector<256x3xbf16>, vector<3x32xbf16>, vector<256x32xf32> -> vector<256x32xf32>
    %42 = arith.addf %35, %41 : vector<256x32xf32>
    %c0_51 = arith.constant 0 : index
    %c2_52 = arith.constant 2 : index
    %c0_53 = arith.constant 0 : index
    %c0_54 = arith.constant 0 : index
    %43 = vector.load %arg1[%c0_51, %c2_52, %c0_53, %c0_54] : memref<1x18x18x3xbf16, #tpu.memory_space<vmem>>, vector<1x16x16x3xbf16>
    %44 = vector.shape_cast %43 : vector<1x16x16x3xbf16> to vector<16x16x3xbf16>
    %45 = vector.shape_cast %44 : vector<16x16x3xbf16> to vector<256x3xbf16>
    %c2_55 = arith.constant 2 : index
    %c0_56 = arith.constant 0 : index
    %c0_57 = arith.constant 0 : index
    %c0_58 = arith.constant 0 : index
    %46 = vector.load %arg2[%c2_55, %c0_56, %c0_57, %c0_58] : memref<3x3x3x32xbf16, #tpu.memory_space<vmem>>, vector<1x1x3x32xbf16>
    %47 = vector.shape_cast %46 : vector<1x1x3x32xbf16> to vector<3x32xbf16>
    %cst_59 = arith.constant dense<0.000000e+00> : vector<256x32xf32>
    %48 = tpu.matmul %45, %47, %cst_59 {dimension_numbers = #tpu.dot_dimension_numbers<[1], [0], [0], [1], [0, 0, 1, 1], [], []>} : vector<256x3xbf16>, vector<3x32xbf16>, vector<256x32xf32> -> vector<256x32xf32>
    %49 = arith.addf %42, %48 : vector<256x32xf32>
    %c0_60 = arith.constant 0 : index
    %c2_61 = arith.constant 2 : index
    %c1_62 = arith.constant 1 : index
    %c0_63 = arith.constant 0 : index
    %50 = vector.load %arg1[%c0_60, %c2_61, %c1_62, %c0_63] : memref<1x18x18x3xbf16, #tpu.memory_space<vmem>>, vector<1x16x16x3xbf16>
    %51 = vector.shape_cast %50 : vector<1x16x16x3xbf16> to vector<16x16x3xbf16>
    %52 = vector.shape_cast %51 : vector<16x16x3xbf16> to vector<256x3xbf16>
    %c2_64 = arith.constant 2 : index
    %c1_65 = arith.constant 1 : index
    %c0_66 = arith.constant 0 : index
    %c0_67 = arith.constant 0 : index
    %53 = vector.load %arg2[%c2_64, %c1_65, %c0_66, %c0_67] : memref<3x3x3x32xbf16, #tpu.memory_space<vmem>>, vector<1x1x3x32xbf16>
    %54 = vector.shape_cast %53 : vector<1x1x3x32xbf16> to vector<3x32xbf16>
    %cst_68 = arith.constant dense<0.000000e+00> : vector<256x32xf32>
    %55 = tpu.matmul %52, %54, %cst_68 {dimension_numbers = #tpu.dot_dimension_numbers<[1], [0], [0], [1], [0, 0, 1, 1], [], []>} : vector<256x3xbf16>, vector<3x32xbf16>, vector<256x32xf32> -> vector<256x32xf32>
    %56 = arith.addf %49, %55 : vector<256x32xf32>
    %c0_69 = arith.constant 0 : index
    %c2_70 = arith.constant 2 : index
    %c2_71 = arith.constant 2 : index
    %c0_72 = arith.constant 0 : index
    %57 = vector.load %arg1[%c0_69, %c2_70, %c2_71, %c0_72] : memref<1x18x18x3xbf16, #tpu.memory_space<vmem>>, vector<1x16x16x3xbf16>
    %58 = vector.shape_cast %57 : vector<1x16x16x3xbf16> to vector<16x16x3xbf16>
    %59 = vector.shape_cast %58 : vector<16x16x3xbf16> to vector<256x3xbf16>
    %c2_73 = arith.constant 2 : index
    %c2_74 = arith.constant 2 : index
    %c0_75 = arith.constant 0 : index
    %c0_76 = arith.constant 0 : index
    %60 = vector.load %arg2[%c2_73, %c2_74, %c0_75, %c0_76] : memref<3x3x3x32xbf16, #tpu.memory_space<vmem>>, vector<1x1x3x32xbf16>
    %61 = vector.shape_cast %60 : vector<1x1x3x32xbf16> to vector<3x32xbf16>
    %cst_77 = arith.constant dense<0.000000e+00> : vector<256x32xf32>
    %62 = tpu.matmul %59, %61, %cst_77 {dimension_numbers = #tpu.dot_dimension_numbers<[1], [0], [0], [1], [0, 0, 1, 1], [], []>} : vector<256x3xbf16>, vector<3x32xbf16>, vector<256x32xf32> -> vector<256x32xf32>
    %63 = arith.addf %56, %62 : vector<256x32xf32>
    %c0_78 = arith.constant 0 : index
    %c0_79 = arith.constant 0 : index
    %64 = vector.load %arg3[%c0_78, %c0_79] : memref<1x32xf32, #tpu.memory_space<vmem>>, vector<1x32xf32>
    %65 = vector.broadcast %64 : vector<1x32xf32> to vector<256x32xf32>
    %66 = arith.addf %63, %65 : vector<256x32xf32>
    %cst_80 = arith.constant 0.000000e+00 : f32
    %67 = vector.broadcast %cst_80 : f32 to vector<256x32xf32>
    %68 = arith.subf %67, %66 : vector<256x32xf32>
    %69 = math.exp %68 : vector<256x32xf32>
    %cst_81 = arith.constant 1.000000e+00 : f32
    %70 = vector.broadcast %cst_81 : f32 to vector<256x32xf32>
    %71 = arith.addf %70, %69 : vector<256x32xf32>
    %72 = tpu.reciprocal %71 {approx = true} : vector<256x32xf32> -> vector<256x32xf32>
    %73 = arith.mulf %66, %72 : vector<256x32xf32>
    %74 = arith.truncf %73 : vector<256x32xf32> to vector<256x32xbf16>
    %c0_82 = arith.constant 0 : index
    %c0_83 = arith.constant 0 : index
    %c0_84 = arith.constant 0 : index
    %75 = vector.load %arg4[%c0_82, %c0_83, %c0_84] : memref<1x256x32xbf16, #tpu.memory_space<vmem>>, vector<1x256x32xbf16>
    %76 = vector.shape_cast %75 : vector<1x256x32xbf16> to vector<256x32xbf16>
    %77 = vector.shape_cast %74 : vector<256x32xbf16> to vector<1x256x32xbf16>
    tpu.vector_store %arg4[%c0_82, %c0_83, %c0_84], %77 {strides = array<i32>} : memref<1x256x32xbf16, #tpu.memory_space<vmem>>, vector<1x256x32xbf16>,
    return
  }
  func.func @transform_0(%arg0: i32) -> (i32, i32, i32, i32) {
    %c0_i32 = arith.constant 0 : i32
    %c0_i32_0 = arith.constant 0 : i32
    %c0_i32_1 = arith.constant 0 : i32
    %c0_i32_2 = arith.constant 0 : i32
    return %arg0, %c0_i32, %c0_i32_0, %c0_i32_1 : i32, i32, i32, i32
  }
  func.func @transform_1(%arg0: i32) -> (i32, i32, i32, i32) {
    %c0_i32 = arith.constant 0 : i32
    %c0_i32_0 = arith.constant 0 : i32
    %c0_i32_1 = arith.constant 0 : i32
    %c0_i32_2 = arith.constant 0 : i32
    %c0_i32_3 = arith.constant 0 : i32
    return %c0_i32, %c0_i32_0, %c0_i32_1, %c0_i32_2 : i32, i32, i32, i32
  }
  func.func @transform_2(%arg0: i32) -> (i32, i32) {
    %c0_i32 = arith.constant 0 : i32
    %c0_i32_0 = arith.constant 0 : i32
    %c0_i32_1 = arith.constant 0 : i32
    return %c0_i32, %c0_i32_0 : i32, i32
  }
  func.func @transform_3(%arg0: i32) -> (i32, i32, i32) {
    %c0_i32 = arith.constant 0 : i32
    %c0_i32_0 = arith.constant 0 : i32
    %c0_i32_1 = arith.constant 0 : i32
    return %arg0, %c0_i32, %c0_i32_0 : i32, i32, i32
  }
}

module attributes {stable_mosaic.version = 11 : i64} {
  func.func @_conv_taps_kernel(%arg0: i32, %arg1: memref<1x20x5x32xbf16, #tpu.memory_space<vmem>>, %arg2: memref<3x3x32x32xbf16, #tpu.memory_space<vmem>>, %arg3: memref<1x32xf32, #tpu.memory_space<vmem>>, %arg4: memref<1x16x32xbf16, #tpu.memory_space<vmem>>) attributes {dimension_semantics = [#tpu.dimension_semantics<parallel>], iteration_bounds = array<i64: 2>, scalar_prefetch = 0 : i64, scratch_operands = 0 : i64, tpu.core_type = #tpu.core_type<tc>, window_params = [{transform_indices = @transform_0, window_bounds = array<i64: 1, 20, 5, 32>}, {pipeline_mode = #tpu.pipeline_mode<synchronous>, transform_indices = @transform_1, window_bounds = array<i64: 3, 3, 32, 32>}, {pipeline_mode = #tpu.pipeline_mode<synchronous>, transform_indices = @transform_2, window_bounds = array<i64: 1, 32>}, {transform_indices = @transform_3, window_bounds = array<i64: 1, 16, 32>}]} {
    %cst = arith.constant 0.000000e+00 : f32
    %0 = vector.broadcast %cst : f32 to vector<16x32xf32>
    %c0 = arith.constant 0 : index
    %c0_0 = arith.constant 0 : index
    %c0_1 = arith.constant 0 : index
    %c0_2 = arith.constant 0 : index
    %1 = vector.load %arg1[%c0, %c0_0, %c0_1, %c0_2] : memref<1x20x5x32xbf16, #tpu.memory_space<vmem>>, vector<1x4x4x32xbf16>
    %2 = vector.shape_cast %1 : vector<1x4x4x32xbf16> to vector<4x4x32xbf16>
    %3 = vector.shape_cast %2 : vector<4x4x32xbf16> to vector<16x32xbf16>
    %c0_3 = arith.constant 0 : index
    %c0_4 = arith.constant 0 : index
    %c0_5 = arith.constant 0 : index
    %c0_6 = arith.constant 0 : index
    %4 = vector.load %arg2[%c0_3, %c0_4, %c0_5, %c0_6] : memref<3x3x32x32xbf16, #tpu.memory_space<vmem>>, vector<1x1x32x32xbf16>
    %5 = vector.shape_cast %4 : vector<1x1x32x32xbf16> to vector<32x32xbf16>
    %cst_7 = arith.constant dense<0.000000e+00> : vector<16x32xf32>
    %6 = tpu.matmul %3, %5, %cst_7 {dimension_numbers = #tpu.dot_dimension_numbers<[1], [0], [0], [1], [0, 0, 1, 1], [], []>} : vector<16x32xbf16>, vector<32x32xbf16>, vector<16x32xf32> -> vector<16x32xf32>
    %7 = arith.addf %0, %6 : vector<16x32xf32>
    %c0_8 = arith.constant 0 : index
    %c5 = arith.constant 5 : index
    %c0_9 = arith.constant 0 : index
    %c0_10 = arith.constant 0 : index
    %8 = vector.load %arg1[%c0_8, %c5, %c0_9, %c0_10] : memref<1x20x5x32xbf16, #tpu.memory_space<vmem>>, vector<1x4x4x32xbf16>
    %9 = vector.shape_cast %8 : vector<1x4x4x32xbf16> to vector<4x4x32xbf16>
    %10 = vector.shape_cast %9 : vector<4x4x32xbf16> to vector<16x32xbf16>
    %c0_11 = arith.constant 0 : index
    %c1 = arith.constant 1 : index
    %c0_12 = arith.constant 0 : index
    %c0_13 = arith.constant 0 : index
    %11 = vector.load %arg2[%c0_11, %c1, %c0_12, %c0_13] : memref<3x3x32x32xbf16, #tpu.memory_space<vmem>>, vector<1x1x32x32xbf16>
    %12 = vector.shape_cast %11 : vector<1x1x32x32xbf16> to vector<32x32xbf16>
    %cst_14 = arith.constant dense<0.000000e+00> : vector<16x32xf32>
    %13 = tpu.matmul %10, %12, %cst_14 {dimension_numbers = #tpu.dot_dimension_numbers<[1], [0], [0], [1], [0, 0, 1, 1], [], []>} : vector<16x32xbf16>, vector<32x32xbf16>, vector<16x32xf32> -> vector<16x32xf32>
    %14 = arith.addf %7, %13 : vector<16x32xf32>
    %c0_15 = arith.constant 0 : index
    %c0_16 = arith.constant 0 : index
    %c1_17 = arith.constant 1 : index
    %c0_18 = arith.constant 0 : index
    %15 = vector.load %arg1[%c0_15, %c0_16, %c1_17, %c0_18] : memref<1x20x5x32xbf16, #tpu.memory_space<vmem>>, vector<1x4x4x32xbf16>
    %16 = vector.shape_cast %15 : vector<1x4x4x32xbf16> to vector<4x4x32xbf16>
    %17 = vector.shape_cast %16 : vector<4x4x32xbf16> to vector<16x32xbf16>
    %c0_19 = arith.constant 0 : index
    %c2 = arith.constant 2 : index
    %c0_20 = arith.constant 0 : index
    %c0_21 = arith.constant 0 : index
    %18 = vector.load %arg2[%c0_19, %c2, %c0_20, %c0_21] : memref<3x3x32x32xbf16, #tpu.memory_space<vmem>>, vector<1x1x32x32xbf16>
    %19 = vector.shape_cast %18 : vector<1x1x32x32xbf16> to vector<32x32xbf16>
    %cst_22 = arith.constant dense<0.000000e+00> : vector<16x32xf32>
    %20 = tpu.matmul %17, %19, %cst_22 {dimension_numbers = #tpu.dot_dimension_numbers<[1], [0], [0], [1], [0, 0, 1, 1], [], []>} : vector<16x32xbf16>, vector<32x32xbf16>, vector<16x32xf32> -> vector<16x32xf32>
    %21 = arith.addf %14, %20 : vector<16x32xf32>
    %c0_23 = arith.constant 0 : index
    %c10 = arith.constant 10 : index
    %c0_24 = arith.constant 0 : index
    %c0_25 = arith.constant 0 : index
    %22 = vector.load %arg1[%c0_23, %c10, %c0_24, %c0_25] : memref<1x20x5x32xbf16, #tpu.memory_space<vmem>>, vector<1x4x4x32xbf16>
    %23 = vector.shape_cast %22 : vector<1x4x4x32xbf16> to vector<4x4x32xbf16>
    %24 = vector.shape_cast %23 : vector<4x4x32xbf16> to vector<16x32xbf16>
    %c1_26 = arith.constant 1 : index
    %c0_27 = arith.constant 0 : index
    %c0_28 = arith.constant 0 : index
    %c0_29 = arith.constant 0 : index
    %25 = vector.load %arg2[%c1_26, %c0_27, %c0_28, %c0_29] : memref<3x3x32x32xbf16, #tpu.memory_space<vmem>>, vector<1x1x32x32xbf16>
    %26 = vector.shape_cast %25 : vector<1x1x32x32xbf16> to vector<32x32xbf16>
    %cst_30 = arith.constant dense<0.000000e+00> : vector<16x32xf32>
    %27 = tpu.matmul %24, %26, %cst_30 {dimension_numbers = #tpu.dot_dimension_numbers<[1], [0], [0], [1], [0, 0, 1, 1], [], []>} : vector<16x32xbf16>, vector<32x32xbf16>, vector<16x32xf32> -> vector<16x32xf32>
    %28 = arith.addf %21, %27 : vector<16x32xf32>
    %c0_31 = arith.constant 0 : index
    %c15 = arith.constant 15 : index
    %c0_32 = arith.constant 0 : index
    %c0_33 = arith.constant 0 : index
    %29 = vector.load %arg1[%c0_31, %c15, %c0_32, %c0_33] : memref<1x20x5x32xbf16, #tpu.memory_space<vmem>>, vector<1x4x4x32xbf16>
    %30 = vector.shape_cast %29 : vector<1x4x4x32xbf16> to vector<4x4x32xbf16>
    %31 = vector.shape_cast %30 : vector<4x4x32xbf16> to vector<16x32xbf16>
    %c1_34 = arith.constant 1 : index
    %c1_35 = arith.constant 1 : index
    %c0_36 = arith.constant 0 : index
    %c0_37 = arith.constant 0 : index
    %32 = vector.load %arg2[%c1_34, %c1_35, %c0_36, %c0_37] : memref<3x3x32x32xbf16, #tpu.memory_space<vmem>>, vector<1x1x32x32xbf16>
    %33 = vector.shape_cast %32 : vector<1x1x32x32xbf16> to vector<32x32xbf16>
    %cst_38 = arith.constant dense<0.000000e+00> : vector<16x32xf32>
    %34 = tpu.matmul %31, %33, %cst_38 {dimension_numbers = #tpu.dot_dimension_numbers<[1], [0], [0], [1], [0, 0, 1, 1], [], []>} : vector<16x32xbf16>, vector<32x32xbf16>, vector<16x32xf32> -> vector<16x32xf32>
    %35 = arith.addf %28, %34 : vector<16x32xf32>
    %c0_39 = arith.constant 0 : index
    %c10_40 = arith.constant 10 : index
    %c1_41 = arith.constant 1 : index
    %c0_42 = arith.constant 0 : index
    %36 = vector.load %arg1[%c0_39, %c10_40, %c1_41, %c0_42] : memref<1x20x5x32xbf16, #tpu.memory_space<vmem>>, vector<1x4x4x32xbf16>
    %37 = vector.shape_cast %36 : vector<1x4x4x32xbf16> to vector<4x4x32xbf16>
    %38 = vector.shape_cast %37 : vector<4x4x32xbf16> to vector<16x32xbf16>
    %c1_43 = arith.constant 1 : index
    %c2_44 = arith.constant 2 : index
    %c0_45 = arith.constant 0 : index
    %c0_46 = arith.constant 0 : index
    %39 = vector.load %arg2[%c1_43, %c2_44, %c0_45, %c0_46] : memref<3x3x32x32xbf16, #tpu.memory_space<vmem>>, vector<1x1x32x32xbf16>
    %40 = vector.shape_cast %39 : vector<1x1x32x32xbf16> to vector<32x32xbf16>
    %cst_47 = arith.constant dense<0.000000e+00> : vector<16x32xf32>
    %41 = tpu.matmul %38, %40, %cst_47 {dimension_numbers = #tpu.dot_dimension_numbers<[1], [0], [0], [1], [0, 0, 1, 1], [], []>} : vector<16x32xbf16>, vector<32x32xbf16>, vector<16x32xf32> -> vector<16x32xf32>
    %42 = arith.addf %35, %41 : vector<16x32xf32>
    %c0_48 = arith.constant 0 : index
    %c1_49 = arith.constant 1 : index
    %c0_50 = arith.constant 0 : index
    %c0_51 = arith.constant 0 : index
    %43 = vector.load %arg1[%c0_48, %c1_49, %c0_50, %c0_51] : memref<1x20x5x32xbf16, #tpu.memory_space<vmem>>, vector<1x4x4x32xbf16>
    %44 = vector.shape_cast %43 : vector<1x4x4x32xbf16> to vector<4x4x32xbf16>
    %45 = vector.shape_cast %44 : vector<4x4x32xbf16> to vector<16x32xbf16>
    %c2_52 = arith.constant 2 : index
    %c0_53 = arith.constant 0 : index
    %c0_54 = arith.constant 0 : index
    %c0_55 = arith.constant 0 : index
    %46 = vector.load %arg2[%c2_52, %c0_53, %c0_54, %c0_55] : memref<3x3x32x32xbf16, #tpu.memory_space<vmem>>, vector<1x1x32x32xbf16>
    %47 = vector.shape_cast %46 : vector<1x1x32x32xbf16> to vector<32x32xbf16>
    %cst_56 = arith.constant dense<0.000000e+00> : vector<16x32xf32>
    %48 = tpu.matmul %45, %47, %cst_56 {dimension_numbers = #tpu.dot_dimension_numbers<[1], [0], [0], [1], [0, 0, 1, 1], [], []>} : vector<16x32xbf16>, vector<32x32xbf16>, vector<16x32xf32> -> vector<16x32xf32>
    %49 = arith.addf %42, %48 : vector<16x32xf32>
    %c0_57 = arith.constant 0 : index
    %c6 = arith.constant 6 : index
    %c0_58 = arith.constant 0 : index
    %c0_59 = arith.constant 0 : index
    %50 = vector.load %arg1[%c0_57, %c6, %c0_58, %c0_59] : memref<1x20x5x32xbf16, #tpu.memory_space<vmem>>, vector<1x4x4x32xbf16>
    %51 = vector.shape_cast %50 : vector<1x4x4x32xbf16> to vector<4x4x32xbf16>
    %52 = vector.shape_cast %51 : vector<4x4x32xbf16> to vector<16x32xbf16>
    %c2_60 = arith.constant 2 : index
    %c1_61 = arith.constant 1 : index
    %c0_62 = arith.constant 0 : index
    %c0_63 = arith.constant 0 : index
    %53 = vector.load %arg2[%c2_60, %c1_61, %c0_62, %c0_63] : memref<3x3x32x32xbf16, #tpu.memory_space<vmem>>, vector<1x1x32x32xbf16>
    %54 = vector.shape_cast %53 : vector<1x1x32x32xbf16> to vector<32x32xbf16>
    %cst_64 = arith.constant dense<0.000000e+00> : vector<16x32xf32>
    %55 = tpu.matmul %52, %54, %cst_64 {dimension_numbers = #tpu.dot_dimension_numbers<[1], [0], [0], [1], [0, 0, 1, 1], [], []>} : vector<16x32xbf16>, vector<32x32xbf16>, vector<16x32xf32> -> vector<16x32xf32>
    %56 = arith.addf %49, %55 : vector<16x32xf32>
    %c0_65 = arith.constant 0 : index
    %c1_66 = arith.constant 1 : index
    %c1_67 = arith.constant 1 : index
    %c0_68 = arith.constant 0 : index
    %57 = vector.load %arg1[%c0_65, %c1_66, %c1_67, %c0_68] : memref<1x20x5x32xbf16, #tpu.memory_space<vmem>>, vector<1x4x4x32xbf16>
    %58 = vector.shape_cast %57 : vector<1x4x4x32xbf16> to vector<4x4x32xbf16>
    %59 = vector.shape_cast %58 : vector<4x4x32xbf16> to vector<16x32xbf16>
    %c2_69 = arith.constant 2 : index
    %c2_70 = arith.constant 2 : index
    %c0_71 = arith.constant 0 : index
    %c0_72 = arith.constant 0 : index
    %60 = vector.load %arg2[%c2_69, %c2_70, %c0_71, %c0_72] : memref<3x3x32x32xbf16, #tpu.memory_space<vmem>>, vector<1x1x32x32xbf16>
    %61 = vector.shape_cast %60 : vector<1x1x32x32xbf16> to vector<32x32xbf16>
    %cst_73 = arith.constant dense<0.000000e+00> : vector<16x32xf32>
    %62 = tpu.matmul %59, %61, %cst_73 {dimension_numbers = #tpu.dot_dimension_numbers<[1], [0], [0], [1], [0, 0, 1, 1], [], []>} : vector<16x32xbf16>, vector<32x32xbf16>, vector<16x32xf32> -> vector<16x32xf32>
    %63 = arith.addf %56, %62 : vector<16x32xf32>
    %c0_74 = arith.constant 0 : index
    %c0_75 = arith.constant 0 : index
    %64 = vector.load %arg3[%c0_74, %c0_75] : memref<1x32xf32, #tpu.memory_space<vmem>>, vector<1x32xf32>
    %65 = vector.broadcast %64 : vector<1x32xf32> to vector<16x32xf32>
    %66 = arith.addf %63, %65 : vector<16x32xf32>
    %cst_76 = arith.constant 0.000000e+00 : f32
    %67 = vector.broadcast %cst_76 : f32 to vector<16x32xf32>
    %68 = arith.subf %67, %66 : vector<16x32xf32>
    %69 = math.exp %68 : vector<16x32xf32>
    %cst_77 = arith.constant 1.000000e+00 : f32
    %70 = vector.broadcast %cst_77 : f32 to vector<16x32xf32>
    %71 = arith.addf %70, %69 : vector<16x32xf32>
    %72 = tpu.reciprocal %71 {approx = true} : vector<16x32xf32> -> vector<16x32xf32>
    %73 = arith.mulf %66, %72 : vector<16x32xf32>
    %74 = arith.truncf %73 : vector<16x32xf32> to vector<16x32xbf16>
    %c0_78 = arith.constant 0 : index
    %c0_79 = arith.constant 0 : index
    %c0_80 = arith.constant 0 : index
    %75 = vector.load %arg4[%c0_78, %c0_79, %c0_80] : memref<1x16x32xbf16, #tpu.memory_space<vmem>>, vector<1x16x32xbf16>
    %76 = vector.shape_cast %75 : vector<1x16x32xbf16> to vector<16x32xbf16>
    %77 = vector.shape_cast %74 : vector<16x32xbf16> to vector<1x16x32xbf16>
    tpu.vector_store %arg4[%c0_78, %c0_79, %c0_80], %77 {strides = array<i32>} : memref<1x16x32xbf16, #tpu.memory_space<vmem>>, vector<1x16x32xbf16>,
    return
  }
  func.func @transform_0(%arg0: i32) -> (i32, i32, i32, i32) {
    %c0_i32 = arith.constant 0 : i32
    %c0_i32_0 = arith.constant 0 : i32
    %c0_i32_1 = arith.constant 0 : i32
    %c0_i32_2 = arith.constant 0 : i32
    return %arg0, %c0_i32, %c0_i32_0, %c0_i32_1 : i32, i32, i32, i32
  }
  func.func @transform_1(%arg0: i32) -> (i32, i32, i32, i32) {
    %c0_i32 = arith.constant 0 : i32
    %c0_i32_0 = arith.constant 0 : i32
    %c0_i32_1 = arith.constant 0 : i32
    %c0_i32_2 = arith.constant 0 : i32
    %c0_i32_3 = arith.constant 0 : i32
    return %c0_i32, %c0_i32_0, %c0_i32_1, %c0_i32_2 : i32, i32, i32, i32
  }
  func.func @transform_2(%arg0: i32) -> (i32, i32) {
    %c0_i32 = arith.constant 0 : i32
    %c0_i32_0 = arith.constant 0 : i32
    %c0_i32_1 = arith.constant 0 : i32
    return %c0_i32, %c0_i32_0 : i32, i32
  }
  func.func @transform_3(%arg0: i32) -> (i32, i32, i32) {
    %c0_i32 = arith.constant 0 : i32
    %c0_i32_0 = arith.constant 0 : i32
    %c0_i32_1 = arith.constant 0 : i32
    return %arg0, %c0_i32, %c0_i32_0 : i32, i32, i32
  }
}

module attributes {stable_mosaic.version = 11 : i64} {
  func.func @_conv_taps_kernel(%arg0: i32, %arg1: memref<1x36x9x32xbf16, #tpu.memory_space<vmem>>, %arg2: memref<3x3x32x32xbf16, #tpu.memory_space<vmem>>, %arg3: memref<1x32xf32, #tpu.memory_space<vmem>>, %arg4: memref<1x64x32xbf16, #tpu.memory_space<vmem>>) attributes {dimension_semantics = [#tpu.dimension_semantics<parallel>], iteration_bounds = array<i64: 2>, scalar_prefetch = 0 : i64, scratch_operands = 0 : i64, tpu.core_type = #tpu.core_type<tc>, window_params = [{transform_indices = @transform_0, window_bounds = array<i64: 1, 36, 9, 32>}, {pipeline_mode = #tpu.pipeline_mode<synchronous>, transform_indices = @transform_1, window_bounds = array<i64: 3, 3, 32, 32>}, {pipeline_mode = #tpu.pipeline_mode<synchronous>, transform_indices = @transform_2, window_bounds = array<i64: 1, 32>}, {transform_indices = @transform_3, window_bounds = array<i64: 1, 64, 32>}]} {
    %cst = arith.constant 0.000000e+00 : f32
    %0 = vector.broadcast %cst : f32 to vector<64x32xf32>
    %c0 = arith.constant 0 : index
    %c0_0 = arith.constant 0 : index
    %c0_1 = arith.constant 0 : index
    %c0_2 = arith.constant 0 : index
    %1 = vector.load %arg1[%c0, %c0_0, %c0_1, %c0_2] : memref<1x36x9x32xbf16, #tpu.memory_space<vmem>>, vector<1x8x8x32xbf16>
    %2 = vector.shape_cast %1 : vector<1x8x8x32xbf16> to vector<8x8x32xbf16>
    %3 = vector.shape_cast %2 : vector<8x8x32xbf16> to vector<64x32xbf16>
    %c0_3 = arith.constant 0 : index
    %c0_4 = arith.constant 0 : index
    %c0_5 = arith.constant 0 : index
    %c0_6 = arith.constant 0 : index
    %4 = vector.load %arg2[%c0_3, %c0_4, %c0_5, %c0_6] : memref<3x3x32x32xbf16, #tpu.memory_space<vmem>>, vector<1x1x32x32xbf16>
    %5 = vector.shape_cast %4 : vector<1x1x32x32xbf16> to vector<32x32xbf16>
    %cst_7 = arith.constant dense<0.000000e+00> : vector<64x32xf32>
    %6 = tpu.matmul %3, %5, %cst_7 {dimension_numbers = #tpu.dot_dimension_numbers<[1], [0], [0], [1], [0, 0, 1, 1], [], []>} : vector<64x32xbf16>, vector<32x32xbf16>, vector<64x32xf32> -> vector<64x32xf32>
    %7 = arith.addf %0, %6 : vector<64x32xf32>
    %c0_8 = arith.constant 0 : index
    %c9 = arith.constant 9 : index
    %c0_9 = arith.constant 0 : index
    %c0_10 = arith.constant 0 : index
    %8 = vector.load %arg1[%c0_8, %c9, %c0_9, %c0_10] : memref<1x36x9x32xbf16, #tpu.memory_space<vmem>>, vector<1x8x8x32xbf16>
    %9 = vector.shape_cast %8 : vector<1x8x8x32xbf16> to vector<8x8x32xbf16>
    %10 = vector.shape_cast %9 : vector<8x8x32xbf16> to vector<64x32xbf16>
    %c0_11 = arith.constant 0 : index
    %c1 = arith.constant 1 : index
    %c0_12 = arith.constant 0 : index
    %c0_13 = arith.constant 0 : index
    %11 = vector.load %arg2[%c0_11, %c1, %c0_12, %c0_13] : memref<3x3x32x32xbf16, #tpu.memory_space<vmem>>, vector<1x1x32x32xbf16>
    %12 = vector.shape_cast %11 : vector<1x1x32x32xbf16> to vector<32x32xbf16>
    %cst_14 = arith.constant dense<0.000000e+00> : vector<64x32xf32>
    %13 = tpu.matmul %10, %12, %cst_14 {dimension_numbers = #tpu.dot_dimension_numbers<[1], [0], [0], [1], [0, 0, 1, 1], [], []>} : vector<64x32xbf16>, vector<32x32xbf16>, vector<64x32xf32> -> vector<64x32xf32>
    %14 = arith.addf %7, %13 : vector<64x32xf32>
    %c0_15 = arith.constant 0 : index
    %c0_16 = arith.constant 0 : index
    %c1_17 = arith.constant 1 : index
    %c0_18 = arith.constant 0 : index
    %15 = vector.load %arg1[%c0_15, %c0_16, %c1_17, %c0_18] : memref<1x36x9x32xbf16, #tpu.memory_space<vmem>>, vector<1x8x8x32xbf16>
    %16 = vector.shape_cast %15 : vector<1x8x8x32xbf16> to vector<8x8x32xbf16>
    %17 = vector.shape_cast %16 : vector<8x8x32xbf16> to vector<64x32xbf16>
    %c0_19 = arith.constant 0 : index
    %c2 = arith.constant 2 : index
    %c0_20 = arith.constant 0 : index
    %c0_21 = arith.constant 0 : index
    %18 = vector.load %arg2[%c0_19, %c2, %c0_20, %c0_21] : memref<3x3x32x32xbf16, #tpu.memory_space<vmem>>, vector<1x1x32x32xbf16>
    %19 = vector.shape_cast %18 : vector<1x1x32x32xbf16> to vector<32x32xbf16>
    %cst_22 = arith.constant dense<0.000000e+00> : vector<64x32xf32>
    %20 = tpu.matmul %17, %19, %cst_22 {dimension_numbers = #tpu.dot_dimension_numbers<[1], [0], [0], [1], [0, 0, 1, 1], [], []>} : vector<64x32xbf16>, vector<32x32xbf16>, vector<64x32xf32> -> vector<64x32xf32>
    %21 = arith.addf %14, %20 : vector<64x32xf32>
    %c0_23 = arith.constant 0 : index
    %c18 = arith.constant 18 : index
    %c0_24 = arith.constant 0 : index
    %c0_25 = arith.constant 0 : index
    %22 = vector.load %arg1[%c0_23, %c18, %c0_24, %c0_25] : memref<1x36x9x32xbf16, #tpu.memory_space<vmem>>, vector<1x8x8x32xbf16>
    %23 = vector.shape_cast %22 : vector<1x8x8x32xbf16> to vector<8x8x32xbf16>
    %24 = vector.shape_cast %23 : vector<8x8x32xbf16> to vector<64x32xbf16>
    %c1_26 = arith.constant 1 : index
    %c0_27 = arith.constant 0 : index
    %c0_28 = arith.constant 0 : index
    %c0_29 = arith.constant 0 : index
    %25 = vector.load %arg2[%c1_26, %c0_27, %c0_28, %c0_29] : memref<3x3x32x32xbf16, #tpu.memory_space<vmem>>, vector<1x1x32x32xbf16>
    %26 = vector.shape_cast %25 : vector<1x1x32x32xbf16> to vector<32x32xbf16>
    %cst_30 = arith.constant dense<0.000000e+00> : vector<64x32xf32>
    %27 = tpu.matmul %24, %26, %cst_30 {dimension_numbers = #tpu.dot_dimension_numbers<[1], [0], [0], [1], [0, 0, 1, 1], [], []>} : vector<64x32xbf16>, vector<32x32xbf16>, vector<64x32xf32> -> vector<64x32xf32>
    %28 = arith.addf %21, %27 : vector<64x32xf32>
    %c0_31 = arith.constant 0 : index
    %c27 = arith.constant 27 : index
    %c0_32 = arith.constant 0 : index
    %c0_33 = arith.constant 0 : index
    %29 = vector.load %arg1[%c0_31, %c27, %c0_32, %c0_33] : memref<1x36x9x32xbf16, #tpu.memory_space<vmem>>, vector<1x8x8x32xbf16>
    %30 = vector.shape_cast %29 : vector<1x8x8x32xbf16> to vector<8x8x32xbf16>
    %31 = vector.shape_cast %30 : vector<8x8x32xbf16> to vector<64x32xbf16>
    %c1_34 = arith.constant 1 : index
    %c1_35 = arith.constant 1 : index
    %c0_36 = arith.constant 0 : index
    %c0_37 = arith.constant 0 : index
    %32 = vector.load %arg2[%c1_34, %c1_35, %c0_36, %c0_37] : memref<3x3x32x32xbf16, #tpu.memory_space<vmem>>, vector<1x1x32x32xbf16>
    %33 = vector.shape_cast %32 : vector<1x1x32x32xbf16> to vector<32x32xbf16>
    %cst_38 = arith.constant dense<0.000000e+00> : vector<64x32xf32>
    %34 = tpu.matmul %31, %33, %cst_38 {dimension_numbers = #tpu.dot_dimension_numbers<[1], [0], [0], [1], [0, 0, 1, 1], [], []>} : vector<64x32xbf16>, vector<32x32xbf16>, vector<64x32xf32> -> vector<64x32xf32>
    %35 = arith.addf %28, %34 : vector<64x32xf32>
    %c0_39 = arith.constant 0 : index
    %c18_40 = arith.constant 18 : index
    %c1_41 = arith.constant 1 : index
    %c0_42 = arith.constant 0 : index
    %36 = vector.load %arg1[%c0_39, %c18_40, %c1_41, %c0_42] : memref<1x36x9x32xbf16, #tpu.memory_space<vmem>>, vector<1x8x8x32xbf16>
    %37 = vector.shape_cast %36 : vector<1x8x8x32xbf16> to vector<8x8x32xbf16>
    %38 = vector.shape_cast %37 : vector<8x8x32xbf16> to vector<64x32xbf16>
    %c1_43 = arith.constant 1 : index
    %c2_44 = arith.constant 2 : index
    %c0_45 = arith.constant 0 : index
    %c0_46 = arith.constant 0 : index
    %39 = vector.load %arg2[%c1_43, %c2_44, %c0_45, %c0_46] : memref<3x3x32x32xbf16, #tpu.memory_space<vmem>>, vector<1x1x32x32xbf16>
    %40 = vector.shape_cast %39 : vector<1x1x32x32xbf16> to vector<32x32xbf16>
    %cst_47 = arith.constant dense<0.000000e+00> : vector<64x32xf32>
    %41 = tpu.matmul %38, %40, %cst_47 {dimension_numbers = #tpu.dot_dimension_numbers<[1], [0], [0], [1], [0, 0, 1, 1], [], []>} : vector<64x32xbf16>, vector<32x32xbf16>, vector<64x32xf32> -> vector<64x32xf32>
    %42 = arith.addf %35, %41 : vector<64x32xf32>
    %c0_48 = arith.constant 0 : index
    %c1_49 = arith.constant 1 : index
    %c0_50 = arith.constant 0 : index
    %c0_51 = arith.constant 0 : index
    %43 = vector.load %arg1[%c0_48, %c1_49, %c0_50, %c0_51] : memref<1x36x9x32xbf16, #tpu.memory_space<vmem>>, vector<1x8x8x32xbf16>
    %44 = vector.shape_cast %43 : vector<1x8x8x32xbf16> to vector<8x8x32xbf16>
    %45 = vector.shape_cast %44 : vector<8x8x32xbf16> to vector<64x32xbf16>
    %c2_52 = arith.constant 2 : index
    %c0_53 = arith.constant 0 : index
    %c0_54 = arith.constant 0 : index
    %c0_55 = arith.constant 0 : index
    %46 = vector.load %arg2[%c2_52, %c0_53, %c0_54, %c0_55] : memref<3x3x32x32xbf16, #tpu.memory_space<vmem>>, vector<1x1x32x32xbf16>
    %47 = vector.shape_cast %46 : vector<1x1x32x32xbf16> to vector<32x32xbf16>
    %cst_56 = arith.constant dense<0.000000e+00> : vector<64x32xf32>
    %48 = tpu.matmul %45, %47, %cst_56 {dimension_numbers = #tpu.dot_dimension_numbers<[1], [0], [0], [1], [0, 0, 1, 1], [], []>} : vector<64x32xbf16>, vector<32x32xbf16>, vector<64x32xf32> -> vector<64x32xf32>
    %49 = arith.addf %42, %48 : vector<64x32xf32>
    %c0_57 = arith.constant 0 : index
    %c10 = arith.constant 10 : index
    %c0_58 = arith.constant 0 : index
    %c0_59 = arith.constant 0 : index
    %50 = vector.load %arg1[%c0_57, %c10, %c0_58, %c0_59] : memref<1x36x9x32xbf16, #tpu.memory_space<vmem>>, vector<1x8x8x32xbf16>
    %51 = vector.shape_cast %50 : vector<1x8x8x32xbf16> to vector<8x8x32xbf16>
    %52 = vector.shape_cast %51 : vector<8x8x32xbf16> to vector<64x32xbf16>
    %c2_60 = arith.constant 2 : index
    %c1_61 = arith.constant 1 : index
    %c0_62 = arith.constant 0 : index
    %c0_63 = arith.constant 0 : index
    %53 = vector.load %arg2[%c2_60, %c1_61, %c0_62, %c0_63] : memref<3x3x32x32xbf16, #tpu.memory_space<vmem>>, vector<1x1x32x32xbf16>
    %54 = vector.shape_cast %53 : vector<1x1x32x32xbf16> to vector<32x32xbf16>
    %cst_64 = arith.constant dense<0.000000e+00> : vector<64x32xf32>
    %55 = tpu.matmul %52, %54, %cst_64 {dimension_numbers = #tpu.dot_dimension_numbers<[1], [0], [0], [1], [0, 0, 1, 1], [], []>} : vector<64x32xbf16>, vector<32x32xbf16>, vector<64x32xf32> -> vector<64x32xf32>
    %56 = arith.addf %49, %55 : vector<64x32xf32>
    %c0_65 = arith.constant 0 : index
    %c1_66 = arith.constant 1 : index
    %c1_67 = arith.constant 1 : index
    %c0_68 = arith.constant 0 : index
    %57 = vector.load %arg1[%c0_65, %c1_66, %c1_67, %c0_68] : memref<1x36x9x32xbf16, #tpu.memory_space<vmem>>, vector<1x8x8x32xbf16>
    %58 = vector.shape_cast %57 : vector<1x8x8x32xbf16> to vector<8x8x32xbf16>
    %59 = vector.shape_cast %58 : vector<8x8x32xbf16> to vector<64x32xbf16>
    %c2_69 = arith.constant 2 : index
    %c2_70 = arith.constant 2 : index
    %c0_71 = arith.constant 0 : index
    %c0_72 = arith.constant 0 : index
    %60 = vector.load %arg2[%c2_69, %c2_70, %c0_71, %c0_72] : memref<3x3x32x32xbf16, #tpu.memory_space<vmem>>, vector<1x1x32x32xbf16>
    %61 = vector.shape_cast %60 : vector<1x1x32x32xbf16> to vector<32x32xbf16>
    %cst_73 = arith.constant dense<0.000000e+00> : vector<64x32xf32>
    %62 = tpu.matmul %59, %61, %cst_73 {dimension_numbers = #tpu.dot_dimension_numbers<[1], [0], [0], [1], [0, 0, 1, 1], [], []>} : vector<64x32xbf16>, vector<32x32xbf16>, vector<64x32xf32> -> vector<64x32xf32>
    %63 = arith.addf %56, %62 : vector<64x32xf32>
    %c0_74 = arith.constant 0 : index
    %c0_75 = arith.constant 0 : index
    %64 = vector.load %arg3[%c0_74, %c0_75] : memref<1x32xf32, #tpu.memory_space<vmem>>, vector<1x32xf32>
    %65 = vector.broadcast %64 : vector<1x32xf32> to vector<64x32xf32>
    %66 = arith.addf %63, %65 : vector<64x32xf32>
    %cst_76 = arith.constant 0.000000e+00 : f32
    %67 = vector.broadcast %cst_76 : f32 to vector<64x32xf32>
    %68 = arith.subf %67, %66 : vector<64x32xf32>
    %69 = math.exp %68 : vector<64x32xf32>
    %cst_77 = arith.constant 1.000000e+00 : f32
    %70 = vector.broadcast %cst_77 : f32 to vector<64x32xf32>
    %71 = arith.addf %70, %69 : vector<64x32xf32>
    %72 = tpu.reciprocal %71 {approx = true} : vector<64x32xf32> -> vector<64x32xf32>
    %73 = arith.mulf %66, %72 : vector<64x32xf32>
    %74 = arith.truncf %73 : vector<64x32xf32> to vector<64x32xbf16>
    %c0_78 = arith.constant 0 : index
    %c0_79 = arith.constant 0 : index
    %c0_80 = arith.constant 0 : index
    %75 = vector.load %arg4[%c0_78, %c0_79, %c0_80] : memref<1x64x32xbf16, #tpu.memory_space<vmem>>, vector<1x64x32xbf16>
    %76 = vector.shape_cast %75 : vector<1x64x32xbf16> to vector<64x32xbf16>
    %77 = vector.shape_cast %74 : vector<64x32xbf16> to vector<1x64x32xbf16>
    tpu.vector_store %arg4[%c0_78, %c0_79, %c0_80], %77 {strides = array<i32>} : memref<1x64x32xbf16, #tpu.memory_space<vmem>>, vector<1x64x32xbf16>,
    return
  }
  func.func @transform_0(%arg0: i32) -> (i32, i32, i32, i32) {
    %c0_i32 = arith.constant 0 : i32
    %c0_i32_0 = arith.constant 0 : i32
    %c0_i32_1 = arith.constant 0 : i32
    %c0_i32_2 = arith.constant 0 : i32
    return %arg0, %c0_i32, %c0_i32_0, %c0_i32_1 : i32, i32, i32, i32
  }
  func.func @transform_1(%arg0: i32) -> (i32, i32, i32, i32) {
    %c0_i32 = arith.constant 0 : i32
    %c0_i32_0 = arith.constant 0 : i32
    %c0_i32_1 = arith.constant 0 : i32
    %c0_i32_2 = arith.constant 0 : i32
    %c0_i32_3 = arith.constant 0 : i32
    return %c0_i32, %c0_i32_0, %c0_i32_1, %c0_i32_2 : i32, i32, i32, i32
  }
  func.func @transform_2(%arg0: i32) -> (i32, i32) {
    %c0_i32 = arith.constant 0 : i32
    %c0_i32_0 = arith.constant 0 : i32
    %c0_i32_1 = arith.constant 0 : i32
    return %c0_i32, %c0_i32_0 : i32, i32
  }
  func.func @transform_3(%arg0: i32) -> (i32, i32, i32) {
    %c0_i32 = arith.constant 0 : i32
    %c0_i32_0 = arith.constant 0 : i32
    %c0_i32_1 = arith.constant 0 : i32
    return %arg0, %c0_i32, %c0_i32_0 : i32, i32, i32
  }
}

module attributes {stable_mosaic.version = 11 : i64} {
  func.func @_conv_moments_sample_kernel(%arg0: i32, %arg1: memref<1x6x6x32xbf16, #tpu.memory_space<vmem>>, %arg2: memref<3x3x32x8xbf16, #tpu.memory_space<vmem>>, %arg3: memref<1x8xf32, #tpu.memory_space<vmem>>, %arg4: memref<1x16x4xf32, #tpu.memory_space<vmem>>, %arg5: memref<1x16x4xf32, #tpu.memory_space<vmem>>) attributes {dimension_semantics = [#tpu.dimension_semantics<parallel>], iteration_bounds = array<i64: 2>, scalar_prefetch = 0 : i64, scratch_operands = 0 : i64, tpu.core_type = #tpu.core_type<tc>, window_params = [{transform_indices = @transform_0, window_bounds = array<i64: 1, 6, 6, 32>}, {pipeline_mode = #tpu.pipeline_mode<synchronous>, transform_indices = @transform_1, window_bounds = array<i64: 3, 3, 32, 8>}, {pipeline_mode = #tpu.pipeline_mode<synchronous>, transform_indices = @transform_2, window_bounds = array<i64: 1, 8>}, {transform_indices = @transform_3, window_bounds = array<i64: 1, 16, 4>}, {transform_indices = @transform_4, window_bounds = array<i64: 1, 16, 4>}]} {
    %cst = arith.constant 0.000000e+00 : f32
    %0 = vector.broadcast %cst : f32 to vector<16x8xf32>
    %c0 = arith.constant 0 : index
    %c0_0 = arith.constant 0 : index
    %c0_1 = arith.constant 0 : index
    %c0_2 = arith.constant 0 : index
    %1 = vector.load %arg1[%c0, %c0_0, %c0_1, %c0_2] : memref<1x6x6x32xbf16, #tpu.memory_space<vmem>>, vector<1x4x4x32xbf16>
    %2 = vector.shape_cast %1 : vector<1x4x4x32xbf16> to vector<4x4x32xbf16>
    %3 = vector.shape_cast %2 : vector<4x4x32xbf16> to vector<16x32xbf16>
    %c0_3 = arith.constant 0 : index
    %c0_4 = arith.constant 0 : index
    %c0_5 = arith.constant 0 : index
    %c0_6 = arith.constant 0 : index
    %4 = vector.load %arg2[%c0_3, %c0_4, %c0_5, %c0_6] : memref<3x3x32x8xbf16, #tpu.memory_space<vmem>>, vector<1x1x32x8xbf16>
    %5 = vector.shape_cast %4 : vector<1x1x32x8xbf16> to vector<32x8xbf16>
    %cst_7 = arith.constant dense<0.000000e+00> : vector<16x8xf32>
    %6 = tpu.matmul %3, %5, %cst_7 {dimension_numbers = #tpu.dot_dimension_numbers<[1], [0], [0], [1], [0, 0, 1, 1], [], []>} : vector<16x32xbf16>, vector<32x8xbf16>, vector<16x8xf32> -> vector<16x8xf32>
    %7 = arith.addf %0, %6 : vector<16x8xf32>
    %c0_8 = arith.constant 0 : index
    %c0_9 = arith.constant 0 : index
    %c1 = arith.constant 1 : index
    %c0_10 = arith.constant 0 : index
    %8 = vector.load %arg1[%c0_8, %c0_9, %c1, %c0_10] : memref<1x6x6x32xbf16, #tpu.memory_space<vmem>>, vector<1x4x4x32xbf16>
    %9 = vector.shape_cast %8 : vector<1x4x4x32xbf16> to vector<4x4x32xbf16>
    %10 = vector.shape_cast %9 : vector<4x4x32xbf16> to vector<16x32xbf16>
    %c0_11 = arith.constant 0 : index
    %c1_12 = arith.constant 1 : index
    %c0_13 = arith.constant 0 : index
    %c0_14 = arith.constant 0 : index
    %11 = vector.load %arg2[%c0_11, %c1_12, %c0_13, %c0_14] : memref<3x3x32x8xbf16, #tpu.memory_space<vmem>>, vector<1x1x32x8xbf16>
    %12 = vector.shape_cast %11 : vector<1x1x32x8xbf16> to vector<32x8xbf16>
    %cst_15 = arith.constant dense<0.000000e+00> : vector<16x8xf32>
    %13 = tpu.matmul %10, %12, %cst_15 {dimension_numbers = #tpu.dot_dimension_numbers<[1], [0], [0], [1], [0, 0, 1, 1], [], []>} : vector<16x32xbf16>, vector<32x8xbf16>, vector<16x8xf32> -> vector<16x8xf32>
    %14 = arith.addf %7, %13 : vector<16x8xf32>
    %c0_16 = arith.constant 0 : index
    %c0_17 = arith.constant 0 : index
    %c2 = arith.constant 2 : index
    %c0_18 = arith.constant 0 : index
    %15 = vector.load %arg1[%c0_16, %c0_17, %c2, %c0_18] : memref<1x6x6x32xbf16, #tpu.memory_space<vmem>>, vector<1x4x4x32xbf16>
    %16 = vector.shape_cast %15 : vector<1x4x4x32xbf16> to vector<4x4x32xbf16>
    %17 = vector.shape_cast %16 : vector<4x4x32xbf16> to vector<16x32xbf16>
    %c0_19 = arith.constant 0 : index
    %c2_20 = arith.constant 2 : index
    %c0_21 = arith.constant 0 : index
    %c0_22 = arith.constant 0 : index
    %18 = vector.load %arg2[%c0_19, %c2_20, %c0_21, %c0_22] : memref<3x3x32x8xbf16, #tpu.memory_space<vmem>>, vector<1x1x32x8xbf16>
    %19 = vector.shape_cast %18 : vector<1x1x32x8xbf16> to vector<32x8xbf16>
    %cst_23 = arith.constant dense<0.000000e+00> : vector<16x8xf32>
    %20 = tpu.matmul %17, %19, %cst_23 {dimension_numbers = #tpu.dot_dimension_numbers<[1], [0], [0], [1], [0, 0, 1, 1], [], []>} : vector<16x32xbf16>, vector<32x8xbf16>, vector<16x8xf32> -> vector<16x8xf32>
    %21 = arith.addf %14, %20 : vector<16x8xf32>
    %c0_24 = arith.constant 0 : index
    %c1_25 = arith.constant 1 : index
    %c0_26 = arith.constant 0 : index
    %c0_27 = arith.constant 0 : index
    %22 = vector.load %arg1[%c0_24, %c1_25, %c0_26, %c0_27] : memref<1x6x6x32xbf16, #tpu.memory_space<vmem>>, vector<1x4x4x32xbf16>
    %23 = vector.shape_cast %22 : vector<1x4x4x32xbf16> to vector<4x4x32xbf16>
    %24 = vector.shape_cast %23 : vector<4x4x32xbf16> to vector<16x32xbf16>
    %c1_28 = arith.constant 1 : index
    %c0_29 = arith.constant 0 : index
    %c0_30 = arith.constant 0 : index
    %c0_31 = arith.constant 0 : index
    %25 = vector.load %arg2[%c1_28, %c0_29, %c0_30, %c0_31] : memref<3x3x32x8xbf16, #tpu.memory_space<vmem>>, vector<1x1x32x8xbf16>
    %26 = vector.shape_cast %25 : vector<1x1x32x8xbf16> to vector<32x8xbf16>
    %cst_32 = arith.constant dense<0.000000e+00> : vector<16x8xf32>
    %27 = tpu.matmul %24, %26, %cst_32 {dimension_numbers = #tpu.dot_dimension_numbers<[1], [0], [0], [1], [0, 0, 1, 1], [], []>} : vector<16x32xbf16>, vector<32x8xbf16>, vector<16x8xf32> -> vector<16x8xf32>
    %28 = arith.addf %21, %27 : vector<16x8xf32>
    %c0_33 = arith.constant 0 : index
    %c1_34 = arith.constant 1 : index
    %c1_35 = arith.constant 1 : index
    %c0_36 = arith.constant 0 : index
    %29 = vector.load %arg1[%c0_33, %c1_34, %c1_35, %c0_36] : memref<1x6x6x32xbf16, #tpu.memory_space<vmem>>, vector<1x4x4x32xbf16>
    %30 = vector.shape_cast %29 : vector<1x4x4x32xbf16> to vector<4x4x32xbf16>
    %31 = vector.shape_cast %30 : vector<4x4x32xbf16> to vector<16x32xbf16>
    %c1_37 = arith.constant 1 : index
    %c1_38 = arith.constant 1 : index
    %c0_39 = arith.constant 0 : index
    %c0_40 = arith.constant 0 : index
    %32 = vector.load %arg2[%c1_37, %c1_38, %c0_39, %c0_40] : memref<3x3x32x8xbf16, #tpu.memory_space<vmem>>, vector<1x1x32x8xbf16>
    %33 = vector.shape_cast %32 : vector<1x1x32x8xbf16> to vector<32x8xbf16>
    %cst_41 = arith.constant dense<0.000000e+00> : vector<16x8xf32>
    %34 = tpu.matmul %31, %33, %cst_41 {dimension_numbers = #tpu.dot_dimension_numbers<[1], [0], [0], [1], [0, 0, 1, 1], [], []>} : vector<16x32xbf16>, vector<32x8xbf16>, vector<16x8xf32> -> vector<16x8xf32>
    %35 = arith.addf %28, %34 : vector<16x8xf32>
    %c0_42 = arith.constant 0 : index
    %c1_43 = arith.constant 1 : index
    %c2_44 = arith.constant 2 : index
    %c0_45 = arith.constant 0 : index
    %36 = vector.load %arg1[%c0_42, %c1_43, %c2_44, %c0_45] : memref<1x6x6x32xbf16, #tpu.memory_space<vmem>>, vector<1x4x4x32xbf16>
    %37 = vector.shape_cast %36 : vector<1x4x4x32xbf16> to vector<4x4x32xbf16>
    %38 = vector.shape_cast %37 : vector<4x4x32xbf16> to vector<16x32xbf16>
    %c1_46 = arith.constant 1 : index
    %c2_47 = arith.constant 2 : index
    %c0_48 = arith.constant 0 : index
    %c0_49 = arith.constant 0 : index
    %39 = vector.load %arg2[%c1_46, %c2_47, %c0_48, %c0_49] : memref<3x3x32x8xbf16, #tpu.memory_space<vmem>>, vector<1x1x32x8xbf16>
    %40 = vector.shape_cast %39 : vector<1x1x32x8xbf16> to vector<32x8xbf16>
    %cst_50 = arith.constant dense<0.000000e+00> : vector<16x8xf32>
    %41 = tpu.matmul %38, %40, %cst_50 {dimension_numbers = #tpu.dot_dimension_numbers<[1], [0], [0], [1], [0, 0, 1, 1], [], []>} : vector<16x32xbf16>, vector<32x8xbf16>, vector<16x8xf32> -> vector<16x8xf32>
    %42 = arith.addf %35, %41 : vector<16x8xf32>
    %c0_51 = arith.constant 0 : index
    %c2_52 = arith.constant 2 : index
    %c0_53 = arith.constant 0 : index
    %c0_54 = arith.constant 0 : index
    %43 = vector.load %arg1[%c0_51, %c2_52, %c0_53, %c0_54] : memref<1x6x6x32xbf16, #tpu.memory_space<vmem>>, vector<1x4x4x32xbf16>
    %44 = vector.shape_cast %43 : vector<1x4x4x32xbf16> to vector<4x4x32xbf16>
    %45 = vector.shape_cast %44 : vector<4x4x32xbf16> to vector<16x32xbf16>
    %c2_55 = arith.constant 2 : index
    %c0_56 = arith.constant 0 : index
    %c0_57 = arith.constant 0 : index
    %c0_58 = arith.constant 0 : index
    %46 = vector.load %arg2[%c2_55, %c0_56, %c0_57, %c0_58] : memref<3x3x32x8xbf16, #tpu.memory_space<vmem>>, vector<1x1x32x8xbf16>
    %47 = vector.shape_cast %46 : vector<1x1x32x8xbf16> to vector<32x8xbf16>
    %cst_59 = arith.constant dense<0.000000e+00> : vector<16x8xf32>
    %48 = tpu.matmul %45, %47, %cst_59 {dimension_numbers = #tpu.dot_dimension_numbers<[1], [0], [0], [1], [0, 0, 1, 1], [], []>} : vector<16x32xbf16>, vector<32x8xbf16>, vector<16x8xf32> -> vector<16x8xf32>
    %49 = arith.addf %42, %48 : vector<16x8xf32>
    %c0_60 = arith.constant 0 : index
    %c2_61 = arith.constant 2 : index
    %c1_62 = arith.constant 1 : index
    %c0_63 = arith.constant 0 : index
    %50 = vector.load %arg1[%c0_60, %c2_61, %c1_62, %c0_63] : memref<1x6x6x32xbf16, #tpu.memory_space<vmem>>, vector<1x4x4x32xbf16>
    %51 = vector.shape_cast %50 : vector<1x4x4x32xbf16> to vector<4x4x32xbf16>
    %52 = vector.shape_cast %51 : vector<4x4x32xbf16> to vector<16x32xbf16>
    %c2_64 = arith.constant 2 : index
    %c1_65 = arith.constant 1 : index
    %c0_66 = arith.constant 0 : index
    %c0_67 = arith.constant 0 : index
    %53 = vector.load %arg2[%c2_64, %c1_65, %c0_66, %c0_67] : memref<3x3x32x8xbf16, #tpu.memory_space<vmem>>, vector<1x1x32x8xbf16>
    %54 = vector.shape_cast %53 : vector<1x1x32x8xbf16> to vector<32x8xbf16>
    %cst_68 = arith.constant dense<0.000000e+00> : vector<16x8xf32>
    %55 = tpu.matmul %52, %54, %cst_68 {dimension_numbers = #tpu.dot_dimension_numbers<[1], [0], [0], [1], [0, 0, 1, 1], [], []>} : vector<16x32xbf16>, vector<32x8xbf16>, vector<16x8xf32> -> vector<16x8xf32>
    %56 = arith.addf %49, %55 : vector<16x8xf32>
    %c0_69 = arith.constant 0 : index
    %c2_70 = arith.constant 2 : index
    %c2_71 = arith.constant 2 : index
    %c0_72 = arith.constant 0 : index
    %57 = vector.load %arg1[%c0_69, %c2_70, %c2_71, %c0_72] : memref<1x6x6x32xbf16, #tpu.memory_space<vmem>>, vector<1x4x4x32xbf16>
    %58 = vector.shape_cast %57 : vector<1x4x4x32xbf16> to vector<4x4x32xbf16>
    %59 = vector.shape_cast %58 : vector<4x4x32xbf16> to vector<16x32xbf16>
    %c2_73 = arith.constant 2 : index
    %c2_74 = arith.constant 2 : index
    %c0_75 = arith.constant 0 : index
    %c0_76 = arith.constant 0 : index
    %60 = vector.load %arg2[%c2_73, %c2_74, %c0_75, %c0_76] : memref<3x3x32x8xbf16, #tpu.memory_space<vmem>>, vector<1x1x32x8xbf16>
    %61 = vector.shape_cast %60 : vector<1x1x32x8xbf16> to vector<32x8xbf16>
    %cst_77 = arith.constant dense<0.000000e+00> : vector<16x8xf32>
    %62 = tpu.matmul %59, %61, %cst_77 {dimension_numbers = #tpu.dot_dimension_numbers<[1], [0], [0], [1], [0, 0, 1, 1], [], []>} : vector<16x32xbf16>, vector<32x8xbf16>, vector<16x8xf32> -> vector<16x8xf32>
    %63 = arith.addf %56, %62 : vector<16x8xf32>
    %c0_78 = arith.constant 0 : index
    %c0_79 = arith.constant 0 : index
    %64 = vector.load %arg3[%c0_78, %c0_79] : memref<1x8xf32, #tpu.memory_space<vmem>>, vector<1x8xf32>
    %65 = vector.broadcast %64 : vector<1x8xf32> to vector<16x8xf32>
    %66 = arith.addf %63, %65 : vector<16x8xf32>
    %67 = vector.extract_strided_slice %66 {offsets = [0, 0], sizes = [16, 4], strides = [1, 1]} : vector<16x8xf32> to vector<16x4xf32>
    %68 = vector.extract_strided_slice %66 {offsets = [0, 4], sizes = [16, 4], strides = [1, 1]} : vector<16x8xf32> to vector<16x4xf32>
    %cst_80 = arith.constant -3.000000e+01 : f32
    %cst_81 = arith.constant 2.000000e+01 : f32
    %69 = vector.broadcast %cst_80 : f32 to vector<16x4xf32>
    %70 = arith.maximumf %69, %68 : vector<16x4xf32>
    %71 = vector.broadcast %cst_81 : f32 to vector<16x4xf32>
    %72 = arith.minimumf %71, %70 : vector<16x4xf32>
    %cst_82 = arith.constant 5.000000e-01 : f32
    %73 = vector.broadcast %cst_82 : f32 to vector<16x4xf32>
    %74 = arith.mulf %73, %72 : vector<16x4xf32>
    %75 = math.exp %74 : vector<16x4xf32>
    %c0_83 = arith.constant 0 : index
    %c0_84 = arith.constant 0 : index
    %c0_85 = arith.constant 0 : index
    %76 = vector.load %arg4[%c0_83, %c0_84, %c0_85] : memref<1x16x4xf32, #tpu.memory_space<vmem>>, vector<1x16x4xf32>
    %77 = vector.shape_cast %76 : vector<1x16x4xf32> to vector<16x4xf32>
    %78 = arith.mulf %75, %77 : vector<16x4xf32>
    %79 = arith.addf %67, %78 : vector<16x4xf32>
    %cst_86 = arith.constant 1.821500e-01 : f32
    %80 = vector.broadcast %cst_86 : f32 to vector<16x4xf32>
    %81 = arith.mulf %79, %80 : vector<16x4xf32>
    %c0_87 = arith.constant 0 : index
    %c0_88 = arith.constant 0 : index
    %c0_89 = arith.constant 0 : index
    %82 = vector.load %arg5[%c0_87, %c0_88, %c0_89] : memref<1x16x4xf32, #tpu.memory_space<vmem>>, vector<1x16x4xf32>
    %83 = vector.shape_cast %82 : vector<1x16x4xf32> to vector<16x4xf32>
    %84 = vector.shape_cast %81 : vector<16x4xf32> to vector<1x16x4xf32>
    tpu.vector_store %arg5[%c0_87, %c0_88, %c0_89], %84 {strides = array<i32>} : memref<1x16x4xf32, #tpu.memory_space<vmem>>, vector<1x16x4xf32>,
    return
  }
  func.func @transform_0(%arg0: i32) -> (i32, i32, i32, i32) {
    %c0_i32 = arith.constant 0 : i32
    %c0_i32_0 = arith.constant 0 : i32
    %c0_i32_1 = arith.constant 0 : i32
    %c0_i32_2 = arith.constant 0 : i32
    return %arg0, %c0_i32, %c0_i32_0, %c0_i32_1 : i32, i32, i32, i32
  }
  func.func @transform_1(%arg0: i32) -> (i32, i32, i32, i32) {
    %c0_i32 = arith.constant 0 : i32
    %c0_i32_0 = arith.constant 0 : i32
    %c0_i32_1 = arith.constant 0 : i32
    %c0_i32_2 = arith.constant 0 : i32
    %c0_i32_3 = arith.constant 0 : i32
    return %c0_i32, %c0_i32_0, %c0_i32_1, %c0_i32_2 : i32, i32, i32, i32
  }
  func.func @transform_2(%arg0: i32) -> (i32, i32) {
    %c0_i32 = arith.constant 0 : i32
    %c0_i32_0 = arith.constant 0 : i32
    %c0_i32_1 = arith.constant 0 : i32
    return %c0_i32, %c0_i32_0 : i32, i32
  }
  func.func @transform_3(%arg0: i32) -> (i32, i32, i32) {
    %c0_i32 = arith.constant 0 : i32
    %c0_i32_0 = arith.constant 0 : i32
    %c0_i32_1 = arith.constant 0 : i32
    return %arg0, %c0_i32, %c0_i32_0 : i32, i32, i32
  }
  func.func @transform_4(%arg0: i32) -> (i32, i32, i32) {
    %c0_i32 = arith.constant 0 : i32
    %c0_i32_0 = arith.constant 0 : i32
    %c0_i32_1 = arith.constant 0 : i32
    return %arg0, %c0_i32, %c0_i32_0 : i32, i32, i32
  }
}

</mosaic_0001>

<llo_original>
// kernel: vae_encode_forward.6
$region0: #{vae_encode_forward.6}
  #allocation0 [shape = 'u32[]', space=smem, size = 0x4, offset = 0x4, fixed_abs, tag = 'smem constant byte address 0x4 - core index']
  #allocation1 [shape = 'u32[144,128]{1,0:T(1,128)}', space=vmem, size = 0x12000, scoped, tag = 'internal scratch']
  %s0 = inlined_call_operand.vmem [shape: bf16[2,20,5,32], index: 0, kind: input, shape index: {}]
  %s1 = inlined_call_operand.vmem [shape: bf16[3,3,32,32], index: 1, kind: input, shape index: {}]
  %s2 = inlined_call_operand.vmem [shape: f32[1,32], index: 2, kind: input, shape index: {}]
  %s3 = inlined_call_operand.vmem [shape: bf16[2,16,32], index: 3, kind: output, shape index: {}]
  %s4 = sld [smem:[#allocation0]]
  $region45: #{vae_encode_forward.6} parent=0
    _
  %s6 = ssub.s32 1, %s4
  %s7 = scalar_select 0, %s6, %s4
  loop: start=0, step=1, limit=4
  $region2: #{vae_encode_forward.6} parent=0 // loop_pre_header
    _
  $region3: #{vae_encode_forward.6} parent=0 // loop_header
    %s9 = sphi 0, %s13
    %p10 = scmp.ge.s32.totalorder %s9, 4
    %s19 = sphi 0, %s21
    %s22 = sphi 0, %s19
    %s23 = sphi 0, %s22
    %s39 = sphi 0, %s23
    %s43 = sphi 0, %s43
    %s45 = sphi 0, %s43
    %s46 = sphi 0, %s45
    %s60 = sphi 0, %s46
    %s64 = sphi 0, %s64
    %s66 = sphi 0, %s64
    %s67 = sphi 0, %s66
    %s81 = sphi 0, %s67
    %s87 = sphi 0, %s89
    %s90 = sphi 0, %s87
    %s91 = sphi 0, %s90
    %s107 = sphi 0, %s91
  $region4: #{vae_encode_forward.6} parent=0 // loop_header_branch
    %12 = sbr.rel (%p10) target = $region8
  $region5: #{vae_encode_forward.6} parent=0 // loop_body
    %s14 = ssub.s32 %s9, 1
    %s15 = ssub.s32 %s9, 2
    %s16 = sadd.s32 %s9, 1
    %s17 = ssub.s32 %s9, %s16
    %p18 = scmp.eq.s32.totalorder %s17, 0
    %s20 = sadd.s32 %s19, 1
    %s21 = scalar_select %p18, %s19, %s20
    %p24 = pneg %p18
    %p25 = scmp.eq.s32.totalorder %s9, 1
    %p26 = por %p24, %p25
    %p27 = scmp.ne.s32.totalorder %s19, %s22
    %p28 = scmp.eq.s32.totalorder %s9, 0
    %p29 = por %p27, %p28
    %p30 = scmp.ne.s32.totalorder %s19, %s22
    %p31 = scmp.eq.s32.totalorder %s14, 1
    %p32 = por %p30, %p31
    %p33 = scmp.ne.s32.totalorder %s22, %s23
    %p34 = scmp.eq.s32.totalorder %s14, 0
    %p35 = por %p33, %p34
    %p36 = scmp.ne.s32.totalorder %s22, %s23
    %p37 = scmp.eq.s32.totalorder %s15, 1
    %p38 = por %p36, %p37
    %p40 = scmp.ne.s32.totalorder %s23, %s39
    %p41 = scmp.eq.s32.totalorder %s15, 0
    %p42 = por %p40, %p41
    %s44 = sadd.s32 %s43, 1
    %p47 = scmp.eq.s32.totalorder %s9, 1
    %p48 = scmp.ne.s32.totalorder %s43, %s45
    %p49 = scmp.eq.s32.totalorder %s9, 0
    %p50 = por %p48, %p49
    %p51 = scmp.ne.s32.totalorder %s43, %s45
    %p52 = scmp.eq.s32.totalorder %s14, 1
    %p53 = por %p51, %p52
    %p54 = scmp.ne.s32.totalorder %s45, %s46
    %p55 = scmp.eq.s32.totalorder %s14, 0
    %p56 = por %p54, %p55
    %p57 = scmp.ne.s32.totalorder %s45, %s46
    %p58 = scmp.eq.s32.totalorder %s15, 1
    %p59 = por %p57, %p58
    %p61 = scmp.ne.s32.totalorder %s46, %s60
    %p62 = scmp.eq.s32.totalorder %s15, 0
    %p63 = por %p61, %p62
    %s65 = sadd.s32 %s64, 1
    %p68 = scmp.eq.s32.totalorder %s9, 1
    %p69 = scmp.ne.s32.totalorder %s64, %s66
    %p70 = scmp.eq.s32.totalorder %s9, 0
    %p71 = por %p69, %p70
    %p72 = scmp.ne.s32.totalorder %s64, %s66
    %p73 = scmp.eq.s32.totalorder %s14, 1
    %p74 = por %p72, %p73
    %p75 = scmp.ne.s32.totalorder %s66, %s67
    %p76 = scmp.eq.s32.totalorder %s14, 0
    %p77 = por %p75, %p76
    %p78 = scmp.ne.s32.totalorder %s66, %s67
    %p79 = scmp.eq.s32.totalorder %s15, 1
    %p80 = por %p78, %p79
    %p82 = scmp.ne.s32.totalorder %s67, %s81
    %p83 = scmp.eq.s32.totalorder %s15, 0
    %p84 = por %p82, %p83
    %s85 = ssub.s32 %s9, %s16
    %p86 = scmp.eq.s32.totalorder %s85, 0
    %s88 = sadd.s32 %s87, 1
    %s89 = scalar_select %p86, %s87, %s88
    %p92 = pneg %p86
    %p93 = scmp.eq.s32.totalorder %s9, 1
    %p94 = por %p92, %p93
    %p95 = scmp.ne.s32.totalorder %s87, %s90
    %p96 = scmp.eq.s32.totalorder %s9, 0
    %p97 = por %p95, %p96
    %p98 = scmp.ne.s32.totalorder %s87, %s90
    %p99 = scmp.eq.s32.totalorder %s14, 1
    %p100 = por %p98, %p99
    %p101 = scmp.ne.s32.totalorder %s90, %s91
    %p102 = scmp.eq.s32.totalorder %s14, 0
    %p103 = por %p101, %p102
    %p104 = scmp.ne.s32.totalorder %s90, %s91
    %p105 = scmp.eq.s32.totalorder %s15, 1
    %p106 = por %p104, %p105
    %p108 = scmp.ne.s32.totalorder %s91, %s107
    %p109 = scmp.eq.s32.totalorder %s15, 0
    %p110 = por %p108, %p109
    %p111 = scmp.le.s32.totalorder 1, %s9
    %p112 = scmp.lt.s32.totalorder %s9, 3
    %p113 = pnand %p111, %p112
    %p114 = pneg %p113
    // Predicated region
    $region9: #{vae_encode_forward.6} parent=5 // pred_check
      _
    $region10: #{vae_encode_forward.6} parent=5 // pred_check_branch
      %116 = sbr.rel (%p113) target = $region12
    $region11: #{vae_encode_forward.6} parent=5 // pred_region
      %s117 = ssub.s32 %s9, 1
      // Predicated region
      $region13: #{vae_encode_forward.6} parent=11 // pred_check
        %p118 = pneg %p56
      $region14: #{vae_encode_forward.6} parent=11 // pred_check_branch
        %120 = sbr.rel (%p118) target = $region16
      $region15: #{vae_encode_forward.6} parent=11 // pred_region
        _
      $region16: #{vae_encode_forward.6} parent=11 // pred_fallthru
        _
      // Predicated region
      $region17: #{vae_encode_forward.6} parent=11 // pred_check
        %p121 = pneg %p77
      $region18: #{vae_encode_forward.6} parent=11 // pred_check_branch
        %123 = sbr.rel (%p121) target = $region20
      $region19: #{vae_encode_forward.6} parent=11 // pred_region
        _
      $region20: #{vae_encode_forward.6} parent=11 // pred_fallthru
        _
    $region12: #{vae_encode_forward.6} parent=5 // pred_fallthru
      _
    %p124 = scmp.lt.s32.totalorder %s9, 2
    // Predicated region
    $region21: #{vae_encode_forward.6} parent=5 // pred_check
      %p125 = pneg %p124
    $region22: #{vae_encode_forward.6} parent=5 // pred_check_branch
      %127 = sbr.rel (%p125) target = $region24
    $region23: #{vae_encode_forward.6} parent=5 // pred_region
      // Predicated region
      $region25: #{vae_encode_forward.6} parent=23 // pred_check
        %p128 = pneg %p29
      $region26: #{vae_encode_forward.6} parent=23 // pred_check_branch
        %130 = sbr.rel (%p128) target = $region28
      $region27: #{vae_encode_forward.6} parent=23 // pred_region
        %p131 = scmp.lt.s32.totalorder %s9, 1
        %s132 = scalar_select %p131, %s9, 1
        %s133 = smul.addr %s132, 20
        %s134 = smul.addr %s133, 4
        %s135 = scalar_lea.vmem %s0, %s134
      $region28: #{vae_encode_forward.6} parent=23 // pred_fallthru
        _
    $region24: #{vae_encode_forward.6} parent=5 // pred_fallthru
      _
    %p136 = scmp.le.s32.totalorder 1, %s9
    %p137 = scmp.lt.s32.totalorder %s9, 3
    %p138 = pnand %p136, %p137
    %p139 = pneg %p138
    // Predicated region
    $region29: #{vae_encode_forward.6} parent=5 // pred_check
      _
    $region30: #{vae_encode_forward.6} parent=5 // pred_check_branch
      %141 = sbr.rel (%p138) target = $region32
    $region31: #{vae_encode_forward.6} parent=5 // pred_region
      %s142 = ssub.s32 %s9, 1
      %p143 = scmp.lt.s32.totalorder %s14, 1
      %s144 = scalar_select %p143, %s14, 1
      %s145 = smul.addr %s144, 20
      %s146 = smul.addr %s145, 4
      %s147 = scalar_lea.vmem %s0, %s146
      %p148 = pneg %p35
      %p149 = pneg %p32
      %p150 = pneg %p56
      %p151 = pneg %p53
      %p152 = pneg %p77
      %p153 = pneg %p74
      %p154 = pneg %p103
      %p155 = pneg %p100
      %p156 = scmp.lt.s32.totalorder %s14, 1
      %s157 = scalar_select %p156, %s14, 1
      %s158 = smul.addr %s157, 2
      %s159 = smul.addr %s158, 4
      %s160 = scalar_lea.vmem %s3, %s159
      %p161 = scmp.lt.s32.totalorder %s14, 1
      %s162 = scalar_select %p161, %s14, 1
      %s163 = smul.addr %s162, 20
      %s164 = smul.addr %s163, 4
      %s165 = scalar_lea.vmem %s0, %s164
      %p166 = scmp.lt.s32.totalorder %s14, 1
      %s167 = scalar_select %p166, %s14, 1
      %s168 = smul.addr %s167, 2
      %s169 = smul.addr %s168, 4
      %s170 = scalar_lea.vmem %s3, %s169
      %v172 = vld [vmem:[%s165] sm:$0x3]
      %v173 = vld [vmem:[%s165 + $0x4] sm:$0x3]
      %v174 = vld [vmem:[%s165 + $0x8] sm:$0x3]
      %v175 = vld [vmem:[%s165 + $0xc] sm:$0x3]
      %v176 = vld [vmem:[%s1] sm:$0xf]
      %v177 = vld [vmem:[%s1 + $0x4] sm:$0xf]
      %v178 = vld [vmem:[%s1 + $0x8] sm:$0xf]
      %v179 = vld [vmem:[%s1 + $0xc] sm:$0xf]
      %s180 = scalar_lea.vmem %s165, 20
      %v181 = vld [vmem:[%s180] sm:$0x3]
      %v182 = vld [vmem:[%s180 + $0x4] sm:$0x3]
      %v183 = vld [vmem:[%s180 + $0x8] sm:$0x3]
      %v184 = vld [vmem:[%s180 + $0xc] sm:$0x3]
      %s185 = scalar_lea.vmem %s1, 16
      %v186 = vld [vmem:[%s185] sm:$0xf]
      %v187 = vld [vmem:[%s185 + $0x4] sm:$0xf]
      %v188 = vld [vmem:[%s185 + $0x8] sm:$0xf]
      %v189 = vld [vmem:[%s185 + $0xc] sm:$0xf]
      %v194 = vcombine.low %v181, %v182
      %v195 = vcombine.low %v183, %v184
      %v197 = vunpack.c.l.s4 1983009808
      %v198 = vunpack.c.0.s8 %v197
      %v199 = vlaneseq
      %v200 = vshrl.u32 %v199, 7
      %v201 = vsub.s32 %v198, %v200
      %v202 = vrot.slane %v194, %v201
      %v204 = vunpack.c.l.s4 1983009808
      %v205 = vunpack.c.0.s8 %v204
      %v206 = vlaneseq
      %v207 = vshrl.u32 %v206, 7
      %v208 = vsub.s32 %v205, %v207
      %v209 = vrot.slane %v195, %v208
      %v210 = vcombine.low %v202, %v209
      %v215 = vunpack.c.l.b16 %v186
      %v216 = vunpack.c.l.b16 %v187
      %v217 = vunpack.c.l.b16 %v188
      %v218 = vunpack.c.l.b16 %v189
      %v219 = vpack.c.b16 %v216, %v215
      %v220 = vpack.c.b16 %v218, %v217
      %vm223 = vcmask 261120
      %v225 = vsel %vm223, %v210, 0
      %227 = vmatprep.subr.bf16.mxu0 0
      %228 = vmatpush1.bf16.msra.mxu0 %v219
      %229 = vmatprep.subr.bf16.mxu0 0
      %230 = vmatpush1.bf16.msra.mxu0 %v220
      %231 = vmatprep.subr.bf16.mxu0 0
      %232 = vmatpush1.bf16.msra.mxu0 0
      %233 = vmatprep.subr.bf16.mxu0 0
      %234 = vmatpush1.bf16.msra.mxu0 0
      %235 = vmatprep.subr.bf16.mxu0 0
      %236 = vmatpush1.bf16.msra.mxu0 0
      %237 = vmatprep.subr.bf16.mxu0 0
      %238 = vmatpush1.bf16.msra.mxu0 0
      %239 = vmatprep.subr.bf16.mxu0 0
      %240 = vmatpush1.bf16.msra.mxu0 0
      %241 = vmatprep.subr.bf16.mxu0 0
      %242 = vmatpush1.bf16.msra.mxu0 0
      %243 = vmatprep.subr.bf16.mxu0 0
      %244 = vmatpush1.bf16.msra.mxu0 0
      %245 = vmatprep.subr.bf16.mxu0 0
      %246 = vmatpush1.bf16.msra.mxu0 0
      %247 = vmatprep.subr.bf16.mxu0 0
      %248 = vmatpush1.bf16.msra.mxu0 0
      %249 = vmatprep.subr.bf16.mxu0 0
      %250 = vmatpush1.bf16.msra.mxu0 0
      %251 = vmatprep.subr.bf16.mxu0 0
      %252 = vmatpush1.bf16.msra.mxu0 0
      %253 = vmatprep.subr.bf16.mxu0 0
      %254 = vmatpush1.bf16.msra.mxu0 0
      %255 = vmatprep.subr.bf16.mxu0 0
      %256 = vmatpush1.bf16.msra.mxu0 0
      %257 = vmatprep.subr.bf16.mxu0 0
      %258 = vmatpush1.bf16.msra.mxu0 0
      %259 = vmatprep.mubr.bf16.mxu0 0
      %260 = vmatmul.mubr.bf16.gmra.mrb[0].mxu0 %v225
      %v261 = vpop.f32.mrb[0].mxu0
      %v262 = vadd.f32 0.0, %v261
      %v263 = vpop.f32.mrb[0].mxu0
      %v264 = vpop.f32.mrb[0].mxu0
      %v265 = vadd.f32 0.0, %v264
      %v266 = vpop.f32.mrb[0].mxu0
      %267 = vdwg.mxu0
      %v272 = vcombine.low %v172, %v173
      %v273 = vcombine.low %v174, %v175
      %v275 = vunpack.c.l.s4 1983009808
      %v276 = vunpack.c.0.s8 %v275
      %v277 = vlaneseq
      %v278 = vshrl.u32 %v277, 7
      %v279 = vsub.s32 %v276, %v278
      %v280 = vrot.slane %v272, %v279
      %v282 = vunpack.c.l.s4 1983009808
      %v283 = vunpack.c.0.s8 %v282
      %v284 = vlaneseq
      %v285 = vshrl.u32 %v284, 7
      %v286 = vsub.s32 %v283, %v285
      %v287 = vrot.slane %v273, %v286
      %v288 = vcombine.low %v280, %v287
      %v293 = vunpack.c.l.b16 %v176
      %v294 = vunpack.c.l.b16 %v177
      %v295 = vunpack.c.l.b16 %v178
      %v296 = vunpack.c.l.b16 %v179
      %v297 = vpack.c.b16 %v294, %v293
      %v298 = vpack.c.b16 %v296, %v295
      %v302 = vsel %vm223, %v288, 0
      %304 = vmatprep.subr.bf16.mxu0 0
      %305 = vmatpush1.bf16.msra.mxu0 %v297
      %306 = vmatprep.subr.bf16.mxu0 0
      %307 = vmatpush1.bf16.msra.mxu0 %v298
      %308 = vmatprep.subr.bf16.mxu0 0
      %309 = vmatpush1.bf16.msra.mxu0 0
      %310 = vmatprep.subr.bf16.mxu0 0
      %311 = vmatpush1.bf16.msra.mxu0 0
      %312 = vmatprep.subr.bf16.mxu0 0
      %313 = vmatpush1.bf16.msra.mxu0 0
      %314 = vmatprep.subr.bf16.mxu0 0
      %315 = vmatpush1.bf16.msra.mxu0 0
      %316 = vmatprep.subr.bf16.mxu0 0
      %317 = vmatpush1.bf16.msra.mxu0 0
      %318 = vmatprep.subr.bf16.mxu0 0
      %319 = vmatpush1.bf16.msra.mxu0 0
      %320 = vmatprep.subr.bf16.mxu0 0
      %321 = vmatpush1.bf16.msra.mxu0 0
      %322 = vmatprep.subr.bf16.mxu0 0
      %323 = vmatpush1.bf16.msra.mxu0 0
      %324 = vmatprep.subr.bf16.mxu0 0
      %325 = vmatpush1.bf16.msra.mxu0 0
      %326 = vmatprep.subr.bf16.mxu0 0
      %327 = vmatpush1.bf16.msra.mxu0 0
      %328 = vmatprep.subr.bf16.mxu0 0
      %329 = vmatpush1.bf16.msra.mxu0 0
      %330 = vmatprep.subr.bf16.mxu0 0
      %331 = vmatpush1.bf16.msra.mxu0 0
      %332 = vmatprep.subr.bf16.mxu0 0
      %333 = vmatpush1.bf16.msra.mxu0 0
      %334 = vmatprep.subr.bf16.mxu0 0
      %335 = vmatpush1.bf16.msra.mxu0 0
      %336 = vmatprep.mubr.bf16.mxu0 0
      %337 = vmatmul.mubr.bf16.gmra.mrb[0].mxu0 %v302
      %v338 = vpop.f32.mrb[0].mxu0
      %v339 = vadd.f32 %v262, %v338
      %v340 = vpop.f32.mrb[0].mxu0
      %v341 = vpop.f32.mrb[0].mxu0
      %v342 = vadd.f32 %v265, %v341
      %v343 = vpop.f32.mrb[0].mxu0
      %344 = vdwg.mxu0
      %v345 = vld [vmem:[%s165] sm:$0x7]
      %v346 = vld [vmem:[%s165 + $0x4] sm:$0x7]
      %v347 = vld [vmem:[%s165 + $0x8] sm:$0x7]
      %v348 = vld [vmem:[%s165 + $0xc] sm:$0x7]
      %v354 = vunpack.c.l.s4 1983009808
      %v355 = vunpack.c.0.s8 %v354
      %v356 = vlaneseq
      %v357 = vshrl.u32 %v356, 7
      %v358 = vsub.s32 %v355, %v357
      %v359 = vrot.slane %v345, %v358
      %v360 = vcombine.high %v359, %v359
      %v362 = vunpack.c.l.s4 1983009808
      %v363 = vunpack.c.0.s8 %v362
      %v364 = vlaneseq
      %v365 = vshrl.u32 %v364, 7
      %v366 = vsub.s32 %v363, %v365
      %v367 = vrot.slane %v346, %v366
      %v368 = vcombine.high %v367, %v367
      %v370 = vunpack.c.l.s4 1983009808
      %v371 = vunpack.c.0.s8 %v370
      %v372 = vlaneseq
      %v373 = vshrl.u32 %v372, 7
      %v374 = vsub.s32 %v371, %v373
      %v375 = vrot.slane %v347, %v374
      %v376 = vcombine.high %v375, %v375
      %v378 = vunpack.c.l.s4 1983009808
      %v379 = vunpack.c.0.s8 %v378
      %v380 = vlaneseq
      %v381 = vshrl.u32 %v380, 7
      %v382 = vsub.s32 %v379, %v381
      %v383 = vrot.slane %v348, %v382
      %v384 = vcombine.high %v383, %v383
      %vm385 = vsmask.f32 1280
      %vm386 = vsmask.f32 3336
      %vm387 = vmor %vm385, %vm386
      %vm388 = vsmask.f32 5392
      %vm389 = vmor %vm387, %vm388
      %vm390 = vsmask.f32 7448
      %vm391 = vmor %vm389, %vm390
      %v393 = vshrl.u32 %v359, 16
      %v395 = vrot.slane %v393, 6
      %v396 = vshll.u32 %v359, 16
      %v398 = vrot.slane %v396, 7
      %v399 = vor.u32 %v395, %v398
      %v400 = vrot.slane %v399, 2
      %v402 = vshll.u32 %v360, 16
      %v404 = vrot.slane %v402, 7
      %v405 = vsel %vm391, %v400, %v404
      %v407 = vshrl.u32 %v367, 16
      %v409 = vrot.slane %v407, 6
      %v410 = vshll.u32 %v367, 16
      %v412 = vrot.slane %v410, 7
      %v413 = vor.u32 %v409, %v412
      %v414 = vrot.slane %v413, 2
      %v416 = vshll.u32 %v368, 16
      %v418 = vrot.slane %v416, 7
      %v419 = vsel %vm391, %v414, %v418
      %v421 = vshrl.u32 %v375, 16
      %v423 = vrot.slane %v421, 6
      %v424 = vshll.u32 %v375, 16
      %v426 = vrot.slane %v424, 7
      %v427 = vor.u32 %v423, %v426
      %v428 = vrot.slane %v427, 2
      %v430 = vshll.u32 %v376, 16
      %v432 = vrot.slane %v430, 7
      %v433 = vsel %vm391, %v428, %v432
      %v435 = vshrl.u32 %v383, 16
      %v437 = vrot.slane %v435, 6
      %v438 = vshll.u32 %v383, 16
      %v440 = vrot.slane %v438, 7
      %v441 = vor.u32 %v437, %v440
      %v442 = vrot.slane %v441, 2
      %v444 = vshll.u32 %v384, 16
      %v446 = vrot.slane %v444, 7
      %v447 = vsel %vm391, %v442, %v446
      %s448 = scalar_lea.vmem %s1, 32
      %v449 = vld [vmem:[%s448] sm:$0xf]
      %v450 = vld [vmem:[%s448 + $0x4] sm:$0xf]
      %v451 = vld [vmem:[%s448 + $0x8] sm:$0xf]
      %v452 = vld [vmem:[%s448 + $0xc] sm:$0xf]
      %v453 = vcombine.low %v405, %v419
      %v454 = vcombine.low %v433, %v447
      %v456 = vunpack.c.l.s4 1983009808
      %v457 = vunpack.c.0.s8 %v456
      %v458 = vlaneseq
      %v459 = vshrl.u32 %v458, 7
      %v460 = vsub.s32 %v457, %v459
      %v461 = vrot.slane %v453, %v460
      %v463 = vunpack.c.l.s4 1983009808
      %v464 = vunpack.c.0.s8 %v463
      %v465 = vlaneseq
      %v466 = vshrl.u32 %v465, 7
      %v467 = vsub.s32 %v464, %v466
      %v468 = vrot.slane %v454, %v467
      %v469 = vcombine.low %v461, %v468
      %v474 = vunpack.c.l.b16 %v449
      %v475 = vunpack.c.l.b16 %v450
      %v476 = vunpack.c.l.b16 %v451
      %v477 = vunpack.c.l.b16 %v452
      %v478 = vpack.c.b16 %v475, %v474
      %v479 = vpack.c.b16 %v477, %v476
      %v483 = vsel %vm223, %v469, 0
      %485 = vmatprep.subr.bf16.mxu0 0
      %486 = vmatpush1.bf16.msra.mxu0 %v478
      %487 = vmatprep.subr.bf16.mxu0 0
      %488 = vmatpush1.bf16.msra.mxu0 %v479
      %489 = vmatprep.subr.bf16.mxu0 0
      %490 = vmatpush1.bf16.msra.mxu0 0
      %491 = vmatprep.subr.bf16.mxu0 0
      %492 = vmatpush1.bf16.msra.mxu0 0
      %493 = vmatprep.subr.bf16.mxu0 0
      %494 = vmatpush1.bf16.msra.mxu0 0
      %495 = vmatprep.subr.bf16.mxu0 0
      %496 = vmatpush1.bf16.msra.mxu0 0
      %497 = vmatprep.subr.bf16.mxu0 0
      %498 = vmatpush1.bf16.msra.mxu0 0
      %499 = vmatprep.subr.bf16.mxu0 0
      %500 = vmatpush1.bf16.msra.mxu0 0
      %501 = vmatprep.subr.bf16.mxu0 0
      %502 = vmatpush1.bf16.msra.mxu0 0
      %503 = vmatprep.subr.bf16.mxu0 0
      %504 = vmatpush1.bf16.msra.mxu0 0
      %505 = vmatprep.subr.bf16.mxu0 0
      %506 = vmatpush1.bf16.msra.mxu0 0
      %507 = vmatprep.subr.bf16.mxu0 0
      %508 = vmatpush1.bf16.msra.mxu0 0
      %509 = vmatprep.subr.bf16.mxu0 0
      %510 = vmatpush1.bf16.msra.mxu0 0
      %511 = vmatprep.subr.bf16.mxu0 0
      %512 = vmatpush1.bf16.msra.mxu0 0
      %513 = vmatprep.subr.bf16.mxu0 0
      %514 = vmatpush1.bf16.msra.mxu0 0
      %515 = vmatprep.subr.bf16.mxu0 0
      %516 = vmatpush1.bf16.msra.mxu0 0
      %517 = vmatprep.mubr.bf16.mxu0 0
      %518 = vmatmul.mubr.bf16.gmra.mrb[0].mxu0 %v483
      %v519 = vpop.f32.mrb[0].mxu0
      %v520 = vadd.f32 0.0, %v519
      %v521 = vpop.f32.mrb[0].mxu0
      %v522 = vpop.f32.mrb[0].mxu0
      %v523 = vadd.f32 0.0, %v522
      %v524 = vpop.f32.mrb[0].mxu0
      %525 = vdwg.mxu0
      %v526 = vadd.f32 %v339, %v520
      %v527 = vadd.f32 %v342, %v523
      %s528 = scalar_lea.vmem %s165, 40
      %v529 = vld [vmem:[%s528] sm:$0x3]
      %v530 = vld [vmem:[%s528 + $0x4] sm:$0x3]
      %v531 = vld [vmem:[%s528 + $0x8] sm:$0x3]
      %v532 = vld [vmem:[%s528 + $0xc] sm:$0x3]
      %s533 = scalar_lea.vmem %s1, 48
      %v534 = vld [vmem:[%s533] sm:$0xf]
      %v535 = vld [vmem:[%s533 + $0x4] sm:$0xf]
      %v536 = vld [vmem:[%s533 + $0x8] sm:$0xf]
      %v537 = vld [vmem:[%s533 + $0xc] sm:$0xf]
      %v542 = vcombine.low %v529, %v530
      %v543 = vcombine.low %v531, %v532
      %v545 = vunpack.c.l.s4 1983009808
      %v546 = vunpack.c.0.s8 %v545
      %v547 = vlaneseq
      %v548 = vshrl.u32 %v547, 7
      %v549 = vsub.s32 %v546, %v548
      %v550 = vrot.slane %v542, %v549
      %v552 = vunpack.c.l.s4 1983009808
      %v553 = vunpack.c.0.s8 %v552
      %v554 = vlaneseq
      %v555 = vshrl.u32 %v554, 7
      %v556 = vsub.s32 %v553, %v555
      %v557 = vrot.slane %v543, %v556
      %v558 = vcombine.low %v550, %v557
      %v563 = vunpack.c.l.b16 %v534
      %v564 = vunpack.c.l.b16 %v535
      %v565 = vunpack.c.l.b16 %v536
      %v566 = vunpack.c.l.b16 %v537
      %v567 = vpack.c.b16 %v564, %v563
      %v568 = vpack.c.b16 %v566, %v565
      %v572 = vsel %vm223, %v558, 0
      %574 = vmatprep.subr.bf16.mxu0 0
      %575 = vmatpush1.bf16.msra.mxu0 %v567
      %576 = vmatprep.subr.bf16.mxu0 0
      %577 = vmatpush1.bf16.msra.mxu0 %v568
      %578 = vmatprep.subr.bf16.mxu0 0
      %579 = vmatpush1.bf16.msra.mxu0 0
      %580 = vmatprep.subr.bf16.mxu0 0
      %581 = vmatpush1.bf16.msra.mxu0 0
      %582 = vmatprep.subr.bf16.mxu0 0
      %583 = vmatpush1.bf16.msra.mxu0 0
      %584 = vmatprep.subr.bf16.mxu0 0
      %585 = vmatpush1.bf16.msra.mxu0 0
      %586 = vmatprep.subr.bf16.mxu0 0
      %587 = vmatpush1.bf16.msra.mxu0 0
      %588 = vmatprep.subr.bf16.mxu0 0
      %589 = vmatpush1.bf16.msra.mxu0 0
      %590 = vmatprep.subr.bf16.mxu0 0
      %591 = vmatpush1.bf16.msra.mxu0 0
      %592 = vmatprep.subr.bf16.mxu0 0
      %593 = vmatpush1.bf16.msra.mxu0 0
      %594 = vmatprep.subr.bf16.mxu0 0
      %595 = vmatpush1.bf16.msra.mxu0 0
      %596 = vmatprep.subr.bf16.mxu0 0
      %597 = vmatpush1.bf16.msra.mxu0 0
      %598 = vmatprep.subr.bf16.mxu0 0
      %599 = vmatpush1.bf16.msra.mxu0 0
      %600 = vmatprep.subr.bf16.mxu0 0
      %601 = vmatpush1.bf16.msra.mxu0 0
      %602 = vmatprep.subr.bf16.mxu0 0
      %603 = vmatpush1.bf16.msra.mxu0 0
      %604 = vmatprep.subr.bf16.mxu0 0
      %605 = vmatpush1.bf16.msra.mxu0 0
      %606 = vmatprep.mubr.bf16.mxu0 0
      %607 = vmatmul.mubr.bf16.gmra.mrb[0].mxu0 %v572
      %v608 = vpop.f32.mrb[0].mxu0
      %v609 = vadd.f32 0.0, %v608
      %v610 = vpop.f32.mrb[0].mxu0
      %v611 = vpop.f32.mrb[0].mxu0
      %v612 = vadd.f32 0.0, %v611
      %v613 = vpop.f32.mrb[0].mxu0
      %614 = vdwg.mxu0
      %v615 = vadd.f32 %v526, %v609
      %v616 = vadd.f32 %v527, %v612
      %s617 = scalar_lea.vmem %s165, 60
      %v618 = vld [vmem:[%s617] sm:$0x3]
      %v619 = vld [vmem:[%s617 + $0x4] sm:$0x3]
      %v620 = vld [vmem:[%s617 + $0x8] sm:$0x3]
      %v621 = vld [vmem:[%s617 + $0xc] sm:$0x3]
      %s622 = scalar_lea.vmem %s1, 64
      %v623 = vld [vmem:[%s622] sm:$0xf]
      %v624 = vld [vmem:[%s622 + $0x4] sm:$0xf]
      %v625 = vld [vmem:[%s622 + $0x8] sm:$0xf]
      %v626 = vld [vmem:[%s622 + $0xc] sm:$0xf]
      %v631 = vcombine.low %v618, %v619
      %v632 = vcombine.low %v620, %v621
      %v634 = vunpack.c.l.s4 1983009808
      %v635 = vunpack.c.0.s8 %v634
      %v636 = vlaneseq
      %v637 = vshrl.u32 %v636, 7
      %v638 = vsub.s32 %v635, %v637
      %v639 = vrot.slane %v631, %v638
      %v641 = vunpack.c.l.s4 1983009808
      %v642 = vunpack.c.0.s8 %v641
      %v643 = vlaneseq
      %v644 = vshrl.u32 %v643, 7
      %v645 = vsub.s32 %v642, %v644
      %v646 = vrot.slane %v632, %v645
      %v647 = vcombine.low %v639, %v646
      %v652 = vunpack.c.l.b16 %v623
      %v653 = vunpack.c.l.b16 %v624
      %v654 = vunpack.c.l.b16 %v625
      %v655 = vunpack.c.l.b16 %v626
      %v656 = vpack.c.b16 %v653, %v652
      %v657 = vpack.c.b16 %v655, %v654
      %v661 = vsel %vm223, %v647, 0
      %663 = vmatprep.subr.bf16.mxu0 0
      %664 = vmatpush1.bf16.msra.mxu0 %v656
      %665 = vmatprep.subr.bf16.mxu0 0
      %666 = vmatpush1.bf16.msra.mxu0 %v657
      %667 = vmatprep.subr.bf16.mxu0 0
      %668 = vmatpush1.bf16.msra.mxu0 0
      %669 = vmatprep.subr.bf16.mxu0 0
      %670 = vmatpush1.bf16.msra.mxu0 0
      %671 = vmatprep.subr.bf16.mxu0 0
      %672 = vmatpush1.bf16.msra.mxu0 0
      %673 = vmatprep.subr.bf16.mxu0 0
      %674 = vmatpush1.bf16.msra.mxu0 0
      %675 = vmatprep.subr.bf16.mxu0 0
      %676 = vmatpush1.bf16.msra.mxu0 0
      %677 = vmatprep.subr.bf16.mxu0 0
      %678 = vmatpush1.bf16.msra.mxu0 0
      %679 = vmatprep.subr.bf16.mxu0 0
      %680 = vmatpush1.bf16.msra.mxu0 0
      %681 = vmatprep.subr.bf16.mxu0 0
      %682 = vmatpush1.bf16.msra.mxu0 0
      %683 = vmatprep.subr.bf16.mxu0 0
      %684 = vmatpush1.bf16.msra.mxu0 0
      %685 = vmatprep.subr.bf16.mxu0 0
      %686 = vmatpush1.bf16.msra.mxu0 0
      %687 = vmatprep.subr.bf16.mxu0 0
      %688 = vmatpush1.bf16.msra.mxu0 0
      %689 = vmatprep.subr.bf16.mxu0 0
      %690 = vmatpush1.bf16.msra.mxu0 0
      %691 = vmatprep.subr.bf16.mxu0 0
      %692 = vmatpush1.bf16.msra.mxu0 0
      %693 = vmatprep.subr.bf16.mxu0 0
      %694 = vmatpush1.bf16.msra.mxu0 0
      %695 = vmatprep.mubr.bf16.mxu0 0
      %696 = vmatmul.mubr.bf16.gmra.mrb[0].mxu0 %v661
      %v697 = vpop.f32.mrb[0].mxu0
      %v698 = vadd.f32 0.0, %v697
      %v699 = vpop.f32.mrb[0].mxu0
      %v700 = vpop.f32.mrb[0].mxu0
      %v701 = vadd.f32 0.0, %v700
      %v702 = vpop.f32.mrb[0].mxu0
      %703 = vdwg.mxu0
      %v704 = vadd.f32 %v615, %v698
      %v705 = vadd.f32 %v616, %v701
      %v706 = vld [vmem:[%s528] sm:$0x7]
      %v707 = vld [vmem:[%s528 + $0x4] sm:$0x7]
      %v708 = vld [vmem:[%s528 + $0x8] sm:$0x7]
      %v709 = vld [vmem:[%s528 + $0xc] sm:$0x7]
      %v715 = vunpack.c.l.s4 1983009808
      %v716 = vunpack.c.0.s8 %v715
      %v717 = vlaneseq
      %v718 = vshrl.u32 %v717, 7
      %v719 = vsub.s32 %v716, %v718
      %v720 = vrot.slane %v706, %v719
      %v721 = vcombine.high %v720, %v720
      %v723 = vunpack.c.l.s4 1983009808
      %v724 = vunpack.c.0.s8 %v723
      %v725 = vlaneseq
      %v726 = vshrl.u32 %v725, 7
      %v727 = vsub.s32 %v724, %v726
      %v728 = vrot.slane %v707, %v727
      %v729 = vcombine.high %v728, %v728
      %v731 = vunpack.c.l.s4 1983009808
      %v732 = vunpack.c.0.s8 %v731
      %v733 = vlaneseq
      %v734 = vshrl.u32 %v733, 7
      %v735 = vsub.s32 %v732, %v734
      %v736 = vrot.slane %v708, %v735
      %v737 = vcombine.high %v736, %v736
      %v739 = vunpack.c.l.s4 1983009808
      %v740 = vunpack.c.0.s8 %v739
      %v741 = vlaneseq
      %v742 = vshrl.u32 %v741, 7
      %v743 = vsub.s32 %v740, %v742
      %v744 = vrot.slane %v709, %v743
      %v745 = vcombine.high %v744, %v744
      %v747 = vshrl.u32 %v720, 16
      %v749 = vrot.slane %v747, 6
      %v750 = vshll.u32 %v720, 16
      %v752 = vrot.slane %v750, 7
      %v753 = vor.u32 %v749, %v752
      %v754 = vrot.slane %v753, 2
      %v756 = vshll.u32 %v721, 16
      %v758 = vrot.slane %v756, 7
      %v759 = vsel %vm391, %v754, %v758
      %v761 = vshrl.u32 %v728, 16
      %v763 = vrot.slane %v761, 6
      %v764 = vshll.u32 %v728, 16
      %v766 = vrot.slane %v764, 7
      %v767 = vor.u32 %v763, %v766
      %v768 = vrot.slane %v767, 2
      %v770 = vshll.u32 %v729, 16
      %v772 = vrot.slane %v770, 7
      %v773 = vsel %vm391, %v768, %v772
      %v775 = vshrl.u32 %v736, 16
      %v777 = vrot.slane %v775, 6
      %v778 = vshll.u32 %v736, 16
      %v780 = vrot.slane %v778, 7
      %v781 = vor.u32 %v777, %v780
      %v782 = vrot.slane %v781, 2
      %v784 = vshll.u32 %v737, 16
      %v786 = vrot.slane %v784, 7
      %v787 = vsel %vm391, %v782, %v786
      %v789 = vshrl.u32 %v744, 16
      %v791 = vrot.slane %v789, 6
      %v792 = vshll.u32 %v744, 16
      %v794 = vrot.slane %v792, 7
      %v795 = vor.u32 %v791, %v794
      %v796 = vrot.slane %v795, 2
      %v798 = vshll.u32 %v745, 16
      %v800 = vrot.slane %v798, 7
      %v801 = vsel %vm391, %v796, %v800
      %s802 = scalar_lea.vmem %s1, 80
      %v803 = vld [vmem:[%s802] sm:$0xf]
      %v804 = vld [vmem:[%s802 + $0x4] sm:$0xf]
      %v805 = vld [vmem:[%s802 + $0x8] sm:$0xf]
      %v806 = vld [vmem:[%s802 + $0xc] sm:$0xf]
      %v807 = vcombine.low %v759, %v773
      %v808 = vcombine.low %v787, %v801
      %v810 = vunpack.c.l.s4 1983009808
      %v811 = vunpack.c.0.s8 %v810
      %v812 = vlaneseq
      %v813 = vshrl.u32 %v812, 7
      %v814 = vsub.s32 %v811, %v813
      %v815 = vrot.slane %v807, %v814
      %v817 = vunpack.c.l.s4 1983009808
      %v818 = vunpack.c.0.s8 %v817
      %v819 = vlaneseq
      %v820 = vshrl.u32 %v819, 7
      %v821 = vsub.s32 %v818, %v820
      %v822 = vrot.slane %v808, %v821
      %v823 = vcombine.low %v815, %v822
      %v828 = vunpack.c.l.b16 %v803
      %v829 = vunpack.c.l.b16 %v804
      %v830 = vunpack.c.l.b16 %v805
      %v831 = vunpack.c.l.b16 %v806
      %v832 = vpack.c.b16 %v829, %v828
      %v833 = vpack.c.b16 %v831, %v830
      %v837 = vsel %vm223, %v823, 0
      %839 = vmatprep.subr.bf16.mxu0 0
      %840 = vmatpush1.bf16.msra.mxu0 %v832
      %841 = vmatprep.subr.bf16.mxu0 0
      %842 = vmatpush1.bf16.msra.mxu0 %v833
      %843 = vmatprep.subr.bf16.mxu0 0
      %844 = vmatpush1.bf16.msra.mxu0 0
      %845 = vmatprep.subr.bf16.mxu0 0
      %846 = vmatpush1.bf16.msra.mxu0 0
      %847 = vmatprep.subr.bf16.mxu0 0
      %848 = vmatpush1.bf16.msra.mxu0 0
      %849 = vmatprep.subr.bf16.mxu0 0
      %850 = vmatpush1.bf16.msra.mxu0 0
      %851 = vmatprep.subr.bf16.mxu0 0
      %852 = vmatpush1.bf16.msra.mxu0 0
      %853 = vmatprep.subr.bf16.mxu0 0
      %854 = vmatpush1.bf16.msra.mxu0 0
      %855 = vmatprep.subr.bf16.mxu0 0
      %856 = vmatpush1.bf16.msra.mxu0 0
      %857 = vmatprep.subr.bf16.mxu0 0
      %858 = vmatpush1.bf16.msra.mxu0 0
      %859 = vmatprep.subr.bf16.mxu0 0
      %860 = vmatpush1.bf16.msra.mxu0 0
      %861 = vmatprep.subr.bf16.mxu0 0
      %862 = vmatpush1.bf16.msra.mxu0 0
      %863 = vmatprep.subr.bf16.mxu0 0
      %864 = vmatpush1.bf16.msra.mxu0 0
      %865 = vmatprep.subr.bf16.mxu0 0
      %866 = vmatpush1.bf16.msra.mxu0 0
      %867 = vmatprep.subr.bf16.mxu0 0
      %868 = vmatpush1.bf16.msra.mxu0 0
      %869 = vmatprep.subr.bf16.mxu0 0
      %870 = vmatpush1.bf16.msra.mxu0 0
      %871 = vmatprep.mubr.bf16.mxu0 0
      %872 = vmatmul.mubr.bf16.gmra.mrb[0].mxu0 %v837
      %v873 = vpop.f32.mrb[0].mxu0
      %v874 = vadd.f32 0.0, %v873
      %v875 = vpop.f32.mrb[0].mxu0
      %v876 = vpop.f32.mrb[0].mxu0
      %v877 = vadd.f32 0.0, %v876
      %v878 = vpop.f32.mrb[0].mxu0
      %879 = vdwg.mxu0
      %v880 = vadd.f32 %v704, %v874
      %v881 = vadd.f32 %v705, %v877
      %s882 = scalar_lea.vmem %s165, 4
      %v883 = vld [vmem:[%s882] sm:$0x3]
      %v884 = vld [vmem:[%s882 + $0x4] sm:$0x3]
      %v885 = vld [vmem:[%s882 + $0x8] sm:$0x3]
      %v886 = vld [vmem:[%s882 + $0xc] sm:$0x3]
      %s887 = scalar_lea.vmem %s1, 96
      %v888 = vld [vmem:[%s887] sm:$0xf]
      %v889 = vld [vmem:[%s887 + $0x4] sm:$0xf]
      %v890 = vld [vmem:[%s887 + $0x8] sm:$0xf]
      %v891 = vld [vmem:[%s887 + $0xc] sm:$0xf]
      %v896 = vcombine.low %v883, %v884
      %v897 = vcombine.low %v885, %v886
      %v899 = vunpack.c.l.s4 1983009808
      %v900 = vunpack.c.0.s8 %v899
      %v901 = vlaneseq
      %v902 = vshrl.u32 %v901, 7
      %v903 = vsub.s32 %v900, %v902
      %v904 = vrot.slane %v896, %v903
      %v906 = vunpack.c.l.s4 1983009808
      %v907 = vunpack.c.0.s8 %v906
      %v908 = vlaneseq
      %v909 = vshrl.u32 %v908, 7
      %v910 = vsub.s32 %v907, %v909
      %v911 = vrot.slane %v897, %v910
      %v912 = vcombine.low %v904, %v911
      %v917 = vunpack.c.l.b16 %v888
      %v918 = vunpack.c.l.b16 %v889
      %v919 = vunpack.c.l.b16 %v890
      %v920 = vunpack.c.l.b16 %v891
      %v921 = vpack.c.b16 %v918, %v917
      %v922 = vpack.c.b16 %v920, %v919
      %v926 = vsel %vm223, %v912, 0
      %928 = vmatprep.subr.bf16.mxu0 0
      %929 = vmatpush1.bf16.msra.mxu0 %v921
      %930 = vmatprep.subr.bf16.mxu0 0
      %931 = vmatpush1.bf16.msra.mxu0 %v922
      %932 = vmatprep.subr.bf16.mxu0 0
      %933 = vmatpush1.bf16.msra.mxu0 0
      %934 = vmatprep.subr.bf16.mxu0 0
      %935 = vmatpush1.bf16.msra.mxu0 0
      %936 = vmatprep.subr.bf16.mxu0 0
      %937 = vmatpush1.bf16.msra.mxu0 0
      %938 = vmatprep.subr.bf16.mxu0 0
      %939 = vmatpush1.bf16.msra.mxu0 0
      %940 = vmatprep.subr.bf16.mxu0 0
      %941 = vmatpush1.bf16.msra.mxu0 0
      %942 = vmatprep.subr.bf16.mxu0 0
      %943 = vmatpush1.bf16.msra.mxu0 0
      %944 = vmatprep.subr.bf16.mxu0 0
      %945 = vmatpush1.bf16.msra.mxu0 0
      %946 = vmatprep.subr.bf16.mxu0 0
      %947 = vmatpush1.bf16.msra.mxu0 0
      %948 = vmatprep.subr.bf16.mxu0 0
      %949 = vmatpush1.bf16.msra.mxu0 0
      %950 = vmatprep.subr.bf16.mxu0 0
      %951 = vmatpush1.bf16.msra.mxu0 0
      %952 = vmatprep.subr.bf16.mxu0 0
      %953 = vmatpush1.bf16.msra.mxu0 0
      %954 = vmatprep.subr.bf16.mxu0 0
      %955 = vmatpush1.bf16.msra.mxu0 0
      %956 = vmatprep.subr.bf16.mxu0 0
      %957 = vmatpush1.bf16.msra.mxu0 0
      %958 = vmatprep.subr.bf16.mxu0 0
      %959 = vmatpush1.bf16.msra.mxu0 0
      %960 = vmatprep.mubr.bf16.mxu0 0
      %961 = vmatmul.mubr.bf16.gmra.mrb[0].mxu0 %v926
      %v962 = vpop.f32.mrb[0].mxu0
      %v963 = vadd.f32 0.0, %v962
      %v964 = vpop.f32.mrb[0].mxu0
      %v965 = vpop.f32.mrb[0].mxu0
      %v966 = vadd.f32 0.0, %v965
      %v967 = vpop.f32.mrb[0].mxu0
      %968 = vdwg.mxu0
      %v969 = vadd.f32 %v880, %v963
      %v970 = vadd.f32 %v881, %v966
      %s971 = scalar_lea.vmem %s165, 24
      %v972 = vld [vmem:[%s971] sm:$0x3]
      %v973 = vld [vmem:[%s971 + $0x4] sm:$0x3]
      %v974 = vld [vmem:[%s971 + $0x8] sm:$0x3]
      %v975 = vld [vmem:[%s971 + $0xc] sm:$0x3]
      %s976 = scalar_lea.vmem %s1, 112
      %v977 = vld [vmem:[%s976] sm:$0xf]
      %v978 = vld [vmem:[%s976 + $0x4] sm:$0xf]
      %v979 = vld [vmem:[%s976 + $0x8] sm:$0xf]
      %v980 = vld [vmem:[%s976 + $0xc] sm:$0xf]
      %v985 = vcombine.low %v972, %v973
      %v986 = vcombine.low %v974, %v975
      %v988 = vunpack.c.l.s4 1983009808
      %v989 = vunpack.c.0.s8 %v988
      %v990 = vlaneseq
      %v991 = vshrl.u32 %v990, 7
      %v992 = vsub.s32 %v989, %v991
      %v993 = vrot.slane %v985, %v992
      %v995 = vunpack.c.l.s4 1983009808
      %v996 = vunpack.c.0.s8 %v995
      %v997 = vlaneseq
      %v998 = vshrl.u32 %v997, 7
      %v999 = vsub.s32 %v996, %v998
      %v1000 = vrot.slane %v986, %v999
      %v1001 = vcombine.low %v993, %v1000
      %v1006 = vunpack.c.l.b16 %v977
      %v1007 = vunpack.c.l.b16 %v978
      %v1008 = vunpack.c.l.b16 %v979
      %v1009 = vunpack.c.l.b16 %v980
      %v1010 = vpack.c.b16 %v1007, %v1006
      %v1011 = vpack.c.b16 %v1009, %v1008
      %v1015 = vsel %vm223, %v1001, 0
      %1017 = vmatprep.subr.bf16.mxu0 0
      %1018 = vmatpush1.bf16.msra.mxu0 %v1010
      %1019 = vmatprep.subr.bf16.mxu0 0
      %1020 = vmatpush1.bf16.msra.mxu0 %v1011
      %1021 = vmatprep.subr.bf16.mxu0 0
      %1022 = vmatpush1.bf16.msra.mxu0 0
      %1023 = vmatprep.subr.bf16.mxu0 0
      %1024 = vmatpush1.bf16.msra.mxu0 0
      %1025 = vmatprep.subr.bf16.mxu0 0
      %1026 = vmatpush1.bf16.msra.mxu0 0
      %1027 = vmatprep.subr.bf16.mxu0 0
      %1028 = vmatpush1.bf16.msra.mxu0 0
      %1029 = vmatprep.subr.bf16.mxu0 0
      %1030 = vmatpush1.bf16.msra.mxu0 0
      %1031 = vmatprep.subr.bf16.mxu0 0
      %1032 = vmatpush1.bf16.msra.mxu0 0
      %1033 = vmatprep.subr.bf16.mxu0 0
      %1034 = vmatpush1.bf16.msra.mxu0 0
      %1035 = vmatprep.subr.bf16.mxu0 0
      %1036 = vmatpush1.bf16.msra.mxu0 0
      %1037 = vmatprep.subr.bf16.mxu0 0
      %1038 = vmatpush1.bf16.msra.mxu0 0
      %1039 = vmatprep.subr.bf16.mxu0 0
      %1040 = vmatpush1.bf16.msra.mxu0 0
      %1041 = vmatprep.subr.bf16.mxu0 0
      %1042 = vmatpush1.bf16.msra.mxu0 0
      %1043 = vmatprep.subr.bf16.mxu0 0
      %1044 = vmatpush1.bf16.msra.mxu0 0
      %1045 = vmatprep.subr.bf16.mxu0 0
      %1046 = vmatpush1.bf16.msra.mxu0 0
      %1047 = vmatprep.subr.bf16.mxu0 0
      %1048 = vmatpush1.bf16.msra.mxu0 0
      %1049 = vmatprep.mubr.bf16.mxu0 0
      %1050 = vmatmul.mubr.bf16.gmra.mrb[0].mxu0 %v1015
      %v1051 = vpop.f32.mrb[0].mxu0
      %v1052 = vadd.f32 0.0, %v1051
      %v1053 = vpop.f32.mrb[0].mxu0
      %v1054 = vpop.f32.mrb[0].mxu0
      %v1055 = vadd.f32 0.0, %v1054
      %v1056 = vpop.f32.mrb[0].mxu0
      %1057 = vdwg.mxu0
      %v1058 = vadd.f32 %v969, %v1052
      %v1059 = vadd.f32 %v970, %v1055
      %v1060 = vld [vmem:[%s882] sm:$0x7]
      %v1061 = vld [vmem:[%s882 + $0x4] sm:$0x7]
      %v1062 = vld [vmem:[%s882 + $0x8] sm:$0x7]
      %v1063 = vld [vmem:[%s882 + $0xc] sm:$0x7]
      %v1069 = vunpack.c.l.s4 1983009808
      %v1070 = vunpack.c.0.s8 %v1069
      %v1071 = vlaneseq
      %v1072 = vshrl.u32 %v1071, 7
      %v1073 = vsub.s32 %v1070, %v1072
      %v1074 = vrot.slane %v1060, %v1073
      %v1075 = vcombine.high %v1074, %v1074
      %v1077 = vunpack.c.l.s4 1983009808
      %v1078 = vunpack.c.0.s8 %v1077
      %v1079 = vlaneseq
      %v1080 = vshrl.u32 %v1079, 7
      %v1081 = vsub.s32 %v1078, %v1080
      %v1082 = vrot.slane %v1061, %v1081
      %v1083 = vcombine.high %v1082, %v1082
      %v1085 = vunpack.c.l.s4 1983009808
      %v1086 = vunpack.c.0.s8 %v1085
      %v1087 = vlaneseq
      %v1088 = vshrl.u32 %v1087, 7
      %v1089 = vsub.s32 %v1086, %v1088
      %v1090 = vrot.slane %v1062, %v1089
      %v1091 = vcombine.high %v1090, %v1090
      %v1093 = vunpack.c.l.s4 1983009808
      %v1094 = vunpack.c.0.s8 %v1093
      %v1095 = vlaneseq
      %v1096 = vshrl.u32 %v1095, 7
      %v1097 = vsub.s32 %v1094, %v1096
      %v1098 = vrot.slane %v1063, %v1097
      %v1099 = vcombine.high %v1098, %v1098
      %v1101 = vshrl.u32 %v1074, 16
      %v1103 = vrot.slane %v1101, 6
      %v1104 = vshll.u32 %v1074, 16
      %v1106 = vrot.slane %v1104, 7
      %v1107 = vor.u32 %v1103, %v1106
      %v1108 = vrot.slane %v1107, 2
      %v1110 = vshll.u32 %v1075, 16
      %v1112 = vrot.slane %v1110, 7
      %v1113 = vsel %vm391, %v1108, %v1112
      %v1115 = vshrl.u32 %v1082, 16
      %v1117 = vrot.slane %v1115, 6
      %v1118 = vshll.u32 %v1082, 16
      %v1120 = vrot.slane %v1118, 7
      %v1121 = vor.u32 %v1117, %v1120
      %v1122 = vrot.slane %v1121, 2
      %v1124 = vshll.u32 %v1083, 16
      %v1126 = vrot.slane %v1124, 7
      %v1127 = vsel %vm391, %v1122, %v1126
      %v1129 = vshrl.u32 %v1090, 16
      %v1131 = vrot.slane %v1129, 6
      %v1132 = vshll.u32 %v1090, 16
      %v1134 = vrot.slane %v1132, 7
      %v1135 = vor.u32 %v1131, %v1134
      %v1136 = vrot.slane %v1135, 2
      %v1138 = vshll.u32 %v1091, 16
      %v1140 = vrot.slane %v1138, 7
      %v1141 = vsel %vm391, %v1136, %v1140
      %v1143 = vshrl.u32 %v1098, 16
      %v1145 = vrot.slane %v1143, 6
      %v1146 = vshll.u32 %v1098, 16
      %v1148 = vrot.slane %v1146, 7
      %v1149 = vor.u32 %v1145, %v1148
      %v1150 = vrot.slane %v1149, 2
      %v1152 = vshll.u32 %v1099, 16
      %v1154 = vrot.slane %v1152, 7
      %v1155 = vsel %vm391, %v1150, %v1154
      %s1156 = scalar_lea.vmem %s1, 128
      %v1157 = vld [vmem:[%s1156] sm:$0xf]
      %v1158 = vld [vmem:[%s1156 + $0x4] sm:$0xf]
      %v1159 = vld [vmem:[%s1156 + $0x8] sm:$0xf]
      %v1160 = vld [vmem:[%s1156 + $0xc] sm:$0xf]
      %v1161 = vcombine.low %v1113, %v1127
      %v1162 = vcombine.low %v1141, %v1155
      %v1164 = vunpack.c.l.s4 1983009808
      %v1165 = vunpack.c.0.s8 %v1164
      %v1166 = vlaneseq
      %v1167 = vshrl.u32 %v1166, 7
      %v1168 = vsub.s32 %v1165, %v1167
      %v1169 = vrot.slane %v1161, %v1168
      %v1171 = vunpack.c.l.s4 1983009808
      %v1172 = vunpack.c.0.s8 %v1171
      %v1173 = vlaneseq
      %v1174 = vshrl.u32 %v1173, 7
      %v1175 = vsub.s32 %v1172, %v1174
      %v1176 = vrot.slane %v1162, %v1175
      %v1177 = vcombine.low %v1169, %v1176
      %v1182 = vunpack.c.l.b16 %v1157
      %v1183 = vunpack.c.l.b16 %v1158
      %v1184 = vunpack.c.l.b16 %v1159
      %v1185 = vunpack.c.l.b16 %v1160
      %v1186 = vpack.c.b16 %v1183, %v1182
      %v1187 = vpack.c.b16 %v1185, %v1184
      %v1191 = vsel %vm223, %v1177, 0
      %1193 = vmatprep.subr.bf16.mxu0 0
      %1194 = vmatpush1.bf16.msra.mxu0 %v1186
      %1195 = vmatprep.subr.bf16.mxu0 0
      %1196 = vmatpush1.bf16.msra.mxu0 %v1187
      %1197 = vmatprep.subr.bf16.mxu0 0
      %1198 = vmatpush1.bf16.msra.mxu0 0
      %1199 = vmatprep.subr.bf16.mxu0 0
      %1200 = vmatpush1.bf16.msra.mxu0 0
      %1201 = vmatprep.subr.bf16.mxu0 0
      %1202 = vmatpush1.bf16.msra.mxu0 0
      %1203 = vmatprep.subr.bf16.mxu0 0
      %1204 = vmatpush1.bf16.msra.mxu0 0
      %1205 = vmatprep.subr.bf16.mxu0 0
      %1206 = vmatpush1.bf16.msra.mxu0 0
      %1207 = vmatprep.subr.bf16.mxu0 0
      %1208 = vmatpush1.bf16.msra.mxu0 0
      %1209 = vmatprep.subr.bf16.mxu0 0
      %1210 = vmatpush1.bf16.msra.mxu0 0
      %1211 = vmatprep.subr.bf16.mxu0 0
      %1212 = vmatpush1.bf16.msra.mxu0 0
      %1213 = vmatprep.subr.bf16.mxu0 0
      %1214 = vmatpush1.bf16.msra.mxu0 0
      %1215 = vmatprep.subr.bf16.mxu0 0
      %1216 = vmatpush1.bf16.msra.mxu0 0
      %1217 = vmatprep.subr.bf16.mxu0 0
      %1218 = vmatpush1.bf16.msra.mxu0 0
      %1219 = vmatprep.subr.bf16.mxu0 0
      %1220 = vmatpush1.bf16.msra.mxu0 0
      %1221 = vmatprep.subr.bf16.mxu0 0
      %1222 = vmatpush1.bf16.msra.mxu0 0
      %1223 = vmatprep.subr.bf16.mxu0 0
      %1224 = vmatpush1.bf16.msra.mxu0 0
      %1225 = vmatprep.mubr.bf16.mxu0 0
      %1226 = vmatmul.mubr.bf16.gmra.mrb[0].mxu0 %v1191
      %v1227 = vpop.f32.mrb[0].mxu0
      %v1228 = vadd.f32 0.0, %v1227
      %v1229 = vpop.f32.mrb[0].mxu0
      %v1230 = vpop.f32.mrb[0].mxu0
      %v1231 = vadd.f32 0.0, %v1230
      %v1232 = vpop.f32.mrb[0].mxu0
      %1233 = vdwg.mxu0
      %v1234 = vadd.f32 %v1058, %v1228
      %v1235 = vadd.f32 %v1059, %v1231
      %v1236 = vld [vmem:[%s2] sm:$0x1]
      %v1238 = vlaneseq
      %v1239 = vshrl.u32 %v1238, 7
      %v1240 = vsub.s32 0, %v1239
      %v1241 = vrot.slane %v1236, %v1240
      %v1243 = vadd.f32 %v1234, %v1241
      %v1244 = vadd.f32 %v1235, %v1241
      %v1245 = vsub.f32 0.0, %v1243
      %v1246 = vsub.f32 0.0, %v1244
      %v1247 = vmul.f32 %v1245, 1.442695
      %v1248 = vpow.pop %v1247
      %v1249 = vmul.f32 %v1246, 1.442695
      %v1250 = vpow.pop %v1249
      %v1251 = vadd.f32 %v1248, 1.0
      %v1252 = vadd.f32 %v1250, 1.0
      %v1253 = vrcp.pop %v1251
      %v1254 = vrcp.pop %v1252
      %v1255 = vmul.f32 %v1243, %v1253
      %v1256 = vmul.f32 %v1244, %v1254
      %v1257 = vpack.c.bf16 %v1256, %v1255
      %v1259 = vunpack.c.l.b16 %v1257
      %v1260 = vunpack.c.h.b16 %v1257
      %v1261 = vpack.c.b16 %v1259, %v1259
      %v1262 = vpack.c.b16 %v1260, %v1260
      %vm1265 = vcmask 257024
      %1266 = vst.msk [vmem:[%s170] sm:$0xf] %vm1265, %v1261
      %1267 = vst.msk [vmem:[%s170 + $0x4] sm:$0xf] %vm1265, %v1262
      %p1268 = scmp.lt.s32.totalorder %s14, 1
      %s1269 = scalar_select %p1268, %s14, 1
      %s1270 = smul.addr %s1269, 2
      %s1271 = smul.addr %s1270, 4
      %s1272 = scalar_lea.vmem %s3, %s1271
      // Predicated region
      $region33: #{vae_encode_forward.6} parent=31 // pred_check
        %p1273 = pneg %p100
      $region34: #{vae_encode_forward.6} parent=31 // pred_check_branch
        %1275 = sbr.rel (%p1273) target = $region36
      $region35: #{vae_encode_forward.6} parent=31 // pred_region
        _
      $region36: #{vae_encode_forward.6} parent=31 // pred_fallthru
        _
    $region32: #{vae_encode_forward.6} parent=5 // pred_fallthru
      _
    %p1276 = scmp.le.s32.totalorder 2, %s9
    // Predicated region
    $region37: #{vae_encode_forward.6} parent=5 // pred_check
      %p1277 = pneg %p1276
    $region38: #{vae_encode_forward.6} parent=5 // pred_check_branch
      %1279 = sbr.rel (%p1277) target = $region40
    $region39: #{vae_encode_forward.6} parent=5 // pred_region
      %s1280 = ssub.s32 %s9, 2
      // Predicated region
      $region41: #{vae_encode_forward.6} parent=39 // pred_check
        %p1281 = pneg %p106
      $region42: #{vae_encode_forward.6} parent=39 // pred_check_branch
        %1283 = sbr.rel (%p1281) target = $region44
      $region43: #{vae_encode_forward.6} parent=39 // pred_region
        %p1284 = scmp.lt.s32.totalorder %s15, 1
        %s1285 = scalar_select %p1284, %s15, 1
        %s1286 = smul.addr %s1285, 2
        %s1287 = smul.addr %s1286, 4
        %s1288 = scalar_lea.vmem %s3, %s1287
      $region44: #{vae_encode_forward.6} parent=39 // pred_fallthru
        _
    $region40: #{vae_encode_forward.6} parent=5 // pred_fallthru
      _
  $region6: #{vae_encode_forward.6} parent=0 // loop_footer
    %s13 = sadd.s32 1, %s9
  $region7: #{vae_encode_forward.6} parent=0 // loop_footer_branch
    %8 = sbr.rel target = $region3
  $region8: #{vae_encode_forward.6} parent=0 // loop_exit
    _

// kernel: vae_encode_forward.5
$region0: #{vae_encode_forward.5}
  #allocation0 [shape = 'u32[]', space=smem, size = 0x4, offset = 0x4, fixed_abs, tag = 'smem constant byte address 0x4 - core index']
  #allocation1 [shape = 'u32[144,128]{1,0:T(1,128)}', space=vmem, size = 0x12000, scoped, tag = 'internal scratch']
  %s0 = inlined_call_operand.vmem [shape: bf16[2,36,9,32], index: 0, kind: input, shape index: {}]
  %s1 = inlined_call_operand.vmem [shape: bf16[3,3,32,32], index: 1, kind: input, shape index: {}]
  %s2 = inlined_call_operand.vmem [shape: f32[1,32], index: 2, kind: input, shape index: {}]
  %s3 = inlined_call_operand.vmem [shape: bf16[2,64,32], index: 3, kind: output, shape index: {}]
  %s4 = sld [smem:[#allocation0]]
  $region45: #{vae_encode_forward.5} parent=0
    _
  %s6 = ssub.s32 1, %s4
  %s7 = scalar_select 0, %s6, %s4
  loop: start=0, step=1, limit=4
  $region2: #{vae_encode_forward.5} parent=0 // loop_pre_header
    _
  $region3: #{vae_encode_forward.5} parent=0 // loop_header
    %s9 = sphi 0, %s13
    %p10 = scmp.ge.s32.totalorder %s9, 4
    %s19 = sphi 0, %s21
    %s22 = sphi 0, %s19
    %s23 = sphi 0, %s22
    %s39 = sphi 0, %s23
    %s43 = sphi 0, %s43
    %s45 = sphi 0, %s43
    %s46 = sphi 0, %s45
    %s60 = sphi 0, %s46
    %s64 = sphi 0, %s64
    %s66 = sphi 0, %s64
    %s67 = sphi 0, %s66
    %s81 = sphi 0, %s67
    %s87 = sphi 0, %s89
    %s90 = sphi 0, %s87
    %s91 = sphi 0, %s90
    %s107 = sphi 0, %s91
  $region4: #{vae_encode_forward.5} parent=0 // loop_header_branch
    %12 = sbr.rel (%p10) target = $region8
  $region5: #{vae_encode_forward.5} parent=0 // loop_body
    %s14 = ssub.s32 %s9, 1
    %s15 = ssub.s32 %s9, 2
    %s16 = sadd.s32 %s9, 1
    %s17 = ssub.s32 %s9, %s16
    %p18 = scmp.eq.s32.totalorder %s17, 0
    %s20 = sadd.s32 %s19, 1
    %s21 = scalar_select %p18, %s19, %s20
    %p24 = pneg %p18
    %p25 = scmp.eq.s32.totalorder %s9, 1
    %p26 = por %p24, %p25
    %p27 = scmp.ne.s32.totalorder %s19, %s22
    %p28 = scmp.eq.s32.totalorder %s9, 0
    %p29 = por %p27, %p28
    %p30 = scmp.ne.s32.totalorder %s19, %s22
    %p31 = scmp.eq.s32.totalorder %s14, 1
    %p32 = por %p30, %p31
    %p33 = scmp.ne.s32.totalorder %s22, %s23
    %p34 = scmp.eq.s32.totalorder %s14, 0
    %p35 = por %p33, %p34
    %p36 = scmp.ne.s32.totalorder %s22, %s23
    %p37 = scmp.eq.s32.totalorder %s15, 1
    %p38 = por %p36, %p37
    %p40 = scmp.ne.s32.totalorder %s23, %s39
    %p41 = scmp.eq.s32.totalorder %s15, 0
    %p42 = por %p40, %p41
    %s44 = sadd.s32 %s43, 1
    %p47 = scmp.eq.s32.totalorder %s9, 1
    %p48 = scmp.ne.s32.totalorder %s43, %s45
    %p49 = scmp.eq.s32.totalorder %s9, 0
    %p50 = por %p48, %p49
    %p51 = scmp.ne.s32.totalorder %s43, %s45
    %p52 = scmp.eq.s32.totalorder %s14, 1
    %p53 = por %p51, %p52
    %p54 = scmp.ne.s32.totalorder %s45, %s46
    %p55 = scmp.eq.s32.totalorder %s14, 0
    %p56 = por %p54, %p55
    %p57 = scmp.ne.s32.totalorder %s45, %s46
    %p58 = scmp.eq.s32.totalorder %s15, 1
    %p59 = por %p57, %p58
    %p61 = scmp.ne.s32.totalorder %s46, %s60
    %p62 = scmp.eq.s32.totalorder %s15, 0
    %p63 = por %p61, %p62
    %s65 = sadd.s32 %s64, 1
    %p68 = scmp.eq.s32.totalorder %s9, 1
    %p69 = scmp.ne.s32.totalorder %s64, %s66
    %p70 = scmp.eq.s32.totalorder %s9, 0
    %p71 = por %p69, %p70
    %p72 = scmp.ne.s32.totalorder %s64, %s66
    %p73 = scmp.eq.s32.totalorder %s14, 1
    %p74 = por %p72, %p73
    %p75 = scmp.ne.s32.totalorder %s66, %s67
    %p76 = scmp.eq.s32.totalorder %s14, 0
    %p77 = por %p75, %p76
    %p78 = scmp.ne.s32.totalorder %s66, %s67
    %p79 = scmp.eq.s32.totalorder %s15, 1
    %p80 = por %p78, %p79
    %p82 = scmp.ne.s32.totalorder %s67, %s81
    %p83 = scmp.eq.s32.totalorder %s15, 0
    %p84 = por %p82, %p83
    %s85 = ssub.s32 %s9, %s16
    %p86 = scmp.eq.s32.totalorder %s85, 0
    %s88 = sadd.s32 %s87, 1
    %s89 = scalar_select %p86, %s87, %s88
    %p92 = pneg %p86
    %p93 = scmp.eq.s32.totalorder %s9, 1
    %p94 = por %p92, %p93
    %p95 = scmp.ne.s32.totalorder %s87, %s90
    %p96 = scmp.eq.s32.totalorder %s9, 0
    %p97 = por %p95, %p96
    %p98 = scmp.ne.s32.totalorder %s87, %s90
    %p99 = scmp.eq.s32.totalorder %s14, 1
    %p100 = por %p98, %p99
    %p101 = scmp.ne.s32.totalorder %s90, %s91
    %p102 = scmp.eq.s32.totalorder %s14, 0
    %p103 = por %p101, %p102
    %p104 = scmp.ne.s32.totalorder %s90, %s91
    %p105 = scmp.eq.s32.totalorder %s15, 1
    %p106 = por %p104, %p105
    %p108 = scmp.ne.s32.totalorder %s91, %s107
    %p109 = scmp.eq.s32.totalorder %s15, 0
    %p110 = por %p108, %p109
    %p111 = scmp.le.s32.totalorder 1, %s9
    %p112 = scmp.lt.s32.totalorder %s9, 3
    %p113 = pnand %p111, %p112
    %p114 = pneg %p113
    // Predicated region
    $region9: #{vae_encode_forward.5} parent=5 // pred_check
      _
    $region10: #{vae_encode_forward.5} parent=5 // pred_check_branch
      %116 = sbr.rel (%p113) target = $region12
    $region11: #{vae_encode_forward.5} parent=5 // pred_region
      %s117 = ssub.s32 %s9, 1
      // Predicated region
      $region13: #{vae_encode_forward.5} parent=11 // pred_check
        %p118 = pneg %p56
      $region14: #{vae_encode_forward.5} parent=11 // pred_check_branch
        %120 = sbr.rel (%p118) target = $region16
      $region15: #{vae_encode_forward.5} parent=11 // pred_region
        _
      $region16: #{vae_encode_forward.5} parent=11 // pred_fallthru
        _
      // Predicated region
      $region17: #{vae_encode_forward.5} parent=11 // pred_check
        %p121 = pneg %p77
      $region18: #{vae_encode_forward.5} parent=11 // pred_check_branch
        %123 = sbr.rel (%p121) target = $region20
      $region19: #{vae_encode_forward.5} parent=11 // pred_region
        _
      $region20: #{vae_encode_forward.5} parent=11 // pred_fallthru
        _
    $region12: #{vae_encode_forward.5} parent=5 // pred_fallthru
      _
    %p124 = scmp.lt.s32.totalorder %s9, 2
    // Predicated region
    $region21: #{vae_encode_forward.5} parent=5 // pred_check
      %p125 = pneg %p124
    $region22: #{vae_encode_forward.5} parent=5 // pred_check_branch
      %127 = sbr.rel (%p125) target = $region24
    $region23: #{vae_encode_forward.5} parent=5 // pred_region
      // Predicated region
      $region25: #{vae_encode_forward.5} parent=23 // pred_check
        %p128 = pneg %p29
      $region26: #{vae_encode_forward.5} parent=23 // pred_check_branch
        %130 = sbr.rel (%p128) target = $region28
      $region27: #{vae_encode_forward.5} parent=23 // pred_region
        %p131 = scmp.lt.s32.totalorder %s9, 1
        %s132 = scalar_select %p131, %s9, 1
        %s133 = smul.addr %s132, 72
        %s134 = smul.addr %s133, 4
        %s135 = scalar_lea.vmem %s0, %s134
      $region28: #{vae_encode_forward.5} parent=23 // pred_fallthru
        _
    $region24: #{vae_encode_forward.5} parent=5 // pred_fallthru
      _
    %p136 = scmp.le.s32.totalorder 1, %s9
    %p137 = scmp.lt.s32.totalorder %s9, 3
    %p138 = pnand %p136, %p137
    %p139 = pneg %p138
    // Predicated region
    $region29: #{vae_encode_forward.5} parent=5 // pred_check
      _
    $region30: #{vae_encode_forward.5} parent=5 // pred_check_branch
      %141 = sbr.rel (%p138) target = $region32
    $region31: #{vae_encode_forward.5} parent=5 // pred_region
      %s142 = ssub.s32 %s9, 1
      %p143 = scmp.lt.s32.totalorder %s14, 1
      %s144 = scalar_select %p143, %s14, 1
      %s145 = smul.addr %s144, 72
      %s146 = smul.addr %s145, 4
      %s147 = scalar_lea.vmem %s0, %s146
      %p148 = pneg %p35
      %p149 = pneg %p32
      %p150 = pneg %p56
      %p151 = pneg %p53
      %p152 = pneg %p77
      %p153 = pneg %p74
      %p154 = pneg %p103
      %p155 = pneg %p100
      %p156 = scmp.lt.s32.totalorder %s14, 1
      %s157 = scalar_select %p156, %s14, 1
      %s158 = smul.addr %s157, 8
      %s159 = smul.addr %s158, 4
      %s160 = scalar_lea.vmem %s3, %s159
      %p161 = scmp.lt.s32.totalorder %s14, 1
      %s162 = scalar_select %p161, %s14, 1
      %s163 = smul.addr %s162, 72
      %s164 = smul.addr %s163, 4
      %s165 = scalar_lea.vmem %s0, %s164
      %p166 = scmp.lt.s32.totalorder %s14, 1
      %s167 = scalar_select %p166, %s14, 1
      %s168 = smul.addr %s167, 8
      %s169 = smul.addr %s168, 4
      %s170 = scalar_lea.vmem %s3, %s169
      %v172 = vld [vmem:[%s165] sm:$0xf]
      %v173 = vld [vmem:[%s165 + $0x8] sm:$0xf]
      %v174 = vld [vmem:[%s165 + $0x10] sm:$0xf]
      %v175 = vld [vmem:[%s165 + $0x18] sm:$0xf]
      %v176 = vld [vmem:[%s165 + $0x20] sm:$0xf]
      %v177 = vld [vmem:[%s165 + $0x28] sm:$0xf]
      %v178 = vld [vmem:[%s165 + $0x30] sm:$0xf]
      %v179 = vld [vmem:[%s165 + $0x38] sm:$0xf]
      %v180 = vld [vmem:[%s1] sm:$0xf]
      %v181 = vld [vmem:[%s1 + $0x4] sm:$0xf]
      %v182 = vld [vmem:[%s1 + $0x8] sm:$0xf]
      %v183 = vld [vmem:[%s1 + $0xc] sm:$0xf]
      %s184 = scalar_lea.vmem %s165, 72
      %v185 = vld [vmem:[%s184] sm:$0xf]
      %v186 = vld [vmem:[%s184 + $0x8] sm:$0xf]
      %v187 = vld [vmem:[%s184 + $0x10] sm:$0xf]
      %v188 = vld [vmem:[%s184 + $0x18] sm:$0xf]
      %v189 = vld [vmem:[%s184 + $0x20] sm:$0xf]
      %v190 = vld [vmem:[%s184 + $0x28] sm:$0xf]
      %v191 = vld [vmem:[%s184 + $0x30] sm:$0xf]
      %v192 = vld [vmem:[%s184 + $0x38] sm:$0xf]
      %s193 = scalar_lea.vmem %s1, 16
      %v194 = vld [vmem:[%s193] sm:$0xf]
      %v195 = vld [vmem:[%s193 + $0x4] sm:$0xf]
      %v196 = vld [vmem:[%s193 + $0x8] sm:$0xf]
      %v197 = vld [vmem:[%s193 + $0xc] sm:$0xf]
      %v206 = vunpack.c.l.b16 %v185
      %v207 = vunpack.c.l.b16 %v186
      %v208 = vunpack.c.l.b16 %v187
      %v209 = vunpack.c.l.b16 %v188
      %v210 = vunpack.c.l.b16 %v189
      %v211 = vunpack.c.l.b16 %v190
      %v212 = vunpack.c.l.b16 %v191
      %v213 = vunpack.c.l.b16 %v192
      %v214 = vpack.c.b16 %v207, %v206
      %v215 = vpack.c.b16 %v209, %v208
      %v216 = vpack.c.b16 %v211, %v210
      %v217 = vpack.c.b16 %v213, %v212
      %v222 = vunpack.c.l.b16 %v194
      %v223 = vunpack.c.l.b16 %v195
      %v224 = vunpack.c.l.b16 %v196
      %v225 = vunpack.c.l.b16 %v197
      %v226 = vpack.c.b16 %v223, %v222
      %v227 = vpack.c.b16 %v225, %v224
      %vm230 = vcmask 261120
      %v232 = vsel %vm230, %v214, 0
      %v235 = vsel %vm230, %v215, 0
      %v238 = vsel %vm230, %v216, 0
      %v241 = vsel %vm230, %v217, 0
      %243 = vmatprep.subr.bf16.mxu0 0
      %244 = vmatpush1.bf16.msra.mxu0 %v226
      %245 = vmatprep.subr.bf16.mxu0 0
      %246 = vmatpush1.bf16.msra.mxu0 %v227
      %247 = vmatprep.subr.bf16.mxu0 0
      %248 = vmatpush1.bf16.msra.mxu0 0
      %249 = vmatprep.subr.bf16.mxu0 0
      %250 = vmatpush1.bf16.msra.mxu0 0
      %251 = vmatprep.subr.bf16.mxu0 0
      %252 = vmatpush1.bf16.msra.mxu0 0
      %253 = vmatprep.subr.bf16.mxu0 0
      %254 = vmatpush1.bf16.msra.mxu0 0
      %255 = vmatprep.subr.bf16.mxu0 0
      %256 = vmatpush1.bf16.msra.mxu0 0
      %257 = vmatprep.subr.bf16.mxu0 0
      %258 = vmatpush1.bf16.msra.mxu0 0
      %259 = vmatprep.subr.bf16.mxu0 0
      %260 = vmatpush1.bf16.msra.mxu0 0
      %261 = vmatprep.subr.bf16.mxu0 0
      %262 = vmatpush1.bf16.msra.mxu0 0
      %263 = vmatprep.subr.bf16.mxu0 0
      %264 = vmatpush1.bf16.msra.mxu0 0
      %265 = vmatprep.subr.bf16.mxu0 0
      %266 = vmatpush1.bf16.msra.mxu0 0
      %267 = vmatprep.subr.bf16.mxu0 0
      %268 = vmatpush1.bf16.msra.mxu0 0
      %269 = vmatprep.subr.bf16.mxu0 0
      %270 = vmatpush1.bf16.msra.mxu0 0
      %271 = vmatprep.subr.bf16.mxu0 0
      %272 = vmatpush1.bf16.msra.mxu0 0
      %273 = vmatprep.subr.bf16.mxu0 0
      %274 = vmatpush1.bf16.msra.mxu0 0
      %275 = vmatprep.mubr.bf16.mxu0 0
      %276 = vmatmul.mubr.bf16.gmra.mrb[0].mxu0 %v232
      %v277 = vpop.f32.mrb[0].mxu0
      %v278 = vadd.f32 0.0, %v277
      %v279 = vpop.f32.mrb[0].mxu0
      %v280 = vpop.f32.mrb[0].mxu0
      %v281 = vadd.f32 0.0, %v280
      %v282 = vpop.f32.mrb[0].mxu0
      %283 = vmatprep.mubr.bf16.mxu0 0
      %284 = vmatmul.mubr.bf16.gmra.mrb[0].mxu0 %v235
      %v285 = vpop.f32.mrb[0].mxu0
      %v286 = vadd.f32 0.0, %v285
      %v287 = vpop.f32.mrb[0].mxu0
      %v288 = vpop.f32.mrb[0].mxu0
      %v289 = vadd.f32 0.0, %v288
      %v290 = vpop.f32.mrb[0].mxu0
      %291 = vmatprep.mubr.bf16.mxu0 0
      %292 = vmatmul.mubr.bf16.gmra.mrb[0].mxu0 %v238
      %v293 = vpop.f32.mrb[0].mxu0
      %v294 = vadd.f32 0.0, %v293
      %v295 = vpop.f32.mrb[0].mxu0
      %v296 = vpop.f32.mrb[0].mxu0
      %v297 = vadd.f32 0.0, %v296
      %v298 = vpop.f32.mrb[0].mxu0
      %299 = vmatprep.mubr.bf16.mxu0 0
      %300 = vmatmul.mubr.bf16.gmra.mrb[0].mxu0 %v241
      %v301 = vpop.f32.mrb[0].mxu0
      %v302 = vadd.f32 0.0, %v301
      %v303 = vpop.f32.mrb[0].mxu0
      %v304 = vpop.f32.mrb[0].mxu0
      %v305 = vadd.f32 0.0, %v304
      %v306 = vpop.f32.mrb[0].mxu0
      %307 = vdwg.mxu0
      %v316 = vunpack.c.l.b16 %v172
      %v317 = vunpack.c.l.b16 %v173
      %v318 = vunpack.c.l.b16 %v174
      %v319 = vunpack.c.l.b16 %v175
      %v320 = vunpack.c.l.b16 %v176
      %v321 = vunpack.c.l.b16 %v177
      %v322 = vunpack.c.l.b16 %v178
      %v323 = vunpack.c.l.b16 %v179
      %v324 = vpack.c.b16 %v317, %v316
      %v325 = vpack.c.b16 %v319, %v318
      %v326 = vpack.c.b16 %v321, %v320
      %v327 = vpack.c.b16 %v323, %v322
      %v332 = vunpack.c.l.b16 %v180
      %v333 = vunpack.c.l.b16 %v181
      %v334 = vunpack.c.l.b16 %v182
      %v335 = vunpack.c.l.b16 %v183
      %v336 = vpack.c.b16 %v333, %v332
      %v337 = vpack.c.b16 %v335, %v334
      %v341 = vsel %vm230, %v324, 0
      %v344 = vsel %vm230, %v325, 0
      %v347 = vsel %vm230, %v326, 0
      %v350 = vsel %vm230, %v327, 0
      %352 = vmatprep.subr.bf16.mxu0 0
      %353 = vmatpush1.bf16.msra.mxu0 %v336
      %354 = vmatprep.subr.bf16.mxu0 0
      %355 = vmatpush1.bf16.msra.mxu0 %v337
      %356 = vmatprep.subr.bf16.mxu0 0
      %357 = vmatpush1.bf16.msra.mxu0 0
      %358 = vmatprep.subr.bf16.mxu0 0
      %359 = vmatpush1.bf16.msra.mxu0 0
      %360 = vmatprep.subr.bf16.mxu0 0
      %361 = vmatpush1.bf16.msra.mxu0 0
      %362 = vmatprep.subr.bf16.mxu0 0
      %363 = vmatpush1.bf16.msra.mxu0 0
      %364 = vmatprep.subr.bf16.mxu0 0
      %365 = vmatpush1.bf16.msra.mxu0 0
      %366 = vmatprep.subr.bf16.mxu0 0
      %367 = vmatpush1.bf16.msra.mxu0 0
      %368 = vmatprep.subr.bf16.mxu0 0
      %369 = vmatpush1.bf16.msra.mxu0 0
      %370 = vmatprep.subr.bf16.mxu0 0
      %371 = vmatpush1.bf16.msra.mxu0 0
      %372 = vmatprep.subr.bf16.mxu0 0
      %373 = vmatpush1.bf16.msra.mxu0 0
      %374 = vmatprep.subr.bf16.mxu0 0
      %375 = vmatpush1.bf16.msra.mxu0 0
      %376 = vmatprep.subr.bf16.mxu0 0
      %377 = vmatpush1.bf16.msra.mxu0 0
      %378 = vmatprep.subr.bf16.mxu0 0
      %379 = vmatpush1.bf16.msra.mxu0 0
      %380 = vmatprep.subr.bf16.mxu0 0
      %381 = vmatpush1.bf16.msra.mxu0 0
      %382 = vmatprep.subr.bf16.mxu0 0
      %383 = vmatpush1.bf16.msra.mxu0 0
      %384 = vmatprep.mubr.bf16.mxu0 0
      %385 = vmatmul.mubr.bf16.gmra.mrb[0].mxu0 %v341
      %v386 = vpop.f32.mrb[0].mxu0
      %v387 = vadd.f32 %v278, %v386
      %v388 = vpop.f32.mrb[0].mxu0
      %v389 = vpop.f32.mrb[0].mxu0
      %v390 = vadd.f32 %v281, %v389
      %v391 = vpop.f32.mrb[0].mxu0
      %392 = vmatprep.mubr.bf16.mxu0 0
      %393 = vmatmul.mubr.bf16.gmra.mrb[0].mxu0 %v344
      %v394 = vpop.f32.mrb[0].mxu0
      %v395 = vadd.f32 %v286, %v394
      %v396 = vpop.f32.mrb[0].mxu0
      %v397 = vpop.f32.mrb[0].mxu0
      %v398 = vadd.f32 %v289, %v397
      %v399 = vpop.f32.mrb[0].mxu0
      %400 = vmatprep.mubr.bf16.mxu0 0
      %401 = vmatmul.mubr.bf16.gmra.mrb[0].mxu0 %v347
      %v402 = vpop.f32.mrb[0].mxu0
      %v403 = vadd.f32 %v294, %v402
      %v404 = vpop.f32.mrb[0].mxu0
      %v405 = vpop.f32.mrb[0].mxu0
      %v406 = vadd.f32 %v297, %v405
      %v407 = vpop.f32.mrb[0].mxu0
      %408 = vmatprep.mubr.bf16.mxu0 0
      %409 = vmatmul.mubr.bf16.gmra.mrb[0].mxu0 %v350
      %v410 = vpop.f32.mrb[0].mxu0
      %v411 = vadd.f32 %v302, %v410
      %v412 = vpop.f32.mrb[0].mxu0
      %v413 = vpop.f32.mrb[0].mxu0
      %v414 = vadd.f32 %v305, %v413
      %v415 = vpop.f32.mrb[0].mxu0
      %416 = vdwg.mxu0
      %v417 = vld [vmem:[%s165] sm:$0xf]
      %v418 = vld [vmem:[%s165 + $0x4] sm:$0x1]
      %v419 = vld [vmem:[%s165 + $0x8] sm:$0xf]
      %v420 = vld [vmem:[%s165 + $0xc] sm:$0x1]
      %v421 = vld [vmem:[%s165 + $0x10] sm:$0xf]
      %v422 = vld [vmem:[%s165 + $0x14] sm:$0x1]
      %v423 = vld [vmem:[%s165 + $0x18] sm:$0xf]
      %v424 = vld [vmem:[%s165 + $0x1c] sm:$0x1]
      %v425 = vld [vmem:[%s165 + $0x20] sm:$0xf]
      %v426 = vld [vmem:[%s165 + $0x24] sm:$0x1]
      %v427 = vld [vmem:[%s165 + $0x28] sm:$0xf]
      %v428 = vld [vmem:[%s165 + $0x2c] sm:$0x1]
      %v429 = vld [vmem:[%s165 + $0x30] sm:$0xf]
      %v430 = vld [vmem:[%s165 + $0x34] sm:$0x1]
      %v431 = vld [vmem:[%s165 + $0x38] sm:$0xf]
      %v432 = vld [vmem:[%s165 + $0x3c] sm:$0x1]
      %vm433 = vsmask.f32 3328
      %vm434 = vsmask.f32 7440
      %vm435 = vmor %vm433, %vm434
      %v437 = vshrl.u32 %v417, 16
      %v439 = vrot.slane %v437, 4
      %v440 = vshll.u32 %v417, 16
      %v442 = vrot.slane %v440, 5
      %v443 = vor.u32 %v439, %v442
      %v444 = vrot.slane %v443, 4
      %v446 = vshll.u32 %v418, 16
      %v448 = vrot.slane %v446, 5
      %v449 = vsel %vm435, %v444, %v448
      %v451 = vshrl.u32 %v419, 16
      %v453 = vrot.slane %v451, 4
      %v454 = vshll.u32 %v419, 16
      %v456 = vrot.slane %v454, 5
      %v457 = vor.u32 %v453, %v456
      %v458 = vrot.slane %v457, 4
      %v460 = vshll.u32 %v420, 16
      %v462 = vrot.slane %v460, 5
      %v463 = vsel %vm435, %v458, %v462
      %v465 = vshrl.u32 %v421, 16
      %v467 = vrot.slane %v465, 4
      %v468 = vshll.u32 %v421, 16
      %v470 = vrot.slane %v468, 5
      %v471 = vor.u32 %v467, %v470
      %v472 = vrot.slane %v471, 4
      %v474 = vshll.u32 %v422, 16
      %v476 = vrot.slane %v474, 5
      %v477 = vsel %vm435, %v472, %v476
      %v479 = vshrl.u32 %v423, 16
      %v481 = vrot.slane %v479, 4
      %v482 = vshll.u32 %v423, 16
      %v484 = vrot.slane %v482, 5
      %v485 = vor.u32 %v481, %v484
      %v486 = vrot.slane %v485, 4
      %v488 = vshll.u32 %v424, 16
      %v490 = vrot.slane %v488, 5
      %v491 = vsel %vm435, %v486, %v490
      %v493 = vshrl.u32 %v425, 16
      %v495 = vrot.slane %v493, 4
      %v496 = vshll.u32 %v425, 16
      %v498 = vrot.slane %v496, 5
      %v499 = vor.u32 %v495, %v498
      %v500 = vrot.slane %v499, 4
      %v502 = vshll.u32 %v426, 16
      %v504 = vrot.slane %v502, 5
      %v505 = vsel %vm435, %v500, %v504
      %v507 = vshrl.u32 %v427, 16
      %v509 = vrot.slane %v507, 4
      %v510 = vshll.u32 %v427, 16
      %v512 = vrot.slane %v510, 5
      %v513 = vor.u32 %v509, %v512
      %v514 = vrot.slane %v513, 4
      %v516 = vshll.u32 %v428, 16
      %v518 = vrot.slane %v516, 5
      %v519 = vsel %vm435, %v514, %v518
      %v521 = vshrl.u32 %v429, 16
      %v523 = vrot.slane %v521, 4
      %v524 = vshll.u32 %v429, 16
      %v526 = vrot.slane %v524, 5
      %v527 = vor.u32 %v523, %v526
      %v528 = vrot.slane %v527, 4
      %v530 = vshll.u32 %v430, 16
      %v532 = vrot.slane %v530, 5
      %v533 = vsel %vm435, %v528, %v532
      %v535 = vshrl.u32 %v431, 16
      %v537 = vrot.slane %v535, 4
      %v538 = vshll.u32 %v431, 16
      %v540 = vrot.slane %v538, 5
      %v541 = vor.u32 %v537, %v540
      %v542 = vrot.slane %v541, 4
      %v544 = vshll.u32 %v432, 16
      %v546 = vrot.slane %v544, 5
      %v547 = vsel %vm435, %v542, %v546
      %s548 = scalar_lea.vmem %s1, 32
      %v549 = vld [vmem:[%s548] sm:$0xf]
      %v550 = vld [vmem:[%s548 + $0x4] sm:$0xf]
      %v551 = vld [vmem:[%s548 + $0x8] sm:$0xf]
      %v552 = vld [vmem:[%s548 + $0xc] sm:$0xf]
      %v553 = vunpack.c.l.b16 %v449
      %v554 = vunpack.c.l.b16 %v463
      %v555 = vunpack.c.l.b16 %v477
      %v556 = vunpack.c.l.b16 %v491
      %v557 = vunpack.c.l.b16 %v505
      %v558 = vunpack.c.l.b16 %v519
      %v559 = vunpack.c.l.b16 %v533
      %v560 = vunpack.c.l.b16 %v547
      %v561 = vpack.c.b16 %v554, %v553
      %v562 = vpack.c.b16 %v556, %v555
      %v563 = vpack.c.b16 %v558, %v557
      %v564 = vpack.c.b16 %v560, %v559
      %v569 = vunpack.c.l.b16 %v549
      %v570 = vunpack.c.l.b16 %v550
      %v571 = vunpack.c.l.b16 %v551
      %v572 = vunpack.c.l.b16 %v552
      %v573 = vpack.c.b16 %v570, %v569
      %v574 = vpack.c.b16 %v572, %v571
      %v578 = vsel %vm230, %v561, 0
      %v581 = vsel %vm230, %v562, 0
      %v584 = vsel %vm230, %v563, 0
      %v587 = vsel %vm230, %v564, 0
      %589 = vmatprep.subr.bf16.mxu0 0
      %590 = vmatpush1.bf16.msra.mxu0 %v573
      %591 = vmatprep.subr.bf16.mxu0 0
      %592 = vmatpush1.bf16.msra.mxu0 %v574
      %593 = vmatprep.subr.bf16.mxu0 0
      %594 = vmatpush1.bf16.msra.mxu0 0
      %595 = vmatprep.subr.bf16.mxu0 0
      %596 = vmatpush1.bf16.msra.mxu0 0
      %597 = vmatprep.subr.bf16.mxu0 0
      %598 = vmatpush1.bf16.msra.mxu0 0
      %599 = vmatprep.subr.bf16.mxu0 0
      %600 = vmatpush1.bf16.msra.mxu0 0
      %601 = vmatprep.subr.bf16.mxu0 0
      %602 = vmatpush1.bf16.msra.mxu0 0
      %603 = vmatprep.subr.bf16.mxu0 0
      %604 = vmatpush1.bf16.msra.mxu0 0
      %605 = vmatprep.subr.bf16.mxu0 0
      %606 = vmatpush1.bf16.msra.mxu0 0
      %607 = vmatprep.subr.bf16.mxu0 0
      %608 = vmatpush1.bf16.msra.mxu0 0
      %609 = vmatprep.subr.bf16.mxu0 0
      %610 = vmatpush1.bf16.msra.mxu0 0
      %611 = vmatprep.subr.bf16.mxu0 0
      %612 = vmatpush1.bf16.msra.mxu0 0
      %613 = vmatprep.subr.bf16.mxu0 0
      %614 = vmatpush1.bf16.msra.mxu0 0
      %615 = vmatprep.subr.bf16.mxu0 0
      %616 = vmatpush1.bf16.msra.mxu0 0
      %617 = vmatprep.subr.bf16.mxu0 0
      %618 = vmatpush1.bf16.msra.mxu0 0
      %619 = vmatprep.subr.bf16.mxu0 0
      %620 = vmatpush1.bf16.msra.mxu0 0
      %621 = vmatprep.mubr.bf16.mxu0 0
      %622 = vmatmul.mubr.bf16.gmra.mrb[0].mxu0 %v578
      %v623 = vpop.f32.mrb[0].mxu0
      %v624 = vadd.f32 0.0, %v623
      %v625 = vpop.f32.mrb[0].mxu0
      %v626 = vpop.f32.mrb[0].mxu0
      %v627 = vadd.f32 0.0, %v626
      %v628 = vpop.f32.mrb[0].mxu0
      %629 = vmatprep.mubr.bf16.mxu0 0
      %630 = vmatmul.mubr.bf16.gmra.mrb[0].mxu0 %v581
      %v631 = vpop.f32.mrb[0].mxu0
      %v632 = vadd.f32 0.0, %v631
      %v633 = vpop.f32.mrb[0].mxu0
      %v634 = vpop.f32.mrb[0].mxu0
      %v635 = vadd.f32 0.0, %v634
      %v636 = vpop.f32.mrb[0].mxu0
      %637 = vmatprep.mubr.bf16.mxu0 0
      %638 = vmatmul.mubr.bf16.gmra.mrb[0].mxu0 %v584
      %v639 = vpop.f32.mrb[0].mxu0
      %v640 = vadd.f32 0.0, %v639
      %v641 = vpop.f32.mrb[0].mxu0
      %v642 = vpop.f32.mrb[0].mxu0
      %v643 = vadd.f32 0.0, %v642
      %v644 = vpop.f32.mrb[0].mxu0
      %645 = vmatprep.mubr.bf16.mxu0 0
      %646 = vmatmul.mubr.bf16.gmra.mrb[0].mxu0 %v587
      %v647 = vpop.f32.mrb[0].mxu0
      %v648 = vadd.f32 0.0, %v647
      %v649 = vpop.f32.mrb[0].mxu0
      %v650 = vpop.f32.mrb[0].mxu0
      %v651 = vadd.f32 0.0, %v650
      %v652 = vpop.f32.mrb[0].mxu0
      %653 = vdwg.mxu0
      %v654 = vadd.f32 %v387, %v624
      %v655 = vadd.f32 %v390, %v627
      %v656 = vadd.f32 %v395, %v632
      %v657 = vadd.f32 %v398, %v635
      %v658 = vadd.f32 %v403, %v640
      %v659 = vadd.f32 %v406, %v643
      %v660 = vadd.f32 %v411, %v648
      %v661 = vadd.f32 %v414, %v651
      %s662 = scalar_lea.vmem %s165, 144
      %v663 = vld [vmem:[%s662] sm:$0xf]
      %v664 = vld [vmem:[%s662 + $0x8] sm:$0xf]
      %v665 = vld [vmem:[%s662 + $0x10] sm:$0xf]
      %v666 = vld [vmem:[%s662 + $0x18] sm:$0xf]
      %v667 = vld [vmem:[%s662 + $0x20] sm:$0xf]
      %v668 = vld [vmem:[%s662 + $0x28] sm:$0xf]
      %v669 = vld [vmem:[%s662 + $0x30] sm:$0xf]
      %v670 = vld [vmem:[%s662 + $0x38] sm:$0xf]
      %s671 = scalar_lea.vmem %s1, 48
      %v672 = vld [vmem:[%s671] sm:$0xf]
      %v673 = vld [vmem:[%s671 + $0x4] sm:$0xf]
      %v674 = vld [vmem:[%s671 + $0x8] sm:$0xf]
      %v675 = vld [vmem:[%s671 + $0xc] sm:$0xf]
      %v684 = vunpack.c.l.b16 %v663
      %v685 = vunpack.c.l.b16 %v664
      %v686 = vunpack.c.l.b16 %v665
      %v687 = vunpack.c.l.b16 %v666
      %v688 = vunpack.c.l.b16 %v667
      %v689 = vunpack.c.l.b16 %v668
      %v690 = vunpack.c.l.b16 %v669
      %v691 = vunpack.c.l.b16 %v670
      %v692 = vpack.c.b16 %v685, %v684
      %v693 = vpack.c.b16 %v687, %v686
      %v694 = vpack.c.b16 %v689, %v688
      %v695 = vpack.c.b16 %v691, %v690
      %v700 = vunpack.c.l.b16 %v672
      %v701 = vunpack.c.l.b16 %v673
      %v702 = vunpack.c.l.b16 %v674
      %v703 = vunpack.c.l.b16 %v675
      %v704 = vpack.c.b16 %v701, %v700
      %v705 = vpack.c.b16 %v703, %v702
      %v709 = vsel %vm230, %v692, 0
      %v712 = vsel %vm230, %v693, 0
      %v715 = vsel %vm230, %v694, 0
      %v718 = vsel %vm230, %v695, 0
      %720 = vmatprep.subr.bf16.mxu0 0
      %721 = vmatpush1.bf16.msra.mxu0 %v704
      %722 = vmatprep.subr.bf16.mxu0 0
      %723 = vmatpush1.bf16.msra.mxu0 %v705
      %724 = vmatprep.subr.bf16.mxu0 0
      %725 = vmatpush1.bf16.msra.mxu0 0
      %726 = vmatprep.subr.bf16.mxu0 0
      %727 = vmatpush1.bf16.msra.mxu0 0
      %728 = vmatprep.subr.bf16.mxu0 0
      %729 = vmatpush1.bf16.msra.mxu0 0
      %730 = vmatprep.subr.bf16.mxu0 0
      %731 = vmatpush1.bf16.msra.mxu0 0
      %732 = vmatprep.subr.bf16.mxu0 0
      %733 = vmatpush1.bf16.msra.mxu0 0
      %734 = vmatprep.subr.bf16.mxu0 0
      %735 = vmatpush1.bf16.msra.mxu0 0
      %736 = vmatprep.subr.bf16.mxu0 0
      %737 = vmatpush1.bf16.msra.mxu0 0
      %738 = vmatprep.subr.bf16.mxu0 0
      %739 = vmatpush1.bf16.msra.mxu0 0
      %740 = vmatprep.subr.bf16.mxu0 0
      %741 = vmatpush1.bf16.msra.mxu0 0
      %742 = vmatprep.subr.bf16.mxu0 0
      %743 = vmatpush1.bf16.msra.mxu0 0
      %744 = vmatprep.subr.bf16.mxu0 0
      %745 = vmatpush1.bf16.msra.mxu0 0
      %746 = vmatprep.subr.bf16.mxu0 0
      %747 = vmatpush1.bf16.msra.mxu0 0
      %748 = vmatprep.subr.bf16.mxu0 0
      %749 = vmatpush1.bf16.msra.mxu0 0
      %750 = vmatprep.subr.bf16.mxu0 0
      %751 = vmatpush1.bf16.msra.mxu0 0
      %752 = vmatprep.mubr.bf16.mxu0 0
      %753 = vmatmul.mubr.bf16.gmra.mrb[0].mxu0 %v709
      %v754 = vpop.f32.mrb[0].mxu0
      %v755 = vadd.f32 0.0, %v754
      %v756 = vpop.f32.mrb[0].mxu0
      %v757 = vpop.f32.mrb[0].mxu0
      %v758 = vadd.f32 0.0, %v757
      %v759 = vpop.f32.mrb[0].mxu0
      %760 = vmatprep.mubr.bf16.mxu0 0
      %761 = vmatmul.mubr.bf16.gmra.mrb[0].mxu0 %v712
      %v762 = vpop.f32.mrb[0].mxu0
      %v763 = vadd.f32 0.0, %v762
      %v764 = vpop.f32.mrb[0].mxu0
      %v765 = vpop.f32.mrb[0].mxu0
      %v766 = vadd.f32 0.0, %v765
      %v767 = vpop.f32.mrb[0].mxu0
      %768 = vmatprep.mubr.bf16.mxu0 0
      %769 = vmatmul.mubr.bf16.gmra.mrb[0].mxu0 %v715
      %v770 = vpop.f32.mrb[0].mxu0
      %v771 = vadd.f32 0.0, %v770
      %v772 = vpop.f32.mrb[0].mxu0
      %v773 = vpop.f32.mrb[0].mxu0
      %v774 = vadd.f32 0.0, %v773
      %v775 = vpop.f32.mrb[0].mxu0
      %776 = vmatprep.mubr.bf16.mxu0 0
      %777 = vmatmul.mubr.bf16.gmra.mrb[0].mxu0 %v718
      %v778 = vpop.f32.mrb[0].mxu0
      %v779 = vadd.f32 0.0, %v778
      %v780 = vpop.f32.mrb[0].mxu0
      %v781 = vpop.f32.mrb[0].mxu0
      %v782 = vadd.f32 0.0, %v781
      %v783 = vpop.f32.mrb[0].mxu0
      %784 = vdwg.mxu0
      %v785 = vadd.f32 %v654, %v755
      %v786 = vadd.f32 %v655, %v758
      %v787 = vadd.f32 %v656, %v763
      %v788 = vadd.f32 %v657, %v766
      %v789 = vadd.f32 %v658, %v771
      %v790 = vadd.f32 %v659, %v774
      %v791 = vadd.f32 %v660, %v779
      %v792 = vadd.f32 %v661, %v782
      %s793 = scalar_lea.vmem %s165, 216
      %v794 = vld [vmem:[%s793] sm:$0xf]
      %v795 = vld [vmem:[%s793 + $0x8] sm:$0xf]
      %v796 = vld [vmem:[%s793 + $0x10] sm:$0xf]
      %v797 = vld [vmem:[%s793 + $0x18] sm:$0xf]
      %v798 = vld [vmem:[%s793 + $0x20] sm:$0xf]
      %v799 = vld [vmem:[%s793 + $0x28] sm:$0xf]
      %v800 = vld [vmem:[%s793 + $0x30] sm:$0xf]
      %v801 = vld [vmem:[%s793 + $0x38] sm:$0xf]
      %s802 = scalar_lea.vmem %s1, 64
      %v803 = vld [vmem:[%s802] sm:$0xf]
      %v804 = vld [vmem:[%s802 + $0x4] sm:$0xf]
      %v805 = vld [vmem:[%s802 + $0x8] sm:$0xf]
      %v806 = vld [vmem:[%s802 + $0xc] sm:$0xf]
      %v815 = vunpack.c.l.b16 %v794
      %v816 = vunpack.c.l.b16 %v795
      %v817 = vunpack.c.l.b16 %v796
      %v818 = vunpack.c.l.b16 %v797
      %v819 = vunpack.c.l.b16 %v798
      %v820 = vunpack.c.l.b16 %v799
      %v821 = vunpack.c.l.b16 %v800
      %v822 = vunpack.c.l.b16 %v801
      %v823 = vpack.c.b16 %v816, %v815
      %v824 = vpack.c.b16 %v818, %v817
      %v825 = vpack.c.b16 %v820, %v819
      %v826 = vpack.c.b16 %v822, %v821
      %v831 = vunpack.c.l.b16 %v803
      %v832 = vunpack.c.l.b16 %v804
      %v833 = vunpack.c.l.b16 %v805
      %v834 = vunpack.c.l.b16 %v806
      %v835 = vpack.c.b16 %v832, %v831
      %v836 = vpack.c.b16 %v834, %v833
      %v840 = vsel %vm230, %v823, 0
      %v843 = vsel %vm230, %v824, 0
      %v846 = vsel %vm230, %v825, 0
      %v849 = vsel %vm230, %v826, 0
      %851 = vmatprep.subr.bf16.mxu0 0
      %852 = vmatpush1.bf16.msra.mxu0 %v835
      %853 = vmatprep.subr.bf16.mxu0 0
      %854 = vmatpush1.bf16.msra.mxu0 %v836
      %855 = vmatprep.subr.bf16.mxu0 0
      %856 = vmatpush1.bf16.msra.mxu0 0
      %857 = vmatprep.subr.bf16.mxu0 0
      %858 = vmatpush1.bf16.msra.mxu0 0
      %859 = vmatprep.subr.bf16.mxu0 0
      %860 = vmatpush1.bf16.msra.mxu0 0
      %861 = vmatprep.subr.bf16.mxu0 0
      %862 = vmatpush1.bf16.msra.mxu0 0
      %863 = vmatprep.subr.bf16.mxu0 0
      %864 = vmatpush1.bf16.msra.mxu0 0
      %865 = vmatprep.subr.bf16.mxu0 0
      %866 = vmatpush1.bf16.msra.mxu0 0
      %867 = vmatprep.subr.bf16.mxu0 0
      %868 = vmatpush1.bf16.msra.mxu0 0
      %869 = vmatprep.subr.bf16.mxu0 0
      %870 = vmatpush1.bf16.msra.mxu0 0
      %871 = vmatprep.subr.bf16.mxu0 0
      %872 = vmatpush1.bf16.msra.mxu0 0
      %873 = vmatprep.subr.bf16.mxu0 0
      %874 = vmatpush1.bf16.msra.mxu0 0
      %875 = vmatprep.subr.bf16.mxu0 0
      %876 = vmatpush1.bf16.msra.mxu0 0
      %877 = vmatprep.subr.bf16.mxu0 0
      %878 = vmatpush1.bf16.msra.mxu0 0
      %879 = vmatprep.subr.bf16.mxu0 0
      %880 = vmatpush1.bf16.msra.mxu0 0
      %881 = vmatprep.subr.bf16.mxu0 0
      %882 = vmatpush1.bf16.msra.mxu0 0
      %883 = vmatprep.mubr.bf16.mxu0 0
      %884 = vmatmul.mubr.bf16.gmra.mrb[0].mxu0 %v840
      %v885 = vpop.f32.mrb[0].mxu0
      %v886 = vadd.f32 0.0, %v885
      %v887 = vpop.f32.mrb[0].mxu0
      %v888 = vpop.f32.mrb[0].mxu0
      %v889 = vadd.f32 0.0, %v888
      %v890 = vpop.f32.mrb[0].mxu0
      %891 = vmatprep.mubr.bf16.mxu0 0
      %892 = vmatmul.mubr.bf16.gmra.mrb[0].mxu0 %v843
      %v893 = vpop.f32.mrb[0].mxu0
      %v894 = vadd.f32 0.0, %v893
      %v895 = vpop.f32.mrb[0].mxu0
      %v896 = vpop.f32.mrb[0].mxu0
      %v897 = vadd.f32 0.0, %v896
      %v898 = vpop.f32.mrb[0].mxu0
      %899 = vmatprep.mubr.bf16.mxu0 0
      %900 = vmatmul.mubr.bf16.gmra.mrb[0].mxu0 %v846
      %v901 = vpop.f32.mrb[0].mxu0
      %v902 = vadd.f32 0.0, %v901
      %v903 = vpop.f32.mrb[0].mxu0
      %v904 = vpop.f32.mrb[0].mxu0
      %v905 = vadd.f32 0.0, %v904
      %v906 = vpop.f32.mrb[0].mxu0
      %907 = vmatprep.mubr.bf16.mxu0 0
      %908 = vmatmul.mubr.bf16.gmra.mrb[0].mxu0 %v849
      %v909 = vpop.f32.mrb[0].mxu0
      %v910 = vadd.f32 0.0, %v909
      %v911 = vpop.f32.mrb[0].mxu0
      %v912 = vpop.f32.mrb[0].mxu0
      %v913 = vadd.f32 0.0, %v912
      %v914 = vpop.f32.mrb[0].mxu0
      %915 = vdwg.mxu0
      %v916 = vadd.f32 %v785, %v886
      %v917 = vadd.f32 %v786, %v889
      %v918 = vadd.f32 %v787, %v894
      %v919 = vadd.f32 %v788, %v897
      %v920 = vadd.f32 %v789, %v902
      %v921 = vadd.f32 %v790, %v905
      %v922 = vadd.f32 %v791, %v910
      %v923 = vadd.f32 %v792, %v913
      %v924 = vld [vmem:[%s662] sm:$0xf]
      %v925 = vld [vmem:[%s662 + $0x4] sm:$0x1]
      %v926 = vld [vmem:[%s662 + $0x8] sm:$0xf]
      %v927 = vld [vmem:[%s662 + $0xc] sm:$0x1]
      %v928 = vld [vmem:[%s662 + $0x10] sm:$0xf]
      %v929 = vld [vmem:[%s662 + $0x14] sm:$0x1]
      %v930 = vld [vmem:[%s662 + $0x18] sm:$0xf]
      %v931 = vld [vmem:[%s662 + $0x1c] sm:$0x1]
      %v932 = vld [vmem:[%s662 + $0x20] sm:$0xf]
      %v933 = vld [vmem:[%s662 + $0x24] sm:$0x1]
      %v934 = vld [vmem:[%s662 + $0x28] sm:$0xf]
      %v935 = vld [vmem:[%s662 + $0x2c] sm:$0x1]
      %v936 = vld [vmem:[%s662 + $0x30] sm:$0xf]
      %v937 = vld [vmem:[%s662 + $0x34] sm:$0x1]
      %v938 = vld [vmem:[%s662 + $0x38] sm:$0xf]
      %v939 = vld [vmem:[%s662 + $0x3c] sm:$0x1]
      %v941 = vshrl.u32 %v924, 16
      %v943 = vrot.slane %v941, 4
      %v944 = vshll.u32 %v924, 16
      %v946 = vrot.slane %v944, 5
      %v947 = vor.u32 %v943, %v946
      %v948 = vrot.slane %v947, 4
      %v950 = vshll.u32 %v925, 16
      %v952 = vrot.slane %v950, 5
      %v953 = vsel %vm435, %v948, %v952
      %v955 = vshrl.u32 %v926, 16
      %v957 = vrot.slane %v955, 4
      %v958 = vshll.u32 %v926, 16
      %v960 = vrot.slane %v958, 5
      %v961 = vor.u32 %v957, %v960
      %v962 = vrot.slane %v961, 4
      %v964 = vshll.u32 %v927, 16
      %v966 = vrot.slane %v964, 5
      %v967 = vsel %vm435, %v962, %v966
      %v969 = vshrl.u32 %v928, 16
      %v971 = vrot.slane %v969, 4
      %v972 = vshll.u32 %v928, 16
      %v974 = vrot.slane %v972, 5
      %v975 = vor.u32 %v971, %v974
      %v976 = vrot.slane %v975, 4
      %v978 = vshll.u32 %v929, 16
      %v980 = vrot.slane %v978, 5
      %v981 = vsel %vm435, %v976, %v980
      %v983 = vshrl.u32 %v930, 16
      %v985 = vrot.slane %v983, 4
      %v986 = vshll.u32 %v930, 16
      %v988 = vrot.slane %v986, 5
      %v989 = vor.u32 %v985, %v988
      %v990 = vrot.slane %v989, 4
      %v992 = vshll.u32 %v931, 16
      %v994 = vrot.slane %v992, 5
      %v995 = vsel %vm435, %v990, %v994
      %v997 = vshrl.u32 %v932, 16
      %v999 = vrot.slane %v997, 4
      %v1000 = vshll.u32 %v932, 16
      %v1002 = vrot.slane %v1000, 5
      %v1003 = vor.u32 %v999, %v1002
      %v1004 = vrot.slane %v1003, 4
      %v1006 = vshll.u32 %v933, 16
      %v1008 = vrot.slane %v1006, 5
      %v1009 = vsel %vm435, %v1004, %v1008
      %v1011 = vshrl.u32 %v934, 16
      %v1013 = vrot.slane %v1011, 4
      %v1014 = vshll.u32 %v934, 16
      %v1016 = vrot.slane %v1014, 5
      %v1017 = vor.u32 %v1013, %v1016
      %v1018 = vrot.slane %v1017, 4
      %v1020 = vshll.u32 %v935, 16
      %v1022 = vrot.slane %v1020, 5
      %v1023 = vsel %vm435, %v1018, %v1022
      %v1025 = vshrl.u32 %v936, 16
      %v1027 = vrot.slane %v1025, 4
      %v1028 = vshll.u32 %v936, 16
      %v1030 = vrot.slane %v1028, 5
      %v1031 = vor.u32 %v1027, %v1030
      %v1032 = vrot.slane %v1031, 4
      %v1034 = vshll.u32 %v937, 16
      %v1036 = vrot.slane %v1034, 5
      %v1037 = vsel %vm435, %v1032, %v1036
      %v1039 = vshrl.u32 %v938, 16
      %v1041 = vrot.slane %v1039, 4
      %v1042 = vshll.u32 %v938, 16
      %v1044 = vrot.slane %v1042, 5
      %v1045 = vor.u32 %v1041, %v1044
      %v1046 = vrot.slane %v1045, 4
      %v1048 = vshll.u32 %v939, 16
      %v1050 = vrot.slane %v1048, 5
      %v1051 = vsel %vm435, %v1046, %v1050
      %s1052 = scalar_lea.vmem %s1, 80
      %v1053 = vld [vmem:[%s1052] sm:$0xf]
      %v1054 = vld [vmem:[%s1052 + $0x4] sm:$0xf]
      %v1055 = vld [vmem:[%s1052 + $0x8] sm:$0xf]
      %v1056 = vld [vmem:[%s1052 + $0xc] sm:$0xf]
      %v1057 = vunpack.c.l.b16 %v953
      %v1058 = vunpack.c.l.b16 %v967
      %v1059 = vunpack.c.l.b16 %v981
      %v1060 = vunpack.c.l.b16 %v995
      %v1061 = vunpack.c.l.b16 %v1009
      %v1062 = vunpack.c.l.b16 %v1023
      %v1063 = vunpack.c.l.b16 %v1037
      %v1064 = vunpack.c.l.b16 %v1051
      %v1065 = vpack.c.b16 %v1058, %v1057
      %v1066 = vpack.c.b16 %v1060, %v1059
      %v1067 = vpack.c.b16 %v1062, %v1061
      %v1068 = vpack.c.b16 %v1064, %v1063
      %v1073 = vunpack.c.l.b16 %v1053
      %v1074 = vunpack.c.l.b16 %v1054
      %v1075 = vunpack.c.l.b16 %v1055
      %v1076 = vunpack.c.l.b16 %v1056
      %v1077 = vpack.c.b16 %v1074, %v1073
      %v1078 = vpack.c.b16 %v1076, %v1075
      %v1082 = vsel %vm230, %v1065, 0
      %v1085 = vsel %vm230, %v1066, 0
      %v1088 = vsel %vm230, %v1067, 0
      %v1091 = vsel %vm230, %v1068, 0
      %1093 = vmatprep.subr.bf16.mxu0 0
      %1094 = vmatpush1.bf16.msra.mxu0 %v1077
      %1095 = vmatprep.subr.bf16.mxu0 0
      %1096 = vmatpush1.bf16.msra.mxu0 %v1078
      %1097 = vmatprep.subr.bf16.mxu0 0
      %1098 = vmatpush1.bf16.msra.mxu0 0
      %1099 = vmatprep.subr.bf16.mxu0 0
      %1100 = vmatpush1.bf16.msra.mxu0 0
      %1101 = vmatprep.subr.bf16.mxu0 0
      %1102 = vmatpush1.bf16.msra.mxu0 0
      %1103 = vmatprep.subr.bf16.mxu0 0
      %1104 = vmatpush1.bf16.msra.mxu0 0
      %1105 = vmatprep.subr.bf16.mxu0 0
      %1106 = vmatpush1.bf16.msra.mxu0 0
      %1107 = vmatprep.subr.bf16.mxu0 0
      %1108 = vmatpush1.bf16.msra.mxu0 0
      %1109 = vmatprep.subr.bf16.mxu0 0
      %1110 = vmatpush1.bf16.msra.mxu0 0
      %1111 = vmatprep.subr.bf16.mxu0 0
      %1112 = vmatpush1.bf16.msra.mxu0 0
      %1113 = vmatprep.subr.bf16.mxu0 0
      %1114 = vmatpush1.bf16.msra.mxu0 0
      %1115 = vmatprep.subr.bf16.mxu0 0
      %1116 = vmatpush1.bf16.msra.mxu0 0
      %1117 = vmatprep.subr.bf16.mxu0 0
      %1118 = vmatpush1.bf16.msra.mxu0 0
      %1119 = vmatprep.subr.bf16.mxu0 0
      %1120 = vmatpush1.bf16.msra.mxu0 0
      %1121 = vmatprep.subr.bf16.mxu0 0
      %1122 = vmatpush1.bf16.msra.mxu0 0
      %1123 = vmatprep.subr.bf16.mxu0 0
      %1124 = vmatpush1.bf16.msra.mxu0 0
      %1125 = vmatprep.mubr.bf16.mxu0 0
      %1126 = vmatmul.mubr.bf16.gmra.mrb[0].mxu0 %v1082
      %v1127 = vpop.f32.mrb[0].mxu0
      %v1128 = vadd.f32 0.0, %v1127
      %v1129 = vpop.f32.mrb[0].mxu0
      %v1130 = vpop.f32.mrb[0].mxu0
      %v1131 = vadd.f32 0.0, %v1130
      %v1132 = vpop.f32.mrb[0].mxu0
      %1133 = vmatprep.mubr.bf16.mxu0 0
      %1134 = vmatmul.mubr.bf16.gmra.mrb[0].mxu0 %v1085
      %v1135 = vpop.f32.mrb[0].mxu0
      %v1136 = vadd.f32 0.0, %v1135
      %v1137 = vpop.f32.mrb[0].mxu0
      %v1138 = vpop.f32.mrb[0].mxu0
      %v1139 = vadd.f32 0.0, %v1138
      %v1140 = vpop.f32.mrb[0].mxu0
      %1141 = vmatprep.mubr.bf16.mxu0 0
      %1142 = vmatmul.mubr.bf16.gmra.mrb[0].mxu0 %v1088
      %v1143 = vpop.f32.mrb[0].mxu0
      %v1144 = vadd.f32 0.0, %v1143
      %v1145 = vpop.f32.mrb[0].mxu0
      %v1146 = vpop.f32.mrb[0].mxu0
      %v1147 = vadd.f32 0.0, %v1146
      %v1148 = vpop.f32.mrb[0].mxu0
      %1149 = vmatprep.mubr.bf16.mxu0 0
      %1150 = vmatmul.mubr.bf16.gmra.mrb[0].mxu0 %v1091
      %v1151 = vpop.f32.mrb[0].mxu0
      %v1152 = vadd.f32 0.0, %v1151
      %v1153 = vpop.f32.mrb[0].mxu0
      %v1154 = vpop.f32.mrb[0].mxu0
      %v1155 = vadd.f32 0.0, %v1154
      %v1156 = vpop.f32.mrb[0].mxu0
      %1157 = vdwg.mxu0
      %v1158 = vadd.f32 %v916, %v1128
      %v1159 = vadd.f32 %v917, %v1131
      %v1160 = vadd.f32 %v918, %v1136
      %v1161 = vadd.f32 %v919, %v1139
      %v1162 = vadd.f32 %v920, %v1144
      %v1163 = vadd.f32 %v921, %v1147
      %v1164 = vadd.f32 %v922, %v1152
      %v1165 = vadd.f32 %v923, %v1155
      %s1166 = scalar_lea.vmem %s165, 8
      %v1167 = vld [vmem:[%s1166] sm:$0xf]
      %v1168 = vld [vmem:[%s1166 + $0x8] sm:$0xf]
      %v1169 = vld [vmem:[%s1166 + $0x10] sm:$0xf]
      %v1170 = vld [vmem:[%s1166 + $0x18] sm:$0xf]
      %v1171 = vld [vmem:[%s1166 + $0x20] sm:$0xf]
      %v1172 = vld [vmem:[%s1166 + $0x28] sm:$0xf]
      %v1173 = vld [vmem:[%s1166 + $0x30] sm:$0xf]
      %v1174 = vld [vmem:[%s1166 + $0x38] sm:$0xf]
      %s1175 = scalar_lea.vmem %s1, 96
      %v1176 = vld [vmem:[%s1175] sm:$0xf]
      %v1177 = vld [vmem:[%s1175 + $0x4] sm:$0xf]
      %v1178 = vld [vmem:[%s1175 + $0x8] sm:$0xf]
      %v1179 = vld [vmem:[%s1175 + $0xc] sm:$0xf]
      %v1188 = vunpack.c.l.b16 %v1167
      %v1189 = vunpack.c.l.b16 %v1168
      %v1190 = vunpack.c.l.b16 %v1169
      %v1191 = vunpack.c.l.b16 %v1170
      %v1192 = vunpack.c.l.b16 %v1171
      %v1193 = vunpack.c.l.b16 %v1172
      %v1194 = vunpack.c.l.b16 %v1173
      %v1195 = vunpack.c.l.b16 %v1174
      %v1196 = vpack.c.b16 %v1189, %v1188
      %v1197 = vpack.c.b16 %v1191, %v1190
      %v1198 = vpack.c.b16 %v1193, %v1192
      %v1199 = vpack.c.b16 %v1195, %v1194
      %v1204 = vunpack.c.l.b16 %v1176
      %v1205 = vunpack.c.l.b16 %v1177
      %v1206 = vunpack.c.l.b16 %v1178
      %v1207 = vunpack.c.l.b16 %v1179
      %v1208 = vpack.c.b16 %v1205, %v1204
      %v1209 = vpack.c.b16 %v1207, %v1206
      %v1213 = vsel %vm230, %v1196, 0
      %v1216 = vsel %vm230, %v1197, 0
      %v1219 = vsel %vm230, %v1198, 0
      %v1222 = vsel %vm230, %v1199, 0
      %1224 = vmatprep.subr.bf16.mxu0 0
      %1225 = vmatpush1.bf16.msra.mxu0 %v1208
      %1226 = vmatprep.subr.bf16.mxu0 0
      %1227 = vmatpush1.bf16.msra.mxu0 %v1209
      %1228 = vmatprep.subr.bf16.mxu0 0
      %1229 = vmatpush1.bf16.msra.mxu0 0
      %1230 = vmatprep.subr.bf16.mxu0 0
      %1231 = vmatpush1.bf16.msra.mxu0 0
      %1232 = vmatprep.subr.bf16.mxu0 0
      %1233 = vmatpush1.bf16.msra.mxu0 0
      %1234 = vmatprep.subr.bf16.mxu0 0
      %1235 = vmatpush1.bf16.msra.mxu0 0
      %1236 = vmatprep.subr.bf16.mxu0 0
      %1237 = vmatpush1.bf16.msra.mxu0 0
      %1238 = vmatprep.subr.bf16.mxu0 0
      %1239 = vmatpush1.bf16.msra.mxu0 0
      %1240 = vmatprep.subr.bf16.mxu0 0
      %1241 = vmatpush1.bf16.msra.mxu0 0
      %1242 = vmatprep.subr.bf16.mxu0 0
      %1243 = vmatpush1.bf16.msra.mxu0 0
      %1244 = vmatprep.subr.bf16.mxu0 0
      %1245 = vmatpush1.bf16.msra.mxu0 0
      %1246 = vmatprep.subr.bf16.mxu0 0
      %1247 = vmatpush1.bf16.msra.mxu0 0
      %1248 = vmatprep.subr.bf16.mxu0 0
      %1249 = vmatpush1.bf16.msra.mxu0 0
      %1250 = vmatprep.subr.bf16.mxu0 0
      %1251 = vmatpush1.bf16.msra.mxu0 0
      %1252 = vmatprep.subr.bf16.mxu0 0
      %1253 = vmatpush1.bf16.msra.mxu0 0
      %1254 = vmatprep.subr.bf16.mxu0 0
      %1255 = vmatpush1.bf16.msra.mxu0 0
      %1256 = vmatprep.mubr.bf16.mxu0 0
      %1257 = vmatmul.mubr.bf16.gmra.mrb[0].mxu0 %v1213
      %v1258 = vpop.f32.mrb[0].mxu0
      %v1259 = vadd.f32 0.0, %v1258
      %v1260 = vpop.f32.mrb[0].mxu0
      %v1261 = vpop.f32.mrb[0].mxu0
      %v1262 = vadd.f32 0.0, %v1261
      %v1263 = vpop.f32.mrb[0].mxu0
      %1264 = vmatprep.mubr.bf16.mxu0 0
      %1265 = vmatmul.mubr.bf16.gmra.mrb[0].mxu0 %v1216
      %v1266 = vpop.f32.mrb[0].mxu0
      %v1267 = vadd.f32 0.0, %v1266
      %v1268 = vpop.f32.mrb[0].mxu0
      %v1269 = vpop.f32.mrb[0].mxu0
      %v1270 = vadd.f32 0.0, %v1269
      %v1271 = vpop.f32.mrb[0].mxu0
      %1272 = vmatprep.mubr.bf16.mxu0 0
      %1273 = vmatmul.mubr.bf16.gmra.mrb[0].mxu0 %v1219
      %v1274 = vpop.f32.mrb[0].mxu0
      %v1275 = vadd.f32 0.0, %v1274
      %v1276 = vpop.f32.mrb[0].mxu0
      %v1277 = vpop.f32.mrb[0].mxu0
      %v1278 = vadd.f32 0.0, %v1277
      %v1279 = vpop.f32.mrb[0].mxu0
      %1280 = vmatprep.mubr.bf16.mxu0 0
      %1281 = vmatmul.mubr.bf16.gmra.mrb[0].mxu0 %v1222
      %v1282 = vpop.f32.mrb[0].mxu0
      %v1283 = vadd.f32 0.0, %v1282
      %v1284 = vpop.f32.mrb[0].mxu0
      %v1285 = vpop.f32.mrb[0].mxu0
      %v1286 = vadd.f32 0.0, %v1285
      %v1287 = vpop.f32.mrb[0].mxu0
      %1288 = vdwg.mxu0
      %v1289 = vadd.f32 %v1158, %v1259
      %v1290 = vadd.f32 %v1159, %v1262
      %v1291 = vadd.f32 %v1160, %v1267
      %v1292 = vadd.f32 %v1161, %v1270
      %v1293 = vadd.f32 %v1162, %v1275
      %v1294 = vadd.f32 %v1163, %v1278
      %v1295 = vadd.f32 %v1164, %v1283
      %v1296 = vadd.f32 %v1165, %v1286
      %s1297 = scalar_lea.vmem %s165, 80
      %v1298 = vld [vmem:[%s1297] sm:$0xf]
      %v1299 = vld [vmem:[%s1297 + $0x8] sm:$0xf]
      %v1300 = vld [vmem:[%s1297 + $0x10] sm:$0xf]
      %v1301 = vld [vmem:[%s1297 + $0x18] sm:$0xf]
      %v1302 = vld [vmem:[%s1297 + $0x20] sm:$0xf]
      %v1303 = vld [vmem:[%s1297 + $0x28] sm:$0xf]
      %v1304 = vld [vmem:[%s1297 + $0x30] sm:$0xf]
      %v1305 = vld [vmem:[%s1297 + $0x38] sm:$0xf]
      %s1306 = scalar_lea.vmem %s1, 112
      %v1307 = vld [vmem:[%s1306] sm:$0xf]
      %v1308 = vld [vmem:[%s1306 + $0x4] sm:$0xf]
      %v1309 = vld [vmem:[%s1306 + $0x8] sm:$0xf]
      %v1310 = vld [vmem:[%s1306 + $0xc] sm:$0xf]
      %v1319 = vunpack.c.l.b16 %v1298
      %v1320 = vunpack.c.l.b16 %v1299
      %v1321 = vunpack.c.l.b16 %v1300
      %v1322 = vunpack.c.l.b16 %v1301
      %v1323 = vunpack.c.l.b16 %v1302
      %v1324 = vunpack.c.l.b16 %v1303
      %v1325 = vunpack.c.l.b16 %v1304
      %v1326 = vunpack.c.l.b16 %v1305
      %v1327 = vpack.c.b16 %v1320, %v1319
      %v1328 = vpack.c.b16 %v1322, %v1321
      %v1329 = vpack.c.b16 %v1324, %v1323
      %v1330 = vpack.c.b16 %v1326, %v1325
      %v1335 = vunpack.c.l.b16 %v1307
      %v1336 = vunpack.c.l.b16 %v1308
      %v1337 = vunpack.c.l.b16 %v1309
      %v1338 = vunpack.c.l.b16 %v1310
      %v1339 = vpack.c.b16 %v1336, %v1335
      %v1340 = vpack.c.b16 %v1338, %v1337
      %v1344 = vsel %vm230, %v1327, 0
      %v1347 = vsel %vm230, %v1328, 0
      %v1350 = vsel %vm230, %v1329, 0
      %v1353 = vsel %vm230, %v1330, 0
      %1355 = vmatprep.subr.bf16.mxu0 0
      %1356 = vmatpush1.bf16.msra.mxu0 %v1339
      %1357 = vmatprep.subr.bf16.mxu0 0
      %1358 = vmatpush1.bf16.msra.mxu0 %v1340
      %1359 = vmatprep.subr.bf16.mxu0 0
      %1360 = vmatpush1.bf16.msra.mxu0 0
      %1361 = vmatprep.subr.bf16.mxu0 0
      %1362 = vmatpush1.bf16.msra.mxu0 0
      %1363 = vmatprep.subr.bf16.mxu0 0
      %1364 = vmatpush1.bf16.msra.mxu0 0
      %1365 = vmatprep.subr.bf16.mxu0 0
      %1366 = vmatpush1.bf16.msra.mxu0 0
      %1367 = vmatprep.subr.bf16.mxu0 0
      %1368 = vmatpush1.bf16.msra.mxu0 0
      %1369 = vmatprep.subr.bf16.mxu0 0
      %1370 = vmatpush1.bf16.msra.mxu0 0
      %1371 = vmatprep.subr.bf16.mxu0 0
      %1372 = vmatpush1.bf16.msra.mxu0 0
      %1373 = vmatprep.subr.bf16.mxu0 0
      %1374 = vmatpush1.bf16.msra.mxu0 0
      %1375 = vmatprep.subr.bf16.mxu0 0
      %1376 = vmatpush1.bf16.msra.mxu0 0
      %1377 = vmatprep.subr.bf16.mxu0 0
      %1378 = vmatpush1.bf16.msra.mxu0 0
      %1379 = vmatprep.subr.bf16.mxu0 0
      %1380 = vmatpush1.bf16.msra.mxu0 0
      %1381 = vmatprep.subr.bf16.mxu0 0
      %1382 = vmatpush1.bf16.msra.mxu0 0
      %1383 = vmatprep.subr.bf16.mxu0 0
      %1384 = vmatpush1.bf16.msra.mxu0 0
      %1385 = vmatprep.subr.bf16.mxu0 0
      %1386 = vmatpush1.bf16.msra.mxu0 0
      %1387 = vmatprep.mubr.bf16.mxu0 0
      %1388 = vmatmul.mubr.bf16.gmra.mrb[0].mxu0 %v1344
      %v1389 = vpop.f32.mrb[0].mxu0
      %v1390 = vadd.f32 0.0, %v1389
      %v1391 = vpop.f32.mrb[0].mxu0
      %v1392 = vpop.f32.mrb[0].mxu0
      %v1393 = vadd.f32 0.0, %v1392
      %v1394 = vpop.f32.mrb[0].mxu0
      %1395 = vmatprep.mubr.bf16.mxu0 0
      %1396 = vmatmul.mubr.bf16.gmra.mrb[0].mxu0 %v1347
      %v1397 = vpop.f32.mrb[0].mxu0
      %v1398 = vadd.f32 0.0, %v1397
      %v1399 = vpop.f32.mrb[0].mxu0
      %v1400 = vpop.f32.mrb[0].mxu0
      %v1401 = vadd.f32 0.0, %v1400
      %v1402 = vpop.f32.mrb[0].mxu0
      %1403 = vmatprep.mubr.bf16.mxu0 0
      %1404 = vmatmul.mubr.bf16.gmra.mrb[0].mxu0 %v1350
      %v1405 = vpop.f32.mrb[0].mxu0
      %v1406 = vadd.f32 0.0, %v1405
      %v1407 = vpop.f32.mrb[0].mxu0
      %v1408 = vpop.f32.mrb[0].mxu0
      %v1409 = vadd.f32 0.0, %v1408
      %v1410 = vpop.f32.mrb[0].mxu0
      %1411 = vmatprep.mubr.bf16.mxu0 0
      %1412 = vmatmul.mubr.bf16.gmra.mrb[0].mxu0 %v1353
      %v1413 = vpop.f32.mrb[0].mxu0
      %v1414 = vadd.f32 0.0, %v1413
      %v1415 = vpop.f32.mrb[0].mxu0
      %v1416 = vpop.f32.mrb[0].mxu0
      %v1417 = vadd.f32 0.0, %v1416
      %v1418 = vpop.f32.mrb[0].mxu0
      %1419 = vdwg.mxu0
      %v1420 = vadd.f32 %v1289, %v1390
      %v1421 = vadd.f32 %v1290, %v1393
      %v1422 = vadd.f32 %v1291, %v1398
      %v1423 = vadd.f32 %v1292, %v1401
      %v1424 = vadd.f32 %v1293, %v1406
      %v1425 = vadd.f32 %v1294, %v1409
      %v1426 = vadd.f32 %v1295, %v1414
      %v1427 = vadd.f32 %v1296, %v1417
      %v1428 = vld [vmem:[%s1166] sm:$0xf]
      %v1429 = vld [vmem:[%s1166 + $0x4] sm:$0x1]
      %v1430 = vld [vmem:[%s1166 + $0x8] sm:$0xf]
      %v1431 = vld [vmem:[%s1166 + $0xc] sm:$0x1]
      %v1432 = vld [vmem:[%s1166 + $0x10] sm:$0xf]
      %v1433 = vld [vmem:[%s1166 + $0x14] sm:$0x1]
      %v1434 = vld [vmem:[%s1166 + $0x18] sm:$0xf]
      %v1435 = vld [vmem:[%s1166 + $0x1c] sm:$0x1]
      %v1436 = vld [vmem:[%s1166 + $0x20] sm:$0xf]
      %v1437 = vld [vmem:[%s1166 + $0x24] sm:$0x1]
      %v1438 = vld [vmem:[%s1166 + $0x28] sm:$0xf]
      %v1439 = vld [vmem:[%s1166 + $0x2c] sm:$0x1]
      %v1440 = vld [vmem:[%s1166 + $0x30] sm:$0xf]
      %v1441 = vld [vmem:[%s1166 + $0x34] sm:$0x1]
      %v1442 = vld [vmem:[%s1166 + $0x38] sm:$0xf]
      %v1443 = vld [vmem:[%s1166 + $0x3c] sm:$0x1]
      %v1445 = vshrl.u32 %v1428, 16
      %v1447 = vrot.slane %v1445, 4
      %v1448 = vshll.u32 %v1428, 16
      %v1450 = vrot.slane %v1448, 5
      %v1451 = vor.u32 %v1447, %v1450
      %v1452 = vrot.slane %v1451, 4
      %v1454 = vshll.u32 %v1429, 16
      %v1456 = vrot.slane %v1454, 5
      %v1457 = vsel %vm435, %v1452, %v1456
      %v1459 = vshrl.u32 %v1430, 16
      %v1461 = vrot.slane %v1459, 4
      %v1462 = vshll.u32 %v1430, 16
      %v1464 = vrot.slane %v1462, 5
      %v1465 = vor.u32 %v1461, %v1464
      %v1466 = vrot.slane %v1465, 4
      %v1468 = vshll.u32 %v1431, 16
      %v1470 = vrot.slane %v1468, 5
      %v1471 = vsel %vm435, %v1466, %v1470
      %v1473 = vshrl.u32 %v1432, 16
      %v1475 = vrot.slane %v1473, 4
      %v1476 = vshll.u32 %v1432, 16
      %v1478 = vrot.slane %v1476, 5
      %v1479 = vor.u32 %v1475, %v1478
      %v1480 = vrot.slane %v1479, 4
      %v1482 = vshll.u32 %v1433, 16
      %v1484 = vrot.slane %v1482, 5
      %v1485 = vsel %vm435, %v1480, %v1484
      %v1487 = vshrl.u32 %v1434, 16
      %v1489 = vrot.slane %v1487, 4
      %v1490 = vshll.u32 %v1434, 16
      %v1492 = vrot.slane %v1490, 5
      %v1493 = vor.u32 %v1489, %v1492
      %v1494 = vrot.slane %v1493, 4
      %v1496 = vshll.u32 %v1435, 16
      %v1498 = vrot.slane %v1496, 5
      %v1499 = vsel %vm435, %v1494, %v1498
      %v1501 = vshrl.u32 %v1436, 16
      %v1503 = vrot.slane %v1501, 4
      %v1504 = vshll.u32 %v1436, 16
      %v1506 = vrot.slane %v1504, 5
      %v1507 = vor.u32 %v1503, %v1506
      %v1508 = vrot.slane %v1507, 4
      %v1510 = vshll.u32 %v1437, 16
      %v1512 = vrot.slane %v1510, 5
      %v1513 = vsel %vm435, %v1508, %v1512
      %v1515 = vshrl.u32 %v1438, 16
      %v1517 = vrot.slane %v1515, 4
      %v1518 = vshll.u32 %v1438, 16
      %v1520 = vrot.slane %v1518, 5
      %v1521 = vor.u32 %v1517, %v1520
      %v1522 = vrot.slane %v1521, 4
      %v1524 = vshll.u32 %v1439, 16
      %v1526 = vrot.slane %v1524, 5
      %v1527 = vsel %vm435, %v1522, %v1526
      %v1529 = vshrl.u32 %v1440, 16
      %v1531 = vrot.slane %v1529, 4
      %v1532 = vshll.u32 %v1440, 16
      %v1534 = vrot.slane %v1532, 5
      %v1535 = vor.u32 %v1531, %v1534
      %v1536 = vrot.slane %v1535, 4
      %v1538 = vshll.u32 %v1441, 16
      %v1540 = vrot.slane %v1538, 5
      %v1541 = vsel %vm435, %v1536, %v1540
      %v1543 = vshrl.u32 %v1442, 16
      %v1545 = vrot.slane %v1543, 4
      %v1546 = vshll.u32 %v1442, 16
      %v1548 = vrot.slane %v1546, 5
      %v1549 = vor.u32 %v1545, %v1548
      %v1550 = vrot.slane %v1549, 4
      %v1552 = vshll.u32 %v1443, 16
      %v1554 = vrot.slane %v1552, 5
      %v1555 = vsel %vm435, %v1550, %v1554
      %s1556 = scalar_lea.vmem %s1, 128
      %v1557 = vld [vmem:[%s1556] sm:$0xf]
      %v1558 = vld [vmem:[%s1556 + $0x4] sm:$0xf]
      %v1559 = vld [vmem:[%s1556 + $0x8] sm:$0xf]
      %v1560 = vld [vmem:[%s1556 + $0xc] sm:$0xf]
      %v1561 = vunpack.c.l.b16 %v1457
      %v1562 = vunpack.c.l.b16 %v1471
      %v1563 = vunpack.c.l.b16 %v1485
      %v1564 = vunpack.c.l.b16 %v1499
      %v1565 = vunpack.c.l.b16 %v1513
      %v1566 = vunpack.c.l.b16 %v1527
      %v1567 = vunpack.c.l.b16 %v1541
      %v1568 = vunpack.c.l.b16 %v1555
      %v1569 = vpack.c.b16 %v1562, %v1561
      %v1570 = vpack.c.b16 %v1564, %v1563
      %v1571 = vpack.c.b16 %v1566, %v1565
      %v1572 = vpack.c.b16 %v1568, %v1567
      %v1577 = vunpack.c.l.b16 %v1557
      %v1578 = vunpack.c.l.b16 %v1558
      %v1579 = vunpack.c.l.b16 %v1559
      %v1580 = vunpack.c.l.b16 %v1560
      %v1581 = vpack.c.b16 %v1578, %v1577
      %v1582 = vpack.c.b16 %v1580, %v1579
      %v1586 = vsel %vm230, %v1569, 0
      %v1589 = vsel %vm230, %v1570, 0
      %v1592 = vsel %vm230, %v1571, 0
      %v1595 = vsel %vm230, %v1572, 0
      %1597 = vmatprep.subr.bf16.mxu0 0
      %1598 = vmatpush1.bf16.msra.mxu0 %v1581
      %1599 = vmatprep.subr.bf16.mxu0 0
      %1600 = vmatpush1.bf16.msra.mxu0 %v1582
      %1601 = vmatprep.subr.bf16.mxu0 0
      %1602 = vmatpush1.bf16.msra.mxu0 0
      %1603 = vmatprep.subr.bf16.mxu0 0
      %1604 = vmatpush1.bf16.msra.mxu0 0
      %1605 = vmatprep.subr.bf16.mxu0 0
      %1606 = vmatpush1.bf16.msra.mxu0 0
      %1607 = vmatprep.subr.bf16.mxu0 0
      %1608 = vmatpush1.bf16.msra.mxu0 0
      %1609 = vmatprep.subr.bf16.mxu0 0
      %1610 = vmatpush1.bf16.msra.mxu0 0
      %1611 = vmatprep.subr.bf16.mxu0 0
      %1612 = vmatpush1.bf16.msra.mxu0 0
      %1613 = vmatprep.subr.bf16.mxu0 0
      %1614 = vmatpush1.bf16.msra.mxu0 0
      %1615 = vmatprep.subr.bf16.mxu0 0
      %1616 = vmatpush1.bf16.msra.mxu0 0
      %1617 = vmatprep.subr.bf16.mxu0 0
      %1618 = vmatpush1.bf16.msra.mxu0 0
      %1619 = vmatprep.subr.bf16.mxu0 0
      %1620 = vmatpush1.bf16.msra.mxu0 0
      %1621 = vmatprep.subr.bf16.mxu0 0
      %1622 = vmatpush1.bf16.msra.mxu0 0
      %1623 = vmatprep.subr.bf16.mxu0 0
      %1624 = vmatpush1.bf16.msra.mxu0 0
      %1625 = vmatprep.subr.bf16.mxu0 0
      %1626 = vmatpush1.bf16.msra.mxu0 0
      %1627 = vmatprep.subr.bf16.mxu0 0
      %1628 = vmatpush1.bf16.msra.mxu0 0
      %1629 = vmatprep.mubr.bf16.mxu0 0
      %1630 = vmatmul.mubr.bf16.gmra.mrb[0].mxu0 %v1586
      %v1631 = vpop.f32.mrb[0].mxu0
      %v1632 = vadd.f32 0.0, %v1631
      %v1633 = vpop.f32.mrb[0].mxu0
      %v1634 = vpop.f32.mrb[0].mxu0
      %v1635 = vadd.f32 0.0, %v1634
      %v1636 = vpop.f32.mrb[0].mxu0
      %1637 = vmatprep.mubr.bf16.mxu0 0
      %1638 = vmatmul.mubr.bf16.gmra.mrb[0].mxu0 %v1589
      %v1639 = vpop.f32.mrb[0].mxu0
      %v1640 = vadd.f32 0.0, %v1639
      %v1641 = vpop.f32.mrb[0].mxu0
      %v1642 = vpop.f32.mrb[0].mxu0
      %v1643 = vadd.f32 0.0, %v1642
      %v1644 = vpop.f32.mrb[0].mxu0
      %1645 = vmatprep.mubr.bf16.mxu0 0
      %1646 = vmatmul.mubr.bf16.gmra.mrb[0].mxu0 %v1592
      %v1647 = vpop.f32.mrb[0].mxu0
      %v1648 = vadd.f32 0.0, %v1647
      %v1649 = vpop.f32.mrb[0].mxu0
      %v1650 = vpop.f32.mrb[0].mxu0
      %v1651 = vadd.f32 0.0, %v1650
      %v1652 = vpop.f32.mrb[0].mxu0
      %1653 = vmatprep.mubr.bf16.mxu0 0
      %1654 = vmatmul.mubr.bf16.gmra.mrb[0].mxu0 %v1595
      %v1655 = vpop.f32.mrb[0].mxu0
      %v1656 = vadd.f32 0.0, %v1655
      %v1657 = vpop.f32.mrb[0].mxu0
      %v1658 = vpop.f32.mrb[0].mxu0
      %v1659 = vadd.f32 0.0, %v1658
      %v1660 = vpop.f32.mrb[0].mxu0
      %1661 = vdwg.mxu0
      %v1662 = vadd.f32 %v1420, %v1632
      %v1663 = vadd.f32 %v1421, %v1635
      %v1664 = vadd.f32 %v1422, %v1640
      %v1665 = vadd.f32 %v1423, %v1643
      %v1666 = vadd.f32 %v1424, %v1648
      %v1667 = vadd.f32 %v1425, %v1651
      %v1668 = vadd.f32 %v1426, %v1656
      %v1669 = vadd.f32 %v1427, %v1659
      %v1670 = vld [vmem:[%s2] sm:$0x1]
      %v1672 = vlaneseq
      %v1673 = vshrl.u32 %v1672, 7
      %v1674 = vsub.s32 0, %v1673
      %v1675 = vrot.slane %v1670, %v1674
      %v1677 = vadd.f32 %v1662, %v1675
      %v1678 = vadd.f32 %v1663, %v1675
      %v1679 = vadd.f32 %v1664, %v1675
      %v1680 = vadd.f32 %v1665, %v1675
      %v1681 = vadd.f32 %v1666, %v1675
      %v1682 = vadd.f32 %v1667, %v1675
      %v1683 = vadd.f32 %v1668, %v1675
      %v1684 = vadd.f32 %v1669, %v1675
      %v1685 = vsub.f32 0.0, %v1677
      %v1686 = vsub.f32 0.0, %v1678
      %v1687 = vsub.f32 0.0, %v1679
      %v1688 = vsub.f32 0.0, %v1680
      %v1689 = vsub.f32 0.0, %v1681
      %v1690 = vsub.f32 0.0, %v1682
      %v1691 = vsub.f32 0.0, %v1683
      %v1692 = vsub.f32 0.0, %v1684
      %v1693 = vmul.f32 %v1685, 1.442695
      %v1694 = vpow.pop %v1693
      %v1695 = vmul.f32 %v1686, 1.442695
      %v1696 = vpow.pop %v1695
      %v1697 = vmul.f32 %v1687, 1.442695
      %v1698 = vpow.pop %v1697
      %v1699 = vmul.f32 %v1688, 1.442695
      %v1700 = vpow.pop %v1699
      %v1701 = vmul.f32 %v1689, 1.442695
      %v1702 = vpow.pop %v1701
      %v1703 = vmul.f32 %v1690, 1.442695
      %v1704 = vpow.pop %v1703
      %v1705 = vmul.f32 %v1691, 1.442695
      %v1706 = vpow.pop %v1705
      %v1707 = vmul.f32 %v1692, 1.442695
      %v1708 = vpow.pop %v1707
      %v1709 = vadd.f32 %v1694, 1.0
      %v1710 = vadd.f32 %v1696, 1.0
      %v1711 = vadd.f32 %v1698, 1.0
      %v1712 = vadd.f32 %v1700, 1.0
      %v1713 = vadd.f32 %v1702, 1.0
      %v1714 = vadd.f32 %v1704, 1.0
      %v1715 = vadd.f32 %v1706, 1.0
      %v1716 = vadd.f32 %v1708, 1.0
      %v1717 = vrcp.pop %v1709
      %v1718 = vrcp.pop %v1710
      %v1719 = vrcp.pop %v1711
      %v1720 = vrcp.pop %v1712
      %v1721 = vrcp.pop %v1713
      %v1722 = vrcp.pop %v1714
      %v1723 = vrcp.pop %v1715
      %v1724 = vrcp.pop %v1716
      %v1725 = vmul.f32 %v1677, %v1717
      %v1726 = vmul.f32 %v1678, %v1718
      %v1727 = vmul.f32 %v1679, %v1719
      %v1728 = vmul.f32 %v1680, %v1720
      %v1729 = vmul.f32 %v1681, %v1721
      %v1730 = vmul.f32 %v1682, %v1722
      %v1731 = vmul.f32 %v1683, %v1723
      %v1732 = vmul.f32 %v1684, %v1724
      %v1733 = vpack.c.bf16 %v1726, %v1725
      %v1734 = vpack.c.bf16 %v1728, %v1727
      %v1735 = vpack.c.bf16 %v1730, %v1729
      %v1736 = vpack.c.bf16 %v1732, %v1731
      %v1741 = vunpack.c.l.b16 %v1733
      %v1742 = vunpack.c.h.b16 %v1733
      %v1743 = vunpack.c.l.b16 %v1734
      %v1744 = vunpack.c.h.b16 %v1734
      %v1745 = vunpack.c.l.b16 %v1735
      %v1746 = vunpack.c.h.b16 %v1735
      %v1747 = vunpack.c.l.b16 %v1736
      %v1748 = vunpack.c.h.b16 %v1736
      %v1749 = vpack.c.b16 %v1741, %v1741
      %v1750 = vpack.c.b16 %v1742, %v1742
      %v1751 = vpack.c.b16 %v1743, %v1743
      %v1752 = vpack.c.b16 %v1744, %v1744
      %v1753 = vpack.c.b16 %v1745, %v1745
      %v1754 = vpack.c.b16 %v1746, %v1746
      %v1755 = vpack.c.b16 %v1747, %v1747
      %v1756 = vpack.c.b16 %v1748, %v1748
      %vm1765 = vcmask 257024
      %1766 = vst.msk [vmem:[%s170] sm:$0xf] %vm1765, %v1749
      %1767 = vst.msk [vmem:[%s170 + $0x4] sm:$0xf] %vm1765, %v1750
      %1768 = vst.msk [vmem:[%s170 + $0x8] sm:$0xf] %vm1765, %v1751
      %1769 = vst.msk [vmem:[%s170 + $0xc] sm:$0xf] %vm1765, %v1752
      %1770 = vst.msk [vmem:[%s170 + $0x10] sm:$0xf] %vm1765, %v1753
      %1771 = vst.msk [vmem:[%s170 + $0x14] sm:$0xf] %vm1765, %v1754
      %1772 = vst.msk [vmem:[%s170 + $0x18] sm:$0xf] %vm1765, %v1755
      %1773 = vst.msk [vmem:[%s170 + $0x1c] sm:$0xf] %vm1765, %v1756
      %p1774 = scmp.lt.s32.totalorder %s14, 1
      %s1775 = scalar_select %p1774, %s14, 1
      %s1776 = smul.addr %s1775, 8
      %s1777 = smul.addr %s1776, 4
      %s1778 = scalar_lea.vmem %s3, %s1777
      // Predicated region
      $region33: #{vae_encode_forward.5} parent=31 // pred_check
        %p1779 = pneg %p100
      $region34: #{vae_encode_forward.5} parent=31 // pred_check_branch
        %1781 = sbr.rel (%p1779) target = $region36
      $region35: #{vae_encode_forward.5} parent=31 // pred_region
        _
      $region36: #{vae_encode_forward.5} parent=31 // pred_fallthru
        _
    $region32: #{vae_encode_forward.5} parent=5 // pred_fallthru
      _
    %p1782 = scmp.le.s32.totalorder 2, %s9
    // Predicated region
    $region37: #{vae_encode_forward.5} parent=5 // pred_check
      %p1783 = pneg %p1782
    $region38: #{vae_encode_forward.5} parent=5 // pred_check_branch
      %1785 = sbr.rel (%p1783) target = $region40
    $region39: #{vae_encode_forward.5} parent=5 // pred_region
      %s1786 = ssub.s32 %s9, 2
      // Predicated region
      $region41: #{vae_encode_forward.5} parent=39 // pred_check
        %p1787 = pneg %p106
      $region42: #{vae_encode_forward.5} parent=39 // pred_check_branch
        %1789 = sbr.rel (%p1787) target = $region44
      $region43: #{vae_encode_forward.5} parent=39 // pred_region
        %p1790 = scmp.lt.s32.totalorder %s15, 1
        %s1791 = scalar_select %p1790, %s15, 1
        %s1792 = smul.addr %s1791, 8
        %s1793 = smul.addr %s1792, 4
        %s1794 = scalar_lea.vmem %s3, %s1793
      $region44: #{vae_encode_forward.5} parent=39 // pred_fallthru
        _
    $region40: #{vae_encode_forward.5} parent=5 // pred_fallthru
      _
  $region6: #{vae_encode_forward.5} parent=0 // loop_footer
    %s13 = sadd.s32 1, %s9
  $region7: #{vae_encode_forward.5} parent=0 // loop_footer_branch
    %8 = sbr.rel target = $region3
  $region8: #{vae_encode_forward.5} parent=0 // loop_exit
    _

// kernel: vae_encode_forward.7
$region0: #{vae_encode_forward.7}
  #allocation0 [shape = 'u32[]', space=smem, size = 0x4, offset = 0x4, fixed_abs, tag = 'smem constant byte address 0x4 - core index']
  #allocation1 [shape = 'u32[144,128]{1,0:T(1,128)}', space=vmem, size = 0x12000, scoped, tag = 'internal scratch']
  %s0 = inlined_call_operand.vmem [shape: bf16[2,6,6,32], index: 0, kind: input, shape index: {}]
  %s1 = inlined_call_operand.vmem [shape: bf16[3,3,32,8], index: 1, kind: input, shape index: {}]
  %s2 = inlined_call_operand.vmem [shape: f32[1,8], index: 2, kind: input, shape index: {}]
  %s3 = inlined_call_operand.vmem [shape: f32[2,16,4], index: 3, kind: input, shape index: {}]
  %s4 = inlined_call_operand.vmem [shape: f32[2,16,4], index: 4, kind: output, shape index: {}]
  %s5 = sld [smem:[#allocation0]]
  $region49: #{vae_encode_forward.7} parent=0
    _
  %s7 = ssub.s32 1, %s5
  %s8 = scalar_select 0, %s7, %s5
  loop: start=0, step=1, limit=4
  $region2: #{vae_encode_forward.7} parent=0 // loop_pre_header
    _
  $region3: #{vae_encode_forward.7} parent=0 // loop_header
    %s10 = sphi 0, %s14
    %p11 = scmp.ge.s32.totalorder %s10, 4
    %s20 = sphi 0, %s22
    %s23 = sphi 0, %s20
    %s24 = sphi 0, %s23
    %s40 = sphi 0, %s24
    %s44 = sphi 0, %s44
    %s46 = sphi 0, %s44
    %s47 = sphi 0, %s46
    %s61 = sphi 0, %s47
    %s65 = sphi 0, %s65
    %s67 = sphi 0, %s65
    %s68 = sphi 0, %s67
    %s82 = sphi 0, %s68
    %s88 = sphi 0, %s90
    %s91 = sphi 0, %s88
    %s92 = sphi 0, %s91
    %s108 = sphi 0, %s92
    %s114 = sphi 0, %s116
    %s117 = sphi 0, %s114
    %s118 = sphi 0, %s117
    %s134 = sphi 0, %s118
  $region4: #{vae_encode_forward.7} parent=0 // loop_header_branch
    %13 = sbr.rel (%p11) target = $region8
  $region5: #{vae_encode_forward.7} parent=0 // loop_body
    %s15 = ssub.s32 %s10, 1
    %s16 = ssub.s32 %s10, 2
    %s17 = sadd.s32 %s10, 1
    %s18 = ssub.s32 %s10, %s17
    %p19 = scmp.eq.s32.totalorder %s18, 0
    %s21 = sadd.s32 %s20, 1
    %s22 = scalar_select %p19, %s20, %s21
    %p25 = pneg %p19
    %p26 = scmp.eq.s32.totalorder %s10, 1
    %p27 = por %p25, %p26
    %p28 = scmp.ne.s32.totalorder %s20, %s23
    %p29 = scmp.eq.s32.totalorder %s10, 0
    %p30 = por %p28, %p29
    %p31 = scmp.ne.s32.totalorder %s20, %s23
    %p32 = scmp.eq.s32.totalorder %s15, 1
    %p33 = por %p31, %p32
    %p34 = scmp.ne.s32.totalorder %s23, %s24
    %p35 = scmp.eq.s32.totalorder %s15, 0
    %p36 = por %p34, %p35
    %p37 = scmp.ne.s32.totalorder %s23, %s24
    %p38 = scmp.eq.s32.totalorder %s16, 1
    %p39 = por %p37, %p38
    %p41 = scmp.ne.s32.totalorder %s24, %s40
    %p42 = scmp.eq.s32.totalorder %s16, 0
    %p43 = por %p41, %p42
    %s45 = sadd.s32 %s44, 1
    %p48 = scmp.eq.s32.totalorder %s10, 1
    %p49 = scmp.ne.s32.totalorder %s44, %s46
    %p50 = scmp.eq.s32.totalorder %s10, 0
    %p51 = por %p49, %p50
    %p52 = scmp.ne.s32.totalorder %s44, %s46
    %p53 = scmp.eq.s32.totalorder %s15, 1
    %p54 = por %p52, %p53
    %p55 = scmp.ne.s32.totalorder %s46, %s47
    %p56 = scmp.eq.s32.totalorder %s15, 0
    %p57 = por %p55, %p56
    %p58 = scmp.ne.s32.totalorder %s46, %s47
    %p59 = scmp.eq.s32.totalorder %s16, 1
    %p60 = por %p58, %p59
    %p62 = scmp.ne.s32.totalorder %s47, %s61
    %p63 = scmp.eq.s32.totalorder %s16, 0
    %p64 = por %p62, %p63
    %s66 = sadd.s32 %s65, 1
    %p69 = scmp.eq.s32.totalorder %s10, 1
    %p70 = scmp.ne.s32.totalorder %s65, %s67
    %p71 = scmp.eq.s32.totalorder %s10, 0
    %p72 = por %p70, %p71
    %p73 = scmp.ne.s32.totalorder %s65, %s67
    %p74 = scmp.eq.s32.totalorder %s15, 1
    %p75 = por %p73, %p74
    %p76 = scmp.ne.s32.totalorder %s67, %s68
    %p77 = scmp.eq.s32.totalorder %s15, 0
    %p78 = por %p76, %p77
    %p79 = scmp.ne.s32.totalorder %s67, %s68
    %p80 = scmp.eq.s32.totalorder %s16, 1
    %p81 = por %p79, %p80
    %p83 = scmp.ne.s32.totalorder %s68, %s82
    %p84 = scmp.eq.s32.totalorder %s16, 0
    %p85 = por %p83, %p84
    %s86 = ssub.s32 %s10, %s17
    %p87 = scmp.eq.s32.totalorder %s86, 0
    %s89 = sadd.s32 %s88, 1
    %s90 = scalar_select %p87, %s88, %s89
    %p93 = pneg %p87
    %p94 = scmp.eq.s32.totalorder %s10, 1
    %p95 = por %p93, %p94
    %p96 = scmp.ne.s32.totalorder %s88, %s91
    %p97 = scmp.eq.s32.totalorder %s10, 0
    %p98 = por %p96, %p97
    %p99 = scmp.ne.s32.totalorder %s88, %s91
    %p100 = scmp.eq.s32.totalorder %s15, 1
    %p101 = por %p99, %p100
    %p102 = scmp.ne.s32.totalorder %s91, %s92
    %p103 = scmp.eq.s32.totalorder %s15, 0
    %p104 = por %p102, %p103
    %p105 = scmp.ne.s32.totalorder %s91, %s92
    %p106 = scmp.eq.s32.totalorder %s16, 1
    %p107 = por %p105, %p106
    %p109 = scmp.ne.s32.totalorder %s92, %s108
    %p110 = scmp.eq.s32.totalorder %s16, 0
    %p111 = por %p109, %p110
    %s112 = ssub.s32 %s10, %s17
    %p113 = scmp.eq.s32.totalorder %s112, 0
    %s115 = sadd.s32 %s114, 1
    %s116 = scalar_select %p113, %s114, %s115
    %p119 = pneg %p113
    %p120 = scmp.eq.s32.totalorder %s10, 1
    %p121 = por %p119, %p120
    %p122 = scmp.ne.s32.totalorder %s114, %s117
    %p123 = scmp.eq.s32.totalorder %s10, 0
    %p124 = por %p122, %p123
    %p125 = scmp.ne.s32.totalorder %s114, %s117
    %p126 = scmp.eq.s32.totalorder %s15, 1
    %p127 = por %p125, %p126
    %p128 = scmp.ne.s32.totalorder %s117, %s118
    %p129 = scmp.eq.s32.totalorder %s15, 0
    %p130 = por %p128, %p129
    %p131 = scmp.ne.s32.totalorder %s117, %s118
    %p132 = scmp.eq.s32.totalorder %s16, 1
    %p133 = por %p131, %p132
    %p135 = scmp.ne.s32.totalorder %s118, %s134
    %p136 = scmp.eq.s32.totalorder %s16, 0
    %p137 = por %p135, %p136
    %p138 = scmp.le.s32.totalorder 1, %s10
    %p139 = scmp.lt.s32.totalorder %s10, 3
    %p140 = pnand %p138, %p139
    %p141 = pneg %p140
    // Predicated region
    $region9: #{vae_encode_forward.7} parent=5 // pred_check
      _
    $region10: #{vae_encode_forward.7} parent=5 // pred_check_branch
      %143 = sbr.rel (%p140) target = $region12
    $region11: #{vae_encode_forward.7} parent=5 // pred_region
      %s144 = ssub.s32 %s10, 1
      // Predicated region
      $region13: #{vae_encode_forward.7} parent=11 // pred_check
        %p145 = pneg %p57
      $region14: #{vae_encode_forward.7} parent=11 // pred_check_branch
        %147 = sbr.rel (%p145) target = $region16
      $region15: #{vae_encode_forward.7} parent=11 // pred_region
        _
      $region16: #{vae_encode_forward.7} parent=11 // pred_fallthru
        _
      // Predicated region
      $region17: #{vae_encode_forward.7} parent=11 // pred_check
        %p148 = pneg %p78
      $region18: #{vae_encode_forward.7} parent=11 // pred_check_branch
        %150 = sbr.rel (%p148) target = $region20
      $region19: #{vae_encode_forward.7} parent=11 // pred_region
        _
      $region20: #{vae_encode_forward.7} parent=11 // pred_fallthru
        _
    $region12: #{vae_encode_forward.7} parent=5 // pred_fallthru
      _
    %p151 = scmp.lt.s32.totalorder %s10, 2
    // Predicated region
    $region21: #{vae_encode_forward.7} parent=5 // pred_check
      %p152 = pneg %p151
    $region22: #{vae_encode_forward.7} parent=5 // pred_check_branch
      %154 = sbr.rel (%p152) target = $region24
    $region23: #{vae_encode_forward.7} parent=5 // pred_region
      // Predicated region
      $region25: #{vae_encode_forward.7} parent=23 // pred_check
        %p155 = pneg %p30
      $region26: #{vae_encode_forward.7} parent=23 // pred_check_branch
        %157 = sbr.rel (%p155) target = $region28
      $region27: #{vae_encode_forward.7} parent=23 // pred_region
        %p158 = scmp.lt.s32.totalorder %s10, 1
        %s159 = scalar_select %p158, %s10, 1
        %s160 = smul.addr %s159, 6
        %s161 = smul.addr %s160, 4
        %s162 = scalar_lea.vmem %s0, %s161
      $region28: #{vae_encode_forward.7} parent=23 // pred_fallthru
        _
      // Predicated region
      $region29: #{vae_encode_forward.7} parent=23 // pred_check
        %p163 = pneg %p98
      $region30: #{vae_encode_forward.7} parent=23 // pred_check_branch
        %165 = sbr.rel (%p163) target = $region32
      $region31: #{vae_encode_forward.7} parent=23 // pred_region
        %p166 = scmp.lt.s32.totalorder %s10, 1
        %s167 = scalar_select %p166, %s10, 1
        %s168 = smul.addr %s167, 2
        %s169 = smul.addr %s168, 8
        %s170 = scalar_lea.vmem %s3, %s169
      $region32: #{vae_encode_forward.7} parent=23 // pred_fallthru
        _
    $region24: #{vae_encode_forward.7} parent=5 // pred_fallthru
      _
    %p171 = scmp.le.s32.totalorder 1, %s10
    %p172 = scmp.lt.s32.totalorder %s10, 3
    %p173 = pnand %p171, %p172
    %p174 = pneg %p173
    // Predicated region
    $region33: #{vae_encode_forward.7} parent=5 // pred_check
      _
    $region34: #{vae_encode_forward.7} parent=5 // pred_check_branch
      %176 = sbr.rel (%p173) target = $region36
    $region35: #{vae_encode_forward.7} parent=5 // pred_region
      %s177 = ssub.s32 %s10, 1
      %p178 = scmp.lt.s32.totalorder %s15, 1
      %s179 = scalar_select %p178, %s15, 1
      %s180 = smul.addr %s179, 6
      %s181 = smul.addr %s180, 4
      %s182 = scalar_lea.vmem %s0, %s181
      %p183 = pneg %p36
      %p184 = pneg %p33
      %p185 = pneg %p57
      %p186 = pneg %p54
      %p187 = pneg %p78
      %p188 = pneg %p75
      %p189 = scmp.lt.s32.totalorder %s15, 1
      %s190 = scalar_select %p189, %s15, 1
      %s191 = smul.addr %s190, 2
      %s192 = smul.addr %s191, 8
      %s193 = scalar_lea.vmem %s3, %s192
      %p194 = pneg %p104
      %p195 = pneg %p101
      %p196 = pneg %p130
      %p197 = pneg %p127
      %p198 = scmp.lt.s32.totalorder %s15, 1
      %s199 = scalar_select %p198, %s15, 1
      %s200 = smul.addr %s199, 2
      %s201 = smul.addr %s200, 8
      %s202 = scalar_lea.vmem %s4, %s201
      %p203 = scmp.lt.s32.totalorder %s15, 1
      %s204 = scalar_select %p203, %s15, 1
      %s205 = smul.addr %s204, 6
      %s206 = smul.addr %s205, 4
      %s207 = scalar_lea.vmem %s0, %s206
      %p208 = scmp.lt.s32.totalorder %s15, 1
      %s209 = scalar_select %p208, %s15, 1
      %s210 = smul.addr %s209, 2
      %s211 = smul.addr %s210, 8
      %s212 = scalar_lea.vmem %s3, %s211
      %p213 = scmp.lt.s32.totalorder %s15, 1
      %s214 = scalar_select %p213, %s15, 1
      %s215 = smul.addr %s214, 2
      %s216 = smul.addr %s215, 8
      %s217 = scalar_lea.vmem %s4, %s216
      %v219 = vld [vmem:[%s207] sm:$0x3]
      %v220 = vld [vmem:[%s207 + $0x4] sm:$0x3]
      %v221 = vld [vmem:[%s207 + $0x8] sm:$0x3]
      %v222 = vld [vmem:[%s207 + $0xc] sm:$0x3]
      %v223 = vld [vmem:[%s1] sm:$0xf]
      %v224 = vld [vmem:[%s1 + $0x4] sm:$0xf]
      %v225 = vld [vmem:[%s1 + $0x8] sm:$0xf]
      %v226 = vld [vmem:[%s1 + $0xc] sm:$0xf]
      %v227 = vld [vmem:[%s207] sm:$0x7]
      %v228 = vld [vmem:[%s207 + $0x4] sm:$0x7]
      %v229 = vld [vmem:[%s207 + $0x8] sm:$0x7]
      %v230 = vld [vmem:[%s207 + $0xc] sm:$0x7]
      %v236 = vunpack.c.l.s4 1983009808
      %v237 = vunpack.c.0.s8 %v236
      %v238 = vlaneseq
      %v239 = vshrl.u32 %v238, 7
      %v240 = vsub.s32 %v237, %v239
      %v241 = vrot.slane %v227, %v240
      %v242 = vcombine.high %v241, %v241
      %v244 = vunpack.c.l.s4 1983009808
      %v245 = vunpack.c.0.s8 %v244
      %v246 = vlaneseq
      %v247 = vshrl.u32 %v246, 7
      %v248 = vsub.s32 %v245, %v247
      %v249 = vrot.slane %v228, %v248
      %v250 = vcombine.high %v249, %v249
      %v252 = vunpack.c.l.s4 1983009808
      %v253 = vunpack.c.0.s8 %v252
      %v254 = vlaneseq
      %v255 = vshrl.u32 %v254, 7
      %v256 = vsub.s32 %v253, %v255
      %v257 = vrot.slane %v229, %v256
      %v258 = vcombine.high %v257, %v257
      %v260 = vunpack.c.l.s4 1983009808
      %v261 = vunpack.c.0.s8 %v260
      %v262 = vlaneseq
      %v263 = vshrl.u32 %v262, 7
      %v264 = vsub.s32 %v261, %v263
      %v265 = vrot.slane %v230, %v264
      %v266 = vcombine.high %v265, %v265
      %vm267 = vsmask.f32 1280
      %vm268 = vsmask.f32 3336
      %vm269 = vmor %vm267, %vm268
      %vm270 = vsmask.f32 5392
      %vm271 = vmor %vm269, %vm270
      %vm272 = vsmask.f32 7448
      %vm273 = vmor %vm271, %vm272
      %v275 = vshrl.u32 %v241, 16
      %v277 = vrot.slane %v275, 6
      %v278 = vshll.u32 %v241, 16
      %v280 = vrot.slane %v278, 7
      %v281 = vor.u32 %v277, %v280
      %v282 = vrot.slane %v281, 2
      %v284 = vshll.u32 %v242, 16
      %v286 = vrot.slane %v284, 7
      %v287 = vsel %vm273, %v282, %v286
      %v289 = vshrl.u32 %v249, 16
      %v291 = vrot.slane %v289, 6
      %v292 = vshll.u32 %v249, 16
      %v294 = vrot.slane %v292, 7
      %v295 = vor.u32 %v291, %v294
      %v296 = vrot.slane %v295, 2
      %v298 = vshll.u32 %v250, 16
      %v300 = vrot.slane %v298, 7
      %v301 = vsel %vm273, %v296, %v300
      %v303 = vshrl.u32 %v257, 16
      %v305 = vrot.slane %v303, 6
      %v306 = vshll.u32 %v257, 16
      %v308 = vrot.slane %v306, 7
      %v309 = vor.u32 %v305, %v308
      %v310 = vrot.slane %v309, 2
      %v312 = vshll.u32 %v258, 16
      %v314 = vrot.slane %v312, 7
      %v315 = vsel %vm273, %v310, %v314
      %v317 = vshrl.u32 %v265, 16
      %v319 = vrot.slane %v317, 6
      %v320 = vshll.u32 %v265, 16
      %v322 = vrot.slane %v320, 7
      %v323 = vor.u32 %v319, %v322
      %v324 = vrot.slane %v323, 2
      %v326 = vshll.u32 %v266, 16
      %v328 = vrot.slane %v326, 7
      %v329 = vsel %vm273, %v324, %v328
      %s330 = scalar_lea.vmem %s1, 16
      %v331 = vld [vmem:[%s330] sm:$0xf]
      %v332 = vld [vmem:[%s330 + $0x4] sm:$0xf]
      %v333 = vld [vmem:[%s330 + $0x8] sm:$0xf]
      %v334 = vld [vmem:[%s330 + $0xc] sm:$0xf]
      %v335 = vcombine.low %v287, %v301
      %v336 = vcombine.low %v315, %v329
      %v338 = vunpack.c.l.s4 1983009808
      %v339 = vunpack.c.0.s8 %v338
      %v340 = vlaneseq
      %v341 = vshrl.u32 %v340, 7
      %v342 = vsub.s32 %v339, %v341
      %v343 = vrot.slane %v335, %v342
      %v345 = vunpack.c.l.s4 1983009808
      %v346 = vunpack.c.0.s8 %v345
      %v347 = vlaneseq
      %v348 = vshrl.u32 %v347, 7
      %v349 = vsub.s32 %v346, %v348
      %v350 = vrot.slane %v336, %v349
      %v351 = vcombine.low %v343, %v350
      %v356 = vunpack.c.l.b16 %v331
      %v357 = vunpack.c.l.b16 %v332
      %v358 = vunpack.c.l.b16 %v333
      %v359 = vunpack.c.l.b16 %v334
      %v360 = vpack.c.b16 %v357, %v356
      %v361 = vpack.c.b16 %v359, %v358
      %vm364 = vcmask 261120
      %v366 = vsel %vm364, %v351, 0
      %368 = vmatprep.subr.bf16.mxu0 0
      %369 = vmatpush1.bf16.msra.mxu0 %v360
      %370 = vmatprep.subr.bf16.mxu0 0
      %371 = vmatpush1.bf16.msra.mxu0 %v361
      %372 = vmatprep.subr.bf16.mxu0 0
      %373 = vmatpush1.bf16.msra.mxu0 0
      %374 = vmatprep.subr.bf16.mxu0 0
      %375 = vmatpush1.bf16.msra.mxu0 0
      %376 = vmatprep.subr.bf16.mxu0 0
      %377 = vmatpush1.bf16.msra.mxu0 0
      %378 = vmatprep.subr.bf16.mxu0 0
      %379 = vmatpush1.bf16.msra.mxu0 0
      %380 = vmatprep.subr.bf16.mxu0 0
      %381 = vmatpush1.bf16.msra.mxu0 0
      %382 = vmatprep.subr.bf16.mxu0 0
      %383 = vmatpush1.bf16.msra.mxu0 0
      %384 = vmatprep.subr.bf16.mxu0 0
      %385 = vmatpush1.bf16.msra.mxu0 0
      %386 = vmatprep.subr.bf16.mxu0 0
      %387 = vmatpush1.bf16.msra.mxu0 0
      %388 = vmatprep.subr.bf16.mxu0 0
      %389 = vmatpush1.bf16.msra.mxu0 0
      %390 = vmatprep.subr.bf16.mxu0 0
      %391 = vmatpush1.bf16.msra.mxu0 0
      %392 = vmatprep.subr.bf16.mxu0 0
      %393 = vmatpush1.bf16.msra.mxu0 0
      %394 = vmatprep.subr.bf16.mxu0 0
      %395 = vmatpush1.bf16.msra.mxu0 0
      %396 = vmatprep.subr.bf16.mxu0 0
      %397 = vmatpush1.bf16.msra.mxu0 0
      %398 = vmatprep.subr.bf16.mxu0 0
      %399 = vmatpush1.bf16.msra.mxu0 0
      %400 = vmatprep.mubr.bf16.mxu0 0
      %401 = vmatmul.mubr.bf16.gmra.mrb[0].mxu0 %v366
      %v402 = vpop.f32.mrb[0].mxu0
      %v403 = vadd.f32 0.0, %v402
      %v404 = vpop.f32.mrb[0].mxu0
      %v405 = vpop.f32.mrb[0].mxu0
      %v406 = vadd.f32 0.0, %v405
      %v407 = vpop.f32.mrb[0].mxu0
      %408 = vdwg.mxu0
      %v413 = vcombine.low %v219, %v220
      %v414 = vcombine.low %v221, %v222
      %v416 = vunpack.c.l.s4 1983009808
      %v417 = vunpack.c.0.s8 %v416
      %v418 = vlaneseq
      %v419 = vshrl.u32 %v418, 7
      %v420 = vsub.s32 %v417, %v419
      %v421 = vrot.slane %v413, %v420
      %v423 = vunpack.c.l.s4 1983009808
      %v424 = vunpack.c.0.s8 %v423
      %v425 = vlaneseq
      %v426 = vshrl.u32 %v425, 7
      %v427 = vsub.s32 %v424, %v426
      %v428 = vrot.slane %v414, %v427
      %v429 = vcombine.low %v421, %v428
      %v434 = vunpack.c.l.b16 %v223
      %v435 = vunpack.c.l.b16 %v224
      %v436 = vunpack.c.l.b16 %v225
      %v437 = vunpack.c.l.b16 %v226
      %v438 = vpack.c.b16 %v435, %v434
      %v439 = vpack.c.b16 %v437, %v436
      %v443 = vsel %vm364, %v429, 0
      %445 = vmatprep.subr.bf16.mxu0 0
      %446 = vmatpush1.bf16.msra.mxu0 %v438
      %447 = vmatprep.subr.bf16.mxu0 0
      %448 = vmatpush1.bf16.msra.mxu0 %v439
      %449 = vmatprep.subr.bf16.mxu0 0
      %450 = vmatpush1.bf16.msra.mxu0 0
      %451 = vmatprep.subr.bf16.mxu0 0
      %452 = vmatpush1.bf16.msra.mxu0 0
      %453 = vmatprep.subr.bf16.mxu0 0
      %454 = vmatpush1.bf16.msra.mxu0 0
      %455 = vmatprep.subr.bf16.mxu0 0
      %456 = vmatpush1.bf16.msra.mxu0 0
      %457 = vmatprep.subr.bf16.mxu0 0
      %458 = vmatpush1.bf16.msra.mxu0 0
      %459 = vmatprep.subr.bf16.mxu0 0
      %460 = vmatpush1.bf16.msra.mxu0 0
      %461 = vmatprep.subr.bf16.mxu0 0
      %462 = vmatpush1.bf16.msra.mxu0 0
      %463 = vmatprep.subr.bf16.mxu0 0
      %464 = vmatpush1.bf16.msra.mxu0 0
      %465 = vmatprep.subr.bf16.mxu0 0
      %466 = vmatpush1.bf16.msra.mxu0 0
      %467 = vmatprep.subr.bf16.mxu0 0
      %468 = vmatpush1.bf16.msra.mxu0 0
      %469 = vmatprep.subr.bf16.mxu0 0
      %470 = vmatpush1.bf16.msra.mxu0 0
      %471 = vmatprep.subr.bf16.mxu0 0
      %472 = vmatpush1.bf16.msra.mxu0 0
      %473 = vmatprep.subr.bf16.mxu0 0
      %474 = vmatpush1.bf16.msra.mxu0 0
      %475 = vmatprep.subr.bf16.mxu0 0
      %476 = vmatpush1.bf16.msra.mxu0 0
      %477 = vmatprep.mubr.bf16.mxu0 0
      %478 = vmatmul.mubr.bf16.gmra.mrb[0].mxu0 %v443
      %v479 = vpop.f32.mrb[0].mxu0
      %v480 = vadd.f32 %v403, %v479
      %v481 = vpop.f32.mrb[0].mxu0
      %v482 = vpop.f32.mrb[0].mxu0
      %v483 = vadd.f32 %v406, %v482
      %v484 = vpop.f32.mrb[0].mxu0
      %485 = vdwg.mxu0
      %v486 = vld [vmem:[%s207] sm:$0x6]
      %v487 = vld [vmem:[%s207 + $0x4] sm:$0x6]
      %v488 = vld [vmem:[%s207 + $0x8] sm:$0x6]
      %v489 = vld [vmem:[%s207 + $0xc] sm:$0x6]
      %v495 = vunpack.c.l.s4 1983009808
      %v496 = vunpack.c.0.s8 %v495
      %v497 = vlaneseq
      %v498 = vshrl.u32 %v497, 7
      %v499 = vsub.s32 %v496, %v498
      %v500 = vrot.slane %v486, %v499
      %v501 = vcombine.high %v500, %v500
      %v503 = vunpack.c.l.s4 1983009808
      %v504 = vunpack.c.0.s8 %v503
      %v505 = vlaneseq
      %v506 = vshrl.u32 %v505, 7
      %v507 = vsub.s32 %v504, %v506
      %v508 = vrot.slane %v487, %v507
      %v509 = vcombine.high %v508, %v508
      %v511 = vunpack.c.l.s4 1983009808
      %v512 = vunpack.c.0.s8 %v511
      %v513 = vlaneseq
      %v514 = vshrl.u32 %v513, 7
      %v515 = vsub.s32 %v512, %v514
      %v516 = vrot.slane %v488, %v515
      %v517 = vcombine.high %v516, %v516
      %v519 = vunpack.c.l.s4 1983009808
      %v520 = vunpack.c.0.s8 %v519
      %v521 = vlaneseq
      %v522 = vshrl.u32 %v521, 7
      %v523 = vsub.s32 %v520, %v522
      %v524 = vrot.slane %v489, %v523
      %v525 = vcombine.high %v524, %v524
      %vm526 = vcmask 1040384
      %vm527 = vcmask 1042434
      %vm528 = vmor %vm526, %vm527
      %vm529 = vcmask 1044484
      %vm530 = vmor %vm528, %vm529
      %vm531 = vcmask 1046534
      %vm532 = vmor %vm530, %vm531
      %v533 = vrot.slane %v500, 7
      %v534 = vrot.slane %v533, 2
      %v535 = vrot.slane %v501, 7
      %v536 = vsel %vm532, %v534, %v535
      %v537 = vrot.slane %v508, 7
      %v538 = vrot.slane %v537, 2
      %v539 = vrot.slane %v509, 7
      %v540 = vsel %vm532, %v538, %v539
      %v541 = vrot.slane %v516, 7
      %v542 = vrot.slane %v541, 2
      %v543 = vrot.slane %v517, 7
      %v544 = vsel %vm532, %v542, %v543
      %v545 = vrot.slane %v524, 7
      %v546 = vrot.slane %v545, 2
      %v547 = vrot.slane %v525, 7
      %v548 = vsel %vm532, %v546, %v547
      %s549 = scalar_lea.vmem %s1, 32
      %v550 = vld [vmem:[%s549] sm:$0xf]
      %v551 = vld [vmem:[%s549 + $0x4] sm:$0xf]
      %v552 = vld [vmem:[%s549 + $0x8] sm:$0xf]
      %v553 = vld [vmem:[%s549 + $0xc] sm:$0xf]
      %v554 = vcombine.low %v536, %v540
      %v555 = vcombine.low %v544, %v548
      %v557 = vunpack.c.l.s4 1983009808
      %v558 = vunpack.c.0.s8 %v557
      %v559 = vlaneseq
      %v560 = vshrl.u32 %v559, 7
      %v561 = vsub.s32 %v558, %v560
      %v562 = vrot.slane %v554, %v561
      %v564 = vunpack.c.l.s4 1983009808
      %v565 = vunpack.c.0.s8 %v564
      %v566 = vlaneseq
      %v567 = vshrl.u32 %v566, 7
      %v568 = vsub.s32 %v565, %v567
      %v569 = vrot.slane %v555, %v568
      %v570 = vcombine.low %v562, %v569
      %v575 = vunpack.c.l.b16 %v550
      %v576 = vunpack.c.l.b16 %v551
      %v577 = vunpack.c.l.b16 %v552
      %v578 = vunpack.c.l.b16 %v553
      %v579 = vpack.c.b16 %v576, %v575
      %v580 = vpack.c.b16 %v578, %v577
      %v584 = vsel %vm364, %v570, 0
      %586 = vmatprep.subr.bf16.mxu0 0
      %587 = vmatpush1.bf16.msra.mxu0 %v579
      %588 = vmatprep.subr.bf16.mxu0 0
      %589 = vmatpush1.bf16.msra.mxu0 %v580
      %590 = vmatprep.subr.bf16.mxu0 0
      %591 = vmatpush1.bf16.msra.mxu0 0
      %592 = vmatprep.subr.bf16.mxu0 0
      %593 = vmatpush1.bf16.msra.mxu0 0
      %594 = vmatprep.subr.bf16.mxu0 0
      %595 = vmatpush1.bf16.msra.mxu0 0
      %596 = vmatprep.subr.bf16.mxu0 0
      %597 = vmatpush1.bf16.msra.mxu0 0
      %598 = vmatprep.subr.bf16.mxu0 0
      %599 = vmatpush1.bf16.msra.mxu0 0
      %600 = vmatprep.subr.bf16.mxu0 0
      %601 = vmatpush1.bf16.msra.mxu0 0
      %602 = vmatprep.subr.bf16.mxu0 0
      %603 = vmatpush1.bf16.msra.mxu0 0
      %604 = vmatprep.subr.bf16.mxu0 0
      %605 = vmatpush1.bf16.msra.mxu0 0
      %606 = vmatprep.subr.bf16.mxu0 0
      %607 = vmatpush1.bf16.msra.mxu0 0
      %608 = vmatprep.subr.bf16.mxu0 0
      %609 = vmatpush1.bf16.msra.mxu0 0
      %610 = vmatprep.subr.bf16.mxu0 0
      %611 = vmatpush1.bf16.msra.mxu0 0
      %612 = vmatprep.subr.bf16.mxu0 0
      %613 = vmatpush1.bf16.msra.mxu0 0
      %614 = vmatprep.subr.bf16.mxu0 0
      %615 = vmatpush1.bf16.msra.mxu0 0
      %616 = vmatprep.subr.bf16.mxu0 0
      %617 = vmatpush1.bf16.msra.mxu0 0
      %618 = vmatprep.mubr.bf16.mxu0 0
      %619 = vmatmul.mubr.bf16.gmra.mrb[0].mxu0 %v584
      %v620 = vpop.f32.mrb[0].mxu0
      %v621 = vadd.f32 0.0, %v620
      %v622 = vpop.f32.mrb[0].mxu0
      %v623 = vpop.f32.mrb[0].mxu0
      %v624 = vadd.f32 0.0, %v623
      %v625 = vpop.f32.mrb[0].mxu0
      %626 = vdwg.mxu0
      %v627 = vadd.f32 %v480, %v621
      %v628 = vadd.f32 %v483, %v624
      %s629 = scalar_lea.vmem %s207, 4
      %v630 = vld [vmem:[%s629] sm:$0x3]
      %v631 = vld [vmem:[%s629 + $0x4] sm:$0x3]
      %v632 = vld [vmem:[%s629 + $0x8] sm:$0x3]
      %v633 = vld [vmem:[%s629 + $0xc] sm:$0x3]
      %s634 = scalar_lea.vmem %s1, 48
      %v635 = vld [vmem:[%s634] sm:$0xf]
      %v636 = vld [vmem:[%s634 + $0x4] sm:$0xf]
      %v637 = vld [vmem:[%s634 + $0x8] sm:$0xf]
      %v638 = vld [vmem:[%s634 + $0xc] sm:$0xf]
      %v643 = vcombine.low %v630, %v631
      %v644 = vcombine.low %v632, %v633
      %v646 = vunpack.c.l.s4 1983009808
      %v647 = vunpack.c.0.s8 %v646
      %v648 = vlaneseq
      %v649 = vshrl.u32 %v648, 7
      %v650 = vsub.s32 %v647, %v649
      %v651 = vrot.slane %v643, %v650
      %v653 = vunpack.c.l.s4 1983009808
      %v654 = vunpack.c.0.s8 %v653
      %v655 = vlaneseq
      %v656 = vshrl.u32 %v655, 7
      %v657 = vsub.s32 %v654, %v656
      %v658 = vrot.slane %v644, %v657
      %v659 = vcombine.low %v651, %v658
      %v664 = vunpack.c.l.b16 %v635
      %v665 = vunpack.c.l.b16 %v636
      %v666 = vunpack.c.l.b16 %v637
      %v667 = vunpack.c.l.b16 %v638
      %v668 = vpack.c.b16 %v665, %v664
      %v669 = vpack.c.b16 %v667, %v666
      %v673 = vsel %vm364, %v659, 0
      %675 = vmatprep.subr.bf16.mxu0 0
      %676 = vmatpush1.bf16.msra.mxu0 %v668
      %677 = vmatprep.subr.bf16.mxu0 0
      %678 = vmatpush1.bf16.msra.mxu0 %v669
      %679 = vmatprep.subr.bf16.mxu0 0
      %680 = vmatpush1.bf16.msra.mxu0 0
      %681 = vmatprep.subr.bf16.mxu0 0
      %682 = vmatpush1.bf16.msra.mxu0 0
      %683 = vmatprep.subr.bf16.mxu0 0
      %684 = vmatpush1.bf16.msra.mxu0 0
      %685 = vmatprep.subr.bf16.mxu0 0
      %686 = vmatpush1.bf16.msra.mxu0 0
      %687 = vmatprep.subr.bf16.mxu0 0
      %688 = vmatpush1.bf16.msra.mxu0 0
      %689 = vmatprep.subr.bf16.mxu0 0
      %690 = vmatpush1.bf16.msra.mxu0 0
      %691 = vmatprep.subr.bf16.mxu0 0
      %692 = vmatpush1.bf16.msra.mxu0 0
      %693 = vmatprep.subr.bf16.mxu0 0
      %694 = vmatpush1.bf16.msra.mxu0 0
      %695 = vmatprep.subr.bf16.mxu0 0
      %696 = vmatpush1.bf16.msra.mxu0 0
      %697 = vmatprep.subr.bf16.mxu0 0
      %698 = vmatpush1.bf16.msra.mxu0 0
      %699 = vmatprep.subr.bf16.mxu0 0
      %700 = vmatpush1.bf16.msra.mxu0 0
      %701 = vmatprep.subr.bf16.mxu0 0
      %702 = vmatpush1.bf16.msra.mxu0 0
      %703 = vmatprep.subr.bf16.mxu0 0
      %704 = vmatpush1.bf16.msra.mxu0 0
      %705 = vmatprep.subr.bf16.mxu0 0
      %706 = vmatpush1.bf16.msra.mxu0 0
      %707 = vmatprep.mubr.bf16.mxu0 0
      %708 = vmatmul.mubr.bf16.gmra.mrb[0].mxu0 %v673
      %v709 = vpop.f32.mrb[0].mxu0
      %v710 = vadd.f32 0.0, %v709
      %v711 = vpop.f32.mrb[0].mxu0
      %v712 = vpop.f32.mrb[0].mxu0
      %v713 = vadd.f32 0.0, %v712
      %v714 = vpop.f32.mrb[0].mxu0
      %715 = vdwg.mxu0
      %v716 = vadd.f32 %v627, %v710
      %v717 = vadd.f32 %v628, %v713
      %v718 = vld [vmem:[%s629] sm:$0x7]
      %v719 = vld [vmem:[%s629 + $0x4] sm:$0x7]
      %v720 = vld [vmem:[%s629 + $0x8] sm:$0x7]
      %v721 = vld [vmem:[%s629 + $0xc] sm:$0x7]
      %v727 = vunpack.c.l.s4 1983009808
      %v728 = vunpack.c.0.s8 %v727
      %v729 = vlaneseq
      %v730 = vshrl.u32 %v729, 7
      %v731 = vsub.s32 %v728, %v730
      %v732 = vrot.slane %v718, %v731
      %v733 = vcombine.high %v732, %v732
      %v735 = vunpack.c.l.s4 1983009808
      %v736 = vunpack.c.0.s8 %v735
      %v737 = vlaneseq
      %v738 = vshrl.u32 %v737, 7
      %v739 = vsub.s32 %v736, %v738
      %v740 = vrot.slane %v719, %v739
      %v741 = vcombine.high %v740, %v740
      %v743 = vunpack.c.l.s4 1983009808
      %v744 = vunpack.c.0.s8 %v743
      %v745 = vlaneseq
      %v746 = vshrl.u32 %v745, 7
      %v747 = vsub.s32 %v744, %v746
      %v748 = vrot.slane %v720, %v747
      %v749 = vcombine.high %v748, %v748
      %v751 = vunpack.c.l.s4 1983009808
      %v752 = vunpack.c.0.s8 %v751
      %v753 = vlaneseq
      %v754 = vshrl.u32 %v753, 7
      %v755 = vsub.s32 %v752, %v754
      %v756 = vrot.slane %v721, %v755
      %v757 = vcombine.high %v756, %v756
      %v759 = vshrl.u32 %v732, 16
      %v761 = vrot.slane %v759, 6
      %v762 = vshll.u32 %v732, 16
      %v764 = vrot.slane %v762, 7
      %v765 = vor.u32 %v761, %v764
      %v766 = vrot.slane %v765, 2
      %v768 = vshll.u32 %v733, 16
      %v770 = vrot.slane %v768, 7
      %v771 = vsel %vm273, %v766, %v770
      %v773 = vshrl.u32 %v740, 16
      %v775 = vrot.slane %v773, 6
      %v776 = vshll.u32 %v740, 16
      %v778 = vrot.slane %v776, 7
      %v779 = vor.u32 %v775, %v778
      %v780 = vrot.slane %v779, 2
      %v782 = vshll.u32 %v741, 16
      %v784 = vrot.slane %v782, 7
      %v785 = vsel %vm273, %v780, %v784
      %v787 = vshrl.u32 %v748, 16
      %v789 = vrot.slane %v787, 6
      %v790 = vshll.u32 %v748, 16
      %v792 = vrot.slane %v790, 7
      %v793 = vor.u32 %v789, %v792
      %v794 = vrot.slane %v793, 2
      %v796 = vshll.u32 %v749, 16
      %v798 = vrot.slane %v796, 7
      %v799 = vsel %vm273, %v794, %v798
      %v801 = vshrl.u32 %v756, 16
      %v803 = vrot.slane %v801, 6
      %v804 = vshll.u32 %v756, 16
      %v806 = vrot.slane %v804, 7
      %v807 = vor.u32 %v803, %v806
      %v808 = vrot.slane %v807, 2
      %v810 = vshll.u32 %v757, 16
      %v812 = vrot.slane %v810, 7
      %v813 = vsel %vm273, %v808, %v812
      %s814 = scalar_lea.vmem %s1, 64
      %v815 = vld [vmem:[%s814] sm:$0xf]
      %v816 = vld [vmem:[%s814 + $0x4] sm:$0xf]
      %v817 = vld [vmem:[%s814 + $0x8] sm:$0xf]
      %v818 = vld [vmem:[%s814 + $0xc] sm:$0xf]
      %v819 = vcombine.low %v771, %v785
      %v820 = vcombine.low %v799, %v813
      %v822 = vunpack.c.l.s4 1983009808
      %v823 = vunpack.c.0.s8 %v822
      %v824 = vlaneseq
      %v825 = vshrl.u32 %v824, 7
      %v826 = vsub.s32 %v823, %v825
      %v827 = vrot.slane %v819, %v826
      %v829 = vunpack.c.l.s4 1983009808
      %v830 = vunpack.c.0.s8 %v829
      %v831 = vlaneseq
      %v832 = vshrl.u32 %v831, 7
      %v833 = vsub.s32 %v830, %v832
      %v834 = vrot.slane %v820, %v833
      %v835 = vcombine.low %v827, %v834
      %v840 = vunpack.c.l.b16 %v815
      %v841 = vunpack.c.l.b16 %v816
      %v842 = vunpack.c.l.b16 %v817
      %v843 = vunpack.c.l.b16 %v818
      %v844 = vpack.c.b16 %v841, %v840
      %v845 = vpack.c.b16 %v843, %v842
      %v849 = vsel %vm364, %v835, 0
      %851 = vmatprep.subr.bf16.mxu0 0
      %852 = vmatpush1.bf16.msra.mxu0 %v844
      %853 = vmatprep.subr.bf16.mxu0 0
      %854 = vmatpush1.bf16.msra.mxu0 %v845
      %855 = vmatprep.subr.bf16.mxu0 0
      %856 = vmatpush1.bf16.msra.mxu0 0
      %857 = vmatprep.subr.bf16.mxu0 0
      %858 = vmatpush1.bf16.msra.mxu0 0
      %859 = vmatprep.subr.bf16.mxu0 0
      %860 = vmatpush1.bf16.msra.mxu0 0
      %861 = vmatprep.subr.bf16.mxu0 0
      %862 = vmatpush1.bf16.msra.mxu0 0
      %863 = vmatprep.subr.bf16.mxu0 0
      %864 = vmatpush1.bf16.msra.mxu0 0
      %865 = vmatprep.subr.bf16.mxu0 0
      %866 = vmatpush1.bf16.msra.mxu0 0
      %867 = vmatprep.subr.bf16.mxu0 0
      %868 = vmatpush1.bf16.msra.mxu0 0
      %869 = vmatprep.subr.bf16.mxu0 0
      %870 = vmatpush1.bf16.msra.mxu0 0
      %871 = vmatprep.subr.bf16.mxu0 0
      %872 = vmatpush1.bf16.msra.mxu0 0
      %873 = vmatprep.subr.bf16.mxu0 0
      %874 = vmatpush1.bf16.msra.mxu0 0
      %875 = vmatprep.subr.bf16.mxu0 0
      %876 = vmatpush1.bf16.msra.mxu0 0
      %877 = vmatprep.subr.bf16.mxu0 0
      %878 = vmatpush1.bf16.msra.mxu0 0
      %879 = vmatprep.subr.bf16.mxu0 0
      %880 = vmatpush1.bf16.msra.mxu0 0
      %881 = vmatprep.subr.bf16.mxu0 0
      %882 = vmatpush1.bf16.msra.mxu0 0
      %883 = vmatprep.mubr.bf16.mxu0 0
      %884 = vmatmul.mubr.bf16.gmra.mrb[0].mxu0 %v849
      %v885 = vpop.f32.mrb[0].mxu0
      %v886 = vadd.f32 0.0, %v885
      %v887 = vpop.f32.mrb[0].mxu0
      %v888 = vpop.f32.mrb[0].mxu0
      %v889 = vadd.f32 0.0, %v888
      %v890 = vpop.f32.mrb[0].mxu0
      %891 = vdwg.mxu0
      %v892 = vadd.f32 %v716, %v886
      %v893 = vadd.f32 %v717, %v889
      %v894 = vld [vmem:[%s629] sm:$0x6]
      %v895 = vld [vmem:[%s629 + $0x4] sm:$0x6]
      %v896 = vld [vmem:[%s629 + $0x8] sm:$0x6]
      %v897 = vld [vmem:[%s629 + $0xc] sm:$0x6]
      %v903 = vunpack.c.l.s4 1983009808
      %v904 = vunpack.c.0.s8 %v903
      %v905 = vlaneseq
      %v906 = vshrl.u32 %v905, 7
      %v907 = vsub.s32 %v904, %v906
      %v908 = vrot.slane %v894, %v907
      %v909 = vcombine.high %v908, %v908
      %v911 = vunpack.c.l.s4 1983009808
      %v912 = vunpack.c.0.s8 %v911
      %v913 = vlaneseq
      %v914 = vshrl.u32 %v913, 7
      %v915 = vsub.s32 %v912, %v914
      %v916 = vrot.slane %v895, %v915
      %v917 = vcombine.high %v916, %v916
      %v919 = vunpack.c.l.s4 1983009808
      %v920 = vunpack.c.0.s8 %v919
      %v921 = vlaneseq
      %v922 = vshrl.u32 %v921, 7
      %v923 = vsub.s32 %v920, %v922
      %v924 = vrot.slane %v896, %v923
      %v925 = vcombine.high %v924, %v924
      %v927 = vunpack.c.l.s4 1983009808
      %v928 = vunpack.c.0.s8 %v927
      %v929 = vlaneseq
      %v930 = vshrl.u32 %v929, 7
      %v931 = vsub.s32 %v928, %v930
      %v932 = vrot.slane %v897, %v931
      %v933 = vcombine.high %v932, %v932
      %v934 = vrot.slane %v908, 7
      %v935 = vrot.slane %v934, 2
      %v936 = vrot.slane %v909, 7
      %v937 = vsel %vm532, %v935, %v936
      %v938 = vrot.slane %v916, 7
      %v939 = vrot.slane %v938, 2
      %v940 = vrot.slane %v917, 7
      %v941 = vsel %vm532, %v939, %v940
      %v942 = vrot.slane %v924, 7
      %v943 = vrot.slane %v942, 2
      %v944 = vrot.slane %v925, 7
      %v945 = vsel %vm532, %v943, %v944
      %v946 = vrot.slane %v932, 7
      %v947 = vrot.slane %v946, 2
      %v948 = vrot.slane %v933, 7
      %v949 = vsel %vm532, %v947, %v948
      %s950 = scalar_lea.vmem %s1, 80
      %v951 = vld [vmem:[%s950] sm:$0xf]
      %v952 = vld [vmem:[%s950 + $0x4] sm:$0xf]
      %v953 = vld [vmem:[%s950 + $0x8] sm:$0xf]
      %v954 = vld [vmem:[%s950 + $0xc] sm:$0xf]
      %v955 = vcombine.low %v937, %v941
      %v956 = vcombine.low %v945, %v949
      %v958 = vunpack.c.l.s4 1983009808
      %v959 = vunpack.c.0.s8 %v958
      %v960 = vlaneseq
      %v961 = vshrl.u32 %v960, 7
      %v962 = vsub.s32 %v959, %v961
      %v963 = vrot.slane %v955, %v962
      %v965 = vunpack.c.l.s4 1983009808
      %v966 = vunpack.c.0.s8 %v965
      %v967 = vlaneseq
      %v968 = vshrl.u32 %v967, 7
      %v969 = vsub.s32 %v966, %v968
      %v970 = vrot.slane %v956, %v969
      %v971 = vcombine.low %v963, %v970
      %v976 = vunpack.c.l.b16 %v951
      %v977 = vunpack.c.l.b16 %v952
      %v978 = vunpack.c.l.b16 %v953
      %v979 = vunpack.c.l.b16 %v954
      %v980 = vpack.c.b16 %v977, %v976
      %v981 = vpack.c.b16 %v979, %v978
      %v985 = vsel %vm364, %v971, 0
      %987 = vmatprep.subr.bf16.mxu0 0
      %988 = vmatpush1.bf16.msra.mxu0 %v980
      %989 = vmatprep.subr.bf16.mxu0 0
      %990 = vmatpush1.bf16.msra.mxu0 %v981
      %991 = vmatprep.subr.bf16.mxu0 0
      %992 = vmatpush1.bf16.msra.mxu0 0
      %993 = vmatprep.subr.bf16.mxu0 0
      %994 = vmatpush1.bf16.msra.mxu0 0
      %995 = vmatprep.subr.bf16.mxu0 0
      %996 = vmatpush1.bf16.msra.mxu0 0
      %997 = vmatprep.subr.bf16.mxu0 0
      %998 = vmatpush1.bf16.msra.mxu0 0
      %999 = vmatprep.subr.bf16.mxu0 0
      %1000 = vmatpush1.bf16.msra.mxu0 0
      %1001 = vmatprep.subr.bf16.mxu0 0
      %1002 = vmatpush1.bf16.msra.mxu0 0
      %1003 = vmatprep.subr.bf16.mxu0 0
      %1004 = vmatpush1.bf16.msra.mxu0 0
      %1005 = vmatprep.subr.bf16.mxu0 0
      %1006 = vmatpush1.bf16.msra.mxu0 0
      %1007 = vmatprep.subr.bf16.mxu0 0
      %1008 = vmatpush1.bf16.msra.mxu0 0
      %1009 = vmatprep.subr.bf16.mxu0 0
      %1010 = vmatpush1.bf16.msra.mxu0 0
      %1011 = vmatprep.subr.bf16.mxu0 0
      %1012 = vmatpush1.bf16.msra.mxu0 0
      %1013 = vmatprep.subr.bf16.mxu0 0
      %1014 = vmatpush1.bf16.msra.mxu0 0
      %1015 = vmatprep.subr.bf16.mxu0 0
      %1016 = vmatpush1.bf16.msra.mxu0 0
      %1017 = vmatprep.subr.bf16.mxu0 0
      %1018 = vmatpush1.bf16.msra.mxu0 0
      %1019 = vmatprep.mubr.bf16.mxu0 0
      %1020 = vmatmul.mubr.bf16.gmra.mrb[0].mxu0 %v985
      %v1021 = vpop.f32.mrb[0].mxu0
      %v1022 = vadd.f32 0.0, %v1021
      %v1023 = vpop.f32.mrb[0].mxu0
      %v1024 = vpop.f32.mrb[0].mxu0
      %v1025 = vadd.f32 0.0, %v1024
      %v1026 = vpop.f32.mrb[0].mxu0
      %1027 = vdwg.mxu0
      %v1028 = vadd.f32 %v892, %v1022
      %v1029 = vadd.f32 %v893, %v1025
      %s1030 = scalar_lea.vmem %s207, 8
      %v1031 = vld [vmem:[%s1030] sm:$0x3]
      %v1032 = vld [vmem:[%s1030 + $0x4] sm:$0x3]
      %v1033 = vld [vmem:[%s1030 + $0x8] sm:$0x3]
      %v1034 = vld [vmem:[%s1030 + $0xc] sm:$0x3]
      %s1035 = scalar_lea.vmem %s1, 96
      %v1036 = vld [vmem:[%s1035] sm:$0xf]
      %v1037 = vld [vmem:[%s1035 + $0x4] sm:$0xf]
      %v1038 = vld [vmem:[%s1035 + $0x8] sm:$0xf]
      %v1039 = vld [vmem:[%s1035 + $0xc] sm:$0xf]
      %v1044 = vcombine.low %v1031, %v1032
      %v1045 = vcombine.low %v1033, %v1034
      %v1047 = vunpack.c.l.s4 1983009808
      %v1048 = vunpack.c.0.s8 %v1047
      %v1049 = vlaneseq
      %v1050 = vshrl.u32 %v1049, 7
      %v1051 = vsub.s32 %v1048, %v1050
      %v1052 = vrot.slane %v1044, %v1051
      %v1054 = vunpack.c.l.s4 1983009808
      %v1055 = vunpack.c.0.s8 %v1054
      %v1056 = vlaneseq
      %v1057 = vshrl.u32 %v1056, 7
      %v1058 = vsub.s32 %v1055, %v1057
      %v1059 = vrot.slane %v1045, %v1058
      %v1060 = vcombine.low %v1052, %v1059
      %v1065 = vunpack.c.l.b16 %v1036
      %v1066 = vunpack.c.l.b16 %v1037
      %v1067 = vunpack.c.l.b16 %v1038
      %v1068 = vunpack.c.l.b16 %v1039
      %v1069 = vpack.c.b16 %v1066, %v1065
      %v1070 = vpack.c.b16 %v1068, %v1067
      %v1074 = vsel %vm364, %v1060, 0
      %1076 = vmatprep.subr.bf16.mxu0 0
      %1077 = vmatpush1.bf16.msra.mxu0 %v1069
      %1078 = vmatprep.subr.bf16.mxu0 0
      %1079 = vmatpush1.bf16.msra.mxu0 %v1070
      %1080 = vmatprep.subr.bf16.mxu0 0
      %1081 = vmatpush1.bf16.msra.mxu0 0
      %1082 = vmatprep.subr.bf16.mxu0 0
      %1083 = vmatpush1.bf16.msra.mxu0 0
      %1084 = vmatprep.subr.bf16.mxu0 0
      %1085 = vmatpush1.bf16.msra.mxu0 0
      %1086 = vmatprep.subr.bf16.mxu0 0
      %1087 = vmatpush1.bf16.msra.mxu0 0
      %1088 = vmatprep.subr.bf16.mxu0 0
      %1089 = vmatpush1.bf16.msra.mxu0 0
      %1090 = vmatprep.subr.bf16.mxu0 0
      %1091 = vmatpush1.bf16.msra.mxu0 0
      %1092 = vmatprep.subr.bf16.mxu0 0
      %1093 = vmatpush1.bf16.msra.mxu0 0
      %1094 = vmatprep.subr.bf16.mxu0 0
      %1095 = vmatpush1.bf16.msra.mxu0 0
      %1096 = vmatprep.subr.bf16.mxu0 0
      %1097 = vmatpush1.bf16.msra.mxu0 0
      %1098 = vmatprep.subr.bf16.mxu0 0
      %1099 = vmatpush1.bf16.msra.mxu0 0
      %1100 = vmatprep.subr.bf16.mxu0 0
      %1101 = vmatpush1.bf16.msra.mxu0 0
      %1102 = vmatprep.subr.bf16.mxu0 0
      %1103 = vmatpush1.bf16.msra.mxu0 0
      %1104 = vmatprep.subr.bf16.mxu0 0
      %1105 = vmatpush1.bf16.msra.mxu0 0
      %1106 = vmatprep.subr.bf16.mxu0 0
      %1107 = vmatpush1.bf16.msra.mxu0 0
      %1108 = vmatprep.mubr.bf16.mxu0 0
      %1109 = vmatmul.mubr.bf16.gmra.mrb[0].mxu0 %v1074
      %v1110 = vpop.f32.mrb[0].mxu0
      %v1111 = vadd.f32 0.0, %v1110
      %v1112 = vpop.f32.mrb[0].mxu0
      %v1113 = vpop.f32.mrb[0].mxu0
      %v1114 = vadd.f32 0.0, %v1113
      %v1115 = vpop.f32.mrb[0].mxu0
      %1116 = vdwg.mxu0
      %v1117 = vadd.f32 %v1028, %v1111
      %v1118 = vadd.f32 %v1029, %v1114
      %v1119 = vld [vmem:[%s1030] sm:$0x7]
      %v1120 = vld [vmem:[%s1030 + $0x4] sm:$0x7]
      %v1121 = vld [vmem:[%s1030 + $0x8] sm:$0x7]
      %v1122 = vld [vmem:[%s1030 + $0xc] sm:$0x7]
      %v1128 = vunpack.c.l.s4 1983009808
      %v1129 = vunpack.c.0.s8 %v1128
      %v1130 = vlaneseq
      %v1131 = vshrl.u32 %v1130, 7
      %v1132 = vsub.s32 %v1129, %v1131
      %v1133 = vrot.slane %v1119, %v1132
      %v1134 = vcombine.high %v1133, %v1133
      %v1136 = vunpack.c.l.s4 1983009808
      %v1137 = vunpack.c.0.s8 %v1136
      %v1138 = vlaneseq
      %v1139 = vshrl.u32 %v1138, 7
      %v1140 = vsub.s32 %v1137, %v1139
      %v1141 = vrot.slane %v1120, %v1140
      %v1142 = vcombine.high %v1141, %v1141
      %v1144 = vunpack.c.l.s4 1983009808
      %v1145 = vunpack.c.0.s8 %v1144
      %v1146 = vlaneseq
      %v1147 = vshrl.u32 %v1146, 7
      %v1148 = vsub.s32 %v1145, %v1147
      %v1149 = vrot.slane %v1121, %v1148
      %v1150 = vcombine.high %v1149, %v1149
      %v1152 = vunpack.c.l.s4 1983009808
      %v1153 = vunpack.c.0.s8 %v1152
      %v1154 = vlaneseq
      %v1155 = vshrl.u32 %v1154, 7
      %v1156 = vsub.s32 %v1153, %v1155
      %v1157 = vrot.slane %v1122, %v1156
      %v1158 = vcombine.high %v1157, %v1157
      %v1160 = vshrl.u32 %v1133, 16
      %v1162 = vrot.slane %v1160, 6
      %v1163 = vshll.u32 %v1133, 16
      %v1165 = vrot.slane %v1163, 7
      %v1166 = vor.u32 %v1162, %v1165
      %v1167 = vrot.slane %v1166, 2
      %v1169 = vshll.u32 %v1134, 16
      %v1171 = vrot.slane %v1169, 7
      %v1172 = vsel %vm273, %v1167, %v1171
      %v1174 = vshrl.u32 %v1141, 16
      %v1176 = vrot.slane %v1174, 6
      %v1177 = vshll.u32 %v1141, 16
      %v1179 = vrot.slane %v1177, 7
      %v1180 = vor.u32 %v1176, %v1179
      %v1181 = vrot.slane %v1180, 2
      %v1183 = vshll.u32 %v1142, 16
      %v1185 = vrot.slane %v1183, 7
      %v1186 = vsel %vm273, %v1181, %v1185
      %v1188 = vshrl.u32 %v1149, 16
      %v1190 = vrot.slane %v1188, 6
      %v1191 = vshll.u32 %v1149, 16
      %v1193 = vrot.slane %v1191, 7
      %v1194 = vor.u32 %v1190, %v1193
      %v1195 = vrot.slane %v1194, 2
      %v1197 = vshll.u32 %v1150, 16
      %v1199 = vrot.slane %v1197, 7
      %v1200 = vsel %vm273, %v1195, %v1199
      %v1202 = vshrl.u32 %v1157, 16
      %v1204 = vrot.slane %v1202, 6
      %v1205 = vshll.u32 %v1157, 16
      %v1207 = vrot.slane %v1205, 7
      %v1208 = vor.u32 %v1204, %v1207
      %v1209 = vrot.slane %v1208, 2
      %v1211 = vshll.u32 %v1158, 16
      %v1213 = vrot.slane %v1211, 7
      %v1214 = vsel %vm273, %v1209, %v1213
      %s1215 = scalar_lea.vmem %s1, 112
      %v1216 = vld [vmem:[%s1215] sm:$0xf]
      %v1217 = vld [vmem:[%s1215 + $0x4] sm:$0xf]
      %v1218 = vld [vmem:[%s1215 + $0x8] sm:$0xf]
      %v1219 = vld [vmem:[%s1215 + $0xc] sm:$0xf]
      %v1220 = vcombine.low %v1172, %v1186
      %v1221 = vcombine.low %v1200, %v1214
      %v1223 = vunpack.c.l.s4 1983009808
      %v1224 = vunpack.c.0.s8 %v1223
      %v1225 = vlaneseq
      %v1226 = vshrl.u32 %v1225, 7
      %v1227 = vsub.s32 %v1224, %v1226
      %v1228 = vrot.slane %v1220, %v1227
      %v1230 = vunpack.c.l.s4 1983009808
      %v1231 = vunpack.c.0.s8 %v1230
      %v1232 = vlaneseq
      %v1233 = vshrl.u32 %v1232, 7
      %v1234 = vsub.s32 %v1231, %v1233
      %v1235 = vrot.slane %v1221, %v1234
      %v1236 = vcombine.low %v1228, %v1235
      %v1241 = vunpack.c.l.b16 %v1216
      %v1242 = vunpack.c.l.b16 %v1217
      %v1243 = vunpack.c.l.b16 %v1218
      %v1244 = vunpack.c.l.b16 %v1219
      %v1245 = vpack.c.b16 %v1242, %v1241
      %v1246 = vpack.c.b16 %v1244, %v1243
      %v1250 = vsel %vm364, %v1236, 0
      %1252 = vmatprep.subr.bf16.mxu0 0
      %1253 = vmatpush1.bf16.msra.mxu0 %v1245
      %1254 = vmatprep.subr.bf16.mxu0 0
      %1255 = vmatpush1.bf16.msra.mxu0 %v1246
      %1256 = vmatprep.subr.bf16.mxu0 0
      %1257 = vmatpush1.bf16.msra.mxu0 0
      %1258 = vmatprep.subr.bf16.mxu0 0
      %1259 = vmatpush1.bf16.msra.mxu0 0
      %1260 = vmatprep.subr.bf16.mxu0 0
      %1261 = vmatpush1.bf16.msra.mxu0 0
      %1262 = vmatprep.subr.bf16.mxu0 0
      %1263 = vmatpush1.bf16.msra.mxu0 0
      %1264 = vmatprep.subr.bf16.mxu0 0
      %1265 = vmatpush1.bf16.msra.mxu0 0
      %1266 = vmatprep.subr.bf16.mxu0 0
      %1267 = vmatpush1.bf16.msra.mxu0 0
      %1268 = vmatprep.subr.bf16.mxu0 0
      %1269 = vmatpush1.bf16.msra.mxu0 0
      %1270 = vmatprep.subr.bf16.mxu0 0
      %1271 = vmatpush1.bf16.msra.mxu0 0
      %1272 = vmatprep.subr.bf16.mxu0 0
      %1273 = vmatpush1.bf16.msra.mxu0 0
      %1274 = vmatprep.subr.bf16.mxu0 0
      %1275 = vmatpush1.bf16.msra.mxu0 0
      %1276 = vmatprep.subr.bf16.mxu0 0
      %1277 = vmatpush1.bf16.msra.mxu0 0
      %1278 = vmatprep.subr.bf16.mxu0 0
      %1279 = vmatpush1.bf16.msra.mxu0 0
      %1280 = vmatprep.subr.bf16.mxu0 0
      %1281 = vmatpush1.bf16.msra.mxu0 0
      %1282 = vmatprep.subr.bf16.mxu0 0
      %1283 = vmatpush1.bf16.msra.mxu0 0
      %1284 = vmatprep.mubr.bf16.mxu0 0
      %1285 = vmatmul.mubr.bf16.gmra.mrb[0].mxu0 %v1250
      %v1286 = vpop.f32.mrb[0].mxu0
      %v1287 = vadd.f32 0.0, %v1286
      %v1288 = vpop.f32.mrb[0].mxu0
      %v1289 = vpop.f32.mrb[0].mxu0
      %v1290 = vadd.f32 0.0, %v1289
      %v1291 = vpop.f32.mrb[0].mxu0
      %1292 = vdwg.mxu0
      %v1293 = vadd.f32 %v1117, %v1287
      %v1294 = vadd.f32 %v1118, %v1290
      %v1295 = vld [vmem:[%s1030] sm:$0x6]
      %v1296 = vld [vmem:[%s1030 + $0x4] sm:$0x6]
      %v1297 = vld [vmem:[%s1030 + $0x8] sm:$0x6]
      %v1298 = vld [vmem:[%s1030 + $0xc] sm:$0x6]
      %v1304 = vunpack.c.l.s4 1983009808
      %v1305 = vunpack.c.0.s8 %v1304
      %v1306 = vlaneseq
      %v1307 = vshrl.u32 %v1306, 7
      %v1308 = vsub.s32 %v1305, %v1307
      %v1309 = vrot.slane %v1295, %v1308
      %v1310 = vcombine.high %v1309, %v1309
      %v1312 = vunpack.c.l.s4 1983009808
      %v1313 = vunpack.c.0.s8 %v1312
      %v1314 = vlaneseq
      %v1315 = vshrl.u32 %v1314, 7
      %v1316 = vsub.s32 %v1313, %v1315
      %v1317 = vrot.slane %v1296, %v1316
      %v1318 = vcombine.high %v1317, %v1317
      %v1320 = vunpack.c.l.s4 1983009808
      %v1321 = vunpack.c.0.s8 %v1320
      %v1322 = vlaneseq
      %v1323 = vshrl.u32 %v1322, 7
      %v1324 = vsub.s32 %v1321, %v1323
      %v1325 = vrot.slane %v1297, %v1324
      %v1326 = vcombine.high %v1325, %v1325
      %v1328 = vunpack.c.l.s4 1983009808
      %v1329 = vunpack.c.0.s8 %v1328
      %v1330 = vlaneseq
      %v1331 = vshrl.u32 %v1330, 7
      %v1332 = vsub.s32 %v1329, %v1331
      %v1333 = vrot.slane %v1298, %v1332
      %v1334 = vcombine.high %v1333, %v1333
      %v1335 = vrot.slane %v1309, 7
      %v1336 = vrot.slane %v1335, 2
      %v1337 = vrot.slane %v1310, 7
      %v1338 = vsel %vm532, %v1336, %v1337
      %v1339 = vrot.slane %v1317, 7
      %v1340 = vrot.slane %v1339, 2
      %v1341 = vrot.slane %v1318, 7
      %v1342 = vsel %vm532, %v1340, %v1341
      %v1343 = vrot.slane %v1325, 7
      %v1344 = vrot.slane %v1343, 2
      %v1345 = vrot.slane %v1326, 7
      %v1346 = vsel %vm532, %v1344, %v1345
      %v1347 = vrot.slane %v1333, 7
      %v1348 = vrot.slane %v1347, 2
      %v1349 = vrot.slane %v1334, 7
      %v1350 = vsel %vm532, %v1348, %v1349
      %s1351 = scalar_lea.vmem %s1, 128
      %v1352 = vld [vmem:[%s1351] sm:$0xf]
      %v1353 = vld [vmem:[%s1351 + $0x4] sm:$0xf]
      %v1354 = vld [vmem:[%s1351 + $0x8] sm:$0xf]
      %v1355 = vld [vmem:[%s1351 + $0xc] sm:$0xf]
      %v1356 = vcombine.low %v1338, %v1342
      %v1357 = vcombine.low %v1346, %v1350
      %v1359 = vunpack.c.l.s4 1983009808
      %v1360 = vunpack.c.0.s8 %v1359
      %v1361 = vlaneseq
      %v1362 = vshrl.u32 %v1361, 7
      %v1363 = vsub.s32 %v1360, %v1362
      %v1364 = vrot.slane %v1356, %v1363
      %v1366 = vunpack.c.l.s4 1983009808
      %v1367 = vunpack.c.0.s8 %v1366
      %v1368 = vlaneseq
      %v1369 = vshrl.u32 %v1368, 7
      %v1370 = vsub.s32 %v1367, %v1369
      %v1371 = vrot.slane %v1357, %v1370
      %v1372 = vcombine.low %v1364, %v1371
      %v1377 = vunpack.c.l.b16 %v1352
      %v1378 = vunpack.c.l.b16 %v1353
      %v1379 = vunpack.c.l.b16 %v1354
      %v1380 = vunpack.c.l.b16 %v1355
      %v1381 = vpack.c.b16 %v1378, %v1377
      %v1382 = vpack.c.b16 %v1380, %v1379
      %v1386 = vsel %vm364, %v1372, 0
      %1388 = vmatprep.subr.bf16.mxu0 0
      %1389 = vmatpush1.bf16.msra.mxu0 %v1381
      %1390 = vmatprep.subr.bf16.mxu0 0
      %1391 = vmatpush1.bf16.msra.mxu0 %v1382
      %1392 = vmatprep.subr.bf16.mxu0 0
      %1393 = vmatpush1.bf16.msra.mxu0 0
      %1394 = vmatprep.subr.bf16.mxu0 0
      %1395 = vmatpush1.bf16.msra.mxu0 0
      %1396 = vmatprep.subr.bf16.mxu0 0
      %1397 = vmatpush1.bf16.msra.mxu0 0
      %1398 = vmatprep.subr.bf16.mxu0 0
      %1399 = vmatpush1.bf16.msra.mxu0 0
      %1400 = vmatprep.subr.bf16.mxu0 0
      %1401 = vmatpush1.bf16.msra.mxu0 0
      %1402 = vmatprep.subr.bf16.mxu0 0
      %1403 = vmatpush1.bf16.msra.mxu0 0
      %1404 = vmatprep.subr.bf16.mxu0 0
      %1405 = vmatpush1.bf16.msra.mxu0 0
      %1406 = vmatprep.subr.bf16.mxu0 0
      %1407 = vmatpush1.bf16.msra.mxu0 0
      %1408 = vmatprep.subr.bf16.mxu0 0
      %1409 = vmatpush1.bf16.msra.mxu0 0
      %1410 = vmatprep.subr.bf16.mxu0 0
      %1411 = vmatpush1.bf16.msra.mxu0 0
      %1412 = vmatprep.subr.bf16.mxu0 0
      %1413 = vmatpush1.bf16.msra.mxu0 0
      %1414 = vmatprep.subr.bf16.mxu0 0
      %1415 = vmatpush1.bf16.msra.mxu0 0
      %1416 = vmatprep.subr.bf16.mxu0 0
      %1417 = vmatpush1.bf16.msra.mxu0 0
      %1418 = vmatprep.subr.bf16.mxu0 0
      %1419 = vmatpush1.bf16.msra.mxu0 0
      %1420 = vmatprep.mubr.bf16.mxu0 0
      %1421 = vmatmul.mubr.bf16.gmra.mrb[0].mxu0 %v1386
      %v1422 = vpop.f32.mrb[0].mxu0
      %v1423 = vadd.f32 0.0, %v1422
      %v1424 = vpop.f32.mrb[0].mxu0
      %v1425 = vpop.f32.mrb[0].mxu0
      %v1426 = vadd.f32 0.0, %v1425
      %v1427 = vpop.f32.mrb[0].mxu0
      %1428 = vdwg.mxu0
      %v1429 = vadd.f32 %v1293, %v1423
      %v1430 = vadd.f32 %v1294, %v1426
      %v1431 = vld [vmem:[%s2] sm:$0x1]
      %v1433 = vlaneseq
      %v1434 = vshrl.u32 %v1433, 7
      %v1435 = vsub.s32 0, %v1434
      %v1436 = vrot.slane %v1431, %v1435
      %v1438 = vadd.f32 %v1429, %v1436
      %v1439 = vadd.f32 %v1430, %v1436
      %v1440 = vmax.f32 %v1438, -30.0
      %v1441 = vmax.f32 %v1439, -30.0
      %v1442 = vmin.f32 %v1440, 20.0
      %v1443 = vmin.f32 %v1441, 20.0
      %v1444 = vmul.f32 %v1442, 0.5
      %v1445 = vmul.f32 %v1443, 0.5
      %v1446 = vmul.f32 %v1444, 1.442695
      %v1447 = vpow.pop %v1446
      %v1448 = vmul.f32 %v1445, 1.442695
      %v1449 = vpow.pop %v1448
      %v1450 = vld [vmem:[%s212] sm:$0xff]
      %v1451 = vld [vmem:[%s212 + $0x8] sm:$0xff]
      %1454 = vrot.lane.b32.xlu0 %v1450, 4
      %v1455 = vpop.permute.xlu0 %1454
      %1456 = vrot.lane.b32.xlu0 %v1451, 4
      %v1457 = vpop.permute.xlu0 %1456
      %v1460 = vmul.f32 %v1447, %v1455
      %v1461 = vmul.f32 %v1449, %v1457
      %1464 = vrot.lane.b32.xlu0 %v1460, 124
      %v1465 = vpop.permute.xlu0 %1464
      %1466 = vrot.lane.b32.xlu0 %v1461, 124
      %v1467 = vpop.permute.xlu0 %1466
      %v1470 = vadd.f32 %v1438, %v1465
      %v1471 = vadd.f32 %v1439, %v1467
      %v1472 = vmul.f32 %v1470, 0.18215
      %v1473 = vmul.f32 %v1471, 0.18215
      %vm1474 = vcmask 31744
      %1475 = vst.msk [vmem:[%s217] sm:$0xff] %vm1474, %v1472
      %1476 = vst.msk [vmem:[%s217 + $0x8] sm:$0xff] %vm1474, %v1473
      %p1477 = scmp.lt.s32.totalorder %s15, 1
      %s1478 = scalar_select %p1477, %s15, 1
      %s1479 = smul.addr %s1478, 2
      %s1480 = smul.addr %s1479, 8
      %s1481 = scalar_lea.vmem %s4, %s1480
      // Predicated region
      $region37: #{vae_encode_forward.7} parent=35 // pred_check
        %p1482 = pneg %p127
      $region38: #{vae_encode_forward.7} parent=35 // pred_check_branch
        %1484 = sbr.rel (%p1482) target = $region40
      $region39: #{vae_encode_forward.7} parent=35 // pred_region
        _
      $region40: #{vae_encode_forward.7} parent=35 // pred_fallthru
        _
    $region36: #{vae_encode_forward.7} parent=5 // pred_fallthru
      _
    %p1485 = scmp.le.s32.totalorder 2, %s10
    // Predicated region
    $region41: #{vae_encode_forward.7} parent=5 // pred_check
      %p1486 = pneg %p1485
    $region42: #{vae_encode_forward.7} parent=5 // pred_check_branch
      %1488 = sbr.rel (%p1486) target = $region44
    $region43: #{vae_encode_forward.7} parent=5 // pred_region
      %s1489 = ssub.s32 %s10, 2
      // Predicated region
      $region45: #{vae_encode_forward.7} parent=43 // pred_check
        %p1490 = pneg %p133
      $region46: #{vae_encode_forward.7} parent=43 // pred_check_branch
        %1492 = sbr.rel (%p1490) target = $region48
      $region47: #{vae_encode_forward.7} parent=43 // pred_region
        %p1493 = scmp.lt.s32.totalorder %s16, 1
        %s1494 = scalar_select %p1493, %s16, 1
        %s1495 = smul.addr %s1494, 2
        %s1496 = smul.addr %s1495, 8
        %s1497 = scalar_lea.vmem %s4, %s1496
      $region48: #{vae_encode_forward.7} parent=43 // pred_fallthru
        _
    $region44: #{vae_encode_forward.7} parent=5 // pred_fallthru
      _
  $region6: #{vae_encode_forward.7} parent=0 // loop_footer
    %s14 = sadd.s32 1, %s10
  $region7: #{vae_encode_forward.7} parent=0 // loop_footer_branch
    %9 = sbr.rel target = $region3
  $region8: #{vae_encode_forward.7} parent=0 // loop_exit
    _

// kernel: vae_encode_forward.4
$region0: #{vae_encode_forward.4}
  #allocation0 [shape = 'u32[]', space=smem, size = 0x4, offset = 0x4, fixed_abs, tag = 'smem constant byte address 0x4 - core index']
  #allocation1 [shape = 'u32[144,128]{1,0:T(1,128)}', space=vmem, size = 0x12000, scoped, tag = 'internal scratch']
  %s0 = inlined_call_operand.vmem [shape: bf16[2,18,18,3], index: 0, kind: input, shape index: {}]
  %s1 = inlined_call_operand.vmem [shape: bf16[3,3,3,32], index: 1, kind: input, shape index: {}]
  %s2 = inlined_call_operand.vmem [shape: f32[1,32], index: 2, kind: input, shape index: {}]
  %s3 = inlined_call_operand.vmem [shape: bf16[2,256,32], index: 3, kind: output, shape index: {}]
  %s4 = sld [smem:[#allocation0]]
  $region45: #{vae_encode_forward.4} parent=0
    _
  %s6 = ssub.s32 1, %s4
  %s7 = scalar_select 0, %s6, %s4
  loop: start=0, step=1, limit=4
  $region2: #{vae_encode_forward.4} parent=0 // loop_pre_header
    _
  $region3: #{vae_encode_forward.4} parent=0 // loop_header
    %s9 = sphi 0, %s13
    %p10 = scmp.ge.s32.totalorder %s9, 4
    %s19 = sphi 0, %s21
    %s22 = sphi 0, %s19
    %s23 = sphi 0, %s22
    %s39 = sphi 0, %s23
    %s43 = sphi 0, %s43
    %s45 = sphi 0, %s43
    %s46 = sphi 0, %s45
    %s60 = sphi 0, %s46
    %s64 = sphi 0, %s64
    %s66 = sphi 0, %s64
    %s67 = sphi 0, %s66
    %s81 = sphi 0, %s67
    %s87 = sphi 0, %s89
    %s90 = sphi 0, %s87
    %s91 = sphi 0, %s90
    %s107 = sphi 0, %s91
  $region4: #{vae_encode_forward.4} parent=0 // loop_header_branch
    %12 = sbr.rel (%p10) target = $region8
  $region5: #{vae_encode_forward.4} parent=0 // loop_body
    %s14 = ssub.s32 %s9, 1
    %s15 = ssub.s32 %s9, 2
    %s16 = sadd.s32 %s9, 1
    %s17 = ssub.s32 %s9, %s16
    %p18 = scmp.eq.s32.totalorder %s17, 0
    %s20 = sadd.s32 %s19, 1
    %s21 = scalar_select %p18, %s19, %s20
    %p24 = pneg %p18
    %p25 = scmp.eq.s32.totalorder %s9, 1
    %p26 = por %p24, %p25
    %p27 = scmp.ne.s32.totalorder %s19, %s22
    %p28 = scmp.eq.s32.totalorder %s9, 0
    %p29 = por %p27, %p28
    %p30 = scmp.ne.s32.totalorder %s19, %s22
    %p31 = scmp.eq.s32.totalorder %s14, 1
    %p32 = por %p30, %p31
    %p33 = scmp.ne.s32.totalorder %s22, %s23
    %p34 = scmp.eq.s32.totalorder %s14, 0
    %p35 = por %p33, %p34
    %p36 = scmp.ne.s32.totalorder %s22, %s23
    %p37 = scmp.eq.s32.totalorder %s15, 1
    %p38 = por %p36, %p37
    %p40 = scmp.ne.s32.totalorder %s23, %s39
    %p41 = scmp.eq.s32.totalorder %s15, 0
    %p42 = por %p40, %p41
    %s44 = sadd.s32 %s43, 1
    %p47 = scmp.eq.s32.totalorder %s9, 1
    %p48 = scmp.ne.s32.totalorder %s43, %s45
    %p49 = scmp.eq.s32.totalorder %s9, 0
    %p50 = por %p48, %p49
    %p51 = scmp.ne.s32.totalorder %s43, %s45
    %p52 = scmp.eq.s32.totalorder %s14, 1
    %p53 = por %p51, %p52
    %p54 = scmp.ne.s32.totalorder %s45, %s46
    %p55 = scmp.eq.s32.totalorder %s14, 0
    %p56 = por %p54, %p55
    %p57 = scmp.ne.s32.totalorder %s45, %s46
    %p58 = scmp.eq.s32.totalorder %s15, 1
    %p59 = por %p57, %p58
    %p61 = scmp.ne.s32.totalorder %s46, %s60
    %p62 = scmp.eq.s32.totalorder %s15, 0
    %p63 = por %p61, %p62
    %s65 = sadd.s32 %s64, 1
    %p68 = scmp.eq.s32.totalorder %s9, 1
    %p69 = scmp.ne.s32.totalorder %s64, %s66
    %p70 = scmp.eq.s32.totalorder %s9, 0
    %p71 = por %p69, %p70
    %p72 = scmp.ne.s32.totalorder %s64, %s66
    %p73 = scmp.eq.s32.totalorder %s14, 1
    %p74 = por %p72, %p73
    %p75 = scmp.ne.s32.totalorder %s66, %s67
    %p76 = scmp.eq.s32.totalorder %s14, 0
    %p77 = por %p75, %p76
    %p78 = scmp.ne.s32.totalorder %s66, %s67
    %p79 = scmp.eq.s32.totalorder %s15, 1
    %p80 = por %p78, %p79
    %p82 = scmp.ne.s32.totalorder %s67, %s81
    %p83 = scmp.eq.s32.totalorder %s15, 0
    %p84 = por %p82, %p83
    %s85 = ssub.s32 %s9, %s16
    %p86 = scmp.eq.s32.totalorder %s85, 0
    %s88 = sadd.s32 %s87, 1
    %s89 = scalar_select %p86, %s87, %s88
    %p92 = pneg %p86
    %p93 = scmp.eq.s32.totalorder %s9, 1
    %p94 = por %p92, %p93
    %p95 = scmp.ne.s32.totalorder %s87, %s90
    %p96 = scmp.eq.s32.totalorder %s9, 0
    %p97 = por %p95, %p96
    %p98 = scmp.ne.s32.totalorder %s87, %s90
    %p99 = scmp.eq.s32.totalorder %s14, 1
    %p100 = por %p98, %p99
    %p101 = scmp.ne.s32.totalorder %s90, %s91
    %p102 = scmp.eq.s32.totalorder %s14, 0
    %p103 = por %p101, %p102
    %p104 = scmp.ne.s32.totalorder %s90, %s91
    %p105 = scmp.eq.s32.totalorder %s15, 1
    %p106 = por %p104, %p105
    %p108 = scmp.ne.s32.totalorder %s91, %s107
    %p109 = scmp.eq.s32.totalorder %s15, 0
    %p110 = por %p108, %p109
    %p111 = scmp.le.s32.totalorder 1, %s9
    %p112 = scmp.lt.s32.totalorder %s9, 3
    %p113 = pnand %p111, %p112
    %p114 = pneg %p113
    // Predicated region
    $region9: #{vae_encode_forward.4} parent=5 // pred_check
      _
    $region10: #{vae_encode_forward.4} parent=5 // pred_check_branch
      %116 = sbr.rel (%p113) target = $region12
    $region11: #{vae_encode_forward.4} parent=5 // pred_region
      %s117 = ssub.s32 %s9, 1
      // Predicated region
      $region13: #{vae_encode_forward.4} parent=11 // pred_check
        %p118 = pneg %p56
      $region14: #{vae_encode_forward.4} parent=11 // pred_check_branch
        %120 = sbr.rel (%p118) target = $region16
      $region15: #{vae_encode_forward.4} parent=11 // pred_region
        _
      $region16: #{vae_encode_forward.4} parent=11 // pred_fallthru
        _
      // Predicated region
      $region17: #{vae_encode_forward.4} parent=11 // pred_check
        %p121 = pneg %p77
      $region18: #{vae_encode_forward.4} parent=11 // pred_check_branch
        %123 = sbr.rel (%p121) target = $region20
      $region19: #{vae_encode_forward.4} parent=11 // pred_region
        _
      $region20: #{vae_encode_forward.4} parent=11 // pred_fallthru
        _
    $region12: #{vae_encode_forward.4} parent=5 // pred_fallthru
      _
    %p124 = scmp.lt.s32.totalorder %s9, 2
    // Predicated region
    $region21: #{vae_encode_forward.4} parent=5 // pred_check
      %p125 = pneg %p124
    $region22: #{vae_encode_forward.4} parent=5 // pred_check_branch
      %127 = sbr.rel (%p125) target = $region24
    $region23: #{vae_encode_forward.4} parent=5 // pred_region
      // Predicated region
      $region25: #{vae_encode_forward.4} parent=23 // pred_check
        %p128 = pneg %p29
      $region26: #{vae_encode_forward.4} parent=23 // pred_check_branch
        %130 = sbr.rel (%p128) target = $region28
      $region27: #{vae_encode_forward.4} parent=23 // pred_region
        %p131 = scmp.lt.s32.totalorder %s9, 1
        %s132 = scalar_select %p131, %s9, 1
        %s133 = smul.addr %s132, 54
        %s134 = smul.addr %s133, 4
        %s135 = scalar_lea.vmem %s0, %s134
      $region28: #{vae_encode_forward.4} parent=23 // pred_fallthru
        _
    $region24: #{vae_encode_forward.4} parent=5 // pred_fallthru
      _
    %p136 = scmp.le.s32.totalorder 1, %s9
    %p137 = scmp.lt.s32.totalorder %s9, 3
    %p138 = pnand %p136, %p137
    %p139 = pneg %p138
    // Predicated region
    $region29: #{vae_encode_forward.4} parent=5 // pred_check
      _
    $region30: #{vae_encode_forward.4} parent=5 // pred_check_branch
      %141 = sbr.rel (%p138) target = $region32
    $region31: #{vae_encode_forward.4} parent=5 // pred_region
      %s142 = ssub.s32 %s9, 1
      %p143 = scmp.lt.s32.totalorder %s14, 1
      %s144 = scalar_select %p143, %s14, 1
      %s145 = smul.addr %s144, 54
      %s146 = smul.addr %s145, 4
      %s147 = scalar_lea.vmem %s0, %s146
      %p148 = pneg %p35
      %p149 = pneg %p32
      %p150 = pneg %p56
      %p151 = pneg %p53
      %p152 = pneg %p77
      %p153 = pneg %p74
      %p154 = pneg %p103
      %p155 = pneg %p100
      %p156 = scmp.lt.s32.totalorder %s14, 1
      %s157 = scalar_select %p156, %s14, 1
      %s158 = smul.addr %s157, 32
      %s159 = smul.addr %s158, 4
      %s160 = scalar_lea.vmem %s3, %s159
      %p161 = scmp.lt.s32.totalorder %s14, 1
      %s162 = scalar_select %p161, %s14, 1
      %s163 = smul.addr %s162, 54
      %s164 = smul.addr %s163, 4
      %s165 = scalar_lea.vmem %s0, %s164
      %p166 = scmp.lt.s32.totalorder %s14, 1
      %s167 = scalar_select %p166, %s14, 1
      %s168 = smul.addr %s167, 32
      %s169 = smul.addr %s168, 4
      %s170 = scalar_lea.vmem %s3, %s169
      %v172 = vld [vmem:[%s165] sm:$0xf]
      %v173 = vld [vmem:[%s165 + $0x4] sm:$0xf]
      %v174 = vld [vmem:[%s165 + $0xc] sm:$0xf]
      %v175 = vld [vmem:[%s165 + $0x10] sm:$0xf]
      %v176 = vld [vmem:[%s165 + $0x18] sm:$0xf]
      %v177 = vld [vmem:[%s165 + $0x1c] sm:$0xf]
      %v178 = vld [vmem:[%s165 + $0x24] sm:$0xf]
      %v179 = vld [vmem:[%s165 + $0x28] sm:$0xf]
      %v180 = vld [vmem:[%s165 + $0x30] sm:$0xf]
      %v181 = vld [vmem:[%s165 + $0x34] sm:$0xf]
      %v182 = vld [vmem:[%s165 + $0x3c] sm:$0xf]
      %v183 = vld [vmem:[%s165 + $0x40] sm:$0xf]
      %v184 = vld [vmem:[%s165 + $0x48] sm:$0xf]
      %v185 = vld [vmem:[%s165 + $0x4c] sm:$0xf]
      %v186 = vld [vmem:[%s165 + $0x54] sm:$0xf]
      %v187 = vld [vmem:[%s165 + $0x58] sm:$0xf]
      %v188 = vld [vmem:[%s165 + $0x60] sm:$0xf]
      %v189 = vld [vmem:[%s165 + $0x64] sm:$0xf]
      %v190 = vld [vmem:[%s165 + $0x6c] sm:$0xf]
      %v191 = vld [vmem:[%s165 + $0x70] sm:$0xf]
      %v192 = vld [vmem:[%s165 + $0x78] sm:$0xf]
      %v193 = vld [vmem:[%s165 + $0x7c] sm:$0xf]
      %v194 = vld [vmem:[%s165 + $0x84] sm:$0xf]
      %v195 = vld [vmem:[%s165 + $0x88] sm:$0xf]
      %v196 = vld [vmem:[%s165 + $0x90] sm:$0xf]
      %v197 = vld [vmem:[%s165 + $0x94] sm:$0xf]
      %v198 = vld [vmem:[%s165 + $0x9c] sm:$0xf]
      %v199 = vld [vmem:[%s165 + $0xa0] sm:$0xf]
      %v200 = vld [vmem:[%s165 + $0xa8] sm:$0xf]
      %v201 = vld [vmem:[%s165 + $0xac] sm:$0xf]
      %v202 = vld [vmem:[%s165 + $0xb4] sm:$0xf]
      %v203 = vld [vmem:[%s165 + $0xb8] sm:$0xf]
      %v204 = vld [vmem:[%s1] sm:$0x3]
      %v205 = vld [vmem:[%s165 + $0x8] sm:$0x1]
      %v206 = vld [vmem:[%s165 + $0x14] sm:$0x1]
      %v207 = vld [vmem:[%s165 + $0x20] sm:$0x1]
      %v208 = vld [vmem:[%s165 + $0x2c] sm:$0x1]
      %v209 = vld [vmem:[%s165 + $0x38] sm:$0x1]
      %v210 = vld [vmem:[%s165 + $0x44] sm:$0x1]
      %v211 = vld [vmem:[%s165 + $0x50] sm:$0x1]
      %v212 = vld [vmem:[%s165 + $0x5c] sm:$0x1]
      %v213 = vld [vmem:[%s165 + $0x68] sm:$0x1]
      %v214 = vld [vmem:[%s165 + $0x74] sm:$0x1]
      %v215 = vld [vmem:[%s165 + $0x80] sm:$0x1]
      %v216 = vld [vmem:[%s165 + $0x8c] sm:$0x1]
      %v217 = vld [vmem:[%s165 + $0x98] sm:$0x1]
      %v218 = vld [vmem:[%s165 + $0xa4] sm:$0x1]
      %v219 = vld [vmem:[%s165 + $0xb0] sm:$0x1]
      %v220 = vld [vmem:[%s165 + $0xbc] sm:$0x1]
      %vm221 = vsmask.f32 3328
      %vm222 = vsmask.f32 7440
      %vm223 = vmor %vm221, %vm222
      %v225 = vshrl.u32 %v172, 16
      %v227 = vrot.slane %v225, 4
      %v228 = vshll.u32 %v172, 16
      %v230 = vrot.slane %v228, 5
      %v231 = vor.u32 %v227, %v230
      %v232 = vrot.slane %v231, 4
      %v234 = vshll.u32 %v173, 16
      %v236 = vrot.slane %v234, 5
      %v237 = vsel %vm223, %v232, %v236
      %v238 = vshrl.u32 %v173, 16
      %v240 = vrot.slane %v238, 4
      %v241 = vor.u32 %v240, %v236
      %v242 = vrot.slane %v241, 4
      %v244 = vshll.u32 %v205, 16
      %v246 = vrot.slane %v244, 5
      %v247 = vsel %vm223, %v242, %v246
      %v249 = vshrl.u32 %v174, 16
      %v251 = vrot.slane %v249, 4
      %v252 = vshll.u32 %v174, 16
      %v254 = vrot.slane %v252, 5
      %v255 = vor.u32 %v251, %v254
      %v256 = vrot.slane %v255, 4
      %v258 = vshll.u32 %v175, 16
      %v260 = vrot.slane %v258, 5
      %v261 = vsel %vm223, %v256, %v260
      %v262 = vshrl.u32 %v175, 16
      %v264 = vrot.slane %v262, 4
      %v265 = vor.u32 %v264, %v260
      %v266 = vrot.slane %v265, 4
      %v268 = vshll.u32 %v206, 16
      %v270 = vrot.slane %v268, 5
      %v271 = vsel %vm223, %v266, %v270
      %v273 = vshrl.u32 %v176, 16
      %v275 = vrot.slane %v273, 4
      %v276 = vshll.u32 %v176, 16
      %v278 = vrot.slane %v276, 5
      %v279 = vor.u32 %v275, %v278
      %v280 = vrot.slane %v279, 4
      %v282 = vshll.u32 %v177, 16
      %v284 = vrot.slane %v282, 5
      %v285 = vsel %vm223, %v280, %v284
      %v286 = vshrl.u32 %v177, 16
      %v288 = vrot.slane %v286, 4
      %v289 = vor.u32 %v288, %v284
      %v290 = vrot.slane %v289, 4
      %v292 = vshll.u32 %v207, 16
      %v294 = vrot.slane %v292, 5
      %v295 = vsel %vm223, %v290, %v294
      %v297 = vshrl.u32 %v178, 16
      %v299 = vrot.slane %v297, 4
      %v300 = vshll.u32 %v178, 16
      %v302 = vrot.slane %v300, 5
      %v303 = vor.u32 %v299, %v302
      %v304 = vrot.slane %v303, 4
      %v306 = vshll.u32 %v179, 16
      %v308 = vrot.slane %v306, 5
      %v309 = vsel %vm223, %v304, %v308
      %v310 = vshrl.u32 %v179, 16
      %v312 = vrot.slane %v310, 4
      %v313 = vor.u32 %v312, %v308
      %v314 = vrot.slane %v313, 4
      %v316 = vshll.u32 %v208, 16
      %v318 = vrot.slane %v316, 5
      %v319 = vsel %vm223, %v314, %v318
      %v321 = vshrl.u32 %v180, 16
      %v323 = vrot.slane %v321, 4
      %v324 = vshll.u32 %v180, 16
      %v326 = vrot.slane %v324, 5
      %v327 = vor.u32 %v323, %v326
      %v328 = vrot.slane %v327, 4
      %v330 = vshll.u32 %v181, 16
      %v332 = vrot.slane %v330, 5
      %v333 = vsel %vm223, %v328, %v332
      %v334 = vshrl.u32 %v181, 16
      %v336 = vrot.slane %v334, 4
      %v337 = vor.u32 %v336, %v332
      %v338 = vrot.slane %v337, 4
      %v340 = vshll.u32 %v209, 16
      %v342 = vrot.slane %v340, 5
      %v343 = vsel %vm223, %v338, %v342
      %v345 = vshrl.u32 %v182, 16
      %v347 = vrot.slane %v345, 4
      %v348 = vshll.u32 %v182, 16
      %v350 = vrot.slane %v348, 5
      %v351 = vor.u32 %v347, %v350
      %v352 = vrot.slane %v351, 4
      %v354 = vshll.u32 %v183, 16
      %v356 = vrot.slane %v354, 5
      %v357 = vsel %vm223, %v352, %v356
      %v358 = vshrl.u32 %v183, 16
      %v360 = vrot.slane %v358, 4
      %v361 = vor.u32 %v360, %v356
      %v362 = vrot.slane %v361, 4
      %v364 = vshll.u32 %v210, 16
      %v366 = vrot.slane %v364, 5
      %v367 = vsel %vm223, %v362, %v366
      %v369 = vshrl.u32 %v184, 16
      %v371 = vrot.slane %v369, 4
      %v372 = vshll.u32 %v184, 16
      %v374 = vrot.slane %v372, 5
      %v375 = vor.u32 %v371, %v374
      %v376 = vrot.slane %v375, 4
      %v378 = vshll.u32 %v185, 16
      %v380 = vrot.slane %v378, 5
      %v381 = vsel %vm223, %v376, %v380
      %v382 = vshrl.u32 %v185, 16
      %v384 = vrot.slane %v382, 4
      %v385 = vor.u32 %v384, %v380
      %v386 = vrot.slane %v385, 4
      %v388 = vshll.u32 %v211, 16
      %v390 = vrot.slane %v388, 5
      %v391 = vsel %vm223, %v386, %v390
      %v393 = vshrl.u32 %v186, 16
      %v395 = vrot.slane %v393, 4
      %v396 = vshll.u32 %v186, 16
      %v398 = vrot.slane %v396, 5
      %v399 = vor.u32 %v395, %v398
      %v400 = vrot.slane %v399, 4
      %v402 = vshll.u32 %v187, 16
      %v404 = vrot.slane %v402, 5
      %v405 = vsel %vm223, %v400, %v404
      %v406 = vshrl.u32 %v187, 16
      %v408 = vrot.slane %v406, 4
      %v409 = vor.u32 %v408, %v404
      %v410 = vrot.slane %v409, 4
      %v412 = vshll.u32 %v212, 16
      %v414 = vrot.slane %v412, 5
      %v415 = vsel %vm223, %v410, %v414
      %v417 = vshrl.u32 %v188, 16
      %v419 = vrot.slane %v417, 4
      %v420 = vshll.u32 %v188, 16
      %v422 = vrot.slane %v420, 5
      %v423 = vor.u32 %v419, %v422
      %v424 = vrot.slane %v423, 4
      %v426 = vshll.u32 %v189, 16
      %v428 = vrot.slane %v426, 5
      %v429 = vsel %vm223, %v424, %v428
      %v430 = vshrl.u32 %v189, 16
      %v432 = vrot.slane %v430, 4
      %v433 = vor.u32 %v432, %v428
      %v434 = vrot.slane %v433, 4
      %v436 = vshll.u32 %v213, 16
      %v438 = vrot.slane %v436, 5
      %v439 = vsel %vm223, %v434, %v438
      %v441 = vshrl.u32 %v190, 16
      %v443 = vrot.slane %v441, 4
      %v444 = vshll.u32 %v190, 16
      %v446 = vrot.slane %v444, 5
      %v447 = vor.u32 %v443, %v446
      %v448 = vrot.slane %v447, 4
      %v450 = vshll.u32 %v191, 16
      %v452 = vrot.slane %v450, 5
      %v453 = vsel %vm223, %v448, %v452
      %v454 = vshrl.u32 %v191, 16
      %v456 = vrot.slane %v454, 4
      %v457 = vor.u32 %v456, %v452
      %v458 = vrot.slane %v457, 4
      %v460 = vshll.u32 %v214, 16
      %v462 = vrot.slane %v460, 5
      %v463 = vsel %vm223, %v458, %v462
      %v465 = vshrl.u32 %v192, 16
      %v467 = vrot.slane %v465, 4
      %v468 = vshll.u32 %v192, 16
      %v470 = vrot.slane %v468, 5
      %v471 = vor.u32 %v467, %v470
      %v472 = vrot.slane %v471, 4
      %v474 = vshll.u32 %v193, 16
      %v476 = vrot.slane %v474, 5
      %v477 = vsel %vm223, %v472, %v476
      %v478 = vshrl.u32 %v193, 16
      %v480 = vrot.slane %v478, 4
      %v481 = vor.u32 %v480, %v476
      %v482 = vrot.slane %v481, 4
      %v484 = vshll.u32 %v215, 16
      %v486 = vrot.slane %v484, 5
      %v487 = vsel %vm223, %v482, %v486
      %v489 = vshrl.u32 %v194, 16
      %v491 = vrot.slane %v489, 4
      %v492 = vshll.u32 %v194, 16
      %v494 = vrot.slane %v492, 5
      %v495 = vor.u32 %v491, %v494
      %v496 = vrot.slane %v495, 4
      %v498 = vshll.u32 %v195, 16
      %v500 = vrot.slane %v498, 5
      %v501 = vsel %vm223, %v496, %v500
      %v502 = vshrl.u32 %v195, 16
      %v504 = vrot.slane %v502, 4
      %v505 = vor.u32 %v504, %v500
      %v506 = vrot.slane %v505, 4
      %v508 = vshll.u32 %v216, 16
      %v510 = vrot.slane %v508, 5
      %v511 = vsel %vm223, %v506, %v510
      %v513 = vshrl.u32 %v196, 16
      %v515 = vrot.slane %v513, 4
      %v516 = vshll.u32 %v196, 16
      %v518 = vrot.slane %v516, 5
      %v519 = vor.u32 %v515, %v518
      %v520 = vrot.slane %v519, 4
      %v522 = vshll.u32 %v197, 16
      %v524 = vrot.slane %v522, 5
      %v525 = vsel %vm223, %v520, %v524
      %v526 = vshrl.u32 %v197, 16
      %v528 = vrot.slane %v526, 4
      %v529 = vor.u32 %v528, %v524
      %v530 = vrot.slane %v529, 4
      %v532 = vshll.u32 %v217, 16
      %v534 = vrot.slane %v532, 5
      %v535 = vsel %vm223, %v530, %v534
      %v537 = vshrl.u32 %v198, 16
      %v539 = vrot.slane %v537, 4
      %v540 = vshll.u32 %v198, 16
      %v542 = vrot.slane %v540, 5
      %v543 = vor.u32 %v539, %v542
      %v544 = vrot.slane %v543, 4
      %v546 = vshll.u32 %v199, 16
      %v548 = vrot.slane %v546, 5
      %v549 = vsel %vm223, %v544, %v548
      %v550 = vshrl.u32 %v199, 16
      %v552 = vrot.slane %v550, 4
      %v553 = vor.u32 %v552, %v548
      %v554 = vrot.slane %v553, 4
      %v556 = vshll.u32 %v218, 16
      %v558 = vrot.slane %v556, 5
      %v559 = vsel %vm223, %v554, %v558
      %v561 = vshrl.u32 %v200, 16
      %v563 = vrot.slane %v561, 4
      %v564 = vshll.u32 %v200, 16
      %v566 = vrot.slane %v564, 5
      %v567 = vor.u32 %v563, %v566
      %v568 = vrot.slane %v567, 4
      %v570 = vshll.u32 %v201, 16
      %v572 = vrot.slane %v570, 5
      %v573 = vsel %vm223, %v568, %v572
      %v574 = vshrl.u32 %v201, 16
      %v576 = vrot.slane %v574, 4
      %v577 = vor.u32 %v576, %v572
      %v578 = vrot.slane %v577, 4
      %v580 = vshll.u32 %v219, 16
      %v582 = vrot.slane %v580, 5
      %v583 = vsel %vm223, %v578, %v582
      %v585 = vshrl.u32 %v202, 16
      %v587 = vrot.slane %v585, 4
      %v588 = vshll.u32 %v202, 16
      %v590 = vrot.slane %v588, 5
      %v591 = vor.u32 %v587, %v590
      %v592 = vrot.slane %v591, 4
      %v594 = vshll.u32 %v203, 16
      %v596 = vrot.slane %v594, 5
      %v597 = vsel %vm223, %v592, %v596
      %v598 = vshrl.u32 %v203, 16
      %v600 = vrot.slane %v598, 4
      %v601 = vor.u32 %v600, %v596
      %v602 = vrot.slane %v601, 4
      %v604 = vshll.u32 %v220, 16
      %v606 = vrot.slane %v604, 5
      %v607 = vsel %vm223, %v602, %v606
      %s608 = scalar_lea.vmem %s1, 2
      %v609 = vld [vmem:[%s608] sm:$0x3]
      %v610 = vunpack.c.l.b16 %v237
      %v611 = vunpack.c.l.b16 %v247
      %v612 = vunpack.c.l.b16 %v261
      %v613 = vunpack.c.l.b16 %v271
      %v614 = vunpack.c.l.b16 %v285
      %v615 = vunpack.c.l.b16 %v295
      %v616 = vunpack.c.l.b16 %v309
      %v617 = vunpack.c.l.b16 %v319
      %v618 = vunpack.c.l.b16 %v333
      %v619 = vunpack.c.l.b16 %v343
      %v620 = vunpack.c.l.b16 %v357
      %v621 = vunpack.c.l.b16 %v367
      %v622 = vunpack.c.l.b16 %v381
      %v623 = vunpack.c.l.b16 %v391
      %v624 = vunpack.c.l.b16 %v405
      %v625 = vunpack.c.l.b16 %v415
      %v626 = vunpack.c.l.b16 %v429
      %v627 = vunpack.c.l.b16 %v439
      %v628 = vunpack.c.l.b16 %v453
      %v629 = vunpack.c.l.b16 %v463
      %v630 = vunpack.c.l.b16 %v477
      %v631 = vunpack.c.l.b16 %v487
      %v632 = vunpack.c.l.b16 %v501
      %v633 = vunpack.c.l.b16 %v511
      %v634 = vunpack.c.l.b16 %v525
      %v635 = vunpack.c.l.b16 %v535
      %v636 = vunpack.c.l.b16 %v549
      %v637 = vunpack.c.l.b16 %v559
      %v638 = vunpack.c.l.b16 %v573
      %v639 = vunpack.c.l.b16 %v583
      %v640 = vunpack.c.l.b16 %v597
      %v641 = vunpack.c.l.b16 %v607
      %v642 = vpack.c.b16 %v611, %v610
      %v643 = vpack.c.b16 %v613, %v612
      %v644 = vpack.c.b16 %v615, %v614
      %v645 = vpack.c.b16 %v617, %v616
      %v646 = vpack.c.b16 %v619, %v618
      %v647 = vpack.c.b16 %v621, %v620
      %v648 = vpack.c.b16 %v623, %v622
      %v649 = vpack.c.b16 %v625, %v624
      %v650 = vpack.c.b16 %v627, %v626
      %v651 = vpack.c.b16 %v629, %v628
      %v652 = vpack.c.b16 %v631, %v630
      %v653 = vpack.c.b16 %v633, %v632
      %v654 = vpack.c.b16 %v635, %v634
      %v655 = vpack.c.b16 %v637, %v636
      %v656 = vpack.c.b16 %v639, %v638
      %v657 = vpack.c.b16 %v641, %v640
      %vm658 = vcmask 23552
      %v660 = vsel %vm658, %v642, 0
      %v663 = vsel %vm658, %v643, 0
      %v666 = vsel %vm658, %v644, 0
      %v669 = vsel %vm658, %v645, 0
      %v672 = vsel %vm658, %v646, 0
      %v675 = vsel %vm658, %v647, 0
      %v678 = vsel %vm658, %v648, 0
      %v681 = vsel %vm658, %v649, 0
      %v684 = vsel %vm658, %v650, 0
      %v687 = vsel %vm658, %v651, 0
      %v690 = vsel %vm658, %v652, 0
      %v693 = vsel %vm658, %v653, 0
      %v696 = vsel %vm658, %v654, 0
      %v699 = vsel %vm658, %v655, 0
      %v702 = vsel %vm658, %v656, 0
      %v705 = vsel %vm658, %v657, 0
      %vm707 = vcmask 1040384
      %vm708 = vcmask 1041408
      %v709 = vsel %vm707, 4294967295, 65535
      %v710 = vsel %vm708, %v709, 0
      %v712 = vand.u32 %v609, %v710
      %714 = vmatprep.subr.bf16.mxu0 0
      %715 = vmatpush1.bf16.msra.mxu0 %v712
      %716 = vmatprep.subr.bf16.mxu0 0
      %717 = vmatpush1.bf16.msra.mxu0 0
      %718 = vmatprep.subr.bf16.mxu0 0
      %719 = vmatpush1.bf16.msra.mxu0 0
      %720 = vmatprep.subr.bf16.mxu0 0
      %721 = vmatpush1.bf16.msra.mxu0 0
      %722 = vmatprep.subr.bf16.mxu0 0
      %723 = vmatpush1.bf16.msra.mxu0 0
      %724 = vmatprep.subr.bf16.mxu0 0
      %725 = vmatpush1.bf16.msra.mxu0 0
      %726 = vmatprep.subr.bf16.mxu0 0
      %727 = vmatpush1.bf16.msra.mxu0 0
      %728 = vmatprep.subr.bf16.mxu0 0
      %729 = vmatpush1.bf16.msra.mxu0 0
      %730 = vmatprep.subr.bf16.mxu0 0
      %731 = vmatpush1.bf16.msra.mxu0 0
      %732 = vmatprep.subr.bf16.mxu0 0
      %733 = vmatpush1.bf16.msra.mxu0 0
      %734 = vmatprep.subr.bf16.mxu0 0
      %735 = vmatpush1.bf16.msra.mxu0 0
      %736 = vmatprep.subr.bf16.mxu0 0
      %737 = vmatpush1.bf16.msra.mxu0 0
      %738 = vmatprep.subr.bf16.mxu0 0
      %739 = vmatpush1.bf16.msra.mxu0 0
      %740 = vmatprep.subr.bf16.mxu0 0
      %741 = vmatpush1.bf16.msra.mxu0 0
      %742 = vmatprep.subr.bf16.mxu0 0
      %743 = vmatpush1.bf16.msra.mxu0 0
      %744 = vmatprep.subr.bf16.mxu0 0
      %745 = vmatpush1.bf16.msra.mxu0 0
      %746 = vmatprep.mubr.bf16.mxu0 0
      %747 = vmatmul.mubr.bf16.gmra.mrb[0].mxu0 %v660
      %v748 = vpop.f32.mrb[0].mxu0
      %v749 = vadd.f32 0.0, %v748
      %v750 = vpop.f32.mrb[0].mxu0
      %v751 = vpop.f32.mrb[0].mxu0
      %v752 = vadd.f32 0.0, %v751
      %v753 = vpop.f32.mrb[0].mxu0
      %754 = vmatprep.mubr.bf16.mxu0 0
      %755 = vmatmul.mubr.bf16.gmra.mrb[0].mxu0 %v663
      %v756 = vpop.f32.mrb[0].mxu0
      %v757 = vadd.f32 0.0, %v756
      %v758 = vpop.f32.mrb[0].mxu0
      %v759 = vpop.f32.mrb[0].mxu0
      %v760 = vadd.f32 0.0, %v759
      %v761 = vpop.f32.mrb[0].mxu0
      %762 = vmatprep.mubr.bf16.mxu0 0
      %763 = vmatmul.mubr.bf16.gmra.mrb[0].mxu0 %v666
      %v764 = vpop.f32.mrb[0].mxu0
      %v765 = vadd.f32 0.0, %v764
      %v766 = vpop.f32.mrb[0].mxu0
      %v767 = vpop.f32.mrb[0].mxu0
      %v768 = vadd.f32 0.0, %v767
      %v769 = vpop.f32.mrb[0].mxu0
      %770 = vmatprep.mubr.bf16.mxu0 0
      %771 = vmatmul.mubr.bf16.gmra.mrb[0].mxu0 %v669
      %v772 = vpop.f32.mrb[0].mxu0
      %v773 = vadd.f32 0.0, %v772
      %v774 = vpop.f32.mrb[0].mxu0
      %v775 = vpop.f32.mrb[0].mxu0
      %v776 = vadd.f32 0.0, %v775
      %v777 = vpop.f32.mrb[0].mxu0
      %778 = vmatprep.mubr.bf16.mxu0 0
      %779 = vmatmul.mubr.bf16.gmra.mrb[0].mxu0 %v672
      %v780 = vpop.f32.mrb[0].mxu0
      %v781 = vadd.f32 0.0, %v780
      %v782 = vpop.f32.mrb[0].mxu0
      %v783 = vpop.f32.mrb[0].mxu0
      %v784 = vadd.f32 0.0, %v783
      %v785 = vpop.f32.mrb[0].mxu0
      %786 = vmatprep.mubr.bf16.mxu0 0
      %787 = vmatmul.mubr.bf16.gmra.mrb[0].mxu0 %v675
      %v788 = vpop.f32.mrb[0].mxu0
      %v789 = vadd.f32 0.0, %v788
      %v790 = vpop.f32.mrb[0].mxu0
      %v791 = vpop.f32.mrb[0].mxu0
      %v792 = vadd.f32 0.0, %v791
      %v793 = vpop.f32.mrb[0].mxu0
      %794 = vmatprep.mubr.bf16.mxu0 0
      %795 = vmatmul.mubr.bf16.gmra.mrb[0].mxu0 %v678
      %v796 = vpop.f32.mrb[0].mxu0
      %v797 = vadd.f32 0.0, %v796
      %v798 = vpop.f32.mrb[0].mxu0
      %v799 = vpop.f32.mrb[0].mxu0
      %v800 = vadd.f32 0.0, %v799
      %v801 = vpop.f32.mrb[0].mxu0
      %802 = vmatprep.mubr.bf16.mxu0 0
      %803 = vmatmul.mubr.bf16.gmra.mrb[0].mxu0 %v681
      %v804 = vpop.f32.mrb[0].mxu0
      %v805 = vadd.f32 0.0, %v804
      %v806 = vpop.f32.mrb[0].mxu0
      %v807 = vpop.f32.mrb[0].mxu0
      %v808 = vadd.f32 0.0, %v807
      %v809 = vpop.f32.mrb[0].mxu0
      %810 = vmatprep.mubr.bf16.mxu0 0
      %811 = vmatmul.mubr.bf16.gmra.mrb[0].mxu0 %v684
      %v812 = vpop.f32.mrb[0].mxu0
      %v813 = vadd.f32 0.0, %v812
      %v814 = vpop.f32.mrb[0].mxu0
      %v815 = vpop.f32.mrb[0].mxu0
      %v816 = vadd.f32 0.0, %v815
      %v817 = vpop.f32.mrb[0].mxu0
      %818 = vmatprep.mubr.bf16.mxu0 0
      %819 = vmatmul.mubr.bf16.gmra.mrb[0].mxu0 %v687
      %v820 = vpop.f32.mrb[0].mxu0
      %v821 = vadd.f32 0.0, %v820
      %v822 = vpop.f32.mrb[0].mxu0
      %v823 = vpop.f32.mrb[0].mxu0
      %v824 = vadd.f32 0.0, %v823
      %v825 = vpop.f32.mrb[0].mxu0
      %826 = vmatprep.mubr.bf16.mxu0 0
      %827 = vmatmul.mubr.bf16.gmra.mrb[0].mxu0 %v690
      %v828 = vpop.f32.mrb[0].mxu0
      %v829 = vadd.f32 0.0, %v828
      %v830 = vpop.f32.mrb[0].mxu0
      %v831 = vpop.f32.mrb[0].mxu0
      %v832 = vadd.f32 0.0, %v831
      %v833 = vpop.f32.mrb[0].mxu0
      %834 = vmatprep.mubr.bf16.mxu0 0
      %835 = vmatmul.mubr.bf16.gmra.mrb[0].mxu0 %v693
      %v836 = vpop.f32.mrb[0].mxu0
      %v837 = vadd.f32 0.0, %v836
      %v838 = vpop.f32.mrb[0].mxu0
      %v839 = vpop.f32.mrb[0].mxu0
      %v840 = vadd.f32 0.0, %v839
      %v841 = vpop.f32.mrb[0].mxu0
      %842 = vmatprep.mubr.bf16.mxu0 0
      %843 = vmatmul.mubr.bf16.gmra.mrb[0].mxu0 %v696
      %v844 = vpop.f32.mrb[0].mxu0
      %v845 = vadd.f32 0.0, %v844
      %v846 = vpop.f32.mrb[0].mxu0
      %v847 = vpop.f32.mrb[0].mxu0
      %v848 = vadd.f32 0.0, %v847
      %v849 = vpop.f32.mrb[0].mxu0
      %850 = vmatprep.mubr.bf16.mxu0 0
      %851 = vmatmul.mubr.bf16.gmra.mrb[0].mxu0 %v699
      %v852 = vpop.f32.mrb[0].mxu0
      %v853 = vadd.f32 0.0, %v852
      %v854 = vpop.f32.mrb[0].mxu0
      %v855 = vpop.f32.mrb[0].mxu0
      %v856 = vadd.f32 0.0, %v855
      %v857 = vpop.f32.mrb[0].mxu0
      %858 = vmatprep.mubr.bf16.mxu0 0
      %859 = vmatmul.mubr.bf16.gmra.mrb[0].mxu0 %v702
      %v860 = vpop.f32.mrb[0].mxu0
      %v861 = vadd.f32 0.0, %v860
      %v862 = vpop.f32.mrb[0].mxu0
      %v863 = vpop.f32.mrb[0].mxu0
      %v864 = vadd.f32 0.0, %v863
      %v865 = vpop.f32.mrb[0].mxu0
      %866 = vmatprep.mubr.bf16.mxu0 0
      %867 = vmatmul.mubr.bf16.gmra.mrb[0].mxu0 %v705
      %v868 = vpop.f32.mrb[0].mxu0
      %v869 = vadd.f32 0.0, %v868
      %v870 = vpop.f32.mrb[0].mxu0
      %v871 = vpop.f32.mrb[0].mxu0
      %v872 = vadd.f32 0.0, %v871
      %v873 = vpop.f32.mrb[0].mxu0
      %874 = vdwg.mxu0
      %v907 = vunpack.c.l.b16 %v172
      %v908 = vunpack.c.l.b16 %v173
      %v909 = vunpack.c.l.b16 %v174
      %v910 = vunpack.c.l.b16 %v175
      %v911 = vunpack.c.l.b16 %v176
      %v912 = vunpack.c.l.b16 %v177
      %v913 = vunpack.c.l.b16 %v178
      %v914 = vunpack.c.l.b16 %v179
      %v915 = vunpack.c.l.b16 %v180
      %v916 = vunpack.c.l.b16 %v181
      %v917 = vunpack.c.l.b16 %v182
      %v918 = vunpack.c.l.b16 %v183
      %v919 = vunpack.c.l.b16 %v184
      %v920 = vunpack.c.l.b16 %v185
      %v921 = vunpack.c.l.b16 %v186
      %v922 = vunpack.c.l.b16 %v187
      %v923 = vunpack.c.l.b16 %v188
      %v924 = vunpack.c.l.b16 %v189
      %v925 = vunpack.c.l.b16 %v190
      %v926 = vunpack.c.l.b16 %v191
      %v927 = vunpack.c.l.b16 %v192
      %v928 = vunpack.c.l.b16 %v193
      %v929 = vunpack.c.l.b16 %v194
      %v930 = vunpack.c.l.b16 %v195
      %v931 = vunpack.c.l.b16 %v196
      %v932 = vunpack.c.l.b16 %v197
      %v933 = vunpack.c.l.b16 %v198
      %v934 = vunpack.c.l.b16 %v199
      %v935 = vunpack.c.l.b16 %v200
      %v936 = vunpack.c.l.b16 %v201
      %v937 = vunpack.c.l.b16 %v202
      %v938 = vunpack.c.l.b16 %v203
      %v939 = vpack.c.b16 %v908, %v907
      %v940 = vpack.c.b16 %v910, %v909
      %v941 = vpack.c.b16 %v912, %v911
      %v942 = vpack.c.b16 %v914, %v913
      %v943 = vpack.c.b16 %v916, %v915
      %v944 = vpack.c.b16 %v918, %v917
      %v945 = vpack.c.b16 %v920, %v919
      %v946 = vpack.c.b16 %v922, %v921
      %v947 = vpack.c.b16 %v924, %v923
      %v948 = vpack.c.b16 %v926, %v925
      %v949 = vpack.c.b16 %v928, %v927
      %v950 = vpack.c.b16 %v930, %v929
      %v951 = vpack.c.b16 %v932, %v931
      %v952 = vpack.c.b16 %v934, %v933
      %v953 = vpack.c.b16 %v936, %v935
      %v954 = vpack.c.b16 %v938, %v937
      %v956 = vsel %vm658, %v939, 0
      %v959 = vsel %vm658, %v940, 0
      %v962 = vsel %vm658, %v941, 0
      %v965 = vsel %vm658, %v942, 0
      %v968 = vsel %vm658, %v943, 0
      %v971 = vsel %vm658, %v944, 0
      %v974 = vsel %vm658, %v945, 0
      %v977 = vsel %vm658, %v946, 0
      %v980 = vsel %vm658, %v947, 0
      %v983 = vsel %vm658, %v948, 0
      %v986 = vsel %vm658, %v949, 0
      %v989 = vsel %vm658, %v950, 0
      %v992 = vsel %vm658, %v951, 0
      %v995 = vsel %vm658, %v952, 0
      %v998 = vsel %vm658, %v953, 0
      %v1001 = vsel %vm658, %v954, 0
      %v1004 = vand.u32 %v204, %v710
      %1006 = vmatprep.subr.bf16.mxu0 0
      %1007 = vmatpush1.bf16.msra.mxu0 %v1004
      %1008 = vmatprep.subr.bf16.mxu0 0
      %1009 = vmatpush1.bf16.msra.mxu0 0
      %1010 = vmatprep.subr.bf16.mxu0 0
      %1011 = vmatpush1.bf16.msra.mxu0 0
      %1012 = vmatprep.subr.bf16.mxu0 0
      %1013 = vmatpush1.bf16.msra.mxu0 0
      %1014 = vmatprep.subr.bf16.mxu0 0
      %1015 = vmatpush1.bf16.msra.mxu0 0
      %1016 = vmatprep.subr.bf16.mxu0 0
      %1017 = vmatpush1.bf16.msra.mxu0 0
      %1018 = vmatprep.subr.bf16.mxu0 0
      %1019 = vmatpush1.bf16.msra.mxu0 0
      %1020 = vmatprep.subr.bf16.mxu0 0
      %1021 = vmatpush1.bf16.msra.mxu0 0
      %1022 = vmatprep.subr.bf16.mxu0 0
      %1023 = vmatpush1.bf16.msra.mxu0 0
      %1024 = vmatprep.subr.bf16.mxu0 0
      %1025 = vmatpush1.bf16.msra.mxu0 0
      %1026 = vmatprep.subr.bf16.mxu0 0
      %1027 = vmatpush1.bf16.msra.mxu0 0
      %1028 = vmatprep.subr.bf16.mxu0 0
      %1029 = vmatpush1.bf16.msra.mxu0 0
      %1030 = vmatprep.subr.bf16.mxu0 0
      %1031 = vmatpush1.bf16.msra.mxu0 0
      %1032 = vmatprep.subr.bf16.mxu0 0
      %1033 = vmatpush1.bf16.msra.mxu0 0
      %1034 = vmatprep.subr.bf16.mxu0 0
      %1035 = vmatpush1.bf16.msra.mxu0 0
      %1036 = vmatprep.subr.bf16.mxu0 0
      %1037 = vmatpush1.bf16.msra.mxu0 0
      %1038 = vmatprep.mubr.bf16.mxu0 0
      %1039 = vmatmul.mubr.bf16.gmra.mrb[0].mxu0 %v956
      %v1040 = vpop.f32.mrb[0].mxu0
      %v1041 = vadd.f32 %v749, %v1040
      %v1042 = vpop.f32.mrb[0].mxu0
      %v1043 = vpop.f32.mrb[0].mxu0
      %v1044 = vadd.f32 %v752, %v1043
      %v1045 = vpop.f32.mrb[0].mxu0
      %1046 = vmatprep.mubr.bf16.mxu0 0
      %1047 = vmatmul.mubr.bf16.gmra.mrb[0].mxu0 %v959
      %v1048 = vpop.f32.mrb[0].mxu0
      %v1049 = vadd.f32 %v757, %v1048
      %v1050 = vpop.f32.mrb[0].mxu0
      %v1051 = vpop.f32.mrb[0].mxu0
      %v1052 = vadd.f32 %v760, %v1051
      %v1053 = vpop.f32.mrb[0].mxu0
      %1054 = vmatprep.mubr.bf16.mxu0 0
      %1055 = vmatmul.mubr.bf16.gmra.mrb[0].mxu0 %v962
      %v1056 = vpop.f32.mrb[0].mxu0
      %v1057 = vadd.f32 %v765, %v1056
      %v1058 = vpop.f32.mrb[0].mxu0
      %v1059 = vpop.f32.mrb[0].mxu0
      %v1060 = vadd.f32 %v768, %v1059
      %v1061 = vpop.f32.mrb[0].mxu0
      %1062 = vmatprep.mubr.bf16.mxu0 0
      %1063 = vmatmul.mubr.bf16.gmra.mrb[0].mxu0 %v965
      %v1064 = vpop.f32.mrb[0].mxu0
      %v1065 = vadd.f32 %v773, %v1064
      %v1066 = vpop.f32.mrb[0].mxu0
      %v1067 = vpop.f32.mrb[0].mxu0
      %v1068 = vadd.f32 %v776, %v1067
      %v1069 = vpop.f32.mrb[0].mxu0
      %1070 = vmatprep.mubr.bf16.mxu0 0
      %1071 = vmatmul.mubr.bf16.gmra.mrb[0].mxu0 %v968
      %v1072 = vpop.f32.mrb[0].mxu0
      %v1073 = vadd.f32 %v781, %v1072
      %v1074 = vpop.f32.mrb[0].mxu0
      %v1075 = vpop.f32.mrb[0].mxu0
      %v1076 = vadd.f32 %v784, %v1075
      %v1077 = vpop.f32.mrb[0].mxu0
      %1078 = vmatprep.mubr.bf16.mxu0 0
      %1079 = vmatmul.mubr.bf16.gmra.mrb[0].mxu0 %v971
      %v1080 = vpop.f32.mrb[0].mxu0
      %v1081 = vadd.f32 %v789, %v1080
      %v1082 = vpop.f32.mrb[0].mxu0
      %v1083 = vpop.f32.mrb[0].mxu0
      %v1084 = vadd.f32 %v792, %v1083
      %v1085 = vpop.f32.mrb[0].mxu0
      %1086 = vmatprep.mubr.bf16.mxu0 0
      %1087 = vmatmul.mubr.bf16.gmra.mrb[0].mxu0 %v974
      %v1088 = vpop.f32.mrb[0].mxu0
      %v1089 = vadd.f32 %v797, %v1088
      %v1090 = vpop.f32.mrb[0].mxu0
      %v1091 = vpop.f32.mrb[0].mxu0
      %v1092 = vadd.f32 %v800, %v1091
      %v1093 = vpop.f32.mrb[0].mxu0
      %1094 = vmatprep.mubr.bf16.mxu0 0
      %1095 = vmatmul.mubr.bf16.gmra.mrb[0].mxu0 %v977
      %v1096 = vpop.f32.mrb[0].mxu0
      %v1097 = vadd.f32 %v805, %v1096
      %v1098 = vpop.f32.mrb[0].mxu0
      %v1099 = vpop.f32.mrb[0].mxu0
      %v1100 = vadd.f32 %v808, %v1099
      %v1101 = vpop.f32.mrb[0].mxu0
      %1102 = vmatprep.mubr.bf16.mxu0 0
      %1103 = vmatmul.mubr.bf16.gmra.mrb[0].mxu0 %v980
      %v1104 = vpop.f32.mrb[0].mxu0
      %v1105 = vadd.f32 %v813, %v1104
      %v1106 = vpop.f32.mrb[0].mxu0
      %v1107 = vpop.f32.mrb[0].mxu0
      %v1108 = vadd.f32 %v816, %v1107
      %v1109 = vpop.f32.mrb[0].mxu0
      %1110 = vmatprep.mubr.bf16.mxu0 0
      %1111 = vmatmul.mubr.bf16.gmra.mrb[0].mxu0 %v983
      %v1112 = vpop.f32.mrb[0].mxu0
      %v1113 = vadd.f32 %v821, %v1112
      %v1114 = vpop.f32.mrb[0].mxu0
      %v1115 = vpop.f32.mrb[0].mxu0
      %v1116 = vadd.f32 %v824, %v1115
      %v1117 = vpop.f32.mrb[0].mxu0
      %1118 = vmatprep.mubr.bf16.mxu0 0
      %1119 = vmatmul.mubr.bf16.gmra.mrb[0].mxu0 %v986
      %v1120 = vpop.f32.mrb[0].mxu0
      %v1121 = vadd.f32 %v829, %v1120
      %v1122 = vpop.f32.mrb[0].mxu0
      %v1123 = vpop.f32.mrb[0].mxu0
      %v1124 = vadd.f32 %v832, %v1123
      %v1125 = vpop.f32.mrb[0].mxu0
      %1126 = vmatprep.mubr.bf16.mxu0 0
      %1127 = vmatmul.mubr.bf16.gmra.mrb[0].mxu0 %v989
      %v1128 = vpop.f32.mrb[0].mxu0
      %v1129 = vadd.f32 %v837, %v1128
      %v1130 = vpop.f32.mrb[0].mxu0
      %v1131 = vpop.f32.mrb[0].mxu0
      %v1132 = vadd.f32 %v840, %v1131
      %v1133 = vpop.f32.mrb[0].mxu0
      %1134 = vmatprep.mubr.bf16.mxu0 0
      %1135 = vmatmul.mubr.bf16.gmra.mrb[0].mxu0 %v992
      %v1136 = vpop.f32.mrb[0].mxu0
      %v1137 = vadd.f32 %v845, %v1136
      %v1138 = vpop.f32.mrb[0].mxu0
      %v1139 = vpop.f32.mrb[0].mxu0
      %v1140 = vadd.f32 %v848, %v1139
      %v1141 = vpop.f32.mrb[0].mxu0
      %1142 = vmatprep.mubr.bf16.mxu0 0
      %1143 = vmatmul.mubr.bf16.gmra.mrb[0].mxu0 %v995
      %v1144 = vpop.f32.mrb[0].mxu0
      %v1145 = vadd.f32 %v853, %v1144
      %v1146 = vpop.f32.mrb[0].mxu0
      %v1147 = vpop.f32.mrb[0].mxu0
      %v1148 = vadd.f32 %v856, %v1147
      %v1149 = vpop.f32.mrb[0].mxu0
      %1150 = vmatprep.mubr.bf16.mxu0 0
      %1151 = vmatmul.mubr.bf16.gmra.mrb[0].mxu0 %v998
      %v1152 = vpop.f32.mrb[0].mxu0
      %v1153 = vadd.f32 %v861, %v1152
      %v1154 = vpop.f32.mrb[0].mxu0
      %v1155 = vpop.f32.mrb[0].mxu0
      %v1156 = vadd.f32 %v864, %v1155
      %v1157 = vpop.f32.mrb[0].mxu0
      %1158 = vmatprep.mubr.bf16.mxu0 0
      %1159 = vmatmul.mubr.bf16.gmra.mrb[0].mxu0 %v1001
      %v1160 = vpop.f32.mrb[0].mxu0
      %v1161 = vadd.f32 %v869, %v1160
      %v1162 = vpop.f32.mrb[0].mxu0
      %v1163 = vpop.f32.mrb[0].mxu0
      %v1164 = vadd.f32 %v872, %v1163
      %v1165 = vpop.f32.mrb[0].mxu0
      %1166 = vdwg.mxu0
      %v1167 = vld [vmem:[%s165] sm:$0xe]
      %v1168 = vld [vmem:[%s165 + $0xc] sm:$0xe]
      %v1169 = vld [vmem:[%s165 + $0x18] sm:$0xe]
      %v1170 = vld [vmem:[%s165 + $0x24] sm:$0xe]
      %v1171 = vld [vmem:[%s165 + $0x30] sm:$0xe]
      %v1172 = vld [vmem:[%s165 + $0x3c] sm:$0xe]
      %v1173 = vld [vmem:[%s165 + $0x48] sm:$0xe]
      %v1174 = vld [vmem:[%s165 + $0x54] sm:$0xe]
      %v1175 = vld [vmem:[%s165 + $0x60] sm:$0xe]
      %v1176 = vld [vmem:[%s165 + $0x6c] sm:$0xe]
      %v1177 = vld [vmem:[%s165 + $0x78] sm:$0xe]
      %v1178 = vld [vmem:[%s165 + $0x84] sm:$0xe]
      %v1179 = vld [vmem:[%s165 + $0x90] sm:$0xe]
      %v1180 = vld [vmem:[%s165 + $0x9c] sm:$0xe]
      %v1181 = vld [vmem:[%s165 + $0xa8] sm:$0xe]
      %v1182 = vld [vmem:[%s165 + $0xb4] sm:$0xe]
      %vm1215 = vcmask 1042432
      %vm1216 = vcmask 1046532
      %vm1217 = vmor %vm1215, %vm1216
      %v1218 = vrot.slane %v1167, 5
      %v1219 = vrot.slane %v1218, 4
      %v1220 = vrot.slane %v173, 5
      %v1221 = vsel %vm1217, %v1219, %v1220
      %v1222 = vrot.slane %v1220, 4
      %v1223 = vrot.slane %v205, 5
      %v1224 = vsel %vm1217, %v1222, %v1223
      %v1225 = vrot.slane %v1168, 5
      %v1226 = vrot.slane %v1225, 4
      %v1227 = vrot.slane %v175, 5
      %v1228 = vsel %vm1217, %v1226, %v1227
      %v1229 = vrot.slane %v1227, 4
      %v1230 = vrot.slane %v206, 5
      %v1231 = vsel %vm1217, %v1229, %v1230
      %v1232 = vrot.slane %v1169, 5
      %v1233 = vrot.slane %v1232, 4
      %v1234 = vrot.slane %v177, 5
      %v1235 = vsel %vm1217, %v1233, %v1234
      %v1236 = vrot.slane %v1234, 4
      %v1237 = vrot.slane %v207, 5
      %v1238 = vsel %vm1217, %v1236, %v1237
      %v1239 = vrot.slane %v1170, 5
      %v1240 = vrot.slane %v1239, 4
      %v1241 = vrot.slane %v179, 5
      %v1242 = vsel %vm1217, %v1240, %v1241
      %v1243 = vrot.slane %v1241, 4
      %v1244 = vrot.slane %v208, 5
      %v1245 = vsel %vm1217, %v1243, %v1244
      %v1246 = vrot.slane %v1171, 5
      %v1247 = vrot.slane %v1246, 4
      %v1248 = vrot.slane %v181, 5
      %v1249 = vsel %vm1217, %v1247, %v1248
      %v1250 = vrot.slane %v1248, 4
      %v1251 = vrot.slane %v209, 5
      %v1252 = vsel %vm1217, %v1250, %v1251
      %v1253 = vrot.slane %v1172, 5
      %v1254 = vrot.slane %v1253, 4
      %v1255 = vrot.slane %v183, 5
      %v1256 = vsel %vm1217, %v1254, %v1255
      %v1257 = vrot.slane %v1255, 4
      %v1258 = vrot.slane %v210, 5
      %v1259 = vsel %vm1217, %v1257, %v1258
      %v1260 = vrot.slane %v1173, 5
      %v1261 = vrot.slane %v1260, 4
      %v1262 = vrot.slane %v185, 5
      %v1263 = vsel %vm1217, %v1261, %v1262
      %v1264 = vrot.slane %v1262, 4
      %v1265 = vrot.slane %v211, 5
      %v1266 = vsel %vm1217, %v1264, %v1265
      %v1267 = vrot.slane %v1174, 5
      %v1268 = vrot.slane %v1267, 4
      %v1269 = vrot.slane %v187, 5
      %v1270 = vsel %vm1217, %v1268, %v1269
      %v1271 = vrot.slane %v1269, 4
      %v1272 = vrot.slane %v212, 5
      %v1273 = vsel %vm1217, %v1271, %v1272
      %v1274 = vrot.slane %v1175, 5
      %v1275 = vrot.slane %v1274, 4
      %v1276 = vrot.slane %v189, 5
      %v1277 = vsel %vm1217, %v1275, %v1276
      %v1278 = vrot.slane %v1276, 4
      %v1279 = vrot.slane %v213, 5
      %v1280 = vsel %vm1217, %v1278, %v1279
      %v1281 = vrot.slane %v1176, 5
      %v1282 = vrot.slane %v1281, 4
      %v1283 = vrot.slane %v191, 5
      %v1284 = vsel %vm1217, %v1282, %v1283
      %v1285 = vrot.slane %v1283, 4
      %v1286 = vrot.slane %v214, 5
      %v1287 = vsel %vm1217, %v1285, %v1286
      %v1288 = vrot.slane %v1177, 5
      %v1289 = vrot.slane %v1288, 4
      %v1290 = vrot.slane %v193, 5
      %v1291 = vsel %vm1217, %v1289, %v1290
      %v1292 = vrot.slane %v1290, 4
      %v1293 = vrot.slane %v215, 5
      %v1294 = vsel %vm1217, %v1292, %v1293
      %v1295 = vrot.slane %v1178, 5
      %v1296 = vrot.slane %v1295, 4
      %v1297 = vrot.slane %v195, 5
      %v1298 = vsel %vm1217, %v1296, %v1297
      %v1299 = vrot.slane %v1297, 4
      %v1300 = vrot.slane %v216, 5
      %v1301 = vsel %vm1217, %v1299, %v1300
      %v1302 = vrot.slane %v1179, 5
      %v1303 = vrot.slane %v1302, 4
      %v1304 = vrot.slane %v197, 5
      %v1305 = vsel %vm1217, %v1303, %v1304
      %v1306 = vrot.slane %v1304, 4
      %v1307 = vrot.slane %v217, 5
      %v1308 = vsel %vm1217, %v1306, %v1307
      %v1309 = vrot.slane %v1180, 5
      %v1310 = vrot.slane %v1309, 4
      %v1311 = vrot.slane %v199, 5
      %v1312 = vsel %vm1217, %v1310, %v1311
      %v1313 = vrot.slane %v1311, 4
      %v1314 = vrot.slane %v218, 5
      %v1315 = vsel %vm1217, %v1313, %v1314
      %v1316 = vrot.slane %v1181, 5
      %v1317 = vrot.slane %v1316, 4
      %v1318 = vrot.slane %v201, 5
      %v1319 = vsel %vm1217, %v1317, %v1318
      %v1320 = vrot.slane %v1318, 4
      %v1321 = vrot.slane %v219, 5
      %v1322 = vsel %vm1217, %v1320, %v1321
      %v1323 = vrot.slane %v1182, 5
      %v1324 = vrot.slane %v1323, 4
      %v1325 = vrot.slane %v203, 5
      %v1326 = vsel %vm1217, %v1324, %v1325
      %v1327 = vrot.slane %v1325, 4
      %v1328 = vrot.slane %v220, 5
      %v1329 = vsel %vm1217, %v1327, %v1328
      %s1330 = scalar_lea.vmem %s1, 4
      %v1331 = vld [vmem:[%s1330] sm:$0x3]
      %v1332 = vunpack.c.l.b16 %v1221
      %v1333 = vunpack.c.l.b16 %v1224
      %v1334 = vunpack.c.l.b16 %v1228
      %v1335 = vunpack.c.l.b16 %v1231
      %v1336 = vunpack.c.l.b16 %v1235
      %v1337 = vunpack.c.l.b16 %v1238
      %v1338 = vunpack.c.l.b16 %v1242
      %v1339 = vunpack.c.l.b16 %v1245
      %v1340 = vunpack.c.l.b16 %v1249
      %v1341 = vunpack.c.l.b16 %v1252
      %v1342 = vunpack.c.l.b16 %v1256
      %v1343 = vunpack.c.l.b16 %v1259
      %v1344 = vunpack.c.l.b16 %v1263
      %v1345 = vunpack.c.l.b16 %v1266
      %v1346 = vunpack.c.l.b16 %v1270
      %v1347 = vunpack.c.l.b16 %v1273
      %v1348 = vunpack.c.l.b16 %v1277
      %v1349 = vunpack.c.l.b16 %v1280
      %v1350 = vunpack.c.l.b16 %v1284
      %v1351 = vunpack.c.l.b16 %v1287
      %v1352 = vunpack.c.l.b16 %v1291
      %v1353 = vunpack.c.l.b16 %v1294
      %v1354 = vunpack.c.l.b16 %v1298
      %v1355 = vunpack.c.l.b16 %v1301
      %v1356 = vunpack.c.l.b16 %v1305
      %v1357 = vunpack.c.l.b16 %v1308
      %v1358 = vunpack.c.l.b16 %v1312
      %v1359 = vunpack.c.l.b16 %v1315
      %v1360 = vunpack.c.l.b16 %v1319
      %v1361 = vunpack.c.l.b16 %v1322
      %v1362 = vunpack.c.l.b16 %v1326
      %v1363 = vunpack.c.l.b16 %v1329
      %v1364 = vpack.c.b16 %v1333, %v1332
      %v1365 = vpack.c.b16 %v1335, %v1334
      %v1366 = vpack.c.b16 %v1337, %v1336
      %v1367 = vpack.c.b16 %v1339, %v1338
      %v1368 = vpack.c.b16 %v1341, %v1340
      %v1369 = vpack.c.b16 %v1343, %v1342
      %v1370 = vpack.c.b16 %v1345, %v1344
      %v1371 = vpack.c.b16 %v1347, %v1346
      %v1372 = vpack.c.b16 %v1349, %v1348
      %v1373 = vpack.c.b16 %v1351, %v1350
      %v1374 = vpack.c.b16 %v1353, %v1352
      %v1375 = vpack.c.b16 %v1355, %v1354
      %v1376 = vpack.c.b16 %v1357, %v1356
      %v1377 = vpack.c.b16 %v1359, %v1358
      %v1378 = vpack.c.b16 %v1361, %v1360
      %v1379 = vpack.c.b16 %v1363, %v1362
      %v1381 = vsel %vm658, %v1364, 0
      %v1384 = vsel %vm658, %v1365, 0
      %v1387 = vsel %vm658, %v1366, 0
      %v1390 = vsel %vm658, %v1367, 0
      %v1393 = vsel %vm658, %v1368, 0
      %v1396 = vsel %vm658, %v1369, 0
      %v1399 = vsel %vm658, %v1370, 0
      %v1402 = vsel %vm658, %v1371, 0
      %v1405 = vsel %vm658, %v1372, 0
      %v1408 = vsel %vm658, %v1373, 0
      %v1411 = vsel %vm658, %v1374, 0
      %v1414 = vsel %vm658, %v1375, 0
      %v1417 = vsel %vm658, %v1376, 0
      %v1420 = vsel %vm658, %v1377, 0
      %v1423 = vsel %vm658, %v1378, 0
      %v1426 = vsel %vm658, %v1379, 0
      %v1429 = vand.u32 %v1331, %v710
      %1431 = vmatprep.subr.bf16.mxu0 0
      %1432 = vmatpush1.bf16.msra.mxu0 %v1429
      %1433 = vmatprep.subr.bf16.mxu0 0
      %1434 = vmatpush1.bf16.msra.mxu0 0
      %1435 = vmatprep.subr.bf16.mxu0 0
      %1436 = vmatpush1.bf16.msra.mxu0 0
      %1437 = vmatprep.subr.bf16.mxu0 0
      %1438 = vmatpush1.bf16.msra.mxu0 0
      %1439 = vmatprep.subr.bf16.mxu0 0
      %1440 = vmatpush1.bf16.msra.mxu0 0
      %1441 = vmatprep.subr.bf16.mxu0 0
      %1442 = vmatpush1.bf16.msra.mxu0 0
      %1443 = vmatprep.subr.bf16.mxu0 0
      %1444 = vmatpush1.bf16.msra.mxu0 0
      %1445 = vmatprep.subr.bf16.mxu0 0
      %1446 = vmatpush1.bf16.msra.mxu0 0
      %1447 = vmatprep.subr.bf16.mxu0 0
      %1448 = vmatpush1.bf16.msra.mxu0 0
      %1449 = vmatprep.subr.bf16.mxu0 0
      %1450 = vmatpush1.bf16.msra.mxu0 0
      %1451 = vmatprep.subr.bf16.mxu0 0
      %1452 = vmatpush1.bf16.msra.mxu0 0
      %1453 = vmatprep.subr.bf16.mxu0 0
      %1454 = vmatpush1.bf16.msra.mxu0 0
      %1455 = vmatprep.subr.bf16.mxu0 0
      %1456 = vmatpush1.bf16.msra.mxu0 0
      %1457 = vmatprep.subr.bf16.mxu0 0
      %1458 = vmatpush1.bf16.msra.mxu0 0
      %1459 = vmatprep.subr.bf16.mxu0 0
      %1460 = vmatpush1.bf16.msra.mxu0 0
      %1461 = vmatprep.subr.bf16.mxu0 0
      %1462 = vmatpush1.bf16.msra.mxu0 0
      %1463 = vmatprep.mubr.bf16.mxu0 0
      %1464 = vmatmul.mubr.bf16.gmra.mrb[0].mxu0 %v1381
      %v1465 = vpop.f32.mrb[0].mxu0
      %v1466 = vadd.f32 0.0, %v1465
      %v1467 = vpop.f32.mrb[0].mxu0
      %v1468 = vpop.f32.mrb[0].mxu0
      %v1469 = vadd.f32 0.0, %v1468
      %v1470 = vpop.f32.mrb[0].mxu0
      %1471 = vmatprep.mubr.bf16.mxu0 0
      %1472 = vmatmul.mubr.bf16.gmra.mrb[0].mxu0 %v1384
      %v1473 = vpop.f32.mrb[0].mxu0
      %v1474 = vadd.f32 0.0, %v1473
      %v1475 = vpop.f32.mrb[0].mxu0
      %v1476 = vpop.f32.mrb[0].mxu0
      %v1477 = vadd.f32 0.0, %v1476
      %v1478 = vpop.f32.mrb[0].mxu0
      %1479 = vmatprep.mubr.bf16.mxu0 0
      %1480 = vmatmul.mubr.bf16.gmra.mrb[0].mxu0 %v1387
      %v1481 = vpop.f32.mrb[0].mxu0
      %v1482 = vadd.f32 0.0, %v1481
      %v1483 = vpop.f32.mrb[0].mxu0
      %v1484 = vpop.f32.mrb[0].mxu0
      %v1485 = vadd.f32 0.0, %v1484
      %v1486 = vpop.f32.mrb[0].mxu0
      %1487 = vmatprep.mubr.bf16.mxu0 0
      %1488 = vmatmul.mubr.bf16.gmra.mrb[0].mxu0 %v1390
      %v1489 = vpop.f32.mrb[0].mxu0
      %v1490 = vadd.f32 0.0, %v1489
      %v1491 = vpop.f32.mrb[0].mxu0
      %v1492 = vpop.f32.mrb[0].mxu0
      %v1493 = vadd.f32 0.0, %v1492
      %v1494 = vpop.f32.mrb[0].mxu0
      %1495 = vmatprep.mubr.bf16.mxu0 0
      %1496 = vmatmul.mubr.bf16.gmra.mrb[0].mxu0 %v1393
      %v1497 = vpop.f32.mrb[0].mxu0
      %v1498 = vadd.f32 0.0, %v1497
      %v1499 = vpop.f32.mrb[0].mxu0
      %v1500 = vpop.f32.mrb[0].mxu0
      %v1501 = vadd.f32 0.0, %v1500
      %v1502 = vpop.f32.mrb[0].mxu0
      %1503 = vmatprep.mubr.bf16.mxu0 0
      %1504 = vmatmul.mubr.bf16.gmra.mrb[0].mxu0 %v1396
      %v1505 = vpop.f32.mrb[0].mxu0
      %v1506 = vadd.f32 0.0, %v1505
      %v1507 = vpop.f32.mrb[0].mxu0
      %v1508 = vpop.f32.mrb[0].mxu0
      %v1509 = vadd.f32 0.0, %v1508
      %v1510 = vpop.f32.mrb[0].mxu0
      %1511 = vmatprep.mubr.bf16.mxu0 0
      %1512 = vmatmul.mubr.bf16.gmra.mrb[0].mxu0 %v1399
      %v1513 = vpop.f32.mrb[0].mxu0
      %v1514 = vadd.f32 0.0, %v1513
      %v1515 = vpop.f32.mrb[0].mxu0
      %v1516 = vpop.f32.mrb[0].mxu0
      %v1517 = vadd.f32 0.0, %v1516
      %v1518 = vpop.f32.mrb[0].mxu0
      %1519 = vmatprep.mubr.bf16.mxu0 0
      %1520 = vmatmul.mubr.bf16.gmra.mrb[0].mxu0 %v1402
      %v1521 = vpop.f32.mrb[0].mxu0
      %v1522 = vadd.f32 0.0, %v1521
      %v1523 = vpop.f32.mrb[0].mxu0
      %v1524 = vpop.f32.mrb[0].mxu0
      %v1525 = vadd.f32 0.0, %v1524
      %v1526 = vpop.f32.mrb[0].mxu0
      %1527 = vmatprep.mubr.bf16.mxu0 0
      %1528 = vmatmul.mubr.bf16.gmra.mrb[0].mxu0 %v1405
      %v1529 = vpop.f32.mrb[0].mxu0
      %v1530 = vadd.f32 0.0, %v1529
      %v1531 = vpop.f32.mrb[0].mxu0
      %v1532 = vpop.f32.mrb[0].mxu0
      %v1533 = vadd.f32 0.0, %v1532
      %v1534 = vpop.f32.mrb[0].mxu0
      %1535 = vmatprep.mubr.bf16.mxu0 0
      %1536 = vmatmul.mubr.bf16.gmra.mrb[0].mxu0 %v1408
      %v1537 = vpop.f32.mrb[0].mxu0
      %v1538 = vadd.f32 0.0, %v1537
      %v1539 = vpop.f32.mrb[0].mxu0
      %v1540 = vpop.f32.mrb[0].mxu0
      %v1541 = vadd.f32 0.0, %v1540
      %v1542 = vpop.f32.mrb[0].mxu0
      %1543 = vmatprep.mubr.bf16.mxu0 0
      %1544 = vmatmul.mubr.bf16.gmra.mrb[0].mxu0 %v1411
      %v1545 = vpop.f32.mrb[0].mxu0
      %v1546 = vadd.f32 0.0, %v1545
      %v1547 = vpop.f32.mrb[0].mxu0
      %v1548 = vpop.f32.mrb[0].mxu0
      %v1549 = vadd.f32 0.0, %v1548
      %v1550 = vpop.f32.mrb[0].mxu0
      %1551 = vmatprep.mubr.bf16.mxu0 0
      %1552 = vmatmul.mubr.bf16.gmra.mrb[0].mxu0 %v1414
      %v1553 = vpop.f32.mrb[0].mxu0
      %v1554 = vadd.f32 0.0, %v1553
      %v1555 = vpop.f32.mrb[0].mxu0
      %v1556 = vpop.f32.mrb[0].mxu0
      %v1557 = vadd.f32 0.0, %v1556
      %v1558 = vpop.f32.mrb[0].mxu0
      %1559 = vmatprep.mubr.bf16.mxu0 0
      %1560 = vmatmul.mubr.bf16.gmra.mrb[0].mxu0 %v1417
      %v1561 = vpop.f32.mrb[0].mxu0
      %v1562 = vadd.f32 0.0, %v1561
      %v1563 = vpop.f32.mrb[0].mxu0
      %v1564 = vpop.f32.mrb[0].mxu0
      %v1565 = vadd.f32 0.0, %v1564
      %v1566 = vpop.f32.mrb[0].mxu0
      %1567 = vmatprep.mubr.bf16.mxu0 0
      %1568 = vmatmul.mubr.bf16.gmra.mrb[0].mxu0 %v1420
      %v1569 = vpop.f32.mrb[0].mxu0
      %v1570 = vadd.f32 0.0, %v1569
      %v1571 = vpop.f32.mrb[0].mxu0
      %v1572 = vpop.f32.mrb[0].mxu0
      %v1573 = vadd.f32 0.0, %v1572
      %v1574 = vpop.f32.mrb[0].mxu0
      %1575 = vmatprep.mubr.bf16.mxu0 0
      %1576 = vmatmul.mubr.bf16.gmra.mrb[0].mxu0 %v1423
      %v1577 = vpop.f32.mrb[0].mxu0
      %v1578 = vadd.f32 0.0, %v1577
      %v1579 = vpop.f32.mrb[0].mxu0
      %v1580 = vpop.f32.mrb[0].mxu0
      %v1581 = vadd.f32 0.0, %v1580
      %v1582 = vpop.f32.mrb[0].mxu0
      %1583 = vmatprep.mubr.bf16.mxu0 0
      %1584 = vmatmul.mubr.bf16.gmra.mrb[0].mxu0 %v1426
      %v1585 = vpop.f32.mrb[0].mxu0
      %v1586 = vadd.f32 0.0, %v1585
      %v1587 = vpop.f32.mrb[0].mxu0
      %v1588 = vpop.f32.mrb[0].mxu0
      %v1589 = vadd.f32 0.0, %v1588
      %v1590 = vpop.f32.mrb[0].mxu0
      %1591 = vdwg.mxu0
      %v1592 = vadd.f32 %v1041, %v1466
      %v1593 = vadd.f32 %v1044, %v1469
      %v1594 = vadd.f32 %v1049, %v1474
      %v1595 = vadd.f32 %v1052, %v1477
      %v1596 = vadd.f32 %v1057, %v1482
      %v1597 = vadd.f32 %v1060, %v1485
      %v1598 = vadd.f32 %v1065, %v1490
      %v1599 = vadd.f32 %v1068, %v1493
      %v1600 = vadd.f32 %v1073, %v1498
      %v1601 = vadd.f32 %v1076, %v1501
      %v1602 = vadd.f32 %v1081, %v1506
      %v1603 = vadd.f32 %v1084, %v1509
      %v1604 = vadd.f32 %v1089, %v1514
      %v1605 = vadd.f32 %v1092, %v1517
      %v1606 = vadd.f32 %v1097, %v1522
      %v1607 = vadd.f32 %v1100, %v1525
      %v1608 = vadd.f32 %v1105, %v1530
      %v1609 = vadd.f32 %v1108, %v1533
      %v1610 = vadd.f32 %v1113, %v1538
      %v1611 = vadd.f32 %v1116, %v1541
      %v1612 = vadd.f32 %v1121, %v1546
      %v1613 = vadd.f32 %v1124, %v1549
      %v1614 = vadd.f32 %v1129, %v1554
      %v1615 = vadd.f32 %v1132, %v1557
      %v1616 = vadd.f32 %v1137, %v1562
      %v1617 = vadd.f32 %v1140, %v1565
      %v1618 = vadd.f32 %v1145, %v1570
      %v1619 = vadd.f32 %v1148, %v1573
      %v1620 = vadd.f32 %v1153, %v1578
      %v1621 = vadd.f32 %v1156, %v1581
      %v1622 = vadd.f32 %v1161, %v1586
      %v1623 = vadd.f32 %v1164, %v1589
      %s1624 = scalar_lea.vmem %s165, 12
      %v1625 = vld [vmem:[%s1624] sm:$0xf]
      %v1626 = vld [vmem:[%s1624 + $0x4] sm:$0xf]
      %v1627 = vld [vmem:[%s1624 + $0xc] sm:$0xf]
      %v1628 = vld [vmem:[%s1624 + $0x10] sm:$0xf]
      %v1629 = vld [vmem:[%s1624 + $0x18] sm:$0xf]
      %v1630 = vld [vmem:[%s1624 + $0x1c] sm:$0xf]
      %v1631 = vld [vmem:[%s1624 + $0x24] sm:$0xf]
      %v1632 = vld [vmem:[%s1624 + $0x28] sm:$0xf]
      %v1633 = vld [vmem:[%s1624 + $0x30] sm:$0xf]
      %v1634 = vld [vmem:[%s1624 + $0x34] sm:$0xf]
      %v1635 = vld [vmem:[%s1624 + $0x3c] sm:$0xf]
      %v1636 = vld [vmem:[%s1624 + $0x40] sm:$0xf]
      %v1637 = vld [vmem:[%s1624 + $0x48] sm:$0xf]
      %v1638 = vld [vmem:[%s1624 + $0x4c] sm:$0xf]
      %v1639 = vld [vmem:[%s1624 + $0x54] sm:$0xf]
      %v1640 = vld [vmem:[%s1624 + $0x58] sm:$0xf]
      %v1641 = vld [vmem:[%s1624 + $0x60] sm:$0xf]
      %v1642 = vld [vmem:[%s1624 + $0x64] sm:$0xf]
      %v1643 = vld [vmem:[%s1624 + $0x6c] sm:$0xf]
      %v1644 = vld [vmem:[%s1624 + $0x70] sm:$0xf]
      %v1645 = vld [vmem:[%s1624 + $0x78] sm:$0xf]
      %v1646 = vld [vmem:[%s1624 + $0x7c] sm:$0xf]
      %v1647 = vld [vmem:[%s1624 + $0x84] sm:$0xf]
      %v1648 = vld [vmem:[%s1624 + $0x88] sm:$0xf]
      %v1649 = vld [vmem:[%s1624 + $0x90] sm:$0xf]
      %v1650 = vld [vmem:[%s1624 + $0x94] sm:$0xf]
      %v1651 = vld [vmem:[%s1624 + $0x9c] sm:$0xf]
      %v1652 = vld [vmem:[%s1624 + $0xa0] sm:$0xf]
      %v1653 = vld [vmem:[%s1624 + $0xa8] sm:$0xf]
      %v1654 = vld [vmem:[%s1624 + $0xac] sm:$0xf]
      %v1655 = vld [vmem:[%s1624 + $0xb4] sm:$0xf]
      %v1656 = vld [vmem:[%s1624 + $0xb8] sm:$0xf]
      %s1657 = scalar_lea.vmem %s1, 6
      %v1658 = vld [vmem:[%s1657] sm:$0x3]
      %v1691 = vunpack.c.l.b16 %v1625
      %v1692 = vunpack.c.l.b16 %v1626
      %v1693 = vunpack.c.l.b16 %v1627
      %v1694 = vunpack.c.l.b16 %v1628
      %v1695 = vunpack.c.l.b16 %v1629
      %v1696 = vunpack.c.l.b16 %v1630
      %v1697 = vunpack.c.l.b16 %v1631
      %v1698 = vunpack.c.l.b16 %v1632
      %v1699 = vunpack.c.l.b16 %v1633
      %v1700 = vunpack.c.l.b16 %v1634
      %v1701 = vunpack.c.l.b16 %v1635
      %v1702 = vunpack.c.l.b16 %v1636
      %v1703 = vunpack.c.l.b16 %v1637
      %v1704 = vunpack.c.l.b16 %v1638
      %v1705 = vunpack.c.l.b16 %v1639
      %v1706 = vunpack.c.l.b16 %v1640
      %v1707 = vunpack.c.l.b16 %v1641
      %v1708 = vunpack.c.l.b16 %v1642
      %v1709 = vunpack.c.l.b16 %v1643
      %v1710 = vunpack.c.l.b16 %v1644
      %v1711 = vunpack.c.l.b16 %v1645
      %v1712 = vunpack.c.l.b16 %v1646
      %v1713 = vunpack.c.l.b16 %v1647
      %v1714 = vunpack.c.l.b16 %v1648
      %v1715 = vunpack.c.l.b16 %v1649
      %v1716 = vunpack.c.l.b16 %v1650
      %v1717 = vunpack.c.l.b16 %v1651
      %v1718 = vunpack.c.l.b16 %v1652
      %v1719 = vunpack.c.l.b16 %v1653
      %v1720 = vunpack.c.l.b16 %v1654
      %v1721 = vunpack.c.l.b16 %v1655
      %v1722 = vunpack.c.l.b16 %v1656
      %v1723 = vpack.c.b16 %v1692, %v1691
      %v1724 = vpack.c.b16 %v1694, %v1693
      %v1725 = vpack.c.b16 %v1696, %v1695
      %v1726 = vpack.c.b16 %v1698, %v1697
      %v1727 = vpack.c.b16 %v1700, %v1699
      %v1728 = vpack.c.b16 %v1702, %v1701
      %v1729 = vpack.c.b16 %v1704, %v1703
      %v1730 = vpack.c.b16 %v1706, %v1705
      %v1731 = vpack.c.b16 %v1708, %v1707
      %v1732 = vpack.c.b16 %v1710, %v1709
      %v1733 = vpack.c.b16 %v1712, %v1711
      %v1734 = vpack.c.b16 %v1714, %v1713
      %v1735 = vpack.c.b16 %v1716, %v1715
      %v1736 = vpack.c.b16 %v1718, %v1717
      %v1737 = vpack.c.b16 %v1720, %v1719
      %v1738 = vpack.c.b16 %v1722, %v1721
      %v1740 = vsel %vm658, %v1723, 0
      %v1743 = vsel %vm658, %v1724, 0
      %v1746 = vsel %vm658, %v1725, 0
      %v1749 = vsel %vm658, %v1726, 0
      %v1752 = vsel %vm658, %v1727, 0
      %v1755 = vsel %vm658, %v1728, 0
      %v1758 = vsel %vm658, %v1729, 0
      %v1761 = vsel %vm658, %v1730, 0
      %v1764 = vsel %vm658, %v1731, 0
      %v1767 = vsel %vm658, %v1732, 0
      %v1770 = vsel %vm658, %v1733, 0
      %v1773 = vsel %vm658, %v1734, 0
      %v1776 = vsel %vm658, %v1735, 0
      %v1779 = vsel %vm658, %v1736, 0
      %v1782 = vsel %vm658, %v1737, 0
      %v1785 = vsel %vm658, %v1738, 0
      %v1788 = vand.u32 %v1658, %v710
      %1790 = vmatprep.subr.bf16.mxu0 0
      %1791 = vmatpush1.bf16.msra.mxu0 %v1788
      %1792 = vmatprep.subr.bf16.mxu0 0
      %1793 = vmatpush1.bf16.msra.mxu0 0
      %1794 = vmatprep.subr.bf16.mxu0 0
      %1795 = vmatpush1.bf16.msra.mxu0 0
      %1796 = vmatprep.subr.bf16.mxu0 0
      %1797 = vmatpush1.bf16.msra.mxu0 0
      %1798 = vmatprep.subr.bf16.mxu0 0
      %1799 = vmatpush1.bf16.msra.mxu0 0
      %1800 = vmatprep.subr.bf16.mxu0 0
      %1801 = vmatpush1.bf16.msra.mxu0 0
      %1802 = vmatprep.subr.bf16.mxu0 0
      %1803 = vmatpush1.bf16.msra.mxu0 0
      %1804 = vmatprep.subr.bf16.mxu0 0
      %1805 = vmatpush1.bf16.msra.mxu0 0
      %1806 = vmatprep.subr.bf16.mxu0 0
      %1807 = vmatpush1.bf16.msra.mxu0 0
      %1808 = vmatprep.subr.bf16.mxu0 0
      %1809 = vmatpush1.bf16.msra.mxu0 0
      %1810 = vmatprep.subr.bf16.mxu0 0
      %1811 = vmatpush1.bf16.msra.mxu0 0
      %1812 = vmatprep.subr.bf16.mxu0 0
      %1813 = vmatpush1.bf16.msra.mxu0 0
      %1814 = vmatprep.subr.bf16.mxu0 0
      %1815 = vmatpush1.bf16.msra.mxu0 0
      %1816 = vmatprep.subr.bf16.mxu0 0
      %1817 = vmatpush1.bf16.msra.mxu0 0
      %1818 = vmatprep.subr.bf16.mxu0 0
      %1819 = vmatpush1.bf16.msra.mxu0 0
      %1820 = vmatprep.subr.bf16.mxu0 0
      %1821 = vmatpush1.bf16.msra.mxu0 0
      %1822 = vmatprep.mubr.bf16.mxu0 0
      %1823 = vmatmul.mubr.bf16.gmra.mrb[0].mxu0 %v1740
      %v1824 = vpop.f32.mrb[0].mxu0
      %v1825 = vadd.f32 0.0, %v1824
      %v1826 = vpop.f32.mrb[0].mxu0
      %v1827 = vpop.f32.mrb[0].mxu0
      %v1828 = vadd.f32 0.0, %v1827
      %v1829 = vpop.f32.mrb[0].mxu0
      %1830 = vmatprep.mubr.bf16.mxu0 0
      %1831 = vmatmul.mubr.bf16.gmra.mrb[0].mxu0 %v1743
      %v1832 = vpop.f32.mrb[0].mxu0
      %v1833 = vadd.f32 0.0, %v1832
      %v1834 = vpop.f32.mrb[0].mxu0
      %v1835 = vpop.f32.mrb[0].mxu0
      %v1836 = vadd.f32 0.0, %v1835
      %v1837 = vpop.f32.mrb[0].mxu0
      %1838 = vmatprep.mubr.bf16.mxu0 0
      %1839 = vmatmul.mubr.bf16.gmra.mrb[0].mxu0 %v1746
      %v1840 = vpop.f32.mrb[0].mxu0
      %v1841 = vadd.f32 0.0, %v1840
      %v1842 = vpop.f32.mrb[0].mxu0
      %v1843 = vpop.f32.mrb[0].mxu0
      %v1844 = vadd.f32 0.0, %v1843
      %v1845 = vpop.f32.mrb[0].mxu0
      %1846 = vmatprep.mubr.bf16.mxu0 0
      %1847 = vmatmul.mubr.bf16.gmra.mrb[0].mxu0 %v1749
      %v1848 = vpop.f32.mrb[0].mxu0
      %v1849 = vadd.f32 0.0, %v1848
      %v1850 = vpop.f32.mrb[0].mxu0
      %v1851 = vpop.f32.mrb[0].mxu0
      %v1852 = vadd.f32 0.0, %v1851
      %v1853 = vpop.f32.mrb[0].mxu0
      %1854 = vmatprep.mubr.bf16.mxu0 0
      %1855 = vmatmul.mubr.bf16.gmra.mrb[0].mxu0 %v1752
      %v1856 = vpop.f32.mrb[0].mxu0
      %v1857 = vadd.f32 0.0, %v1856
      %v1858 = vpop.f32.mrb[0].mxu0
      %v1859 = vpop.f32.mrb[0].mxu0
      %v1860 = vadd.f32 0.0, %v1859
      %v1861 = vpop.f32.mrb[0].mxu0
      %1862 = vmatprep.mubr.bf16.mxu0 0
      %1863 = vmatmul.mubr.bf16.gmra.mrb[0].mxu0 %v1755
      %v1864 = vpop.f32.mrb[0].mxu0
      %v1865 = vadd.f32 0.0, %v1864
      %v1866 = vpop.f32.mrb[0].mxu0
      %v1867 = vpop.f32.mrb[0].mxu0
      %v1868 = vadd.f32 0.0, %v1867
      %v1869 = vpop.f32.mrb[0].mxu0
      %1870 = vmatprep.mubr.bf16.mxu0 0
      %1871 = vmatmul.mubr.bf16.gmra.mrb[0].mxu0 %v1758
      %v1872 = vpop.f32.mrb[0].mxu0
      %v1873 = vadd.f32 0.0, %v1872
      %v1874 = vpop.f32.mrb[0].mxu0
      %v1875 = vpop.f32.mrb[0].mxu0
      %v1876 = vadd.f32 0.0, %v1875
      %v1877 = vpop.f32.mrb[0].mxu0
      %1878 = vmatprep.mubr.bf16.mxu0 0
      %1879 = vmatmul.mubr.bf16.gmra.mrb[0].mxu0 %v1761
      %v1880 = vpop.f32.mrb[0].mxu0
      %v1881 = vadd.f32 0.0, %v1880
      %v1882 = vpop.f32.mrb[0].mxu0
      %v1883 = vpop.f32.mrb[0].mxu0
      %v1884 = vadd.f32 0.0, %v1883
      %v1885 = vpop.f32.mrb[0].mxu0
      %1886 = vmatprep.mubr.bf16.mxu0 0
      %1887 = vmatmul.mubr.bf16.gmra.mrb[0].mxu0 %v1764
      %v1888 = vpop.f32.mrb[0].mxu0
      %v1889 = vadd.f32 0.0, %v1888
      %v1890 = vpop.f32.mrb[0].mxu0
      %v1891 = vpop.f32.mrb[0].mxu0
      %v1892 = vadd.f32 0.0, %v1891
      %v1893 = vpop.f32.mrb[0].mxu0
      %1894 = vmatprep.mubr.bf16.mxu0 0
      %1895 = vmatmul.mubr.bf16.gmra.mrb[0].mxu0 %v1767
      %v1896 = vpop.f32.mrb[0].mxu0
      %v1897 = vadd.f32 0.0, %v1896
      %v1898 = vpop.f32.mrb[0].mxu0
      %v1899 = vpop.f32.mrb[0].mxu0
      %v1900 = vadd.f32 0.0, %v1899
      %v1901 = vpop.f32.mrb[0].mxu0
      %1902 = vmatprep.mubr.bf16.mxu0 0
      %1903 = vmatmul.mubr.bf16.gmra.mrb[0].mxu0 %v1770
      %v1904 = vpop.f32.mrb[0].mxu0
      %v1905 = vadd.f32 0.0, %v1904
      %v1906 = vpop.f32.mrb[0].mxu0
      %v1907 = vpop.f32.mrb[0].mxu0
      %v1908 = vadd.f32 0.0, %v1907
      %v1909 = vpop.f32.mrb[0].mxu0
      %1910 = vmatprep.mubr.bf16.mxu0 0
      %1911 = vmatmul.mubr.bf16.gmra.mrb[0].mxu0 %v1773
      %v1912 = vpop.f32.mrb[0].mxu0
      %v1913 = vadd.f32 0.0, %v1912
      %v1914 = vpop.f32.mrb[0].mxu0
      %v1915 = vpop.f32.mrb[0].mxu0
      %v1916 = vadd.f32 0.0, %v1915
      %v1917 = vpop.f32.mrb[0].mxu0
      %1918 = vmatprep.mubr.bf16.mxu0 0
      %1919 = vmatmul.mubr.bf16.gmra.mrb[0].mxu0 %v1776
      %v1920 = vpop.f32.mrb[0].mxu0
      %v1921 = vadd.f32 0.0, %v1920
      %v1922 = vpop.f32.mrb[0].mxu0
      %v1923 = vpop.f32.mrb[0].mxu0
      %v1924 = vadd.f32 0.0, %v1923
      %v1925 = vpop.f32.mrb[0].mxu0
      %1926 = vmatprep.mubr.bf16.mxu0 0
      %1927 = vmatmul.mubr.bf16.gmra.mrb[0].mxu0 %v1779
      %v1928 = vpop.f32.mrb[0].mxu0
      %v1929 = vadd.f32 0.0, %v1928
      %v1930 = vpop.f32.mrb[0].mxu0
      %v1931 = vpop.f32.mrb[0].mxu0
      %v1932 = vadd.f32 0.0, %v1931
      %v1933 = vpop.f32.mrb[0].mxu0
      %1934 = vmatprep.mubr.bf16.mxu0 0
      %1935 = vmatmul.mubr.bf16.gmra.mrb[0].mxu0 %v1782
      %v1936 = vpop.f32.mrb[0].mxu0
      %v1937 = vadd.f32 0.0, %v1936
      %v1938 = vpop.f32.mrb[0].mxu0
      %v1939 = vpop.f32.mrb[0].mxu0
      %v1940 = vadd.f32 0.0, %v1939
      %v1941 = vpop.f32.mrb[0].mxu0
      %1942 = vmatprep.mubr.bf16.mxu0 0
      %1943 = vmatmul.mubr.bf16.gmra.mrb[0].mxu0 %v1785
      %v1944 = vpop.f32.mrb[0].mxu0
      %v1945 = vadd.f32 0.0, %v1944
      %v1946 = vpop.f32.mrb[0].mxu0
      %v1947 = vpop.f32.mrb[0].mxu0
      %v1948 = vadd.f32 0.0, %v1947
      %v1949 = vpop.f32.mrb[0].mxu0
      %1950 = vdwg.mxu0
      %v1951 = vadd.f32 %v1592, %v1825
      %v1952 = vadd.f32 %v1593, %v1828
      %v1953 = vadd.f32 %v1594, %v1833
      %v1954 = vadd.f32 %v1595, %v1836
      %v1955 = vadd.f32 %v1596, %v1841
      %v1956 = vadd.f32 %v1597, %v1844
      %v1957 = vadd.f32 %v1598, %v1849
      %v1958 = vadd.f32 %v1599, %v1852
      %v1959 = vadd.f32 %v1600, %v1857
      %v1960 = vadd.f32 %v1601, %v1860
      %v1961 = vadd.f32 %v1602, %v1865
      %v1962 = vadd.f32 %v1603, %v1868
      %v1963 = vadd.f32 %v1604, %v1873
      %v1964 = vadd.f32 %v1605, %v1876
      %v1965 = vadd.f32 %v1606, %v1881
      %v1966 = vadd.f32 %v1607, %v1884
      %v1967 = vadd.f32 %v1608, %v1889
      %v1968 = vadd.f32 %v1609, %v1892
      %v1969 = vadd.f32 %v1610, %v1897
      %v1970 = vadd.f32 %v1611, %v1900
      %v1971 = vadd.f32 %v1612, %v1905
      %v1972 = vadd.f32 %v1613, %v1908
      %v1973 = vadd.f32 %v1614, %v1913
      %v1974 = vadd.f32 %v1615, %v1916
      %v1975 = vadd.f32 %v1616, %v1921
      %v1976 = vadd.f32 %v1617, %v1924
      %v1977 = vadd.f32 %v1618, %v1929
      %v1978 = vadd.f32 %v1619, %v1932
      %v1979 = vadd.f32 %v1620, %v1937
      %v1980 = vadd.f32 %v1621, %v1940
      %v1981 = vadd.f32 %v1622, %v1945
      %v1982 = vadd.f32 %v1623, %v1948
      %v1983 = vld [vmem:[%s1624] sm:$0xf]
      %v1984 = vld [vmem:[%s1624 + $0x4] sm:$0xf]
      %v1985 = vld [vmem:[%s1624 + $0x8] sm:$0x1]
      %v1986 = vld [vmem:[%s1624 + $0xc] sm:$0xf]
      %v1987 = vld [vmem:[%s1624 + $0x10] sm:$0xf]
      %v1988 = vld [vmem:[%s1624 + $0x14] sm:$0x1]
      %v1989 = vld [vmem:[%s1624 + $0x18] sm:$0xf]
      %v1990 = vld [vmem:[%s1624 + $0x1c] sm:$0xf]
      %v1991 = vld [vmem:[%s1624 + $0x20] sm:$0x1]
      %v1992 = vld [vmem:[%s1624 + $0x24] sm:$0xf]
      %v1993 = vld [vmem:[%s1624 + $0x28] sm:$0xf]
      %v1994 = vld [vmem:[%s1624 + $0x2c] sm:$0x1]
      %v1995 = vld [vmem:[%s1624 + $0x30] sm:$0xf]
      %v1996 = vld [vmem:[%s1624 + $0x34] sm:$0xf]
      %v1997 = vld [vmem:[%s1624 + $0x38] sm:$0x1]
      %v1998 = vld [vmem:[%s1624 + $0x3c] sm:$0xf]
      %v1999 = vld [vmem:[%s1624 + $0x40] sm:$0xf]
      %v2000 = vld [vmem:[%s1624 + $0x44] sm:$0x1]
      %v2001 = vld [vmem:[%s1624 + $0x48] sm:$0xf]
      %v2002 = vld [vmem:[%s1624 + $0x4c] sm:$0xf]
      %v2003 = vld [vmem:[%s1624 + $0x50] sm:$0x1]
      %v2004 = vld [vmem:[%s1624 + $0x54] sm:$0xf]
      %v2005 = vld [vmem:[%s1624 + $0x58] sm:$0xf]
      %v2006 = vld [vmem:[%s1624 + $0x5c] sm:$0x1]
      %v2007 = vld [vmem:[%s1624 + $0x60] sm:$0xf]
      %v2008 = vld [vmem:[%s1624 + $0x64] sm:$0xf]
      %v2009 = vld [vmem:[%s1624 + $0x68] sm:$0x1]
      %v2010 = vld [vmem:[%s1624 + $0x6c] sm:$0xf]
      %v2011 = vld [vmem:[%s1624 + $0x70] sm:$0xf]
      %v2012 = vld [vmem:[%s1624 + $0x74] sm:$0x1]
      %v2013 = vld [vmem:[%s1624 + $0x78] sm:$0xf]
      %v2014 = vld [vmem:[%s1624 + $0x7c] sm:$0xf]
      %v2015 = vld [vmem:[%s1624 + $0x80] sm:$0x1]
      %v2016 = vld [vmem:[%s1624 + $0x84] sm:$0xf]
      %v2017 = vld [vmem:[%s1624 + $0x88] sm:$0xf]
      %v2018 = vld [vmem:[%s1624 + $0x8c] sm:$0x1]
      %v2019 = vld [vmem:[%s1624 + $0x90] sm:$0xf]
      %v2020 = vld [vmem:[%s1624 + $0x94] sm:$0xf]
      %v2021 = vld [vmem:[%s1624 + $0x98] sm:$0x1]
      %v2022 = vld [vmem:[%s1624 + $0x9c] sm:$0xf]
      %v2023 = vld [vmem:[%s1624 + $0xa0] sm:$0xf]
      %v2024 = vld [vmem:[%s1624 + $0xa4] sm:$0x1]
      %v2025 = vld [vmem:[%s1624 + $0xa8] sm:$0xf]
      %v2026 = vld [vmem:[%s1624 + $0xac] sm:$0xf]
      %v2027 = vld [vmem:[%s1624 + $0xb0] sm:$0x1]
      %v2028 = vld [vmem:[%s1624 + $0xb4] sm:$0xf]
      %v2029 = vld [vmem:[%s1624 + $0xb8] sm:$0xf]
      %v2030 = vld [vmem:[%s1624 + $0xbc] sm:$0x1]
      %v2032 = vshrl.u32 %v1983, 16
      %v2034 = vrot.slane %v2032, 4
      %v2035 = vshll.u32 %v1983, 16
      %v2037 = vrot.slane %v2035, 5
      %v2038 = vor.u32 %v2034, %v2037
      %v2039 = vrot.slane %v2038, 4
      %v2041 = vshll.u32 %v1984, 16
      %v2043 = vrot.slane %v2041, 5
      %v2044 = vsel %vm223, %v2039, %v2043
      %v2045 = vshrl.u32 %v1984, 16
      %v2047 = vrot.slane %v2045, 4
      %v2048 = vor.u32 %v2047, %v2043
      %v2049 = vrot.slane %v2048, 4
      %v2051 = vshll.u32 %v1985, 16
      %v2053 = vrot.slane %v2051, 5
      %v2054 = vsel %vm223, %v2049, %v2053
      %v2056 = vshrl.u32 %v1986, 16
      %v2058 = vrot.slane %v2056, 4
      %v2059 = vshll.u32 %v1986, 16
      %v2061 = vrot.slane %v2059, 5
      %v2062 = vor.u32 %v2058, %v2061
      %v2063 = vrot.slane %v2062, 4
      %v2065 = vshll.u32 %v1987, 16
      %v2067 = vrot.slane %v2065, 5
      %v2068 = vsel %vm223, %v2063, %v2067
      %v2069 = vshrl.u32 %v1987, 16
      %v2071 = vrot.slane %v2069, 4
      %v2072 = vor.u32 %v2071, %v2067
      %v2073 = vrot.slane %v2072, 4
      %v2075 = vshll.u32 %v1988, 16
      %v2077 = vrot.slane %v2075, 5
      %v2078 = vsel %vm223, %v2073, %v2077
      %v2080 = vshrl.u32 %v1989, 16
      %v2082 = vrot.slane %v2080, 4
      %v2083 = vshll.u32 %v1989, 16
      %v2085 = vrot.slane %v2083, 5
      %v2086 = vor.u32 %v2082, %v2085
      %v2087 = vrot.slane %v2086, 4
      %v2089 = vshll.u32 %v1990, 16
      %v2091 = vrot.slane %v2089, 5
      %v2092 = vsel %vm223, %v2087, %v2091
      %v2093 = vshrl.u32 %v1990, 16
      %v2095 = vrot.slane %v2093, 4
      %v2096 = vor.u32 %v2095, %v2091
      %v2097 = vrot.slane %v2096, 4
      %v2099 = vshll.u32 %v1991, 16
      %v2101 = vrot.slane %v2099, 5
      %v2102 = vsel %vm223, %v2097, %v2101
      %v2104 = vshrl.u32 %v1992, 16
      %v2106 = vrot.slane %v2104, 4
      %v2107 = vshll.u32 %v1992, 16
      %v2109 = vrot.slane %v2107, 5
      %v2110 = vor.u32 %v2106, %v2109
      %v2111 = vrot.slane %v2110, 4
      %v2113 = vshll.u32 %v1993, 16
      %v2115 = vrot.slane %v2113, 5
      %v2116 = vsel %vm223, %v2111, %v2115
      %v2117 = vshrl.u32 %v1993, 16
      %v2119 = vrot.slane %v2117, 4
      %v2120 = vor.u32 %v2119, %v2115
      %v2121 = vrot.slane %v2120, 4
      %v2123 = vshll.u32 %v1994, 16
      %v2125 = vrot.slane %v2123, 5
      %v2126 = vsel %vm223, %v2121, %v2125
      %v2128 = vshrl.u32 %v1995, 16
      %v2130 = vrot.slane %v2128, 4
      %v2131 = vshll.u32 %v1995, 16
      %v2133 = vrot.slane %v2131, 5
      %v2134 = vor.u32 %v2130, %v2133
      %v2135 = vrot.slane %v2134, 4
      %v2137 = vshll.u32 %v1996, 16
      %v2139 = vrot.slane %v2137, 5
      %v2140 = vsel %vm223, %v2135, %v2139
      %v2141 = vshrl.u32 %v1996, 16
      %v2143 = vrot.slane %v2141, 4
      %v2144 = vor.u32 %v2143, %v2139
      %v2145 = vrot.slane %v2144, 4
      %v2147 = vshll.u32 %v1997, 16
      %v2149 = vrot.slane %v2147, 5
      %v2150 = vsel %vm223, %v2145, %v2149
      %v2152 = vshrl.u32 %v1998, 16
      %v2154 = vrot.slane %v2152, 4
      %v2155 = vshll.u32 %v1998, 16
      %v2157 = vrot.slane %v2155, 5
      %v2158 = vor.u32 %v2154, %v2157
      %v2159 = vrot.slane %v2158, 4
      %v2161 = vshll.u32 %v1999, 16
      %v2163 = vrot.slane %v2161, 5
      %v2164 = vsel %vm223, %v2159, %v2163
      %v2165 = vshrl.u32 %v1999, 16
      %v2167 = vrot.slane %v2165, 4
      %v2168 = vor.u32 %v2167, %v2163
      %v2169 = vrot.slane %v2168, 4
      %v2171 = vshll.u32 %v2000, 16
      %v2173 = vrot.slane %v2171, 5
      %v2174 = vsel %vm223, %v2169, %v2173
      %v2176 = vshrl.u32 %v2001, 16
      %v2178 = vrot.slane %v2176, 4
      %v2179 = vshll.u32 %v2001, 16
      %v2181 = vrot.slane %v2179, 5
      %v2182 = vor.u32 %v2178, %v2181
      %v2183 = vrot.slane %v2182, 4
      %v2185 = vshll.u32 %v2002, 16
      %v2187 = vrot.slane %v2185, 5
      %v2188 = vsel %vm223, %v2183, %v2187
      %v2189 = vshrl.u32 %v2002, 16
      %v2191 = vrot.slane %v2189, 4
      %v2192 = vor.u32 %v2191, %v2187
      %v2193 = vrot.slane %v2192, 4
      %v2195 = vshll.u32 %v2003, 16
      %v2197 = vrot.slane %v2195, 5
      %v2198 = vsel %vm223, %v2193, %v2197
      %v2200 = vshrl.u32 %v2004, 16
      %v2202 = vrot.slane %v2200, 4
      %v2203 = vshll.u32 %v2004, 16
      %v2205 = vrot.slane %v2203, 5
      %v2206 = vor.u32 %v2202, %v2205
      %v2207 = vrot.slane %v2206, 4
      %v2209 = vshll.u32 %v2005, 16
      %v2211 = vrot.slane %v2209, 5
      %v2212 = vsel %vm223, %v2207, %v2211
      %v2213 = vshrl.u32 %v2005, 16
      %v2215 = vrot.slane %v2213, 4
      %v2216 = vor.u32 %v2215, %v2211
      %v2217 = vrot.slane %v2216, 4
      %v2219 = vshll.u32 %v2006, 16
      %v2221 = vrot.slane %v2219, 5
      %v2222 = vsel %vm223, %v2217, %v2221
      %v2224 = vshrl.u32 %v2007, 16
      %v2226 = vrot.slane %v2224, 4
      %v2227 = vshll.u32 %v2007, 16
      %v2229 = vrot.slane %v2227, 5
      %v2230 = vor.u32 %v2226, %v2229
      %v2231 = vrot.slane %v2230, 4
      %v2233 = vshll.u32 %v2008, 16
      %v2235 = vrot.slane %v2233, 5
      %v2236 = vsel %vm223, %v2231, %v2235
      %v2237 = vshrl.u32 %v2008, 16
      %v2239 = vrot.slane %v2237, 4
      %v2240 = vor.u32 %v2239, %v2235
      %v2241 = vrot.slane %v2240, 4
      %v2243 = vshll.u32 %v2009, 16
      %v2245 = vrot.slane %v2243, 5
      %v2246 = vsel %vm223, %v2241, %v2245
      %v2248 = vshrl.u32 %v2010, 16
      %v2250 = vrot.slane %v2248, 4
      %v2251 = vshll.u32 %v2010, 16
      %v2253 = vrot.slane %v2251, 5
      %v2254 = vor.u32 %v2250, %v2253
      %v2255 = vrot.slane %v2254, 4
      %v2257 = vshll.u32 %v2011, 16
      %v2259 = vrot.slane %v2257, 5
      %v2260 = vsel %vm223, %v2255, %v2259
      %v2261 = vshrl.u32 %v2011, 16
      %v2263 = vrot.slane %v2261, 4
      %v2264 = vor.u32 %v2263, %v2259
      %v2265 = vrot.slane %v2264, 4
      %v2267 = vshll.u32 %v2012, 16
      %v2269 = vrot.slane %v2267, 5
      %v2270 = vsel %vm223, %v2265, %v2269
      %v2272 = vshrl.u32 %v2013, 16
      %v2274 = vrot.slane %v2272, 4
      %v2275 = vshll.u32 %v2013, 16
      %v2277 = vrot.slane %v2275, 5
      %v2278 = vor.u32 %v2274, %v2277
      %v2279 = vrot.slane %v2278, 4
      %v2281 = vshll.u32 %v2014, 16
      %v2283 = vrot.slane %v2281, 5
      %v2284 = vsel %vm223, %v2279, %v2283
      %v2285 = vshrl.u32 %v2014, 16
      %v2287 = vrot.slane %v2285, 4
      %v2288 = vor.u32 %v2287, %v2283
      %v2289 = vrot.slane %v2288, 4
      %v2291 = vshll.u32 %v2015, 16
      %v2293 = vrot.slane %v2291, 5
      %v2294 = vsel %vm223, %v2289, %v2293
      %v2296 = vshrl.u32 %v2016, 16
      %v2298 = vrot.slane %v2296, 4
      %v2299 = vshll.u32 %v2016, 16
      %v2301 = vrot.slane %v2299, 5
      %v2302 = vor.u32 %v2298, %v2301
      %v2303 = vrot.slane %v2302, 4
      %v2305 = vshll.u32 %v2017, 16
      %v2307 = vrot.slane %v2305, 5
      %v2308 = vsel %vm223, %v2303, %v2307
      %v2309 = vshrl.u32 %v2017, 16
      %v2311 = vrot.slane %v2309, 4
      %v2312 = vor.u32 %v2311, %v2307
      %v2313 = vrot.slane %v2312, 4
      %v2315 = vshll.u32 %v2018, 16
      %v2317 = vrot.slane %v2315, 5
      %v2318 = vsel %vm223, %v2313, %v2317
      %v2320 = vshrl.u32 %v2019, 16
      %v2322 = vrot.slane %v2320, 4
      %v2323 = vshll.u32 %v2019, 16
      %v2325 = vrot.slane %v2323, 5
      %v2326 = vor.u32 %v2322, %v2325
      %v2327 = vrot.slane %v2326, 4
      %v2329 = vshll.u32 %v2020, 16
      %v2331 = vrot.slane %v2329, 5
      %v2332 = vsel %vm223, %v2327, %v2331
      %v2333 = vshrl.u32 %v2020, 16
      %v2335 = vrot.slane %v2333, 4
      %v2336 = vor.u32 %v2335, %v2331
      %v2337 = vrot.slane %v2336, 4
      %v2339 = vshll.u32 %v2021, 16
      %v2341 = vrot.slane %v2339, 5
      %v2342 = vsel %vm223, %v2337, %v2341
      %v2344 = vshrl.u32 %v2022, 16
      %v2346 = vrot.slane %v2344, 4
      %v2347 = vshll.u32 %v2022, 16
      %v2349 = vrot.slane %v2347, 5
      %v2350 = vor.u32 %v2346, %v2349
      %v2351 = vrot.slane %v2350, 4
      %v2353 = vshll.u32 %v2023, 16
      %v2355 = vrot.slane %v2353, 5
      %v2356 = vsel %vm223, %v2351, %v2355
      %v2357 = vshrl.u32 %v2023, 16
      %v2359 = vrot.slane %v2357, 4
      %v2360 = vor.u32 %v2359, %v2355
      %v2361 = vrot.slane %v2360, 4
      %v2363 = vshll.u32 %v2024, 16
      %v2365 = vrot.slane %v2363, 5
      %v2366 = vsel %vm223, %v2361, %v2365
      %v2368 = vshrl.u32 %v2025, 16
      %v2370 = vrot.slane %v2368, 4
      %v2371 = vshll.u32 %v2025, 16
      %v2373 = vrot.slane %v2371, 5
      %v2374 = vor.u32 %v2370, %v2373
      %v2375 = vrot.slane %v2374, 4
      %v2377 = vshll.u32 %v2026, 16
      %v2379 = vrot.slane %v2377, 5
      %v2380 = vsel %vm223, %v2375, %v2379
      %v2381 = vshrl.u32 %v2026, 16
      %v2383 = vrot.slane %v2381, 4
      %v2384 = vor.u32 %v2383, %v2379
      %v2385 = vrot.slane %v2384, 4
      %v2387 = vshll.u32 %v2027, 16
      %v2389 = vrot.slane %v2387, 5
      %v2390 = vsel %vm223, %v2385, %v2389
      %v2392 = vshrl.u32 %v2028, 16
      %v2394 = vrot.slane %v2392, 4
      %v2395 = vshll.u32 %v2028, 16
      %v2397 = vrot.slane %v2395, 5
      %v2398 = vor.u32 %v2394, %v2397
      %v2399 = vrot.slane %v2398, 4
      %v2401 = vshll.u32 %v2029, 16
      %v2403 = vrot.slane %v2401, 5
      %v2404 = vsel %vm223, %v2399, %v2403
      %v2405 = vshrl.u32 %v2029, 16
      %v2407 = vrot.slane %v2405, 4
      %v2408 = vor.u32 %v2407, %v2403
      %v2409 = vrot.slane %v2408, 4
      %v2411 = vshll.u32 %v2030, 16
      %v2413 = vrot.slane %v2411, 5
      %v2414 = vsel %vm223, %v2409, %v2413
      %s2415 = scalar_lea.vmem %s1, 8
      %v2416 = vld [vmem:[%s2415] sm:$0x3]
      %v2417 = vunpack.c.l.b16 %v2044
      %v2418 = vunpack.c.l.b16 %v2054
      %v2419 = vunpack.c.l.b16 %v2068
      %v2420 = vunpack.c.l.b16 %v2078
      %v2421 = vunpack.c.l.b16 %v2092
      %v2422 = vunpack.c.l.b16 %v2102
      %v2423 = vunpack.c.l.b16 %v2116
      %v2424 = vunpack.c.l.b16 %v2126
      %v2425 = vunpack.c.l.b16 %v2140
      %v2426 = vunpack.c.l.b16 %v2150
      %v2427 = vunpack.c.l.b16 %v2164
      %v2428 = vunpack.c.l.b16 %v2174
      %v2429 = vunpack.c.l.b16 %v2188
      %v2430 = vunpack.c.l.b16 %v2198
      %v2431 = vunpack.c.l.b16 %v2212
      %v2432 = vunpack.c.l.b16 %v2222
      %v2433 = vunpack.c.l.b16 %v2236
      %v2434 = vunpack.c.l.b16 %v2246
      %v2435 = vunpack.c.l.b16 %v2260
      %v2436 = vunpack.c.l.b16 %v2270
      %v2437 = vunpack.c.l.b16 %v2284
      %v2438 = vunpack.c.l.b16 %v2294
      %v2439 = vunpack.c.l.b16 %v2308
      %v2440 = vunpack.c.l.b16 %v2318
      %v2441 = vunpack.c.l.b16 %v2332
      %v2442 = vunpack.c.l.b16 %v2342
      %v2443 = vunpack.c.l.b16 %v2356
      %v2444 = vunpack.c.l.b16 %v2366
      %v2445 = vunpack.c.l.b16 %v2380
      %v2446 = vunpack.c.l.b16 %v2390
      %v2447 = vunpack.c.l.b16 %v2404
      %v2448 = vunpack.c.l.b16 %v2414
      %v2449 = vpack.c.b16 %v2418, %v2417
      %v2450 = vpack.c.b16 %v2420, %v2419
      %v2451 = vpack.c.b16 %v2422, %v2421
      %v2452 = vpack.c.b16 %v2424, %v2423
      %v2453 = vpack.c.b16 %v2426, %v2425
      %v2454 = vpack.c.b16 %v2428, %v2427
      %v2455 = vpack.c.b16 %v2430, %v2429
      %v2456 = vpack.c.b16 %v2432, %v2431
      %v2457 = vpack.c.b16 %v2434, %v2433
      %v2458 = vpack.c.b16 %v2436, %v2435
      %v2459 = vpack.c.b16 %v2438, %v2437
      %v2460 = vpack.c.b16 %v2440, %v2439
      %v2461 = vpack.c.b16 %v2442, %v2441
      %v2462 = vpack.c.b16 %v2444, %v2443
      %v2463 = vpack.c.b16 %v2446, %v2445
      %v2464 = vpack.c.b16 %v2448, %v2447
      %v2466 = vsel %vm658, %v2449, 0
      %v2469 = vsel %vm658, %v2450, 0
      %v2472 = vsel %vm658, %v2451, 0
      %v2475 = vsel %vm658, %v2452, 0
      %v2478 = vsel %vm658, %v2453, 0
      %v2481 = vsel %vm658, %v2454, 0
      %v2484 = vsel %vm658, %v2455, 0
      %v2487 = vsel %vm658, %v2456, 0
      %v2490 = vsel %vm658, %v2457, 0
      %v2493 = vsel %vm658, %v2458, 0
      %v2496 = vsel %vm658, %v2459, 0
      %v2499 = vsel %vm658, %v2460, 0
      %v2502 = vsel %vm658, %v2461, 0
      %v2505 = vsel %vm658, %v2462, 0
      %v2508 = vsel %vm658, %v2463, 0
      %v2511 = vsel %vm658, %v2464, 0
      %v2514 = vand.u32 %v2416, %v710
      %2516 = vmatprep.subr.bf16.mxu0 0
      %2517 = vmatpush1.bf16.msra.mxu0 %v2514
      %2518 = vmatprep.subr.bf16.mxu0 0
      %2519 = vmatpush1.bf16.msra.mxu0 0
      %2520 = vmatprep.subr.bf16.mxu0 0
      %2521 = vmatpush1.bf16.msra.mxu0 0
      %2522 = vmatprep.subr.bf16.mxu0 0
      %2523 = vmatpush1.bf16.msra.mxu0 0
      %2524 = vmatprep.subr.bf16.mxu0 0
      %2525 = vmatpush1.bf16.msra.mxu0 0
      %2526 = vmatprep.subr.bf16.mxu0 0
      %2527 = vmatpush1.bf16.msra.mxu0 0
      %2528 = vmatprep.subr.bf16.mxu0 0
      %2529 = vmatpush1.bf16.msra.mxu0 0
      %2530 = vmatprep.subr.bf16.mxu0 0
      %2531 = vmatpush1.bf16.msra.mxu0 0
      %2532 = vmatprep.subr.bf16.mxu0 0
      %2533 = vmatpush1.bf16.msra.mxu0 0
      %2534 = vmatprep.subr.bf16.mxu0 0
      %2535 = vmatpush1.bf16.msra.mxu0 0
      %2536 = vmatprep.subr.bf16.mxu0 0
      %2537 = vmatpush1.bf16.msra.mxu0 0
      %2538 = vmatprep.subr.bf16.mxu0 0
      %2539 = vmatpush1.bf16.msra.mxu0 0
      %2540 = vmatprep.subr.bf16.mxu0 0
      %2541 = vmatpush1.bf16.msra.mxu0 0
      %2542 = vmatprep.subr.bf16.mxu0 0
      %2543 = vmatpush1.bf16.msra.mxu0 0
      %2544 = vmatprep.subr.bf16.mxu0 0
      %2545 = vmatpush1.bf16.msra.mxu0 0
      %2546 = vmatprep.subr.bf16.mxu0 0
      %2547 = vmatpush1.bf16.msra.mxu0 0
      %2548 = vmatprep.mubr.bf16.mxu0 0
      %2549 = vmatmul.mubr.bf16.gmra.mrb[0].mxu0 %v2466
      %v2550 = vpop.f32.mrb[0].mxu0
      %v2551 = vadd.f32 0.0, %v2550
      %v2552 = vpop.f32.mrb[0].mxu0
      %v2553 = vpop.f32.mrb[0].mxu0
      %v2554 = vadd.f32 0.0, %v2553
      %v2555 = vpop.f32.mrb[0].mxu0
      %2556 = vmatprep.mubr.bf16.mxu0 0
      %2557 = vmatmul.mubr.bf16.gmra.mrb[0].mxu0 %v2469
      %v2558 = vpop.f32.mrb[0].mxu0
      %v2559 = vadd.f32 0.0, %v2558
      %v2560 = vpop.f32.mrb[0].mxu0
      %v2561 = vpop.f32.mrb[0].mxu0
      %v2562 = vadd.f32 0.0, %v2561
      %v2563 = vpop.f32.mrb[0].mxu0
      %2564 = vmatprep.mubr.bf16.mxu0 0
      %2565 = vmatmul.mubr.bf16.gmra.mrb[0].mxu0 %v2472
      %v2566 = vpop.f32.mrb[0].mxu0
      %v2567 = vadd.f32 0.0, %v2566
      %v2568 = vpop.f32.mrb[0].mxu0
      %v2569 = vpop.f32.mrb[0].mxu0
      %v2570 = vadd.f32 0.0, %v2569
      %v2571 = vpop.f32.mrb[0].mxu0
      %2572 = vmatprep.mubr.bf16.mxu0 0
      %2573 = vmatmul.mubr.bf16.gmra.mrb[0].mxu0 %v2475
      %v2574 = vpop.f32.mrb[0].mxu0
      %v2575 = vadd.f32 0.0, %v2574
      %v2576 = vpop.f32.mrb[0].mxu0
      %v2577 = vpop.f32.mrb[0].mxu0
      %v2578 = vadd.f32 0.0, %v2577
      %v2579 = vpop.f32.mrb[0].mxu0
      %2580 = vmatprep.mubr.bf16.mxu0 0
      %2581 = vmatmul.mubr.bf16.gmra.mrb[0].mxu0 %v2478
      %v2582 = vpop.f32.mrb[0].mxu0
      %v2583 = vadd.f32 0.0, %v2582
      %v2584 = vpop.f32.mrb[0].mxu0
      %v2585 = vpop.f32.mrb[0].mxu0
      %v2586 = vadd.f32 0.0, %v2585
      %v2587 = vpop.f32.mrb[0].mxu0
      %2588 = vmatprep.mubr.bf16.mxu0 0
      %2589 = vmatmul.mubr.bf16.gmra.mrb[0].mxu0 %v2481
      %v2590 = vpop.f32.mrb[0].mxu0
      %v2591 = vadd.f32 0.0, %v2590
      %v2592 = vpop.f32.mrb[0].mxu0
      %v2593 = vpop.f32.mrb[0].mxu0
      %v2594 = vadd.f32 0.0, %v2593
      %v2595 = vpop.f32.mrb[0].mxu0
      %2596 = vmatprep.mubr.bf16.mxu0 0
      %2597 = vmatmul.mubr.bf16.gmra.mrb[0].mxu0 %v2484
      %v2598 = vpop.f32.mrb[0].mxu0
      %v2599 = vadd.f32 0.0, %v2598
      %v2600 = vpop.f32.mrb[0].mxu0
      %v2601 = vpop.f32.mrb[0].mxu0
      %v2602 = vadd.f32 0.0, %v2601
      %v2603 = vpop.f32.mrb[0].mxu0
      %2604 = vmatprep.mubr.bf16.mxu0 0
      %2605 = vmatmul.mubr.bf16.gmra.mrb[0].mxu0 %v2487
      %v2606 = vpop.f32.mrb[0].mxu0
      %v2607 = vadd.f32 0.0, %v2606
      %v2608 = vpop.f32.mrb[0].mxu0
      %v2609 = vpop.f32.mrb[0].mxu0
      %v2610 = vadd.f32 0.0, %v2609
      %v2611 = vpop.f32.mrb[0].mxu0
      %2612 = vmatprep.mubr.bf16.mxu0 0
      %2613 = vmatmul.mubr.bf16.gmra.mrb[0].mxu0 %v2490
      %v2614 = vpop.f32.mrb[0].mxu0
      %v2615 = vadd.f32 0.0, %v2614
      %v2616 = vpop.f32.mrb[0].mxu0
      %v2617 = vpop.f32.mrb[0].mxu0
      %v2618 = vadd.f32 0.0, %v2617
      %v2619 = vpop.f32.mrb[0].mxu0
      %2620 = vmatprep.mubr.bf16.mxu0 0
      %2621 = vmatmul.mubr.bf16.gmra.mrb[0].mxu0 %v2493
      %v2622 = vpop.f32.mrb[0].mxu0
      %v2623 = vadd.f32 0.0, %v2622
      %v2624 = vpop.f32.mrb[0].mxu0
      %v2625 = vpop.f32.mrb[0].mxu0
      %v2626 = vadd.f32 0.0, %v2625
      %v2627 = vpop.f32.mrb[0].mxu0
      %2628 = vmatprep.mubr.bf16.mxu0 0
      %2629 = vmatmul.mubr.bf16.gmra.mrb[0].mxu0 %v2496
      %v2630 = vpop.f32.mrb[0].mxu0
      %v2631 = vadd.f32 0.0, %v2630
      %v2632 = vpop.f32.mrb[0].mxu0
      %v2633 = vpop.f32.mrb[0].mxu0
      %v2634 = vadd.f32 0.0, %v2633
      %v2635 = vpop.f32.mrb[0].mxu0
      %2636 = vmatprep.mubr.bf16.mxu0 0
      %2637 = vmatmul.mubr.bf16.gmra.mrb[0].mxu0 %v2499
      %v2638 = vpop.f32.mrb[0].mxu0
      %v2639 = vadd.f32 0.0, %v2638
      %v2640 = vpop.f32.mrb[0].mxu0
      %v2641 = vpop.f32.mrb[0].mxu0
      %v2642 = vadd.f32 0.0, %v2641
      %v2643 = vpop.f32.mrb[0].mxu0
      %2644 = vmatprep.mubr.bf16.mxu0 0
      %2645 = vmatmul.mubr.bf16.gmra.mrb[0].mxu0 %v2502
      %v2646 = vpop.f32.mrb[0].mxu0
      %v2647 = vadd.f32 0.0, %v2646
      %v2648 = vpop.f32.mrb[0].mxu0
      %v2649 = vpop.f32.mrb[0].mxu0
      %v2650 = vadd.f32 0.0, %v2649
      %v2651 = vpop.f32.mrb[0].mxu0
      %2652 = vmatprep.mubr.bf16.mxu0 0
      %2653 = vmatmul.mubr.bf16.gmra.mrb[0].mxu0 %v2505
      %v2654 = vpop.f32.mrb[0].mxu0
      %v2655 = vadd.f32 0.0, %v2654
      %v2656 = vpop.f32.mrb[0].mxu0
      %v2657 = vpop.f32.mrb[0].mxu0
      %v2658 = vadd.f32 0.0, %v2657
      %v2659 = vpop.f32.mrb[0].mxu0
      %2660 = vmatprep.mubr.bf16.mxu0 0
      %2661 = vmatmul.mubr.bf16.gmra.mrb[0].mxu0 %v2508
      %v2662 = vpop.f32.mrb[0].mxu0
      %v2663 = vadd.f32 0.0, %v2662
      %v2664 = vpop.f32.mrb[0].mxu0
      %v2665 = vpop.f32.mrb[0].mxu0
      %v2666 = vadd.f32 0.0, %v2665
      %v2667 = vpop.f32.mrb[0].mxu0
      %2668 = vmatprep.mubr.bf16.mxu0 0
      %2669 = vmatmul.mubr.bf16.gmra.mrb[0].mxu0 %v2511
      %v2670 = vpop.f32.mrb[0].mxu0
      %v2671 = vadd.f32 0.0, %v2670
      %v2672 = vpop.f32.mrb[0].mxu0
      %v2673 = vpop.f32.mrb[0].mxu0
      %v2674 = vadd.f32 0.0, %v2673
      %v2675 = vpop.f32.mrb[0].mxu0
      %2676 = vdwg.mxu0
      %v2677 = vadd.f32 %v1951, %v2551
      %v2678 = vadd.f32 %v1952, %v2554
      %v2679 = vadd.f32 %v1953, %v2559
      %v2680 = vadd.f32 %v1954, %v2562
      %v2681 = vadd.f32 %v1955, %v2567
      %v2682 = vadd.f32 %v1956, %v2570
      %v2683 = vadd.f32 %v1957, %v2575
      %v2684 = vadd.f32 %v1958, %v2578
      %v2685 = vadd.f32 %v1959, %v2583
      %v2686 = vadd.f32 %v1960, %v2586
      %v2687 = vadd.f32 %v1961, %v2591
      %v2688 = vadd.f32 %v1962, %v2594
      %v2689 = vadd.f32 %v1963, %v2599
      %v2690 = vadd.f32 %v1964, %v2602
      %v2691 = vadd.f32 %v1965, %v2607
      %v2692 = vadd.f32 %v1966, %v2610
      %v2693 = vadd.f32 %v1967, %v2615
      %v2694 = vadd.f32 %v1968, %v2618
      %v2695 = vadd.f32 %v1969, %v2623
      %v2696 = vadd.f32 %v1970, %v2626
      %v2697 = vadd.f32 %v1971, %v2631
      %v2698 = vadd.f32 %v1972, %v2634
      %v2699 = vadd.f32 %v1973, %v2639
      %v2700 = vadd.f32 %v1974, %v2642
      %v2701 = vadd.f32 %v1975, %v2647
      %v2702 = vadd.f32 %v1976, %v2650
      %v2703 = vadd.f32 %v1977, %v2655
      %v2704 = vadd.f32 %v1978, %v2658
      %v2705 = vadd.f32 %v1979, %v2663
      %v2706 = vadd.f32 %v1980, %v2666
      %v2707 = vadd.f32 %v1981, %v2671
      %v2708 = vadd.f32 %v1982, %v2674
      %v2709 = vld [vmem:[%s1624] sm:$0xe]
      %v2710 = vld [vmem:[%s1624 + $0xc] sm:$0xe]
      %v2711 = vld [vmem:[%s1624 + $0x18] sm:$0xe]
      %v2712 = vld [vmem:[%s1624 + $0x24] sm:$0xe]
      %v2713 = vld [vmem:[%s1624 + $0x30] sm:$0xe]
      %v2714 = vld [vmem:[%s1624 + $0x3c] sm:$0xe]
      %v2715 = vld [vmem:[%s1624 + $0x48] sm:$0xe]
      %v2716 = vld [vmem:[%s1624 + $0x54] sm:$0xe]
      %v2717 = vld [vmem:[%s1624 + $0x60] sm:$0xe]
      %v2718 = vld [vmem:[%s1624 + $0x6c] sm:$0xe]
      %v2719 = vld [vmem:[%s1624 + $0x78] sm:$0xe]
      %v2720 = vld [vmem:[%s1624 + $0x84] sm:$0xe]
      %v2721 = vld [vmem:[%s1624 + $0x90] sm:$0xe]
      %v2722 = vld [vmem:[%s1624 + $0x9c] sm:$0xe]
      %v2723 = vld [vmem:[%s1624 + $0xa8] sm:$0xe]
      %v2724 = vld [vmem:[%s1624 + $0xb4] sm:$0xe]
      %v2773 = vrot.slane %v2709, 5
      %v2774 = vrot.slane %v2773, 4
      %v2775 = vrot.slane %v1984, 5
      %v2776 = vsel %vm1217, %v2774, %v2775
      %v2777 = vrot.slane %v2775, 4
      %v2778 = vrot.slane %v1985, 5
      %v2779 = vsel %vm1217, %v2777, %v2778
      %v2780 = vrot.slane %v2710, 5
      %v2781 = vrot.slane %v2780, 4
      %v2782 = vrot.slane %v1987, 5
      %v2783 = vsel %vm1217, %v2781, %v2782
      %v2784 = vrot.slane %v2782, 4
      %v2785 = vrot.slane %v1988, 5
      %v2786 = vsel %vm1217, %v2784, %v2785
      %v2787 = vrot.slane %v2711, 5
      %v2788 = vrot.slane %v2787, 4
      %v2789 = vrot.slane %v1990, 5
      %v2790 = vsel %vm1217, %v2788, %v2789
      %v2791 = vrot.slane %v2789, 4
      %v2792 = vrot.slane %v1991, 5
      %v2793 = vsel %vm1217, %v2791, %v2792
      %v2794 = vrot.slane %v2712, 5
      %v2795 = vrot.slane %v2794, 4
      %v2796 = vrot.slane %v1993, 5
      %v2797 = vsel %vm1217, %v2795, %v2796
      %v2798 = vrot.slane %v2796, 4
      %v2799 = vrot.slane %v1994, 5
      %v2800 = vsel %vm1217, %v2798, %v2799
      %v2801 = vrot.slane %v2713, 5
      %v2802 = vrot.slane %v2801, 4
      %v2803 = vrot.slane %v1996, 5
      %v2804 = vsel %vm1217, %v2802, %v2803
      %v2805 = vrot.slane %v2803, 4
      %v2806 = vrot.slane %v1997, 5
      %v2807 = vsel %vm1217, %v2805, %v2806
      %v2808 = vrot.slane %v2714, 5
      %v2809 = vrot.slane %v2808, 4
      %v2810 = vrot.slane %v1999, 5
      %v2811 = vsel %vm1217, %v2809, %v2810
      %v2812 = vrot.slane %v2810, 4
      %v2813 = vrot.slane %v2000, 5
      %v2814 = vsel %vm1217, %v2812, %v2813
      %v2815 = vrot.slane %v2715, 5
      %v2816 = vrot.slane %v2815, 4
      %v2817 = vrot.slane %v2002, 5
      %v2818 = vsel %vm1217, %v2816, %v2817
      %v2819 = vrot.slane %v2817, 4
      %v2820 = vrot.slane %v2003, 5
      %v2821 = vsel %vm1217, %v2819, %v2820
      %v2822 = vrot.slane %v2716, 5
      %v2823 = vrot.slane %v2822, 4
      %v2824 = vrot.slane %v2005, 5
      %v2825 = vsel %vm1217, %v2823, %v2824
      %v2826 = vrot.slane %v2824, 4
      %v2827 = vrot.slane %v2006, 5
      %v2828 = vsel %vm1217, %v2826, %v2827
      %v2829 = vrot.slane %v2717, 5
      %v2830 = vrot.slane %v2829, 4
      %v2831 = vrot.slane %v2008, 5
      %v2832 = vsel %vm1217, %v2830, %v2831
      %v2833 = vrot.slane %v2831, 4
      %v2834 = vrot.slane %v2009, 5
      %v2835 = vsel %vm1217, %v2833, %v2834
      %v2836 = vrot.slane %v2718, 5
      %v2837 = vrot.slane %v2836, 4
      %v2838 = vrot.slane %v2011, 5
      %v2839 = vsel %vm1217, %v2837, %v2838
      %v2840 = vrot.slane %v2838, 4
      %v2841 = vrot.slane %v2012, 5
      %v2842 = vsel %vm1217, %v2840, %v2841
      %v2843 = vrot.slane %v2719, 5
      %v2844 = vrot.slane %v2843, 4
      %v2845 = vrot.slane %v2014, 5
      %v2846 = vsel %vm1217, %v2844, %v2845
      %v2847 = vrot.slane %v2845, 4
      %v2848 = vrot.slane %v2015, 5
      %v2849 = vsel %vm1217, %v2847, %v2848
      %v2850 = vrot.slane %v2720, 5
      %v2851 = vrot.slane %v2850, 4
      %v2852 = vrot.slane %v2017, 5
      %v2853 = vsel %vm1217, %v2851, %v2852
      %v2854 = vrot.slane %v2852, 4
      %v2855 = vrot.slane %v2018, 5
      %v2856 = vsel %vm1217, %v2854, %v2855
      %v2857 = vrot.slane %v2721, 5
      %v2858 = vrot.slane %v2857, 4
      %v2859 = vrot.slane %v2020, 5
      %v2860 = vsel %vm1217, %v2858, %v2859
      %v2861 = vrot.slane %v2859, 4
      %v2862 = vrot.slane %v2021, 5
      %v2863 = vsel %vm1217, %v2861, %v2862
      %v2864 = vrot.slane %v2722, 5
      %v2865 = vrot.slane %v2864, 4
      %v2866 = vrot.slane %v2023, 5
      %v2867 = vsel %vm1217, %v2865, %v2866
      %v2868 = vrot.slane %v2866, 4
      %v2869 = vrot.slane %v2024, 5
      %v2870 = vsel %vm1217, %v2868, %v2869
      %v2871 = vrot.slane %v2723, 5
      %v2872 = vrot.slane %v2871, 4
      %v2873 = vrot.slane %v2026, 5
      %v2874 = vsel %vm1217, %v2872, %v2873
      %v2875 = vrot.slane %v2873, 4
      %v2876 = vrot.slane %v2027, 5
      %v2877 = vsel %vm1217, %v2875, %v2876
      %v2878 = vrot.slane %v2724, 5
      %v2879 = vrot.slane %v2878, 4
      %v2880 = vrot.slane %v2029, 5
      %v2881 = vsel %vm1217, %v2879, %v2880
      %v2882 = vrot.slane %v2880, 4
      %v2883 = vrot.slane %v2030, 5
      %v2884 = vsel %vm1217, %v2882, %v2883
      %s2885 = scalar_lea.vmem %s1, 10
      %v2886 = vld [vmem:[%s2885] sm:$0x3]
      %v2887 = vunpack.c.l.b16 %v2776
      %v2888 = vunpack.c.l.b16 %v2779
      %v2889 = vunpack.c.l.b16 %v2783
      %v2890 = vunpack.c.l.b16 %v2786
      %v2891 = vunpack.c.l.b16 %v2790
      %v2892 = vunpack.c.l.b16 %v2793
      %v2893 = vunpack.c.l.b16 %v2797
      %v2894 = vunpack.c.l.b16 %v2800
      %v2895 = vunpack.c.l.b16 %v2804
      %v2896 = vunpack.c.l.b16 %v2807
      %v2897 = vunpack.c.l.b16 %v2811
      %v2898 = vunpack.c.l.b16 %v2814
      %v2899 = vunpack.c.l.b16 %v2818
      %v2900 = vunpack.c.l.b16 %v2821
      %v2901 = vunpack.c.l.b16 %v2825
      %v2902 = vunpack.c.l.b16 %v2828
      %v2903 = vunpack.c.l.b16 %v2832
      %v2904 = vunpack.c.l.b16 %v2835
      %v2905 = vunpack.c.l.b16 %v2839
      %v2906 = vunpack.c.l.b16 %v2842
      %v2907 = vunpack.c.l.b16 %v2846
      %v2908 = vunpack.c.l.b16 %v2849
      %v2909 = vunpack.c.l.b16 %v2853
      %v2910 = vunpack.c.l.b16 %v2856
      %v2911 = vunpack.c.l.b16 %v2860
      %v2912 = vunpack.c.l.b16 %v2863
      %v2913 = vunpack.c.l.b16 %v2867
      %v2914 = vunpack.c.l.b16 %v2870
      %v2915 = vunpack.c.l.b16 %v2874
      %v2916 = vunpack.c.l.b16 %v2877
      %v2917 = vunpack.c.l.b16 %v2881
      %v2918 = vunpack.c.l.b16 %v2884
      %v2919 = vpack.c.b16 %v2888, %v2887
      %v2920 = vpack.c.b16 %v2890, %v2889
      %v2921 = vpack.c.b16 %v2892, %v2891
      %v2922 = vpack.c.b16 %v2894, %v2893
      %v2923 = vpack.c.b16 %v2896, %v2895
      %v2924 = vpack.c.b16 %v2898, %v2897
      %v2925 = vpack.c.b16 %v2900, %v2899
      %v2926 = vpack.c.b16 %v2902, %v2901
      %v2927 = vpack.c.b16 %v2904, %v2903
      %v2928 = vpack.c.b16 %v2906, %v2905
      %v2929 = vpack.c.b16 %v2908, %v2907
      %v2930 = vpack.c.b16 %v2910, %v2909
      %v2931 = vpack.c.b16 %v2912, %v2911
      %v2932 = vpack.c.b16 %v2914, %v2913
      %v2933 = vpack.c.b16 %v2916, %v2915
      %v2934 = vpack.c.b16 %v2918, %v2917
      %v2936 = vsel %vm658, %v2919, 0
      %v2939 = vsel %vm658, %v2920, 0
      %v2942 = vsel %vm658, %v2921, 0
      %v2945 = vsel %vm658, %v2922, 0
      %v2948 = vsel %vm658, %v2923, 0
      %v2951 = vsel %vm658, %v2924, 0
      %v2954 = vsel %vm658, %v2925, 0
      %v2957 = vsel %vm658, %v2926, 0
      %v2960 = vsel %vm658, %v2927, 0
      %v2963 = vsel %vm658, %v2928, 0
      %v2966 = vsel %vm658, %v2929, 0
      %v2969 = vsel %vm658, %v2930, 0
      %v2972 = vsel %vm658, %v2931, 0
      %v2975 = vsel %vm658, %v2932, 0
      %v2978 = vsel %vm658, %v2933, 0
      %v2981 = vsel %vm658, %v2934, 0
      %v2984 = vand.u32 %v2886, %v710
      %2986 = vmatprep.subr.bf16.mxu0 0
      %2987 = vmatpush1.bf16.msra.mxu0 %v2984
      %2988 = vmatprep.subr.bf16.mxu0 0
      %2989 = vmatpush1.bf16.msra.mxu0 0
      %2990 = vmatprep.subr.bf16.mxu0 0
      %2991 = vmatpush1.bf16.msra.mxu0 0
      %2992 = vmatprep.subr.bf16.mxu0 0
      %2993 = vmatpush1.bf16.msra.mxu0 0
      %2994 = vmatprep.subr.bf16.mxu0 0
      %2995 = vmatpush1.bf16.msra.mxu0 0
      %2996 = vmatprep.subr.bf16.mxu0 0
      %2997 = vmatpush1.bf16.msra.mxu0 0
      %2998 = vmatprep.subr.bf16.mxu0 0
      %2999 = vmatpush1.bf16.msra.mxu0 0
      %3000 = vmatprep.subr.bf16.mxu0 0
      %3001 = vmatpush1.bf16.msra.mxu0 0
      %3002 = vmatprep.subr.bf16.mxu0 0
      %3003 = vmatpush1.bf16.msra.mxu0 0
      %3004 = vmatprep.subr.bf16.mxu0 0
      %3005 = vmatpush1.bf16.msra.mxu0 0
      %3006 = vmatprep.subr.bf16.mxu0 0
      %3007 = vmatpush1.bf16.msra.mxu0 0
      %3008 = vmatprep.subr.bf16.mxu0 0
      %3009 = vmatpush1.bf16.msra.mxu0 0
      %3010 = vmatprep.subr.bf16.mxu0 0
      %3011 = vmatpush1.bf16.msra.mxu0 0
      %3012 = vmatprep.subr.bf16.mxu0 0
      %3013 = vmatpush1.bf16.msra.mxu0 0
      %3014 = vmatprep.subr.bf16.mxu0 0
      %3015 = vmatpush1.bf16.msra.mxu0 0
      %3016 = vmatprep.subr.bf16.mxu0 0
      %3017 = vmatpush1.bf16.msra.mxu0 0
      %3018 = vmatprep.mubr.bf16.mxu0 0
      %3019 = vmatmul.mubr.bf16.gmra.mrb[0].mxu0 %v2936
      %v3020 = vpop.f32.mrb[0].mxu0
      %v3021 = vadd.f32 0.0, %v3020
      %v3022 = vpop.f32.mrb[0].mxu0
      %v3023 = vpop.f32.mrb[0].mxu0
      %v3024 = vadd.f32 0.0, %v3023
      %v3025 = vpop.f32.mrb[0].mxu0
      %3026 = vmatprep.mubr.bf16.mxu0 0
      %3027 = vmatmul.mubr.bf16.gmra.mrb[0].mxu0 %v2939
      %v3028 = vpop.f32.mrb[0].mxu0
      %v3029 = vadd.f32 0.0, %v3028
      %v3030 = vpop.f32.mrb[0].mxu0
      %v3031 = vpop.f32.mrb[0].mxu0
      %v3032 = vadd.f32 0.0, %v3031
      %v3033 = vpop.f32.mrb[0].mxu0
      %3034 = vmatprep.mubr.bf16.mxu0 0
      %3035 = vmatmul.mubr.bf16.gmra.mrb[0].mxu0 %v2942
      %v3036 = vpop.f32.mrb[0].mxu0
      %v3037 = vadd.f32 0.0, %v3036
      %v3038 = vpop.f32.mrb[0].mxu0
      %v3039 = vpop.f32.mrb[0].mxu0
      %v3040 = vadd.f32 0.0, %v3039
      %v3041 = vpop.f32.mrb[0].mxu0
      %3042 = vmatprep.mubr.bf16.mxu0 0
      %3043 = vmatmul.mubr.bf16.gmra.mrb[0].mxu0 %v2945
      %v3044 = vpop.f32.mrb[0].mxu0
      %v3045 = vadd.f32 0.0, %v3044
      %v3046 = vpop.f32.mrb[0].mxu0
      %v3047 = vpop.f32.mrb[0].mxu0
      %v3048 = vadd.f32 0.0, %v3047
      %v3049 = vpop.f32.mrb[0].mxu0
      %3050 = vmatprep.mubr.bf16.mxu0 0
      %3051 = vmatmul.mubr.bf16.gmra.mrb[0].mxu0 %v2948
      %v3052 = vpop.f32.mrb[0].mxu0
      %v3053 = vadd.f32 0.0, %v3052
      %v3054 = vpop.f32.mrb[0].mxu0
      %v3055 = vpop.f32.mrb[0].mxu0
      %v3056 = vadd.f32 0.0, %v3055
      %v3057 = vpop.f32.mrb[0].mxu0
      %3058 = vmatprep.mubr.bf16.mxu0 0
      %3059 = vmatmul.mubr.bf16.gmra.mrb[0].mxu0 %v2951
      %v3060 = vpop.f32.mrb[0].mxu0
      %v3061 = vadd.f32 0.0, %v3060
      %v3062 = vpop.f32.mrb[0].mxu0
      %v3063 = vpop.f32.mrb[0].mxu0
      %v3064 = vadd.f32 0.0, %v3063
      %v3065 = vpop.f32.mrb[0].mxu0
      %3066 = vmatprep.mubr.bf16.mxu0 0
      %3067 = vmatmul.mubr.bf16.gmra.mrb[0].mxu0 %v2954
      %v3068 = vpop.f32.mrb[0].mxu0
      %v3069 = vadd.f32 0.0, %v3068
      %v3070 = vpop.f32.mrb[0].mxu0
      %v3071 = vpop.f32.mrb[0].mxu0
      %v3072 = vadd.f32 0.0, %v3071
      %v3073 = vpop.f32.mrb[0].mxu0
      %3074 = vmatprep.mubr.bf16.mxu0 0
      %3075 = vmatmul.mubr.bf16.gmra.mrb[0].mxu0 %v2957
      %v3076 = vpop.f32.mrb[0].mxu0
      %v3077 = vadd.f32 0.0, %v3076
      %v3078 = vpop.f32.mrb[0].mxu0
      %v3079 = vpop.f32.mrb[0].mxu0
      %v3080 = vadd.f32 0.0, %v3079
      %v3081 = vpop.f32.mrb[0].mxu0
      %3082 = vmatprep.mubr.bf16.mxu0 0
      %3083 = vmatmul.mubr.bf16.gmra.mrb[0].mxu0 %v2960
      %v3084 = vpop.f32.mrb[0].mxu0
      %v3085 = vadd.f32 0.0, %v3084
      %v3086 = vpop.f32.mrb[0].mxu0
      %v3087 = vpop.f32.mrb[0].mxu0
      %v3088 = vadd.f32 0.0, %v3087
      %v3089 = vpop.f32.mrb[0].mxu0
      %3090 = vmatprep.mubr.bf16.mxu0 0
      %3091 = vmatmul.mubr.bf16.gmra.mrb[0].mxu0 %v2963
      %v3092 = vpop.f32.mrb[0].mxu0
      %v3093 = vadd.f32 0.0, %v3092
      %v3094 = vpop.f32.mrb[0].mxu0
      %v3095 = vpop.f32.mrb[0].mxu0
      %v3096 = vadd.f32 0.0, %v3095
      %v3097 = vpop.f32.mrb[0].mxu0
      %3098 = vmatprep.mubr.bf16.mxu0 0
      %3099 = vmatmul.mubr.bf16.gmra.mrb[0].mxu0 %v2966
      %v3100 = vpop.f32.mrb[0].mxu0
      %v3101 = vadd.f32 0.0, %v3100
      %v3102 = vpop.f32.mrb[0].mxu0
      %v3103 = vpop.f32.mrb[0].mxu0
      %v3104 = vadd.f32 0.0, %v3103
      %v3105 = vpop.f32.mrb[0].mxu0
      %3106 = vmatprep.mubr.bf16.mxu0 0
      %3107 = vmatmul.mubr.bf16.gmra.mrb[0].mxu0 %v2969
      %v3108 = vpop.f32.mrb[0].mxu0
      %v3109 = vadd.f32 0.0, %v3108
      %v3110 = vpop.f32.mrb[0].mxu0
      %v3111 = vpop.f32.mrb[0].mxu0
      %v3112 = vadd.f32 0.0, %v3111
      %v3113 = vpop.f32.mrb[0].mxu0
      %3114 = vmatprep.mubr.bf16.mxu0 0
      %3115 = vmatmul.mubr.bf16.gmra.mrb[0].mxu0 %v2972
      %v3116 = vpop.f32.mrb[0].mxu0
      %v3117 = vadd.f32 0.0, %v3116
      %v3118 = vpop.f32.mrb[0].mxu0
      %v3119 = vpop.f32.mrb[0].mxu0
      %v3120 = vadd.f32 0.0, %v3119
      %v3121 = vpop.f32.mrb[0].mxu0
      %3122 = vmatprep.mubr.bf16.mxu0 0
      %3123 = vmatmul.mubr.bf16.gmra.mrb[0].mxu0 %v2975
      %v3124 = vpop.f32.mrb[0].mxu0
      %v3125 = vadd.f32 0.0, %v3124
      %v3126 = vpop.f32.mrb[0].mxu0
      %v3127 = vpop.f32.mrb[0].mxu0
      %v3128 = vadd.f32 0.0, %v3127
      %v3129 = vpop.f32.mrb[0].mxu0
      %3130 = vmatprep.mubr.bf16.mxu0 0
      %3131 = vmatmul.mubr.bf16.gmra.mrb[0].mxu0 %v2978
      %v3132 = vpop.f32.mrb[0].mxu0
      %v3133 = vadd.f32 0.0, %v3132
      %v3134 = vpop.f32.mrb[0].mxu0
      %v3135 = vpop.f32.mrb[0].mxu0
      %v3136 = vadd.f32 0.0, %v3135
      %v3137 = vpop.f32.mrb[0].mxu0
      %3138 = vmatprep.mubr.bf16.mxu0 0
      %3139 = vmatmul.mubr.bf16.gmra.mrb[0].mxu0 %v2981
      %v3140 = vpop.f32.mrb[0].mxu0
      %v3141 = vadd.f32 0.0, %v3140
      %v3142 = vpop.f32.mrb[0].mxu0
      %v3143 = vpop.f32.mrb[0].mxu0
      %v3144 = vadd.f32 0.0, %v3143
      %v3145 = vpop.f32.mrb[0].mxu0
      %3146 = vdwg.mxu0
      %v3147 = vadd.f32 %v2677, %v3021
      %v3148 = vadd.f32 %v2678, %v3024
      %v3149 = vadd.f32 %v2679, %v3029
      %v3150 = vadd.f32 %v2680, %v3032
      %v3151 = vadd.f32 %v2681, %v3037
      %v3152 = vadd.f32 %v2682, %v3040
      %v3153 = vadd.f32 %v2683, %v3045
      %v3154 = vadd.f32 %v2684, %v3048
      %v3155 = vadd.f32 %v2685, %v3053
      %v3156 = vadd.f32 %v2686, %v3056
      %v3157 = vadd.f32 %v2687, %v3061
      %v3158 = vadd.f32 %v2688, %v3064
      %v3159 = vadd.f32 %v2689, %v3069
      %v3160 = vadd.f32 %v2690, %v3072
      %v3161 = vadd.f32 %v2691, %v3077
      %v3162 = vadd.f32 %v2692, %v3080
      %v3163 = vadd.f32 %v2693, %v3085
      %v3164 = vadd.f32 %v2694, %v3088
      %v3165 = vadd.f32 %v2695, %v3093
      %v3166 = vadd.f32 %v2696, %v3096
      %v3167 = vadd.f32 %v2697, %v3101
      %v3168 = vadd.f32 %v2698, %v3104
      %v3169 = vadd.f32 %v2699, %v3109
      %v3170 = vadd.f32 %v2700, %v3112
      %v3171 = vadd.f32 %v2701, %v3117
      %v3172 = vadd.f32 %v2702, %v3120
      %v3173 = vadd.f32 %v2703, %v3125
      %v3174 = vadd.f32 %v2704, %v3128
      %v3175 = vadd.f32 %v2705, %v3133
      %v3176 = vadd.f32 %v2706, %v3136
      %v3177 = vadd.f32 %v2707, %v3141
      %v3178 = vadd.f32 %v2708, %v3144
      %s3179 = scalar_lea.vmem %s165, 24
      %v3180 = vld [vmem:[%s3179] sm:$0xf]
      %v3181 = vld [vmem:[%s3179 + $0x4] sm:$0xf]
      %v3182 = vld [vmem:[%s3179 + $0xc] sm:$0xf]
      %v3183 = vld [vmem:[%s3179 + $0x10] sm:$0xf]
      %v3184 = vld [vmem:[%s3179 + $0x18] sm:$0xf]
      %v3185 = vld [vmem:[%s3179 + $0x1c] sm:$0xf]
      %v3186 = vld [vmem:[%s3179 + $0x24] sm:$0xf]
      %v3187 = vld [vmem:[%s3179 + $0x28] sm:$0xf]
      %v3188 = vld [vmem:[%s3179 + $0x30] sm:$0xf]
      %v3189 = vld [vmem:[%s3179 + $0x34] sm:$0xf]
      %v3190 = vld [vmem:[%s3179 + $0x3c] sm:$0xf]
      %v3191 = vld [vmem:[%s3179 + $0x40] sm:$0xf]
      %v3192 = vld [vmem:[%s3179 + $0x48] sm:$0xf]
      %v3193 = vld [vmem:[%s3179 + $0x4c] sm:$0xf]
      %v3194 = vld [vmem:[%s3179 + $0x54] sm:$0xf]
      %v3195 = vld [vmem:[%s3179 + $0x58] sm:$0xf]
      %v3196 = vld [vmem:[%s3179 + $0x60] sm:$0xf]
      %v3197 = vld [vmem:[%s3179 + $0x64] sm:$0xf]
      %v3198 = vld [vmem:[%s3179 + $0x6c] sm:$0xf]
      %v3199 = vld [vmem:[%s3179 + $0x70] sm:$0xf]
      %v3200 = vld [vmem:[%s3179 + $0x78] sm:$0xf]
      %v3201 = vld [vmem:[%s3179 + $0x7c] sm:$0xf]
      %v3202 = vld [vmem:[%s3179 + $0x84] sm:$0xf]
      %v3203 = vld [vmem:[%s3179 + $0x88] sm:$0xf]
      %v3204 = vld [vmem:[%s3179 + $0x90] sm:$0xf]
      %v3205 = vld [vmem:[%s3179 + $0x94] sm:$0xf]
      %v3206 = vld [vmem:[%s3179 + $0x9c] sm:$0xf]
      %v3207 = vld [vmem:[%s3179 + $0xa0] sm:$0xf]
      %v3208 = vld [vmem:[%s3179 + $0xa8] sm:$0xf]
      %v3209 = vld [vmem:[%s3179 + $0xac] sm:$0xf]
      %v3210 = vld [vmem:[%s3179 + $0xb4] sm:$0xf]
      %v3211 = vld [vmem:[%s3179 + $0xb8] sm:$0xf]
      %s3212 = scalar_lea.vmem %s1, 12
      %v3213 = vld [vmem:[%s3212] sm:$0x3]
      %v3246 = vunpack.c.l.b16 %v3180
      %v3247 = vunpack.c.l.b16 %v3181
      %v3248 = vunpack.c.l.b16 %v3182
      %v3249 = vunpack.c.l.b16 %v3183
      %v3250 = vunpack.c.l.b16 %v3184
      %v3251 = vunpack.c.l.b16 %v3185
      %v3252 = vunpack.c.l.b16 %v3186
      %v3253 = vunpack.c.l.b16 %v3187
      %v3254 = vunpack.c.l.b16 %v3188
      %v3255 = vunpack.c.l.b16 %v3189
      %v3256 = vunpack.c.l.b16 %v3190
      %v3257 = vunpack.c.l.b16 %v3191
      %v3258 = vunpack.c.l.b16 %v3192
      %v3259 = vunpack.c.l.b16 %v3193
      %v3260 = vunpack.c.l.b16 %v3194
      %v3261 = vunpack.c.l.b16 %v3195
      %v3262 = vunpack.c.l.b16 %v3196
      %v3263 = vunpack.c.l.b16 %v3197
      %v3264 = vunpack.c.l.b16 %v3198
      %v3265 = vunpack.c.l.b16 %v3199
      %v3266 = vunpack.c.l.b16 %v3200
      %v3267 = vunpack.c.l.b16 %v3201
      %v3268 = vunpack.c.l.b16 %v3202
      %v3269 = vunpack.c.l.b16 %v3203
      %v3270 = vunpack.c.l.b16 %v3204
      %v3271 = vunpack.c.l.b16 %v3205
      %v3272 = vunpack.c.l.b16 %v3206
      %v3273 = vunpack.c.l.b16 %v3207
      %v3274 = vunpack.c.l.b16 %v3208
      %v3275 = vunpack.c.l.b16 %v3209
      %v3276 = vunpack.c.l.b16 %v3210
      %v3277 = vunpack.c.l.b16 %v3211
      %v3278 = vpack.c.b16 %v3247, %v3246
      %v3279 = vpack.c.b16 %v3249, %v3248
      %v3280 = vpack.c.b16 %v3251, %v3250
      %v3281 = vpack.c.b16 %v3253, %v3252
      %v3282 = vpack.c.b16 %v3255, %v3254
      %v3283 = vpack.c.b16 %v3257, %v3256
      %v3284 = vpack.c.b16 %v3259, %v3258
      %v3285 = vpack.c.b16 %v3261, %v3260
      %v3286 = vpack.c.b16 %v3263, %v3262
      %v3287 = vpack.c.b16 %v3265, %v3264
      %v3288 = vpack.c.b16 %v3267, %v3266
      %v3289 = vpack.c.b16 %v3269, %v3268
      %v3290 = vpack.c.b16 %v3271, %v3270
      %v3291 = vpack.c.b16 %v3273, %v3272
      %v3292 = vpack.c.b16 %v3275, %v3274
      %v3293 = vpack.c.b16 %v3277, %v3276
      %v3295 = vsel %vm658, %v3278, 0
      %v3298 = vsel %vm658, %v3279, 0
      %v3301 = vsel %vm658, %v3280, 0
      %v3304 = vsel %vm658, %v3281, 0
      %v3307 = vsel %vm658, %v3282, 0
      %v3310 = vsel %vm658, %v3283, 0
      %v3313 = vsel %vm658, %v3284, 0
      %v3316 = vsel %vm658, %v3285, 0
      %v3319 = vsel %vm658, %v3286, 0
      %v3322 = vsel %vm658, %v3287, 0
      %v3325 = vsel %vm658, %v3288, 0
      %v3328 = vsel %vm658, %v3289, 0
      %v3331 = vsel %vm658, %v3290, 0
      %v3334 = vsel %vm658, %v3291, 0
      %v3337 = vsel %vm658, %v3292, 0
      %v3340 = vsel %vm658, %v3293, 0
      %v3343 = vand.u32 %v3213, %v710
      %3345 = vmatprep.subr.bf16.mxu0 0
      %3346 = vmatpush1.bf16.msra.mxu0 %v3343
      %3347 = vmatprep.subr.bf16.mxu0 0
      %3348 = vmatpush1.bf16.msra.mxu0 0
      %3349 = vmatprep.subr.bf16.mxu0 0
      %3350 = vmatpush1.bf16.msra.mxu0 0
      %3351 = vmatprep.subr.bf16.mxu0 0
      %3352 = vmatpush1.bf16.msra.mxu0 0
      %3353 = vmatprep.subr.bf16.mxu0 0
      %3354 = vmatpush1.bf16.msra.mxu0 0
      %3355 = vmatprep.subr.bf16.mxu0 0
      %3356 = vmatpush1.bf16.msra.mxu0 0
      %3357 = vmatprep.subr.bf16.mxu0 0
      %3358 = vmatpush1.bf16.msra.mxu0 0
      %3359 = vmatprep.subr.bf16.mxu0 0
      %3360 = vmatpush1.bf16.msra.mxu0 0
      %3361 = vmatprep.subr.bf16.mxu0 0
      %3362 = vmatpush1.bf16.msra.mxu0 0
      %3363 = vmatprep.subr.bf16.mxu0 0
      %3364 = vmatpush1.bf16.msra.mxu0 0
      %3365 = vmatprep.subr.bf16.mxu0 0
      %3366 = vmatpush1.bf16.msra.mxu0 0
      %3367 = vmatprep.subr.bf16.mxu0 0
      %3368 = vmatpush1.bf16.msra.mxu0 0
      %3369 = vmatprep.subr.bf16.mxu0 0
      %3370 = vmatpush1.bf16.msra.mxu0 0
      %3371 = vmatprep.subr.bf16.mxu0 0
      %3372 = vmatpush1.bf16.msra.mxu0 0
      %3373 = vmatprep.subr.bf16.mxu0 0
      %3374 = vmatpush1.bf16.msra.mxu0 0
      %3375 = vmatprep.subr.bf16.mxu0 0
      %3376 = vmatpush1.bf16.msra.mxu0 0
      %3377 = vmatprep.mubr.bf16.mxu0 0
      %3378 = vmatmul.mubr.bf16.gmra.mrb[0].mxu0 %v3295
      %v3379 = vpop.f32.mrb[0].mxu0
      %v3380 = vadd.f32 0.0, %v3379
      %v3381 = vpop.f32.mrb[0].mxu0
      %v3382 = vpop.f32.mrb[0].mxu0
      %v3383 = vadd.f32 0.0, %v3382
      %v3384 = vpop.f32.mrb[0].mxu0
      %3385 = vmatprep.mubr.bf16.mxu0 0
      %3386 = vmatmul.mubr.bf16.gmra.mrb[0].mxu0 %v3298
      %v3387 = vpop.f32.mrb[0].mxu0
      %v3388 = vadd.f32 0.0, %v3387
      %v3389 = vpop.f32.mrb[0].mxu0
      %v3390 = vpop.f32.mrb[0].mxu0
      %v3391 = vadd.f32 0.0, %v3390
      %v3392 = vpop.f32.mrb[0].mxu0
      %3393 = vmatprep.mubr.bf16.mxu0 0
      %3394 = vmatmul.mubr.bf16.gmra.mrb[0].mxu0 %v3301
      %v3395 = vpop.f32.mrb[0].mxu0
      %v3396 = vadd.f32 0.0, %v3395
      %v3397 = vpop.f32.mrb[0].mxu0
      %v3398 = vpop.f32.mrb[0].mxu0
      %v3399 = vadd.f32 0.0, %v3398
      %v3400 = vpop.f32.mrb[0].mxu0
      %3401 = vmatprep.mubr.bf16.mxu0 0
      %3402 = vmatmul.mubr.bf16.gmra.mrb[0].mxu0 %v3304
      %v3403 = vpop.f32.mrb[0].mxu0
      %v3404 = vadd.f32 0.0, %v3403
      %v3405 = vpop.f32.mrb[0].mxu0
      %v3406 = vpop.f32.mrb[0].mxu0
      %v3407 = vadd.f32 0.0, %v3406
      %v3408 = vpop.f32.mrb[0].mxu0
      %3409 = vmatprep.mubr.bf16.mxu0 0
      %3410 = vmatmul.mubr.bf16.gmra.mrb[0].mxu0 %v3307
      %v3411 = vpop.f32.mrb[0].mxu0
      %v3412 = vadd.f32 0.0, %v3411
      %v3413 = vpop.f32.mrb[0].mxu0
      %v3414 = vpop.f32.mrb[0].mxu0
      %v3415 = vadd.f32 0.0, %v3414
      %v3416 = vpop.f32.mrb[0].mxu0
      %3417 = vmatprep.mubr.bf16.mxu0 0
      %3418 = vmatmul.mubr.bf16.gmra.mrb[0].mxu0 %v3310
      %v3419 = vpop.f32.mrb[0].mxu0
      %v3420 = vadd.f32 0.0, %v3419
      %v3421 = vpop.f32.mrb[0].mxu0
      %v3422 = vpop.f32.mrb[0].mxu0
      %v3423 = vadd.f32 0.0, %v3422
      %v3424 = vpop.f32.mrb[0].mxu0
      %3425 = vmatprep.mubr.bf16.mxu0 0
      %3426 = vmatmul.mubr.bf16.gmra.mrb[0].mxu0 %v3313
      %v3427 = vpop.f32.mrb[0].mxu0
      %v3428 = vadd.f32 0.0, %v3427
      %v3429 = vpop.f32.mrb[0].mxu0
      %v3430 = vpop.f32.mrb[0].mxu0
      %v3431 = vadd.f32 0.0, %v3430
      %v3432 = vpop.f32.mrb[0].mxu0
      %3433 = vmatprep.mubr.bf16.mxu0 0
      %3434 = vmatmul.mubr.bf16.gmra.mrb[0].mxu0 %v3316
      %v3435 = vpop.f32.mrb[0].mxu0
      %v3436 = vadd.f32 0.0, %v3435
      %v3437 = vpop.f32.mrb[0].mxu0
      %v3438 = vpop.f32.mrb[0].mxu0
      %v3439 = vadd.f32 0.0, %v3438
      %v3440 = vpop.f32.mrb[0].mxu0
      %3441 = vmatprep.mubr.bf16.mxu0 0
      %3442 = vmatmul.mubr.bf16.gmra.mrb[0].mxu0 %v3319
      %v3443 = vpop.f32.mrb[0].mxu0
      %v3444 = vadd.f32 0.0, %v3443
      %v3445 = vpop.f32.mrb[0].mxu0
      %v3446 = vpop.f32.mrb[0].mxu0
      %v3447 = vadd.f32 0.0, %v3446
      %v3448 = vpop.f32.mrb[0].mxu0
      %3449 = vmatprep.mubr.bf16.mxu0 0
      %3450 = vmatmul.mubr.bf16.gmra.mrb[0].mxu0 %v3322
      %v3451 = vpop.f32.mrb[0].mxu0
      %v3452 = vadd.f32 0.0, %v3451
      %v3453 = vpop.f32.mrb[0].mxu0
      %v3454 = vpop.f32.mrb[0].mxu0
      %v3455 = vadd.f32 0.0, %v3454
      %v3456 = vpop.f32.mrb[0].mxu0
      %3457 = vmatprep.mubr.bf16.mxu0 0
      %3458 = vmatmul.mubr.bf16.gmra.mrb[0].mxu0 %v3325
      %v3459 = vpop.f32.mrb[0].mxu0
      %v3460 = vadd.f32 0.0, %v3459
      %v3461 = vpop.f32.mrb[0].mxu0
      %v3462 = vpop.f32.mrb[0].mxu0
      %v3463 = vadd.f32 0.0, %v3462
      %v3464 = vpop.f32.mrb[0].mxu0
      %3465 = vmatprep.mubr.bf16.mxu0 0
      %3466 = vmatmul.mubr.bf16.gmra.mrb[0].mxu0 %v3328
      %v3467 = vpop.f32.mrb[0].mxu0
      %v3468 = vadd.f32 0.0, %v3467
      %v3469 = vpop.f32.mrb[0].mxu0
      %v3470 = vpop.f32.mrb[0].mxu0
      %v3471 = vadd.f32 0.0, %v3470
      %v3472 = vpop.f32.mrb[0].mxu0
      %3473 = vmatprep.mubr.bf16.mxu0 0
      %3474 = vmatmul.mubr.bf16.gmra.mrb[0].mxu0 %v3331
      %v3475 = vpop.f32.mrb[0].mxu0
      %v3476 = vadd.f32 0.0, %v3475
      %v3477 = vpop.f32.mrb[0].mxu0
      %v3478 = vpop.f32.mrb[0].mxu0
      %v3479 = vadd.f32 0.0, %v3478
      %v3480 = vpop.f32.mrb[0].mxu0
      %3481 = vmatprep.mubr.bf16.mxu0 0
      %3482 = vmatmul.mubr.bf16.gmra.mrb[0].mxu0 %v3334
      %v3483 = vpop.f32.mrb[0].mxu0
      %v3484 = vadd.f32 0.0, %v3483
      %v3485 = vpop.f32.mrb[0].mxu0
      %v3486 = vpop.f32.mrb[0].mxu0
      %v3487 = vadd.f32 0.0, %v3486
      %v3488 = vpop.f32.mrb[0].mxu0
      %3489 = vmatprep.mubr.bf16.mxu0 0
      %3490 = vmatmul.mubr.bf16.gmra.mrb[0].mxu0 %v3337
      %v3491 = vpop.f32.mrb[0].mxu0
      %v3492 = vadd.f32 0.0, %v3491
      %v3493 = vpop.f32.mrb[0].mxu0
      %v3494 = vpop.f32.mrb[0].mxu0
      %v3495 = vadd.f32 0.0, %v3494
      %v3496 = vpop.f32.mrb[0].mxu0
      %3497 = vmatprep.mubr.bf16.mxu0 0
      %3498 = vmatmul.mubr.bf16.gmra.mrb[0].mxu0 %v3340
      %v3499 = vpop.f32.mrb[0].mxu0
      %v3500 = vadd.f32 0.0, %v3499
      %v3501 = vpop.f32.mrb[0].mxu0
      %v3502 = vpop.f32.mrb[0].mxu0
      %v3503 = vadd.f32 0.0, %v3502
      %v3504 = vpop.f32.mrb[0].mxu0
      %3505 = vdwg.mxu0
      %v3506 = vadd.f32 %v3147, %v3380
      %v3507 = vadd.f32 %v3148, %v3383
      %v3508 = vadd.f32 %v3149, %v3388
      %v3509 = vadd.f32 %v3150, %v3391
      %v3510 = vadd.f32 %v3151, %v3396
      %v3511 = vadd.f32 %v3152, %v3399
      %v3512 = vadd.f32 %v3153, %v3404
      %v3513 = vadd.f32 %v3154, %v3407
      %v3514 = vadd.f32 %v3155, %v3412
      %v3515 = vadd.f32 %v3156, %v3415
      %v3516 = vadd.f32 %v3157, %v3420
      %v3517 = vadd.f32 %v3158, %v3423
      %v3518 = vadd.f32 %v3159, %v3428
      %v3519 = vadd.f32 %v3160, %v3431
      %v3520 = vadd.f32 %v3161, %v3436
      %v3521 = vadd.f32 %v3162, %v3439
      %v3522 = vadd.f32 %v3163, %v3444
      %v3523 = vadd.f32 %v3164, %v3447
      %v3524 = vadd.f32 %v3165, %v3452
      %v3525 = vadd.f32 %v3166, %v3455
      %v3526 = vadd.f32 %v3167, %v3460
      %v3527 = vadd.f32 %v3168, %v3463
      %v3528 = vadd.f32 %v3169, %v3468
      %v3529 = vadd.f32 %v3170, %v3471
      %v3530 = vadd.f32 %v3171, %v3476
      %v3531 = vadd.f32 %v3172, %v3479
      %v3532 = vadd.f32 %v3173, %v3484
      %v3533 = vadd.f32 %v3174, %v3487
      %v3534 = vadd.f32 %v3175, %v3492
      %v3535 = vadd.f32 %v3176, %v3495
      %v3536 = vadd.f32 %v3177, %v3500
      %v3537 = vadd.f32 %v3178, %v3503
      %v3538 = vld [vmem:[%s3179] sm:$0xf]
      %v3539 = vld [vmem:[%s3179 + $0x4] sm:$0xf]
      %v3540 = vld [vmem:[%s3179 + $0x8] sm:$0x1]
      %v3541 = vld [vmem:[%s3179 + $0xc] sm:$0xf]
      %v3542 = vld [vmem:[%s3179 + $0x10] sm:$0xf]
      %v3543 = vld [vmem:[%s3179 + $0x14] sm:$0x1]
      %v3544 = vld [vmem:[%s3179 + $0x18] sm:$0xf]
      %v3545 = vld [vmem:[%s3179 + $0x1c] sm:$0xf]
      %v3546 = vld [vmem:[%s3179 + $0x20] sm:$0x1]
      %v3547 = vld [vmem:[%s3179 + $0x24] sm:$0xf]
      %v3548 = vld [vmem:[%s3179 + $0x28] sm:$0xf]
      %v3549 = vld [vmem:[%s3179 + $0x2c] sm:$0x1]
      %v3550 = vld [vmem:[%s3179 + $0x30] sm:$0xf]
      %v3551 = vld [vmem:[%s3179 + $0x34] sm:$0xf]
      %v3552 = vld [vmem:[%s3179 + $0x38] sm:$0x1]
      %v3553 = vld [vmem:[%s3179 + $0x3c] sm:$0xf]
      %v3554 = vld [vmem:[%s3179 + $0x40] sm:$0xf]
      %v3555 = vld [vmem:[%s3179 + $0x44] sm:$0x1]
      %v3556 = vld [vmem:[%s3179 + $0x48] sm:$0xf]
      %v3557 = vld [vmem:[%s3179 + $0x4c] sm:$0xf]
      %v3558 = vld [vmem:[%s3179 + $0x50] sm:$0x1]
      %v3559 = vld [vmem:[%s3179 + $0x54] sm:$0xf]
      %v3560 = vld [vmem:[%s3179 + $0x58] sm:$0xf]
      %v3561 = vld [vmem:[%s3179 + $0x5c] sm:$0x1]
      %v3562 = vld [vmem:[%s3179 + $0x60] sm:$0xf]
      %v3563 = vld [vmem:[%s3179 + $0x64] sm:$0xf]
      %v3564 = vld [vmem:[%s3179 + $0x68] sm:$0x1]
      %v3565 = vld [vmem:[%s3179 + $0x6c] sm:$0xf]
      %v3566 = vld [vmem:[%s3179 + $0x70] sm:$0xf]
      %v3567 = vld [vmem:[%s3179 + $0x74] sm:$0x1]
      %v3568 = vld [vmem:[%s3179 + $0x78] sm:$0xf]
      %v3569 = vld [vmem:[%s3179 + $0x7c] sm:$0xf]
      %v3570 = vld [vmem:[%s3179 + $0x80] sm:$0x1]
      %v3571 = vld [vmem:[%s3179 + $0x84] sm:$0xf]
      %v3572 = vld [vmem:[%s3179 + $0x88] sm:$0xf]
      %v3573 = vld [vmem:[%s3179 + $0x8c] sm:$0x1]
      %v3574 = vld [vmem:[%s3179 + $0x90] sm:$0xf]
      %v3575 = vld [vmem:[%s3179 + $0x94] sm:$0xf]
      %v3576 = vld [vmem:[%s3179 + $0x98] sm:$0x1]
      %v3577 = vld [vmem:[%s3179 + $0x9c] sm:$0xf]
      %v3578 = vld [vmem:[%s3179 + $0xa0] sm:$0xf]
      %v3579 = vld [vmem:[%s3179 + $0xa4] sm:$0x1]
      %v3580 = vld [vmem:[%s3179 + $0xa8] sm:$0xf]
      %v3581 = vld [vmem:[%s3179 + $0xac] sm:$0xf]
      %v3582 = vld [vmem:[%s3179 + $0xb0] sm:$0x1]
      %v3583 = vld [vmem:[%s3179 + $0xb4] sm:$0xf]
      %v3584 = vld [vmem:[%s3179 + $0xb8] sm:$0xf]
      %v3585 = vld [vmem:[%s3179 + $0xbc] sm:$0x1]
      %v3587 = vshrl.u32 %v3538, 16
      %v3589 = vrot.slane %v3587, 4
      %v3590 = vshll.u32 %v3538, 16
      %v3592 = vrot.slane %v3590, 5
      %v3593 = vor.u32 %v3589, %v3592
      %v3594 = vrot.slane %v3593, 4
      %v3596 = vshll.u32 %v3539, 16
      %v3598 = vrot.slane %v3596, 5
      %v3599 = vsel %vm223, %v3594, %v3598
      %v3600 = vshrl.u32 %v3539, 16
      %v3602 = vrot.slane %v3600, 4
      %v3603 = vor.u32 %v3602, %v3598
      %v3604 = vrot.slane %v3603, 4
      %v3606 = vshll.u32 %v3540, 16
      %v3608 = vrot.slane %v3606, 5
      %v3609 = vsel %vm223, %v3604, %v3608
      %v3611 = vshrl.u32 %v3541, 16
      %v3613 = vrot.slane %v3611, 4
      %v3614 = vshll.u32 %v3541, 16
      %v3616 = vrot.slane %v3614, 5
      %v3617 = vor.u32 %v3613, %v3616
      %v3618 = vrot.slane %v3617, 4
      %v3620 = vshll.u32 %v3542, 16
      %v3622 = vrot.slane %v3620, 5
      %v3623 = vsel %vm223, %v3618, %v3622
      %v3624 = vshrl.u32 %v3542, 16
      %v3626 = vrot.slane %v3624, 4
      %v3627 = vor.u32 %v3626, %v3622
      %v3628 = vrot.slane %v3627, 4
      %v3630 = vshll.u32 %v3543, 16
      %v3632 = vrot.slane %v3630, 5
      %v3633 = vsel %vm223, %v3628, %v3632
      %v3635 = vshrl.u32 %v3544, 16
      %v3637 = vrot.slane %v3635, 4
      %v3638 = vshll.u32 %v3544, 16
      %v3640 = vrot.slane %v3638, 5
      %v3641 = vor.u32 %v3637, %v3640
      %v3642 = vrot.slane %v3641, 4
      %v3644 = vshll.u32 %v3545, 16
      %v3646 = vrot.slane %v3644, 5
      %v3647 = vsel %vm223, %v3642, %v3646
      %v3648 = vshrl.u32 %v3545, 16
      %v3650 = vrot.slane %v3648, 4
      %v3651 = vor.u32 %v3650, %v3646
      %v3652 = vrot.slane %v3651, 4
      %v3654 = vshll.u32 %v3546, 16
      %v3656 = vrot.slane %v3654, 5
      %v3657 = vsel %vm223, %v3652, %v3656
      %v3659 = vshrl.u32 %v3547, 16
      %v3661 = vrot.slane %v3659, 4
      %v3662 = vshll.u32 %v3547, 16
      %v3664 = vrot.slane %v3662, 5
      %v3665 = vor.u32 %v3661, %v3664
      %v3666 = vrot.slane %v3665, 4
      %v3668 = vshll.u32 %v3548, 16
      %v3670 = vrot.slane %v3668, 5
      %v3671 = vsel %vm223, %v3666, %v3670
      %v3672 = vshrl.u32 %v3548, 16
      %v3674 = vrot.slane %v3672, 4
      %v3675 = vor.u32 %v3674, %v3670
      %v3676 = vrot.slane %v3675, 4
      %v3678 = vshll.u32 %v3549, 16
      %v3680 = vrot.slane %v3678, 5
      %v3681 = vsel %vm223, %v3676, %v3680
      %v3683 = vshrl.u32 %v3550, 16
      %v3685 = vrot.slane %v3683, 4
      %v3686 = vshll.u32 %v3550, 16
      %v3688 = vrot.slane %v3686, 5
      %v3689 = vor.u32 %v3685, %v3688
      %v3690 = vrot.slane %v3689, 4
      %v3692 = vshll.u32 %v3551, 16
      %v3694 = vrot.slane %v3692, 5
      %v3695 = vsel %vm223, %v3690, %v3694
      %v3696 = vshrl.u32 %v3551, 16
      %v3698 = vrot.slane %v3696, 4
      %v3699 = vor.u32 %v3698, %v3694
      %v3700 = vrot.slane %v3699, 4
      %v3702 = vshll.u32 %v3552, 16
      %v3704 = vrot.slane %v3702, 5
      %v3705 = vsel %vm223, %v3700, %v3704
      %v3707 = vshrl.u32 %v3553, 16
      %v3709 = vrot.slane %v3707, 4
      %v3710 = vshll.u32 %v3553, 16
      %v3712 = vrot.slane %v3710, 5
      %v3713 = vor.u32 %v3709, %v3712
      %v3714 = vrot.slane %v3713, 4
      %v3716 = vshll.u32 %v3554, 16
      %v3718 = vrot.slane %v3716, 5
      %v3719 = vsel %vm223, %v3714, %v3718
      %v3720 = vshrl.u32 %v3554, 16
      %v3722 = vrot.slane %v3720, 4
      %v3723 = vor.u32 %v3722, %v3718
      %v3724 = vrot.slane %v3723, 4
      %v3726 = vshll.u32 %v3555, 16
      %v3728 = vrot.slane %v3726, 5
      %v3729 = vsel %vm223, %v3724, %v3728
      %v3731 = vshrl.u32 %v3556, 16
      %v3733 = vrot.slane %v3731, 4
      %v3734 = vshll.u32 %v3556, 16
      %v3736 = vrot.slane %v3734, 5
      %v3737 = vor.u32 %v3733, %v3736
      %v3738 = vrot.slane %v3737, 4
      %v3740 = vshll.u32 %v3557, 16
      %v3742 = vrot.slane %v3740, 5
      %v3743 = vsel %vm223, %v3738, %v3742
      %v3744 = vshrl.u32 %v3557, 16
      %v3746 = vrot.slane %v3744, 4
      %v3747 = vor.u32 %v3746, %v3742
      %v3748 = vrot.slane %v3747, 4
      %v3750 = vshll.u32 %v3558, 16
      %v3752 = vrot.slane %v3750, 5
      %v3753 = vsel %vm223, %v3748, %v3752
      %v3755 = vshrl.u32 %v3559, 16
      %v3757 = vrot.slane %v3755, 4
      %v3758 = vshll.u32 %v3559, 16
      %v3760 = vrot.slane %v3758, 5
      %v3761 = vor.u32 %v3757, %v3760
      %v3762 = vrot.slane %v3761, 4
      %v3764 = vshll.u32 %v3560, 16
      %v3766 = vrot.slane %v3764, 5
      %v3767 = vsel %vm223, %v3762, %v3766
      %v3768 = vshrl.u32 %v3560, 16
      %v3770 = vrot.slane %v3768, 4
      %v3771 = vor.u32 %v3770, %v3766
      %v3772 = vrot.slane %v3771, 4
      %v3774 = vshll.u32 %v3561, 16
      %v3776 = vrot.slane %v3774, 5
      %v3777 = vsel %vm223, %v3772, %v3776
      %v3779 = vshrl.u32 %v3562, 16
      %v3781 = vrot.slane %v3779, 4
      %v3782 = vshll.u32 %v3562, 16
      %v3784 = vrot.slane %v3782, 5
      %v3785 = vor.u32 %v3781, %v3784
      %v3786 = vrot.slane %v3785, 4
      %v3788 = vshll.u32 %v3563, 16
      %v3790 = vrot.slane %v3788, 5
      %v3791 = vsel %vm223, %v3786, %v3790
      %v3792 = vshrl.u32 %v3563, 16
      %v3794 = vrot.slane %v3792, 4
      %v3795 = vor.u32 %v3794, %v3790
      %v3796 = vrot.slane %v3795, 4
      %v3798 = vshll.u32 %v3564, 16
      %v3800 = vrot.slane %v3798, 5
      %v3801 = vsel %vm223, %v3796, %v3800
      %v3803 = vshrl.u32 %v3565, 16
      %v3805 = vrot.slane %v3803, 4
      %v3806 = vshll.u32 %v3565, 16
      %v3808 = vrot.slane %v3806, 5
      %v3809 = vor.u32 %v3805, %v3808
      %v3810 = vrot.slane %v3809, 4
      %v3812 = vshll.u32 %v3566, 16
      %v3814 = vrot.slane %v3812, 5
      %v3815 = vsel %vm223, %v3810, %v3814
      %v3816 = vshrl.u32 %v3566, 16
      %v3818 = vrot.slane %v3816, 4
      %v3819 = vor.u32 %v3818, %v3814
      %v3820 = vrot.slane %v3819, 4
      %v3822 = vshll.u32 %v3567, 16
      %v3824 = vrot.slane %v3822, 5
      %v3825 = vsel %vm223, %v3820, %v3824
      %v3827 = vshrl.u32 %v3568, 16
      %v3829 = vrot.slane %v3827, 4
      %v3830 = vshll.u32 %v3568, 16
      %v3832 = vrot.slane %v3830, 5
      %v3833 = vor.u32 %v3829, %v3832
      %v3834 = vrot.slane %v3833, 4
      %v3836 = vshll.u32 %v3569, 16
      %v3838 = vrot.slane %v3836, 5
      %v3839 = vsel %vm223, %v3834, %v3838
      %v3840 = vshrl.u32 %v3569, 16
      %v3842 = vrot.slane %v3840, 4
      %v3843 = vor.u32 %v3842, %v3838
      %v3844 = vrot.slane %v3843, 4
      %v3846 = vshll.u32 %v3570, 16
      %v3848 = vrot.slane %v3846, 5
      %v3849 = vsel %vm223, %v3844, %v3848
      %v3851 = vshrl.u32 %v3571, 16
      %v3853 = vrot.slane %v3851, 4
      %v3854 = vshll.u32 %v3571, 16
      %v3856 = vrot.slane %v3854, 5
      %v3857 = vor.u32 %v3853, %v3856
      %v3858 = vrot.slane %v3857, 4
      %v3860 = vshll.u32 %v3572, 16
      %v3862 = vrot.slane %v3860, 5
      %v3863 = vsel %vm223, %v3858, %v3862
      %v3864 = vshrl.u32 %v3572, 16
      %v3866 = vrot.slane %v3864, 4
      %v3867 = vor.u32 %v3866, %v3862
      %v3868 = vrot.slane %v3867, 4
      %v3870 = vshll.u32 %v3573, 16
      %v3872 = vrot.slane %v3870, 5
      %v3873 = vsel %vm223, %v3868, %v3872
      %v3875 = vshrl.u32 %v3574, 16
      %v3877 = vrot.slane %v3875, 4
      %v3878 = vshll.u32 %v3574, 16
      %v3880 = vrot.slane %v3878, 5
      %v3881 = vor.u32 %v3877, %v3880
      %v3882 = vrot.slane %v3881, 4
      %v3884 = vshll.u32 %v3575, 16
      %v3886 = vrot.slane %v3884, 5
      %v3887 = vsel %vm223, %v3882, %v3886
      %v3888 = vshrl.u32 %v3575, 16
      %v3890 = vrot.slane %v3888, 4
      %v3891 = vor.u32 %v3890, %v3886
      %v3892 = vrot.slane %v3891, 4
      %v3894 = vshll.u32 %v3576, 16
      %v3896 = vrot.slane %v3894, 5
      %v3897 = vsel %vm223, %v3892, %v3896
      %v3899 = vshrl.u32 %v3577, 16
      %v3901 = vrot.slane %v3899, 4
      %v3902 = vshll.u32 %v3577, 16
      %v3904 = vrot.slane %v3902, 5
      %v3905 = vor.u32 %v3901, %v3904
      %v3906 = vrot.slane %v3905, 4
      %v3908 = vshll.u32 %v3578, 16
      %v3910 = vrot.slane %v3908, 5
      %v3911 = vsel %vm223, %v3906, %v3910
      %v3912 = vshrl.u32 %v3578, 16
      %v3914 = vrot.slane %v3912, 4
      %v3915 = vor.u32 %v3914, %v3910
      %v3916 = vrot.slane %v3915, 4
      %v3918 = vshll.u32 %v3579, 16
      %v3920 = vrot.slane %v3918, 5
      %v3921 = vsel %vm223, %v3916, %v3920
      %v3923 = vshrl.u32 %v3580, 16
      %v3925 = vrot.slane %v3923, 4
      %v3926 = vshll.u32 %v3580, 16
      %v3928 = vrot.slane %v3926, 5
      %v3929 = vor.u32 %v3925, %v3928
      %v3930 = vrot.slane %v3929, 4
      %v3932 = vshll.u32 %v3581, 16
      %v3934 = vrot.slane %v3932, 5
      %v3935 = vsel %vm223, %v3930, %v3934
      %v3936 = vshrl.u32 %v3581, 16
      %v3938 = vrot.slane %v3936, 4
      %v3939 = vor.u32 %v3938, %v3934
      %v3940 = vrot.slane %v3939, 4
      %v3942 = vshll.u32 %v3582, 16
      %v3944 = vrot.slane %v3942, 5
      %v3945 = vsel %vm223, %v3940, %v3944
      %v3947 = vshrl.u32 %v3583, 16
      %v3949 = vrot.slane %v3947, 4
      %v3950 = vshll.u32 %v3583, 16
      %v3952 = vrot.slane %v3950, 5
      %v3953 = vor.u32 %v3949, %v3952
      %v3954 = vrot.slane %v3953, 4
      %v3956 = vshll.u32 %v3584, 16
      %v3958 = vrot.slane %v3956, 5
      %v3959 = vsel %vm223, %v3954, %v3958
      %v3960 = vshrl.u32 %v3584, 16
      %v3962 = vrot.slane %v3960, 4
      %v3963 = vor.u32 %v3962, %v3958
      %v3964 = vrot.slane %v3963, 4
      %v3966 = vshll.u32 %v3585, 16
      %v3968 = vrot.slane %v3966, 5
      %v3969 = vsel %vm223, %v3964, %v3968
      %s3970 = scalar_lea.vmem %s1, 14
      %v3971 = vld [vmem:[%s3970] sm:$0x3]
      %v3972 = vunpack.c.l.b16 %v3599
      %v3973 = vunpack.c.l.b16 %v3609
      %v3974 = vunpack.c.l.b16 %v3623
      %v3975 = vunpack.c.l.b16 %v3633
      %v3976 = vunpack.c.l.b16 %v3647
      %v3977 = vunpack.c.l.b16 %v3657
      %v3978 = vunpack.c.l.b16 %v3671
      %v3979 = vunpack.c.l.b16 %v3681
      %v3980 = vunpack.c.l.b16 %v3695
      %v3981 = vunpack.c.l.b16 %v3705
      %v3982 = vunpack.c.l.b16 %v3719
      %v3983 = vunpack.c.l.b16 %v3729
      %v3984 = vunpack.c.l.b16 %v3743
      %v3985 = vunpack.c.l.b16 %v3753
      %v3986 = vunpack.c.l.b16 %v3767
      %v3987 = vunpack.c.l.b16 %v3777
      %v3988 = vunpack.c.l.b16 %v3791
      %v3989 = vunpack.c.l.b16 %v3801
      %v3990 = vunpack.c.l.b16 %v3815
      %v3991 = vunpack.c.l.b16 %v3825
      %v3992 = vunpack.c.l.b16 %v3839
      %v3993 = vunpack.c.l.b16 %v3849
      %v3994 = vunpack.c.l.b16 %v3863
      %v3995 = vunpack.c.l.b16 %v3873
      %v3996 = vunpack.c.l.b16 %v3887
      %v3997 = vunpack.c.l.b16 %v3897
      %v3998 = vunpack.c.l.b16 %v3911
      %v3999 = vunpack.c.l.b16 %v3921
      %v4000 = vunpack.c.l.b16 %v3935
      %v4001 = vunpack.c.l.b16 %v3945
      %v4002 = vunpack.c.l.b16 %v3959
      %v4003 = vunpack.c.l.b16 %v3969
      %v4004 = vpack.c.b16 %v3973, %v3972
      %v4005 = vpack.c.b16 %v3975, %v3974
      %v4006 = vpack.c.b16 %v3977, %v3976
      %v4007 = vpack.c.b16 %v3979, %v3978
      %v4008 = vpack.c.b16 %v3981, %v3980
      %v4009 = vpack.c.b16 %v3983, %v3982
      %v4010 = vpack.c.b16 %v3985, %v3984
      %v4011 = vpack.c.b16 %v3987, %v3986
      %v4012 = vpack.c.b16 %v3989, %v3988
      %v4013 = vpack.c.b16 %v3991, %v3990
      %v4014 = vpack.c.b16 %v3993, %v3992
      %v4015 = vpack.c.b16 %v3995, %v3994
      %v4016 = vpack.c.b16 %v3997, %v3996
      %v4017 = vpack.c.b16 %v3999, %v3998
      %v4018 = vpack.c.b16 %v4001, %v4000
      %v4019 = vpack.c.b16 %v4003, %v4002
      %v4021 = vsel %vm658, %v4004, 0
      %v4024 = vsel %vm658, %v4005, 0
      %v4027 = vsel %vm658, %v4006, 0
      %v4030 = vsel %vm658, %v4007, 0
      %v4033 = vsel %vm658, %v4008, 0
      %v4036 = vsel %vm658, %v4009, 0
      %v4039 = vsel %vm658, %v4010, 0
      %v4042 = vsel %vm658, %v4011, 0
      %v4045 = vsel %vm658, %v4012, 0
      %v4048 = vsel %vm658, %v4013, 0
      %v4051 = vsel %vm658, %v4014, 0
      %v4054 = vsel %vm658, %v4015, 0
      %v4057 = vsel %vm658, %v4016, 0
      %v4060 = vsel %vm658, %v4017, 0
      %v4063 = vsel %vm658, %v4018, 0
      %v4066 = vsel %vm658, %v4019, 0
      %v4069 = vand.u32 %v3971, %v710
      %4071 = vmatprep.subr.bf16.mxu0 0
      %4072 = vmatpush1.bf16.msra.mxu0 %v4069
      %4073 = vmatprep.subr.bf16.mxu0 0
      %4074 = vmatpush1.bf16.msra.mxu0 0
      %4075 = vmatprep.subr.bf16.mxu0 0
      %4076 = vmatpush1.bf16.msra.mxu0 0
      %4077 = vmatprep.subr.bf16.mxu0 0
      %4078 = vmatpush1.bf16.msra.mxu0 0
      %4079 = vmatprep.subr.bf16.mxu0 0
      %4080 = vmatpush1.bf16.msra.mxu0 0
      %4081 = vmatprep.subr.bf16.mxu0 0
      %4082 = vmatpush1.bf16.msra.mxu0 0
      %4083 = vmatprep.subr.bf16.mxu0 0
      %4084 = vmatpush1.bf16.msra.mxu0 0
      %4085 = vmatprep.subr.bf16.mxu0 0
      %4086 = vmatpush1.bf16.msra.mxu0 0
      %4087 = vmatprep.subr.bf16.mxu0 0
      %4088 = vmatpush1.bf16.msra.mxu0 0
      %4089 = vmatprep.subr.bf16.mxu0 0
      %4090 = vmatpush1.bf16.msra.mxu0 0
      %4091 = vmatprep.subr.bf16.mxu0 0
      %4092 = vmatpush1.bf16.msra.mxu0 0
      %4093 = vmatprep.subr.bf16.mxu0 0
      %4094 = vmatpush1.bf16.msra.mxu0 0
      %4095 = vmatprep.subr.bf16.mxu0 0
      %4096 = vmatpush1.bf16.msra.mxu0 0
      %4097 = vmatprep.subr.bf16.mxu0 0
      %4098 = vmatpush1.bf16.msra.mxu0 0
      %4099 = vmatprep.subr.bf16.mxu0 0
      %4100 = vmatpush1.bf16.msra.mxu0 0
      %4101 = vmatprep.subr.bf16.mxu0 0
      %4102 = vmatpush1.bf16.msra.mxu0 0
      %4103 = vmatprep.mubr.bf16.mxu0 0
      %4104 = vmatmul.mubr.bf16.gmra.mrb[0].mxu0 %v4021
      %v4105 = vpop.f32.mrb[0].mxu0
      %v4106 = vadd.f32 0.0, %v4105
      %v4107 = vpop.f32.mrb[0].mxu0
      %v4108 = vpop.f32.mrb[0].mxu0
      %v4109 = vadd.f32 0.0, %v4108
      %v4110 = vpop.f32.mrb[0].mxu0
      %4111 = vmatprep.mubr.bf16.mxu0 0
      %4112 = vmatmul.mubr.bf16.gmra.mrb[0].mxu0 %v4024
      %v4113 = vpop.f32.mrb[0].mxu0
      %v4114 = vadd.f32 0.0, %v4113
      %v4115 = vpop.f32.mrb[0].mxu0
      %v4116 = vpop.f32.mrb[0].mxu0
      %v4117 = vadd.f32 0.0, %v4116
      %v4118 = vpop.f32.mrb[0].mxu0
      %4119 = vmatprep.mubr.bf16.mxu0 0
      %4120 = vmatmul.mubr.bf16.gmra.mrb[0].mxu0 %v4027
      %v4121 = vpop.f32.mrb[0].mxu0
      %v4122 = vadd.f32 0.0, %v4121
      %v4123 = vpop.f32.mrb[0].mxu0
      %v4124 = vpop.f32.mrb[0].mxu0
      %v4125 = vadd.f32 0.0, %v4124
      %v4126 = vpop.f32.mrb[0].mxu0
      %4127 = vmatprep.mubr.bf16.mxu0 0
      %4128 = vmatmul.mubr.bf16.gmra.mrb[0].mxu0 %v4030
      %v4129 = vpop.f32.mrb[0].mxu0
      %v4130 = vadd.f32 0.0, %v4129
      %v4131 = vpop.f32.mrb[0].mxu0
      %v4132 = vpop.f32.mrb[0].mxu0
      %v4133 = vadd.f32 0.0, %v4132
      %v4134 = vpop.f32.mrb[0].mxu0
      %4135 = vmatprep.mubr.bf16.mxu0 0
      %4136 = vmatmul.mubr.bf16.gmra.mrb[0].mxu0 %v4033
      %v4137 = vpop.f32.mrb[0].mxu0
      %v4138 = vadd.f32 0.0, %v4137
      %v4139 = vpop.f32.mrb[0].mxu0
      %v4140 = vpop.f32.mrb[0].mxu0
      %v4141 = vadd.f32 0.0, %v4140
      %v4142 = vpop.f32.mrb[0].mxu0
      %4143 = vmatprep.mubr.bf16.mxu0 0
      %4144 = vmatmul.mubr.bf16.gmra.mrb[0].mxu0 %v4036
      %v4145 = vpop.f32.mrb[0].mxu0
      %v4146 = vadd.f32 0.0, %v4145
      %v4147 = vpop.f32.mrb[0].mxu0
      %v4148 = vpop.f32.mrb[0].mxu0
      %v4149 = vadd.f32 0.0, %v4148
      %v4150 = vpop.f32.mrb[0].mxu0
      %4151 = vmatprep.mubr.bf16.mxu0 0
      %4152 = vmatmul.mubr.bf16.gmra.mrb[0].mxu0 %v4039
      %v4153 = vpop.f32.mrb[0].mxu0
      %v4154 = vadd.f32 0.0, %v4153
      %v4155 = vpop.f32.mrb[0].mxu0
      %v4156 = vpop.f32.mrb[0].mxu0
      %v4157 = vadd.f32 0.0, %v4156
      %v4158 = vpop.f32.mrb[0].mxu0
      %4159 = vmatprep.mubr.bf16.mxu0 0
      %4160 = vmatmul.mubr.bf16.gmra.mrb[0].mxu0 %v4042
      %v4161 = vpop.f32.mrb[0].mxu0
      %v4162 = vadd.f32 0.0, %v4161
      %v4163 = vpop.f32.mrb[0].mxu0
      %v4164 = vpop.f32.mrb[0].mxu0
      %v4165 = vadd.f32 0.0, %v4164
      %v4166 = vpop.f32.mrb[0].mxu0
      %4167 = vmatprep.mubr.bf16.mxu0 0
      %4168 = vmatmul.mubr.bf16.gmra.mrb[0].mxu0 %v4045
      %v4169 = vpop.f32.mrb[0].mxu0
      %v4170 = vadd.f32 0.0, %v4169
      %v4171 = vpop.f32.mrb[0].mxu0
      %v4172 = vpop.f32.mrb[0].mxu0
      %v4173 = vadd.f32 0.0, %v4172
      %v4174 = vpop.f32.mrb[0].mxu0
      %4175 = vmatprep.mubr.bf16.mxu0 0
      %4176 = vmatmul.mubr.bf16.gmra.mrb[0].mxu0 %v4048
      %v4177 = vpop.f32.mrb[0].mxu0
      %v4178 = vadd.f32 0.0, %v4177
      %v4179 = vpop.f32.mrb[0].mxu0
      %v4180 = vpop.f32.mrb[0].mxu0
      %v4181 = vadd.f32 0.0, %v4180
      %v4182 = vpop.f32.mrb[0].mxu0
      %4183 = vmatprep.mubr.bf16.mxu0 0
      %4184 = vmatmul.mubr.bf16.gmra.mrb[0].mxu0 %v4051
      %v4185 = vpop.f32.mrb[0].mxu0
      %v4186 = vadd.f32 0.0, %v4185
      %v4187 = vpop.f32.mrb[0].mxu0
      %v4188 = vpop.f32.mrb[0].mxu0
      %v4189 = vadd.f32 0.0, %v4188
      %v4190 = vpop.f32.mrb[0].mxu0
      %4191 = vmatprep.mubr.bf16.mxu0 0
      %4192 = vmatmul.mubr.bf16.gmra.mrb[0].mxu0 %v4054
      %v4193 = vpop.f32.mrb[0].mxu0
      %v4194 = vadd.f32 0.0, %v4193
      %v4195 = vpop.f32.mrb[0].mxu0
      %v4196 = vpop.f32.mrb[0].mxu0
      %v4197 = vadd.f32 0.0, %v4196
      %v4198 = vpop.f32.mrb[0].mxu0
      %4199 = vmatprep.mubr.bf16.mxu0 0
      %4200 = vmatmul.mubr.bf16.gmra.mrb[0].mxu0 %v4057
      %v4201 = vpop.f32.mrb[0].mxu0
      %v4202 = vadd.f32 0.0, %v4201
      %v4203 = vpop.f32.mrb[0].mxu0
      %v4204 = vpop.f32.mrb[0].mxu0
      %v4205 = vadd.f32 0.0, %v4204
      %v4206 = vpop.f32.mrb[0].mxu0
      %4207 = vmatprep.mubr.bf16.mxu0 0
      %4208 = vmatmul.mubr.bf16.gmra.mrb[0].mxu0 %v4060
      %v4209 = vpop.f32.mrb[0].mxu0
      %v4210 = vadd.f32 0.0, %v4209
      %v4211 = vpop.f32.mrb[0].mxu0
      %v4212 = vpop.f32.mrb[0].mxu0
      %v4213 = vadd.f32 0.0, %v4212
      %v4214 = vpop.f32.mrb[0].mxu0
      %4215 = vmatprep.mubr.bf16.mxu0 0
      %4216 = vmatmul.mubr.bf16.gmra.mrb[0].mxu0 %v4063
      %v4217 = vpop.f32.mrb[0].mxu0
      %v4218 = vadd.f32 0.0, %v4217
      %v4219 = vpop.f32.mrb[0].mxu0
      %v4220 = vpop.f32.mrb[0].mxu0
      %v4221 = vadd.f32 0.0, %v4220
      %v4222 = vpop.f32.mrb[0].mxu0
      %4223 = vmatprep.mubr.bf16.mxu0 0
      %4224 = vmatmul.mubr.bf16.gmra.mrb[0].mxu0 %v4066
      %v4225 = vpop.f32.mrb[0].mxu0
      %v4226 = vadd.f32 0.0, %v4225
      %v4227 = vpop.f32.mrb[0].mxu0
      %v4228 = vpop.f32.mrb[0].mxu0
      %v4229 = vadd.f32 0.0, %v4228
      %v4230 = vpop.f32.mrb[0].mxu0
      %4231 = vdwg.mxu0
      %v4232 = vadd.f32 %v3506, %v4106
      %v4233 = vadd.f32 %v3507, %v4109
      %v4234 = vadd.f32 %v3508, %v4114
      %v4235 = vadd.f32 %v3509, %v4117
      %v4236 = vadd.f32 %v3510, %v4122
      %v4237 = vadd.f32 %v3511, %v4125
      %v4238 = vadd.f32 %v3512, %v4130
      %v4239 = vadd.f32 %v3513, %v4133
      %v4240 = vadd.f32 %v3514, %v4138
      %v4241 = vadd.f32 %v3515, %v4141
      %v4242 = vadd.f32 %v3516, %v4146
      %v4243 = vadd.f32 %v3517, %v4149
      %v4244 = vadd.f32 %v3518, %v4154
      %v4245 = vadd.f32 %v3519, %v4157
      %v4246 = vadd.f32 %v3520, %v4162
      %v4247 = vadd.f32 %v3521, %v4165
      %v4248 = vadd.f32 %v3522, %v4170
      %v4249 = vadd.f32 %v3523, %v4173
      %v4250 = vadd.f32 %v3524, %v4178
      %v4251 = vadd.f32 %v3525, %v4181
      %v4252 = vadd.f32 %v3526, %v4186
      %v4253 = vadd.f32 %v3527, %v4189
      %v4254 = vadd.f32 %v3528, %v4194
      %v4255 = vadd.f32 %v3529, %v4197
      %v4256 = vadd.f32 %v3530, %v4202
      %v4257 = vadd.f32 %v3531, %v4205
      %v4258 = vadd.f32 %v3532, %v4210
      %v4259 = vadd.f32 %v3533, %v4213
      %v4260 = vadd.f32 %v3534, %v4218
      %v4261 = vadd.f32 %v3535, %v4221
      %v4262 = vadd.f32 %v3536, %v4226
      %v4263 = vadd.f32 %v3537, %v4229
      %v4264 = vld [vmem:[%s3179] sm:$0xe]
      %v4265 = vld [vmem:[%s3179 + $0xc] sm:$0xe]
      %v4266 = vld [vmem:[%s3179 + $0x18] sm:$0xe]
      %v4267 = vld [vmem:[%s3179 + $0x24] sm:$0xe]
      %v4268 = vld [vmem:[%s3179 + $0x30] sm:$0xe]
      %v4269 = vld [vmem:[%s3179 + $0x3c] sm:$0xe]
      %v4270 = vld [vmem:[%s3179 + $0x48] sm:$0xe]
      %v4271 = vld [vmem:[%s3179 + $0x54] sm:$0xe]
      %v4272 = vld [vmem:[%s3179 + $0x60] sm:$0xe]
      %v4273 = vld [vmem:[%s3179 + $0x6c] sm:$0xe]
      %v4274 = vld [vmem:[%s3179 + $0x78] sm:$0xe]
      %v4275 = vld [vmem:[%s3179 + $0x84] sm:$0xe]
      %v4276 = vld [vmem:[%s3179 + $0x90] sm:$0xe]
      %v4277 = vld [vmem:[%s3179 + $0x9c] sm:$0xe]
      %v4278 = vld [vmem:[%s3179 + $0xa8] sm:$0xe]
      %v4279 = vld [vmem:[%s3179 + $0xb4] sm:$0xe]
      %v4328 = vrot.slane %v4264, 5
      %v4329 = vrot.slane %v4328, 4
      %v4330 = vrot.slane %v3539, 5
      %v4331 = vsel %vm1217, %v4329, %v4330
      %v4332 = vrot.slane %v4330, 4
      %v4333 = vrot.slane %v3540, 5
      %v4334 = vsel %vm1217, %v4332, %v4333
      %v4335 = vrot.slane %v4265, 5
      %v4336 = vrot.slane %v4335, 4
      %v4337 = vrot.slane %v3542, 5
      %v4338 = vsel %vm1217, %v4336, %v4337
      %v4339 = vrot.slane %v4337, 4
      %v4340 = vrot.slane %v3543, 5
      %v4341 = vsel %vm1217, %v4339, %v4340
      %v4342 = vrot.slane %v4266, 5
      %v4343 = vrot.slane %v4342, 4
      %v4344 = vrot.slane %v3545, 5
      %v4345 = vsel %vm1217, %v4343, %v4344
      %v4346 = vrot.slane %v4344, 4
      %v4347 = vrot.slane %v3546, 5
      %v4348 = vsel %vm1217, %v4346, %v4347
      %v4349 = vrot.slane %v4267, 5
      %v4350 = vrot.slane %v4349, 4
      %v4351 = vrot.slane %v3548, 5
      %v4352 = vsel %vm1217, %v4350, %v4351
      %v4353 = vrot.slane %v4351, 4
      %v4354 = vrot.slane %v3549, 5
      %v4355 = vsel %vm1217, %v4353, %v4354
      %v4356 = vrot.slane %v4268, 5
      %v4357 = vrot.slane %v4356, 4
      %v4358 = vrot.slane %v3551, 5
      %v4359 = vsel %vm1217, %v4357, %v4358
      %v4360 = vrot.slane %v4358, 4
      %v4361 = vrot.slane %v3552, 5
      %v4362 = vsel %vm1217, %v4360, %v4361
      %v4363 = vrot.slane %v4269, 5
      %v4364 = vrot.slane %v4363, 4
      %v4365 = vrot.slane %v3554, 5
      %v4366 = vsel %vm1217, %v4364, %v4365
      %v4367 = vrot.slane %v4365, 4
      %v4368 = vrot.slane %v3555, 5
      %v4369 = vsel %vm1217, %v4367, %v4368
      %v4370 = vrot.slane %v4270, 5
      %v4371 = vrot.slane %v4370, 4
      %v4372 = vrot.slane %v3557, 5
      %v4373 = vsel %vm1217, %v4371, %v4372
      %v4374 = vrot.slane %v4372, 4
      %v4375 = vrot.slane %v3558, 5
      %v4376 = vsel %vm1217, %v4374, %v4375
      %v4377 = vrot.slane %v4271, 5
      %v4378 = vrot.slane %v4377, 4
      %v4379 = vrot.slane %v3560, 5
      %v4380 = vsel %vm1217, %v4378, %v4379
      %v4381 = vrot.slane %v4379, 4
      %v4382 = vrot.slane %v3561, 5
      %v4383 = vsel %vm1217, %v4381, %v4382
      %v4384 = vrot.slane %v4272, 5
      %v4385 = vrot.slane %v4384, 4
      %v4386 = vrot.slane %v3563, 5
      %v4387 = vsel %vm1217, %v4385, %v4386
      %v4388 = vrot.slane %v4386, 4
      %v4389 = vrot.slane %v3564, 5
      %v4390 = vsel %vm1217, %v4388, %v4389
      %v4391 = vrot.slane %v4273, 5
      %v4392 = vrot.slane %v4391, 4
      %v4393 = vrot.slane %v3566, 5
      %v4394 = vsel %vm1217, %v4392, %v4393
      %v4395 = vrot.slane %v4393, 4
      %v4396 = vrot.slane %v3567, 5
      %v4397 = vsel %vm1217, %v4395, %v4396
      %v4398 = vrot.slane %v4274, 5
      %v4399 = vrot.slane %v4398, 4
      %v4400 = vrot.slane %v3569, 5
      %v4401 = vsel %vm1217, %v4399, %v4400
      %v4402 = vrot.slane %v4400, 4
      %v4403 = vrot.slane %v3570, 5
      %v4404 = vsel %vm1217, %v4402, %v4403
      %v4405 = vrot.slane %v4275, 5
      %v4406 = vrot.slane %v4405, 4
      %v4407 = vrot.slane %v3572, 5
      %v4408 = vsel %vm1217, %v4406, %v4407
      %v4409 = vrot.slane %v4407, 4
      %v4410 = vrot.slane %v3573, 5
      %v4411 = vsel %vm1217, %v4409, %v4410
      %v4412 = vrot.slane %v4276, 5
      %v4413 = vrot.slane %v4412, 4
      %v4414 = vrot.slane %v3575, 5
      %v4415 = vsel %vm1217, %v4413, %v4414
      %v4416 = vrot.slane %v4414, 4
      %v4417 = vrot.slane %v3576, 5
      %v4418 = vsel %vm1217, %v4416, %v4417
      %v4419 = vrot.slane %v4277, 5
      %v4420 = vrot.slane %v4419, 4
      %v4421 = vrot.slane %v3578, 5
      %v4422 = vsel %vm1217, %v4420, %v4421
      %v4423 = vrot.slane %v4421, 4
      %v4424 = vrot.slane %v3579, 5
      %v4425 = vsel %vm1217, %v4423, %v4424
      %v4426 = vrot.slane %v4278, 5
      %v4427 = vrot.slane %v4426, 4
      %v4428 = vrot.slane %v3581, 5
      %v4429 = vsel %vm1217, %v4427, %v4428
      %v4430 = vrot.slane %v4428, 4
      %v4431 = vrot.slane %v3582, 5
      %v4432 = vsel %vm1217, %v4430, %v4431
      %v4433 = vrot.slane %v4279, 5
      %v4434 = vrot.slane %v4433, 4
      %v4435 = vrot.slane %v3584, 5
      %v4436 = vsel %vm1217, %v4434, %v4435
      %v4437 = vrot.slane %v4435, 4
      %v4438 = vrot.slane %v3585, 5
      %v4439 = vsel %vm1217, %v4437, %v4438
      %s4440 = scalar_lea.vmem %s1, 16
      %v4441 = vld [vmem:[%s4440] sm:$0x3]
      %v4442 = vunpack.c.l.b16 %v4331
      %v4443 = vunpack.c.l.b16 %v4334
      %v4444 = vunpack.c.l.b16 %v4338
      %v4445 = vunpack.c.l.b16 %v4341
      %v4446 = vunpack.c.l.b16 %v4345
      %v4447 = vunpack.c.l.b16 %v4348
      %v4448 = vunpack.c.l.b16 %v4352
      %v4449 = vunpack.c.l.b16 %v4355
      %v4450 = vunpack.c.l.b16 %v4359
      %v4451 = vunpack.c.l.b16 %v4362
      %v4452 = vunpack.c.l.b16 %v4366
      %v4453 = vunpack.c.l.b16 %v4369
      %v4454 = vunpack.c.l.b16 %v4373
      %v4455 = vunpack.c.l.b16 %v4376
      %v4456 = vunpack.c.l.b16 %v4380
      %v4457 = vunpack.c.l.b16 %v4383
      %v4458 = vunpack.c.l.b16 %v4387
      %v4459 = vunpack.c.l.b16 %v4390
      %v4460 = vunpack.c.l.b16 %v4394
      %v4461 = vunpack.c.l.b16 %v4397
      %v4462 = vunpack.c.l.b16 %v4401
      %v4463 = vunpack.c.l.b16 %v4404
      %v4464 = vunpack.c.l.b16 %v4408
      %v4465 = vunpack.c.l.b16 %v4411
      %v4466 = vunpack.c.l.b16 %v4415
      %v4467 = vunpack.c.l.b16 %v4418
      %v4468 = vunpack.c.l.b16 %v4422
      %v4469 = vunpack.c.l.b16 %v4425
      %v4470 = vunpack.c.l.b16 %v4429
      %v4471 = vunpack.c.l.b16 %v4432
      %v4472 = vunpack.c.l.b16 %v4436
      %v4473 = vunpack.c.l.b16 %v4439
      %v4474 = vpack.c.b16 %v4443, %v4442
      %v4475 = vpack.c.b16 %v4445, %v4444
      %v4476 = vpack.c.b16 %v4447, %v4446
      %v4477 = vpack.c.b16 %v4449, %v4448
      %v4478 = vpack.c.b16 %v4451, %v4450
      %v4479 = vpack.c.b16 %v4453, %v4452
      %v4480 = vpack.c.b16 %v4455, %v4454
      %v4481 = vpack.c.b16 %v4457, %v4456
      %v4482 = vpack.c.b16 %v4459, %v4458
      %v4483 = vpack.c.b16 %v4461, %v4460
      %v4484 = vpack.c.b16 %v4463, %v4462
      %v4485 = vpack.c.b16 %v4465, %v4464
      %v4486 = vpack.c.b16 %v4467, %v4466
      %v4487 = vpack.c.b16 %v4469, %v4468
      %v4488 = vpack.c.b16 %v4471, %v4470
      %v4489 = vpack.c.b16 %v4473, %v4472
      %v4491 = vsel %vm658, %v4474, 0
      %v4494 = vsel %vm658, %v4475, 0
      %v4497 = vsel %vm658, %v4476, 0
      %v4500 = vsel %vm658, %v4477, 0
      %v4503 = vsel %vm658, %v4478, 0
      %v4506 = vsel %vm658, %v4479, 0
      %v4509 = vsel %vm658, %v4480, 0
      %v4512 = vsel %vm658, %v4481, 0
      %v4515 = vsel %vm658, %v4482, 0
      %v4518 = vsel %vm658, %v4483, 0
      %v4521 = vsel %vm658, %v4484, 0
      %v4524 = vsel %vm658, %v4485, 0
      %v4527 = vsel %vm658, %v4486, 0
      %v4530 = vsel %vm658, %v4487, 0
      %v4533 = vsel %vm658, %v4488, 0
      %v4536 = vsel %vm658, %v4489, 0
      %v4539 = vand.u32 %v4441, %v710
      %4541 = vmatprep.subr.bf16.mxu0 0
      %4542 = vmatpush1.bf16.msra.mxu0 %v4539
      %4543 = vmatprep.subr.bf16.mxu0 0
      %4544 = vmatpush1.bf16.msra.mxu0 0
      %4545 = vmatprep.subr.bf16.mxu0 0
      %4546 = vmatpush1.bf16.msra.mxu0 0
      %4547 = vmatprep.subr.bf16.mxu0 0
      %4548 = vmatpush1.bf16.msra.mxu0 0
      %4549 = vmatprep.subr.bf16.mxu0 0
      %4550 = vmatpush1.bf16.msra.mxu0 0
      %4551 = vmatprep.subr.bf16.mxu0 0
      %4552 = vmatpush1.bf16.msra.mxu0 0
      %4553 = vmatprep.subr.bf16.mxu0 0
      %4554 = vmatpush1.bf16.msra.mxu0 0
      %4555 = vmatprep.subr.bf16.mxu0 0
      %4556 = vmatpush1.bf16.msra.mxu0 0
      %4557 = vmatprep.subr.bf16.mxu0 0
      %4558 = vmatpush1.bf16.msra.mxu0 0
      %4559 = vmatprep.subr.bf16.mxu0 0
      %4560 = vmatpush1.bf16.msra.mxu0 0
      %4561 = vmatprep.subr.bf16.mxu0 0
      %4562 = vmatpush1.bf16.msra.mxu0 0
      %4563 = vmatprep.subr.bf16.mxu0 0
      %4564 = vmatpush1.bf16.msra.mxu0 0
      %4565 = vmatprep.subr.bf16.mxu0 0
      %4566 = vmatpush1.bf16.msra.mxu0 0
      %4567 = vmatprep.subr.bf16.mxu0 0
      %4568 = vmatpush1.bf16.msra.mxu0 0
      %4569 = vmatprep.subr.bf16.mxu0 0
      %4570 = vmatpush1.bf16.msra.mxu0 0
      %4571 = vmatprep.subr.bf16.mxu0 0
      %4572 = vmatpush1.bf16.msra.mxu0 0
      %4573 = vmatprep.mubr.bf16.mxu0 0
      %4574 = vmatmul.mubr.bf16.gmra.mrb[0].mxu0 %v4491
      %v4575 = vpop.f32.mrb[0].mxu0
      %v4576 = vadd.f32 0.0, %v4575
      %v4577 = vpop.f32.mrb[0].mxu0
      %v4578 = vpop.f32.mrb[0].mxu0
      %v4579 = vadd.f32 0.0, %v4578
      %v4580 = vpop.f32.mrb[0].mxu0
      %4581 = vmatprep.mubr.bf16.mxu0 0
      %4582 = vmatmul.mubr.bf16.gmra.mrb[0].mxu0 %v4494
      %v4583 = vpop.f32.mrb[0].mxu0
      %v4584 = vadd.f32 0.0, %v4583
      %v4585 = vpop.f32.mrb[0].mxu0
      %v4586 = vpop.f32.mrb[0].mxu0
      %v4587 = vadd.f32 0.0, %v4586
      %v4588 = vpop.f32.mrb[0].mxu0
      %4589 = vmatprep.mubr.bf16.mxu0 0
      %4590 = vmatmul.mubr.bf16.gmra.mrb[0].mxu0 %v4497
      %v4591 = vpop.f32.mrb[0].mxu0
      %v4592 = vadd.f32 0.0, %v4591
      %v4593 = vpop.f32.mrb[0].mxu0
      %v4594 = vpop.f32.mrb[0].mxu0
      %v4595 = vadd.f32 0.0, %v4594
      %v4596 = vpop.f32.mrb[0].mxu0
      %4597 = vmatprep.mubr.bf16.mxu0 0
      %4598 = vmatmul.mubr.bf16.gmra.mrb[0].mxu0 %v4500
      %v4599 = vpop.f32.mrb[0].mxu0
      %v4600 = vadd.f32 0.0, %v4599
      %v4601 = vpop.f32.mrb[0].mxu0
      %v4602 = vpop.f32.mrb[0].mxu0
      %v4603 = vadd.f32 0.0, %v4602
      %v4604 = vpop.f32.mrb[0].mxu0
      %4605 = vmatprep.mubr.bf16.mxu0 0
      %4606 = vmatmul.mubr.bf16.gmra.mrb[0].mxu0 %v4503
      %v4607 = vpop.f32.mrb[0].mxu0
      %v4608 = vadd.f32 0.0, %v4607
      %v4609 = vpop.f32.mrb[0].mxu0
      %v4610 = vpop.f32.mrb[0].mxu0
      %v4611 = vadd.f32 0.0, %v4610
      %v4612 = vpop.f32.mrb[0].mxu0
      %4613 = vmatprep.mubr.bf16.mxu0 0
      %4614 = vmatmul.mubr.bf16.gmra.mrb[0].mxu0 %v4506
      %v4615 = vpop.f32.mrb[0].mxu0
      %v4616 = vadd.f32 0.0, %v4615
      %v4617 = vpop.f32.mrb[0].mxu0
      %v4618 = vpop.f32.mrb[0].mxu0
      %v4619 = vadd.f32 0.0, %v4618
      %v4620 = vpop.f32.mrb[0].mxu0
      %4621 = vmatprep.mubr.bf16.mxu0 0
      %4622 = vmatmul.mubr.bf16.gmra.mrb[0].mxu0 %v4509
      %v4623 = vpop.f32.mrb[0].mxu0
      %v4624 = vadd.f32 0.0, %v4623
      %v4625 = vpop.f32.mrb[0].mxu0
      %v4626 = vpop.f32.mrb[0].mxu0
      %v4627 = vadd.f32 0.0, %v4626
      %v4628 = vpop.f32.mrb[0].mxu0
      %4629 = vmatprep.mubr.bf16.mxu0 0
      %4630 = vmatmul.mubr.bf16.gmra.mrb[0].mxu0 %v4512
      %v4631 = vpop.f32.mrb[0].mxu0
      %v4632 = vadd.f32 0.0, %v4631
      %v4633 = vpop.f32.mrb[0].mxu0
      %v4634 = vpop.f32.mrb[0].mxu0
      %v4635 = vadd.f32 0.0, %v4634
      %v4636 = vpop.f32.mrb[0].mxu0
      %4637 = vmatprep.mubr.bf16.mxu0 0
      %4638 = vmatmul.mubr.bf16.gmra.mrb[0].mxu0 %v4515
      %v4639 = vpop.f32.mrb[0].mxu0
      %v4640 = vadd.f32 0.0, %v4639
      %v4641 = vpop.f32.mrb[0].mxu0
      %v4642 = vpop.f32.mrb[0].mxu0
      %v4643 = vadd.f32 0.0, %v4642
      %v4644 = vpop.f32.mrb[0].mxu0
      %4645 = vmatprep.mubr.bf16.mxu0 0
      %4646 = vmatmul.mubr.bf16.gmra.mrb[0].mxu0 %v4518
      %v4647 = vpop.f32.mrb[0].mxu0
      %v4648 = vadd.f32 0.0, %v4647
      %v4649 = vpop.f32.mrb[0].mxu0
      %v4650 = vpop.f32.mrb[0].mxu0
      %v4651 = vadd.f32 0.0, %v4650
      %v4652 = vpop.f32.mrb[0].mxu0
      %4653 = vmatprep.mubr.bf16.mxu0 0
      %4654 = vmatmul.mubr.bf16.gmra.mrb[0].mxu0 %v4521
      %v4655 = vpop.f32.mrb[0].mxu0
      %v4656 = vadd.f32 0.0, %v4655
      %v4657 = vpop.f32.mrb[0].mxu0
      %v4658 = vpop.f32.mrb[0].mxu0
      %v4659 = vadd.f32 0.0, %v4658
      %v4660 = vpop.f32.mrb[0].mxu0
      %4661 = vmatprep.mubr.bf16.mxu0 0
      %4662 = vmatmul.mubr.bf16.gmra.mrb[0].mxu0 %v4524
      %v4663 = vpop.f32.mrb[0].mxu0
      %v4664 = vadd.f32 0.0, %v4663
      %v4665 = vpop.f32.mrb[0].mxu0
      %v4666 = vpop.f32.mrb[0].mxu0
      %v4667 = vadd.f32 0.0, %v4666
      %v4668 = vpop.f32.mrb[0].mxu0
      %4669 = vmatprep.mubr.bf16.mxu0 0
      %4670 = vmatmul.mubr.bf16.gmra.mrb[0].mxu0 %v4527
      %v4671 = vpop.f32.mrb[0].mxu0
      %v4672 = vadd.f32 0.0, %v4671
      %v4673 = vpop.f32.mrb[0].mxu0
      %v4674 = vpop.f32.mrb[0].mxu0
      %v4675 = vadd.f32 0.0, %v4674
      %v4676 = vpop.f32.mrb[0].mxu0
      %4677 = vmatprep.mubr.bf16.mxu0 0
      %4678 = vmatmul.mubr.bf16.gmra.mrb[0].mxu0 %v4530
      %v4679 = vpop.f32.mrb[0].mxu0
      %v4680 = vadd.f32 0.0, %v4679
      %v4681 = vpop.f32.mrb[0].mxu0
      %v4682 = vpop.f32.mrb[0].mxu0
      %v4683 = vadd.f32 0.0, %v4682
      %v4684 = vpop.f32.mrb[0].mxu0
      %4685 = vmatprep.mubr.bf16.mxu0 0
      %4686 = vmatmul.mubr.bf16.gmra.mrb[0].mxu0 %v4533
      %v4687 = vpop.f32.mrb[0].mxu0
      %v4688 = vadd.f32 0.0, %v4687
      %v4689 = vpop.f32.mrb[0].mxu0
      %v4690 = vpop.f32.mrb[0].mxu0
      %v4691 = vadd.f32 0.0, %v4690
      %v4692 = vpop.f32.mrb[0].mxu0
      %4693 = vmatprep.mubr.bf16.mxu0 0
      %4694 = vmatmul.mubr.bf16.gmra.mrb[0].mxu0 %v4536
      %v4695 = vpop.f32.mrb[0].mxu0
      %v4696 = vadd.f32 0.0, %v4695
      %v4697 = vpop.f32.mrb[0].mxu0
      %v4698 = vpop.f32.mrb[0].mxu0
      %v4699 = vadd.f32 0.0, %v4698
      %v4700 = vpop.f32.mrb[0].mxu0
      %4701 = vdwg.mxu0
      %v4702 = vadd.f32 %v4232, %v4576
      %v4703 = vadd.f32 %v4233, %v4579
      %v4704 = vadd.f32 %v4234, %v4584
      %v4705 = vadd.f32 %v4235, %v4587
      %v4706 = vadd.f32 %v4236, %v4592
      %v4707 = vadd.f32 %v4237, %v4595
      %v4708 = vadd.f32 %v4238, %v4600
      %v4709 = vadd.f32 %v4239, %v4603
      %v4710 = vadd.f32 %v4240, %v4608
      %v4711 = vadd.f32 %v4241, %v4611
      %v4712 = vadd.f32 %v4242, %v4616
      %v4713 = vadd.f32 %v4243, %v4619
      %v4714 = vadd.f32 %v4244, %v4624
      %v4715 = vadd.f32 %v4245, %v4627
      %v4716 = vadd.f32 %v4246, %v4632
      %v4717 = vadd.f32 %v4247, %v4635
      %v4718 = vadd.f32 %v4248, %v4640
      %v4719 = vadd.f32 %v4249, %v4643
      %v4720 = vadd.f32 %v4250, %v4648
      %v4721 = vadd.f32 %v4251, %v4651
      %v4722 = vadd.f32 %v4252, %v4656
      %v4723 = vadd.f32 %v4253, %v4659
      %v4724 = vadd.f32 %v4254, %v4664
      %v4725 = vadd.f32 %v4255, %v4667
      %v4726 = vadd.f32 %v4256, %v4672
      %v4727 = vadd.f32 %v4257, %v4675
      %v4728 = vadd.f32 %v4258, %v4680
      %v4729 = vadd.f32 %v4259, %v4683
      %v4730 = vadd.f32 %v4260, %v4688
      %v4731 = vadd.f32 %v4261, %v4691
      %v4732 = vadd.f32 %v4262, %v4696
      %v4733 = vadd.f32 %v4263, %v4699
      %v4734 = vld [vmem:[%s2] sm:$0x1]
      %v4736 = vlaneseq
      %v4737 = vshrl.u32 %v4736, 7
      %v4738 = vsub.s32 0, %v4737
      %v4739 = vrot.slane %v4734, %v4738
      %v4741 = vadd.f32 %v4702, %v4739
      %v4742 = vadd.f32 %v4703, %v4739
      %v4743 = vadd.f32 %v4704, %v4739
      %v4744 = vadd.f32 %v4705, %v4739
      %v4745 = vadd.f32 %v4706, %v4739
      %v4746 = vadd.f32 %v4707, %v4739
      %v4747 = vadd.f32 %v4708, %v4739
      %v4748 = vadd.f32 %v4709, %v4739
      %v4749 = vadd.f32 %v4710, %v4739
      %v4750 = vadd.f32 %v4711, %v4739
      %v4751 = vadd.f32 %v4712, %v4739
      %v4752 = vadd.f32 %v4713, %v4739
      %v4753 = vadd.f32 %v4714, %v4739
      %v4754 = vadd.f32 %v4715, %v4739
      %v4755 = vadd.f32 %v4716, %v4739
      %v4756 = vadd.f32 %v4717, %v4739
      %v4757 = vadd.f32 %v4718, %v4739
      %v4758 = vadd.f32 %v4719, %v4739
      %v4759 = vadd.f32 %v4720, %v4739
      %v4760 = vadd.f32 %v4721, %v4739
      %v4761 = vadd.f32 %v4722, %v4739
      %v4762 = vadd.f32 %v4723, %v4739
      %v4763 = vadd.f32 %v4724, %v4739
      %v4764 = vadd.f32 %v4725, %v4739
      %v4765 = vadd.f32 %v4726, %v4739
      %v4766 = vadd.f32 %v4727, %v4739
      %v4767 = vadd.f32 %v4728, %v4739
      %v4768 = vadd.f32 %v4729, %v4739
      %v4769 = vadd.f32 %v4730, %v4739
      %v4770 = vadd.f32 %v4731, %v4739
      %v4771 = vadd.f32 %v4732, %v4739
      %v4772 = vadd.f32 %v4733, %v4739
      %v4773 = vsub.f32 0.0, %v4741
      %v4774 = vsub.f32 0.0, %v4742
      %v4775 = vsub.f32 0.0, %v4743
      %v4776 = vsub.f32 0.0, %v4744
      %v4777 = vsub.f32 0.0, %v4745
      %v4778 = vsub.f32 0.0, %v4746
      %v4779 = vsub.f32 0.0, %v4747
      %v4780 = vsub.f32 0.0, %v4748
      %v4781 = vsub.f32 0.0, %v4749
      %v4782 = vsub.f32 0.0, %v4750
      %v4783 = vsub.f32 0.0, %v4751
      %v4784 = vsub.f32 0.0, %v4752
      %v4785 = vsub.f32 0.0, %v4753
      %v4786 = vsub.f32 0.0, %v4754
      %v4787 = vsub.f32 0.0, %v4755
      %v4788 = vsub.f32 0.0, %v4756
      %v4789 = vsub.f32 0.0, %v4757
      %v4790 = vsub.f32 0.0, %v4758
      %v4791 = vsub.f32 0.0, %v4759
      %v4792 = vsub.f32 0.0, %v4760
      %v4793 = vsub.f32 0.0, %v4761
      %v4794 = vsub.f32 0.0, %v4762
      %v4795 = vsub.f32 0.0, %v4763
      %v4796 = vsub.f32 0.0, %v4764
      %v4797 = vsub.f32 0.0, %v4765
      %v4798 = vsub.f32 0.0, %v4766
      %v4799 = vsub.f32 0.0, %v4767
      %v4800 = vsub.f32 0.0, %v4768
      %v4801 = vsub.f32 0.0, %v4769
      %v4802 = vsub.f32 0.0, %v4770
      %v4803 = vsub.f32 0.0, %v4771
      %v4804 = vsub.f32 0.0, %v4772
      %v4805 = vmul.f32 %v4773, 1.442695
      %v4806 = vpow.pop %v4805
      %v4807 = vmul.f32 %v4774, 1.442695
      %v4808 = vpow.pop %v4807
      %v4809 = vmul.f32 %v4775, 1.442695
      %v4810 = vpow.pop %v4809
      %v4811 = vmul.f32 %v4776, 1.442695
      %v4812 = vpow.pop %v4811
      %v4813 = vmul.f32 %v4777, 1.442695
      %v4814 = vpow.pop %v4813
      %v4815 = vmul.f32 %v4778, 1.442695
      %v4816 = vpow.pop %v4815
      %v4817 = vmul.f32 %v4779, 1.442695
      %v4818 = vpow.pop %v4817
      %v4819 = vmul.f32 %v4780, 1.442695
      %v4820 = vpow.pop %v4819
      %v4821 = vmul.f32 %v4781, 1.442695
      %v4822 = vpow.pop %v4821
      %v4823 = vmul.f32 %v4782, 1.442695
      %v4824 = vpow.pop %v4823
      %v4825 = vmul.f32 %v4783, 1.442695
      %v4826 = vpow.pop %v4825
      %v4827 = vmul.f32 %v4784, 1.442695
      %v4828 = vpow.pop %v4827
      %v4829 = vmul.f32 %v4785, 1.442695
      %v4830 = vpow.pop %v4829
      %v4831 = vmul.f32 %v4786, 1.442695
      %v4832 = vpow.pop %v4831
      %v4833 = vmul.f32 %v4787, 1.442695
      %v4834 = vpow.pop %v4833
      %v4835 = vmul.f32 %v4788, 1.442695
      %v4836 = vpow.pop %v4835
      %v4837 = vmul.f32 %v4789, 1.442695
      %v4838 = vpow.pop %v4837
      %v4839 = vmul.f32 %v4790, 1.442695
      %v4840 = vpow.pop %v4839
      %v4841 = vmul.f32 %v4791, 1.442695
      %v4842 = vpow.pop %v4841
      %v4843 = vmul.f32 %v4792, 1.442695
      %v4844 = vpow.pop %v4843
      %v4845 = vmul.f32 %v4793, 1.442695
      %v4846 = vpow.pop %v4845
      %v4847 = vmul.f32 %v4794, 1.442695
      %v4848 = vpow.pop %v4847
      %v4849 = vmul.f32 %v4795, 1.442695
      %v4850 = vpow.pop %v4849
      %v4851 = vmul.f32 %v4796, 1.442695
      %v4852 = vpow.pop %v4851
      %v4853 = vmul.f32 %v4797, 1.442695
      %v4854 = vpow.pop %v4853
      %v4855 = vmul.f32 %v4798, 1.442695
      %v4856 = vpow.pop %v4855
      %v4857 = vmul.f32 %v4799, 1.442695
      %v4858 = vpow.pop %v4857
      %v4859 = vmul.f32 %v4800, 1.442695
      %v4860 = vpow.pop %v4859
      %v4861 = vmul.f32 %v4801, 1.442695
      %v4862 = vpow.pop %v4861
      %v4863 = vmul.f32 %v4802, 1.442695
      %v4864 = vpow.pop %v4863
      %v4865 = vmul.f32 %v4803, 1.442695
      %v4866 = vpow.pop %v4865
      %v4867 = vmul.f32 %v4804, 1.442695
      %v4868 = vpow.pop %v4867
      %v4869 = vadd.f32 %v4806, 1.0
      %v4870 = vadd.f32 %v4808, 1.0
      %v4871 = vadd.f32 %v4810, 1.0
      %v4872 = vadd.f32 %v4812, 1.0
      %v4873 = vadd.f32 %v4814, 1.0
      %v4874 = vadd.f32 %v4816, 1.0
      %v4875 = vadd.f32 %v4818, 1.0
      %v4876 = vadd.f32 %v4820, 1.0
      %v4877 = vadd.f32 %v4822, 1.0
      %v4878 = vadd.f32 %v4824, 1.0
      %v4879 = vadd.f32 %v4826, 1.0
      %v4880 = vadd.f32 %v4828, 1.0
      %v4881 = vadd.f32 %v4830, 1.0
      %v4882 = vadd.f32 %v4832, 1.0
      %v4883 = vadd.f32 %v4834, 1.0
      %v4884 = vadd.f32 %v4836, 1.0
      %v4885 = vadd.f32 %v4838, 1.0
      %v4886 = vadd.f32 %v4840, 1.0
      %v4887 = vadd.f32 %v4842, 1.0
      %v4888 = vadd.f32 %v4844, 1.0
      %v4889 = vadd.f32 %v4846, 1.0
      %v4890 = vadd.f32 %v4848, 1.0
      %v4891 = vadd.f32 %v4850, 1.0
      %v4892 = vadd.f32 %v4852, 1.0
      %v4893 = vadd.f32 %v4854, 1.0
      %v4894 = vadd.f32 %v4856, 1.0
      %v4895 = vadd.f32 %v4858, 1.0
      %v4896 = vadd.f32 %v4860, 1.0
      %v4897 = vadd.f32 %v4862, 1.0
      %v4898 = vadd.f32 %v4864, 1.0
      %v4899 = vadd.f32 %v4866, 1.0
      %v4900 = vadd.f32 %v4868, 1.0
      %v4901 = vrcp.pop %v4869
      %v4902 = vrcp.pop %v4870
      %v4903 = vrcp.pop %v4871
      %v4904 = vrcp.pop %v4872
      %v4905 = vrcp.pop %v4873
      %v4906 = vrcp.pop %v4874
      %v4907 = vrcp.pop %v4875
      %v4908 = vrcp.pop %v4876
      %v4909 = vrcp.pop %v4877
      %v4910 = vrcp.pop %v4878
      %v4911 = vrcp.pop %v4879
      %v4912 = vrcp.pop %v4880
      %v4913 = vrcp.pop %v4881
      %v4914 = vrcp.pop %v4882
      %v4915 = vrcp.pop %v4883
      %v4916 = vrcp.pop %v4884
      %v4917 = vrcp.pop %v4885
      %v4918 = vrcp.pop %v4886
      %v4919 = vrcp.pop %v4887
      %v4920 = vrcp.pop %v4888
      %v4921 = vrcp.pop %v4889
      %v4922 = vrcp.pop %v4890
      %v4923 = vrcp.pop %v4891
      %v4924 = vrcp.pop %v4892
      %v4925 = vrcp.pop %v4893
      %v4926 = vrcp.pop %v4894
      %v4927 = vrcp.pop %v4895
      %v4928 = vrcp.pop %v4896
      %v4929 = vrcp.pop %v4897
      %v4930 = vrcp.pop %v4898
      %v4931 = vrcp.pop %v4899
      %v4932 = vrcp.pop %v4900
      %v4933 = vmul.f32 %v4741, %v4901
      %v4934 = vmul.f32 %v4742, %v4902
      %v4935 = vmul.f32 %v4743, %v4903
      %v4936 = vmul.f32 %v4744, %v4904
      %v4937 = vmul.f32 %v4745, %v4905
      %v4938 = vmul.f32 %v4746, %v4906
      %v4939 = vmul.f32 %v4747, %v4907
      %v4940 = vmul.f32 %v4748, %v4908
      %v4941 = vmul.f32 %v4749, %v4909
      %v4942 = vmul.f32 %v4750, %v4910
      %v4943 = vmul.f32 %v4751, %v4911
      %v4944 = vmul.f32 %v4752, %v4912
      %v4945 = vmul.f32 %v4753, %v4913
      %v4946 = vmul.f32 %v4754, %v4914
      %v4947 = vmul.f32 %v4755, %v4915
      %v4948 = vmul.f32 %v4756, %v4916
      %v4949 = vmul.f32 %v4757, %v4917
      %v4950 = vmul.f32 %v4758, %v4918
      %v4951 = vmul.f32 %v4759, %v4919
      %v4952 = vmul.f32 %v4760, %v4920
      %v4953 = vmul.f32 %v4761, %v4921
      %v4954 = vmul.f32 %v4762, %v4922
      %v4955 = vmul.f32 %v4763, %v4923
      %v4956 = vmul.f32 %v4764, %v4924
      %v4957 = vmul.f32 %v4765, %v4925
      %v4958 = vmul.f32 %v4766, %v4926
      %v4959 = vmul.f32 %v4767, %v4927
      %v4960 = vmul.f32 %v4768, %v4928
      %v4961 = vmul.f32 %v4769, %v4929
      %v4962 = vmul.f32 %v4770, %v4930
      %v4963 = vmul.f32 %v4771, %v4931
      %v4964 = vmul.f32 %v4772, %v4932
      %v4965 = vpack.c.bf16 %v4934, %v4933
      %v4966 = vpack.c.bf16 %v4936, %v4935
      %v4967 = vpack.c.bf16 %v4938, %v4937
      %v4968 = vpack.c.bf16 %v4940, %v4939
      %v4969 = vpack.c.bf16 %v4942, %v4941
      %v4970 = vpack.c.bf16 %v4944, %v4943
      %v4971 = vpack.c.bf16 %v4946, %v4945
      %v4972 = vpack.c.bf16 %v4948, %v4947
      %v4973 = vpack.c.bf16 %v4950, %v4949
      %v4974 = vpack.c.bf16 %v4952, %v4951
      %v4975 = vpack.c.bf16 %v4954, %v4953
      %v4976 = vpack.c.bf16 %v4956, %v4955
      %v4977 = vpack.c.bf16 %v4958, %v4957
      %v4978 = vpack.c.bf16 %v4960, %v4959
      %v4979 = vpack.c.bf16 %v4962, %v4961
      %v4980 = vpack.c.bf16 %v4964, %v4963
      %v4997 = vunpack.c.l.b16 %v4965
      %v4998 = vunpack.c.h.b16 %v4965
      %v4999 = vunpack.c.l.b16 %v4966
      %v5000 = vunpack.c.h.b16 %v4966
      %v5001 = vunpack.c.l.b16 %v4967
      %v5002 = vunpack.c.h.b16 %v4967
      %v5003 = vunpack.c.l.b16 %v4968
      %v5004 = vunpack.c.h.b16 %v4968
      %v5005 = vunpack.c.l.b16 %v4969
      %v5006 = vunpack.c.h.b16 %v4969
      %v5007 = vunpack.c.l.b16 %v4970
      %v5008 = vunpack.c.h.b16 %v4970
      %v5009 = vunpack.c.l.b16 %v4971
      %v5010 = vunpack.c.h.b16 %v4971
      %v5011 = vunpack.c.l.b16 %v4972
      %v5012 = vunpack.c.h.b16 %v4972
      %v5013 = vunpack.c.l.b16 %v4973
      %v5014 = vunpack.c.h.b16 %v4973
      %v5015 = vunpack.c.l.b16 %v4974
      %v5016 = vunpack.c.h.b16 %v4974
      %v5017 = vunpack.c.l.b16 %v4975
      %v5018 = vunpack.c.h.b16 %v4975
      %v5019 = vunpack.c.l.b16 %v4976
      %v5020 = vunpack.c.h.b16 %v4976
      %v5021 = vunpack.c.l.b16 %v4977
      %v5022 = vunpack.c.h.b16 %v4977
      %v5023 = vunpack.c.l.b16 %v4978
      %v5024 = vunpack.c.h.b16 %v4978
      %v5025 = vunpack.c.l.b16 %v4979
      %v5026 = vunpack.c.h.b16 %v4979
      %v5027 = vunpack.c.l.b16 %v4980
      %v5028 = vunpack.c.h.b16 %v4980
      %v5029 = vpack.c.b16 %v4997, %v4997
      %v5030 = vpack.c.b16 %v4998, %v4998
      %v5031 = vpack.c.b16 %v4999, %v4999
      %v5032 = vpack.c.b16 %v5000, %v5000
      %v5033 = vpack.c.b16 %v5001, %v5001
      %v5034 = vpack.c.b16 %v5002, %v5002
      %v5035 = vpack.c.b16 %v5003, %v5003
      %v5036 = vpack.c.b16 %v5004, %v5004
      %v5037 = vpack.c.b16 %v5005, %v5005
      %v5038 = vpack.c.b16 %v5006, %v5006
      %v5039 = vpack.c.b16 %v5007, %v5007
      %v5040 = vpack.c.b16 %v5008, %v5008
      %v5041 = vpack.c.b16 %v5009, %v5009
      %v5042 = vpack.c.b16 %v5010, %v5010
      %v5043 = vpack.c.b16 %v5011, %v5011
      %v5044 = vpack.c.b16 %v5012, %v5012
      %v5045 = vpack.c.b16 %v5013, %v5013
      %v5046 = vpack.c.b16 %v5014, %v5014
      %v5047 = vpack.c.b16 %v5015, %v5015
      %v5048 = vpack.c.b16 %v5016, %v5016
      %v5049 = vpack.c.b16 %v5017, %v5017
      %v5050 = vpack.c.b16 %v5018, %v5018
      %v5051 = vpack.c.b16 %v5019, %v5019
      %v5052 = vpack.c.b16 %v5020, %v5020
      %v5053 = vpack.c.b16 %v5021, %v5021
      %v5054 = vpack.c.b16 %v5022, %v5022
      %v5055 = vpack.c.b16 %v5023, %v5023
      %v5056 = vpack.c.b16 %v5024, %v5024
      %v5057 = vpack.c.b16 %v5025, %v5025
      %v5058 = vpack.c.b16 %v5026, %v5026
      %v5059 = vpack.c.b16 %v5027, %v5027
      %v5060 = vpack.c.b16 %v5028, %v5028
      %vm5093 = vcmask 257024
      %5094 = vst.msk [vmem:[%s170] sm:$0xf] %vm5093, %v5029
      %5095 = vst.msk [vmem:[%s170 + $0x4] sm:$0xf] %vm5093, %v5030
      %5096 = vst.msk [vmem:[%s170 + $0x8] sm:$0xf] %vm5093, %v5031
      %5097 = vst.msk [vmem:[%s170 + $0xc] sm:$0xf] %vm5093, %v5032
      %5098 = vst.msk [vmem:[%s170 + $0x10] sm:$0xf] %vm5093, %v5033
      %5099 = vst.msk [vmem:[%s170 + $0x14] sm:$0xf] %vm5093, %v5034
      %5100 = vst.msk [vmem:[%s170 + $0x18] sm:$0xf] %vm5093, %v5035
      %5101 = vst.msk [vmem:[%s170 + $0x1c] sm:$0xf] %vm5093, %v5036
      %5102 = vst.msk [vmem:[%s170 + $0x20] sm:$0xf] %vm5093, %v5037
      %5103 = vst.msk [vmem:[%s170 + $0x24] sm:$0xf] %vm5093, %v5038
      %5104 = vst.msk [vmem:[%s170 + $0x28] sm:$0xf] %vm5093, %v5039
      %5105 = vst.msk [vmem:[%s170 + $0x2c] sm:$0xf] %vm5093, %v5040
      %5106 = vst.msk [vmem:[%s170 + $0x30] sm:$0xf] %vm5093, %v5041
      %5107 = vst.msk [vmem:[%s170 + $0x34] sm:$0xf] %vm5093, %v5042
      %5108 = vst.msk [vmem:[%s170 + $0x38] sm:$0xf] %vm5093, %v5043
      %5109 = vst.msk [vmem:[%s170 + $0x3c] sm:$0xf] %vm5093, %v5044
      %5110 = vst.msk [vmem:[%s170 + $0x40] sm:$0xf] %vm5093, %v5045
      %5111 = vst.msk [vmem:[%s170 + $0x44] sm:$0xf] %vm5093, %v5046
      %5112 = vst.msk [vmem:[%s170 + $0x48] sm:$0xf] %vm5093, %v5047
      %5113 = vst.msk [vmem:[%s170 + $0x4c] sm:$0xf] %vm5093, %v5048
      %5114 = vst.msk [vmem:[%s170 + $0x50] sm:$0xf] %vm5093, %v5049
      %5115 = vst.msk [vmem:[%s170 + $0x54] sm:$0xf] %vm5093, %v5050
      %5116 = vst.msk [vmem:[%s170 + $0x58] sm:$0xf] %vm5093, %v5051
      %5117 = vst.msk [vmem:[%s170 + $0x5c] sm:$0xf] %vm5093, %v5052
      %5118 = vst.msk [vmem:[%s170 + $0x60] sm:$0xf] %vm5093, %v5053
      %5119 = vst.msk [vmem:[%s170 + $0x64] sm:$0xf] %vm5093, %v5054
      %5120 = vst.msk [vmem:[%s170 + $0x68] sm:$0xf] %vm5093, %v5055
      %5121 = vst.msk [vmem:[%s170 + $0x6c] sm:$0xf] %vm5093, %v5056
      %5122 = vst.msk [vmem:[%s170 + $0x70] sm:$0xf] %vm5093, %v5057
      %5123 = vst.msk [vmem:[%s170 + $0x74] sm:$0xf] %vm5093, %v5058
      %5124 = vst.msk [vmem:[%s170 + $0x78] sm:$0xf] %vm5093, %v5059
      %5125 = vst.msk [vmem:[%s170 + $0x7c] sm:$0xf] %vm5093, %v5060
      %p5126 = scmp.lt.s32.totalorder %s14, 1
      %s5127 = scalar_select %p5126, %s14, 1
      %s5128 = smul.addr %s5127, 32
      %s5129 = smul.addr %s5128, 4
      %s5130 = scalar_lea.vmem %s3, %s5129
      // Predicated region
      $region33: #{vae_encode_forward.4} parent=31 // pred_check
        %p5131 = pneg %p100
      $region34: #{vae_encode_forward.4} parent=31 // pred_check_branch
        %5133 = sbr.rel (%p5131) target = $region36
      $region35: #{vae_encode_forward.4} parent=31 // pred_region
        _
      $region36: #{vae_encode_forward.4} parent=31 // pred_fallthru
        _
    $region32: #{vae_encode_forward.4} parent=5 // pred_fallthru
      _
    %p5134 = scmp.le.s32.totalorder 2, %s9
    // Predicated region
    $region37: #{vae_encode_forward.4} parent=5 // pred_check
      %p5135 = pneg %p5134
    $region38: #{vae_encode_forward.4} parent=5 // pred_check_branch
      %5137 = sbr.rel (%p5135) target = $region40
    $region39: #{vae_encode_forward.4} parent=5 // pred_region
      %s5138 = ssub.s32 %s9, 2
      // Predicated region
      $region41: #{vae_encode_forward.4} parent=39 // pred_check
        %p5139 = pneg %p106
      $region42: #{vae_encode_forward.4} parent=39 // pred_check_branch
        %5141 = sbr.rel (%p5139) target = $region44
      $region43: #{vae_encode_forward.4} parent=39 // pred_region
        %p5142 = scmp.lt.s32.totalorder %s15, 1
        %s5143 = scalar_select %p5142, %s15, 1
        %s5144 = smul.addr %s5143, 32
        %s5145 = smul.addr %s5144, 4
        %s5146 = scalar_lea.vmem %s3, %s5145
      $region44: #{vae_encode_forward.4} parent=39 // pred_fallthru
        _
    $region40: #{vae_encode_forward.4} parent=5 // pred_fallthru
      _
  $region6: #{vae_encode_forward.4} parent=0 // loop_footer
    %s13 = sadd.s32 1, %s9
  $region7: #{vae_encode_forward.4} parent=0 // loop_footer_branch
    %8 = sbr.rel target = $region3
  $region8: #{vae_encode_forward.4} parent=0 // loop_exit
    _

</llo_original>
